<compile_context>
chip_gen: v6e
topology: v6e:2x2x1
jax: 0.10.0
libtpu: 0.0.40
codegen_flags: <defaults>
</compile_context>

<pallas_src>
import functools

import numpy as np
import jax
import jax.numpy as jnp
from jax.experimental import pallas as pl
from jax.experimental.pallas import tpu as pltpu

# ----------------------------- static geometry ----------------------------- #

_N, _CIN, _F, _IMG = 2, 3, 8, 64     # batch, image channels, filters, 64x64 input


def _ru(x, m):
    return (x + m - 1) // m * m


# Output spatial size of conv layers 1..4 (layer 5 outputs 1x1).
_OH1, _OH2, _OH3, _OH4 = _IMG // 2, _IMG // 4, _IMG // 8, _IMG // 16
# Pair-group counts of each layer's zero-padded input (pads are 1,1,1,0).
_HG2, _HG3, _HG4, _HG5 = (_OH1 + 2) // 2, (_OH2 + 2) // 2, (_OH3 + 2) // 2, _OH4 // 2
_WGN2, _WGN3, _WGN4, _WGN5 = _HG2 * _N, _HG3 * _N, _HG4 * _N, _HG5 * _N
# Conv output slab widths (columns ordered (oh, input-group-col, batch)).
_MS2, _MS3, _MS4, _MS5 = _OH2 * _WGN2, _OH3 * _WGN3, _OH4 * _WGN4, 128
# Padded lane widths of the grouped activations G2..G5 kept in VMEM.
_MG2P = _ru(max(_HG2 * _HG2 * _N, _WGN2 + _N + _MS2), 128)   # 640
_MG3P = _ru(max(_HG3 * _HG3 * _N, _WGN3 + _N + _MS3), 128)   # 256
_MG4P = _ru(max(_HG4 * _HG4 * _N, _WGN4 + _N + _MS4), 128)   # 128
_MG5P = _ru(max(_HG5 * _HG5 * _N, _WGN5 + _N + _MS5), 128)   # 256
# Valid sample counts for the batch-norm statistics of layers 2..4.
_CNT2, _CNT3, _CNT4 = float(_OH2 * _OH2 * _N), float(_OH3 * _OH3 * _N), float(_OH4 * _OH4 * _N)


# ------------------------------- Pallas kernel ------------------------------ #

def _disc_kernel(p1_ref, v1_ref, w1_ref, b1_ref,
                 w2_ref, ga2_ref, be2_ref, mk2_ref, idx3_ref,
                 w3_ref, ga3_ref, be3_ref, mk3_ref, idx4_ref,
                 w4_ref, ga4_ref, be4_ref, mk4_ref, idx5_ref,
                 w5_ref, b5_ref, out_ref):
    f32, bf16 = jnp.float32, jnp.bfloat16

    def leaky(v):
        return jnp.where(v > 0.0, v, 0.2 * v)

    def conv4(g, w_ref, wgn, span):
        # 4x4/stride-2 conv as four shifted matmuls over the grouped layout.
        acc = None
        for a in range(2):
            for b in range(2):
                off = a * wgn + b * _N
                t = jnp.dot(w_ref[a * 2 + b], g[:, off:off + span],
                            preferred_element_type=f32)
                acc = t if acc is None else acc + t
        return acc                                            # (OC, span) f32

    def bn_leaky(acc, ga_ref, be_ref, mk_ref, count):
        # Training-mode BatchNorm2d (batch stats, biased variance, eps=1e-5)
        # fused with LeakyReLU(0.2).  Two-pass (centered) variance; the slab
        # contains a few junk columns (padding groups) which are masked out.
        # TODO(synk): running-mean/var buffer updates (eval-mode path) are not
        # modeled; this matches BatchNorm2d in train() only.
        mask = mk_ref[...]                                    # (1, span)
        inv = 1.0 / count
        mean = jnp.sum(acc * mask, axis=1, keepdims=True) * inv
        cen = (acc - mean) * mask
        var = jnp.sum(cen * cen, axis=1, keepdims=True) * inv
        scale = ga_ref[...] * jax.lax.rsqrt(var + 1e-5)
        return leaky((acc - mean) * scale + be_ref[...])

    def regroup(act, idx_ref, span, dst_w):
        # Re-pair the conv output for the next layer's grouped layout.  The
        # stride-2 parity gather is done with four tiny one-hot matmuls built
        # in-kernel from precomputed int32 index tables (-1 -> zero column,
        # which also writes the next layer's zero-padding ring exactly).
        src = jax.lax.broadcasted_iota(jnp.int32, (span, dst_w), 0)
        blocks = []
        for ij in range(4):
            sel = jnp.where(src == idx_ref[ij], 1.0, 0.0).astype(bf16)
            blocks.append(jnp.dot(act, sel, preferred_element_type=f32))
        return jnp.concatenate(blocks, axis=0).astype(bf16)   # (4*OC, dst_w)

    # ---- Layer 1: Conv(3->F,4,2,1) + bias + LeakyReLU, emitted directly into
    #      the four parity blocks of layer 2's grouped input G2. ----
    w1, b1 = w1_ref[...], b1_ref[...]
    g2_blocks = []
    for ij in range(4):
        a1 = jnp.dot(w1, p1_ref[ij], preferred_element_type=f32)   # (F, MG2P)
        a1 = leaky(a1 + b1) * v1_ref[ij]       # mask restores the exact-zero ring
        g2_blocks.append(a1)
    g2 = jnp.concatenate(g2_blocks, axis=0).astype(bf16)           # (4F, MG2P)

    # ---- Layers 2..4: Conv(no bias) + BatchNorm(batch stats) + LeakyReLU ----
    acc2 = conv4(g2, w2_ref, _WGN2, _MS2)                          # (2F, MS2)
    act2 = bn_leaky(acc2, ga2_ref, be2_ref, mk2_ref, _CNT2).astype(bf16)
    g3 = regroup(act2, idx3_ref, _MS2, _MG3P)                      # (8F, MG3P)

    acc3 = conv4(g3, w3_ref, _WGN3, _MS3)
    act3 = bn_leaky(acc3, ga3_ref, be3_ref, mk3_ref, _CNT3).astype(bf16)
    g4 = regroup(act3, idx4_ref, _MS3, _MG4P)                      # (16F, MG4P)

    acc4 = conv4(g4, w4_ref, _WGN4, _MS4)
    act4 = bn_leaky(acc4, ga4_ref, be4_ref, mk4_ref, _CNT4).astype(bf16)
    g5 = regroup(act4, idx5_ref, _MS4, _MG5P)                      # (32F, MG5P)

    # ---- Layer 5: Conv(8F->1, 4,2,0) + bias + Sigmoid ----
    acc5 = conv4(g5, w5_ref, _WGN5, _MS5)                          # (8, 128)
    out_ref[...] = jax.nn.sigmoid(acc5 + b5_ref[...])


# --------------------------- static tables (init) --------------------------- #

def _bn_mask(oh, wgn):
    m = np.zeros((1, oh * wgn), np.float32)
    for o in range(oh):
        for w in range(oh):                    # only ow < OW columns are real
            for nn in range(_N):
                m[0, o * wgn + w * _N + nn] = 1.0
    return m


def _regroup_idx(oh_src, wgn_src, pad_next, hg_dst, mgp_dst):
    idx = np.full((4, 1, mgp_dst), -1, np.int32)
    for i in range(2):
        for j in range(2):
            for hg in range(hg_dst):
                for wg in range(hg_dst):
                    oh = 2 * hg + i - pad_next
                    ow = 2 * wg + j - pad_next
                    if 0 <= oh < oh_src and 0 <= ow < oh_src:
                        for nn in range(_N):
                            dst = hg * (hg_dst * _N) + wg * _N + nn
                            idx[i * 2 + j, 0, dst] = oh * wgn_src + ow * _N + nn
    return idx


def _valid_mask_l1():
    v = np.zeros((4, 1, _MG2P), np.float32)
    for i in range(2):
        for j in range(2):
            for hg in range(_HG2):
                for wg in range(_HG2):
                    if 0 <= 2 * hg + i - 1 < _OH1 and 0 <= 2 * wg + j - 1 < _OH1:
                        for nn in range(_N):
                            v[i * 2 + j, 0, hg * _WGN2 + wg * _N + nn] = 1.0
    return v


def init_params(key, img_channels=_CIN, filters=_F):
    """Returns (raw PyTorch-layout params, kernel-ready pre-cast/pre-padded params)."""
    ks = jax.random.split(key, 16)
    ic = [img_channels, filters, 2 * filters, 4 * filters, 8 * filters]
    oc = [filters, 2 * filters, 4 * filters, 8 * filters, 1]
    raw, ki = {}, 0
    for l in range(1, 6):
        raw[f"w{l}"] = 0.05 * jax.random.normal(ks[ki], (oc[l - 1], ic[l - 1], 4, 4),
                                                jnp.float32); ki += 1
        if l in (1, 5):
            raw[f"b{l}"] = 0.05 * jax.random.normal(ks[ki], (oc[l - 1],), jnp.float32); ki += 1
        else:
            raw[f"gamma{l}"] = 1.0 + 0.05 * jax.random.normal(ks[ki], (oc[l - 1],), jnp.float32); ki += 1
            raw[f"beta{l}"] = 0.05 * jax.random.normal(ks[ki], (oc[l - 1],), jnp.float32); ki += 1

    kp = {}
    # Layer 1: plain im2col weight, rows ordered (kh, kw, c) to match P1.
    kp["w1"] = jnp.transpose(raw["w1"], (0, 2, 3, 1)).reshape(oc[0], 16 * ic[0]).astype(jnp.bfloat16)
    kp["b1"] = raw["b1"].reshape(-1, 1).astype(jnp.float32)
    # Layers 2..5: four (a,b) tap matrices with columns ordered (u, v, c):
    #   W[a*2+b, oc, (u*2+v)*C + c] = W_torch[oc, c, 2a+u, 2b+v]
    for l in range(2, 6):
        w = jnp.transpose(raw[f"w{l}"], (0, 2, 3, 1))              # (oc, kh, kw, ic)
        w = w.reshape(oc[l - 1], 2, 2, 2, 2, ic[l - 1])            # (oc, a, u, b, v, ic)
        w = jnp.transpose(w, (1, 3, 0, 2, 4, 5))                   # (a, b, oc, u, v, ic)
        w = w.reshape(4, oc[l - 1], 4 * ic[l - 1])
        if l == 5:                                                 # pad OC 1 -> 8 sublanes
            w = jnp.pad(w, ((0, 0), (0, 8 - oc[4]), (0, 0)))
        kp[f"w{l}"] = w.astype(jnp.bfloat16)
    for l in (2, 3, 4):
        kp[f"gamma{l}"] = raw[f"gamma{l}"].reshape(-1, 1).astype(jnp.float32)
        kp[f"beta{l}"] = raw[f"beta{l}"].reshape(-1, 1).astype(jnp.float32)
    kp["b5"] = jnp.pad(raw["b5"], (0, 8 - 1)).reshape(8, 1).astype(jnp.float32)

    # Shape-only gather / mask tables (built once with numpy, tiny).
    kp["v1"] = jnp.asarray(_valid_mask_l1())
    kp["mask2"] = jnp.asarray(_bn_mask(_OH2, _WGN2))
    kp["mask3"] = jnp.asarray(_bn_mask(_OH3, _WGN3))
    kp["mask4"] = jnp.asarray(_bn_mask(_OH4, _WGN4))
    kp["idx3"] = jnp.asarray(_regroup_idx(_OH2, _WGN2, 1, _HG3, _MG3P))
    kp["idx4"] = jnp.asarray(_regroup_idx(_OH3, _WGN3, 1, _HG4, _MG4P))
    kp["idx5"] = jnp.asarray(_regroup_idx(_OH4, _WGN4, 0, _HG5, _MG5P))
    return raw, kp


# ------------------------------- JAX wrapper -------------------------------- #

def _build_p1(x):
    """Layer-1 im2col patches laid out directly in layer-2's grouped geometry.

    Block (i,j), column (hg2, wg2, n) holds the 4x4 input patch (rows ordered
    (kh, kw, c)) for layer-1 output position (2*hg2+i-1, 2*wg2+j-1); columns
    for out-of-range positions are zero.  Shape (4, 16*C, _MG2P) bf16.
    """
    n, c, h, _ = x.shape
    oh = h // 2
    xp = jnp.pad(x, ((0, 0), (0, 0), (1, 1), (1, 1)))
    taps = [xp[:, :, kh:kh + 2 * oh:2, kw:kw + 2 * oh:2]
            for kh in range(4) for kw in range(4)]                 # 16 x (n,c,oh,oh)
    pat = jnp.stack(taps, axis=0)                                  # (16,n,c,oh,oh)
    pat = jnp.pad(pat, ((0, 0), (0, 0), (0, 0), (1, 1), (1, 1)))
    blocks = []
    for i in range(2):
        for j in range(2):
            pij = pat[:, :, :, i::2, j::2]                         # (16,n,c,HG2,HG2)
            pij = jnp.transpose(pij, (0, 2, 3, 4, 1))              # (16,c,HG2,HG2,n)
            blocks.append(pij.reshape(16 * c, _HG2 * _HG2 * n))
    p1 = jnp.stack(blocks, axis=0)                                 # (4, 16c, 578)
    p1 = jnp.pad(p1, ((0, 0), (0, 0), (0, _MG2P - p1.shape[2])))
    return p1.astype(jnp.bfloat16)


def _full_spec(shape):
    return pl.BlockSpec(tuple(shape), lambda i, _r=len(shape): (0,) * _r)


def discriminator_forward(x_nchw, kp):
    """x: (N, 3, 64, 64) f32 -> (N, 1, 1, 1) f32, as the PyTorch Discriminator."""
    p1 = _build_p1(x_nchw)
    inputs = [p1, kp["v1"], kp["w1"], kp["b1"],
              kp["w2"], kp["gamma2"], kp["beta2"], kp["mask2"], kp["idx3"],
              kp["w3"], kp["gamma3"], kp["beta3"], kp["mask3"], kp["idx4"],
              kp["w4"], kp["gamma4"], kp["beta4"], kp["mask4"], kp["idx5"],
              kp["w5"], kp["b5"]]
    out = pl.pallas_call(
        _disc_kernel,
        out_shape=jax.ShapeDtypeStruct((8, 128), jnp.float32),
        grid_spec=pltpu.PrefetchScalarGridSpec(
            num_scalar_prefetch=0,
            grid=(1,),
            in_specs=[_full_spec(a.shape) for a in inputs],
            out_specs=_full_spec((8, 128)),
        ),
        compiler_params=pltpu.CompilerParams(dimension_semantics=("arbitrary",)),
    )(*inputs)
    n = x_nchw.shape[0]
    return out[0, :n].reshape(n, 1, 1, 1)


# -------------------------- pure-JAX reference ------------------------------ #

def reference_forward(x, raw):
    def conv(h, w, stride, pad):
        return jax.lax.conv_general_dilated(
            h, w, window_strides=(stride, stride),
            padding=[(pad, pad), (pad, pad)],
            dimension_numbers=("NCHW", "OIHW", "NCHW"))

    def leaky(v):
        return jnp.where(v > 0, v, 0.2 * v)

    h = leaky(conv(x, raw["w1"], 2, 1) + raw["b1"].reshape(1, -1, 1, 1))
    for l in (2, 3, 4):
        h = conv(h, raw[f"w{l}"], 2, 1)
        mean = h.mean(axis=(0, 2, 3), keepdims=True)
        var = ((h - mean) ** 2).mean(axis=(0, 2, 3), keepdims=True)
        h = (h - mean) * jax.lax.rsqrt(var + 1e-5)
        h = h * raw[f"gamma{l}"].reshape(1, -1, 1, 1) + raw[f"beta{l}"].reshape(1, -1, 1, 1)
        h = leaky(h)
    h = conv(h, raw["w5"], 2, 0) + raw["b5"].reshape(1, -1, 1, 1)
    return jax.nn.sigmoid(h)


# ----------------------------------- main ----------------------------------- #

if __name__ == "__main__":
    key = jax.random.PRNGKey(0)
    k_x, k_p = jax.random.split(key)
    # DCGAN discriminator needs 64x64 inputs (five 4x4/stride-2 convs -> 1x1).
    x = jax.random.normal(k_x, (_N, _CIN, _IMG, _IMG), jnp.float32)
    raw, kparams = init_params(k_p, _CIN, _F)

    fwd = jax.jit(discriminator_forward)
    out = fwd(x, kparams)
    jax.block_until_ready(out)

    assert out.shape == (_N, 1, 1, 1)
    assert bool(jnp.all((out >= 0.0) & (out <= 1.0)))
    ref = reference_forward(x, raw)
    err = float(jnp.max(jnp.abs(out - ref)))
    assert err < 0.1, f"kernel deviates from reference: max|diff|={err}"
    print("KERNEL_OK")
</pallas_src>

<mosaic_0001>
module attributes {stable_mosaic.version = 11 : i64} {
  func.func @_disc_kernel(%arg0: i32, %arg1: memref<4x48x640xbf16, #tpu.memory_space<vmem>>, %arg2: memref<4x1x640xf32, #tpu.memory_space<vmem>>, %arg3: memref<8x48xbf16, #tpu.memory_space<vmem>>, %arg4: memref<8x1xf32, #tpu.memory_space<vmem>>, %arg5: memref<4x16x32xbf16, #tpu.memory_space<vmem>>, %arg6: memref<16x1xf32, #tpu.memory_space<vmem>>, %arg7: memref<16x1xf32, #tpu.memory_space<vmem>>, %arg8: memref<1x544xf32, #tpu.memory_space<vmem>>, %arg9: memref<4x1x256xi32, #tpu.memory_space<vmem>>, %arg10: memref<4x32x64xbf16, #tpu.memory_space<vmem>>, %arg11: memref<32x1xf32, #tpu.memory_space<vmem>>, %arg12: memref<32x1xf32, #tpu.memory_space<vmem>>, %arg13: memref<1x144xf32, #tpu.memory_space<vmem>>, %arg14: memref<4x1x128xi32, #tpu.memory_space<vmem>>, %arg15: memref<4x64x128xbf16, #tpu.memory_space<vmem>>, %arg16: memref<64x1xf32, #tpu.memory_space<vmem>>, %arg17: memref<64x1xf32, #tpu.memory_space<vmem>>, %arg18: memref<1x40xf32, #tpu.memory_space<vmem>>, %arg19: memref<4x1x256xi32, #tpu.memory_space<vmem>>, %arg20: memref<4x8x256xbf16, #tpu.memory_space<vmem>>, %arg21: memref<8x1xf32, #tpu.memory_space<vmem>>, %arg22: memref<8x128xf32, #tpu.memory_space<vmem>>) attributes {dimension_semantics = [#tpu.dimension_semantics<arbitrary>], iteration_bounds = array<i64: 1>, scalar_prefetch = 0 : i64, scratch_operands = 0 : i64, tpu.core_type = #tpu.core_type<tc>, window_params = [{pipeline_mode = #tpu.pipeline_mode<synchronous>, transform_indices = @transform_0, window_bounds = array<i64: 4, 48, 640>}, {pipeline_mode = #tpu.pipeline_mode<synchronous>, transform_indices = @transform_1, window_bounds = array<i64: 4, 1, 640>}, {pipeline_mode = #tpu.pipeline_mode<synchronous>, transform_indices = @transform_2, window_bounds = array<i64: 8, 48>}, {pipeline_mode = #tpu.pipeline_mode<synchronous>, transform_indices = @transform_3, window_bounds = array<i64: 8, 1>}, {pipeline_mode = #tpu.pipeline_mode<synchronous>, transform_indices = @transform_4, window_bounds = array<i64: 4, 16, 32>}, {pipeline_mode = #tpu.pipeline_mode<synchronous>, transform_indices = @transform_5, window_bounds = array<i64: 16, 1>}, {pipeline_mode = #tpu.pipeline_mode<synchronous>, transform_indices = @transform_6, window_bounds = array<i64: 16, 1>}, {pipeline_mode = #tpu.pipeline_mode<synchronous>, transform_indices = @transform_7, window_bounds = array<i64: 1, 544>}, {pipeline_mode = #tpu.pipeline_mode<synchronous>, transform_indices = @transform_8, window_bounds = array<i64: 4, 1, 256>}, {pipeline_mode = #tpu.pipeline_mode<synchronous>, transform_indices = @transform_9, window_bounds = array<i64: 4, 32, 64>}, {pipeline_mode = #tpu.pipeline_mode<synchronous>, transform_indices = @transform_10, window_bounds = array<i64: 32, 1>}, {pipeline_mode = #tpu.pipeline_mode<synchronous>, transform_indices = @transform_11, window_bounds = array<i64: 32, 1>}, {pipeline_mode = #tpu.pipeline_mode<synchronous>, transform_indices = @transform_12, window_bounds = array<i64: 1, 144>}, {pipeline_mode = #tpu.pipeline_mode<synchronous>, transform_indices = @transform_13, window_bounds = array<i64: 4, 1, 128>}, {pipeline_mode = #tpu.pipeline_mode<synchronous>, transform_indices = @transform_14, window_bounds = array<i64: 4, 64, 128>}, {pipeline_mode = #tpu.pipeline_mode<synchronous>, transform_indices = @transform_15, window_bounds = array<i64: 64, 1>}, {pipeline_mode = #tpu.pipeline_mode<synchronous>, transform_indices = @transform_16, window_bounds = array<i64: 64, 1>}, {pipeline_mode = #tpu.pipeline_mode<synchronous>, transform_indices = @transform_17, window_bounds = array<i64: 1, 40>}, {pipeline_mode = #tpu.pipeline_mode<synchronous>, transform_indices = @transform_18, window_bounds = array<i64: 4, 1, 256>}, {pipeline_mode = #tpu.pipeline_mode<synchronous>, transform_indices = @transform_19, window_bounds = array<i64: 4, 8, 256>}, {pipeline_mode = #tpu.pipeline_mode<synchronous>, transform_indices = @transform_20, window_bounds = array<i64: 8, 1>}, {pipeline_mode = #tpu.pipeline_mode<synchronous>, transform_indices = @transform_21, window_bounds = array<i64: 8, 128>}]} {
    %c0 = arith.constant 0 : index
    %c0_0 = arith.constant 0 : index
    %0 = vector.load %arg3[%c0, %c0_0] : memref<8x48xbf16, #tpu.memory_space<vmem>>, vector<8x48xbf16>
    %c0_1 = arith.constant 0 : index
    %c0_2 = arith.constant 0 : index
    %1 = vector.load %arg4[%c0_1, %c0_2] : memref<8x1xf32, #tpu.memory_space<vmem>>, vector<8x1xf32>
    %c0_3 = arith.constant 0 : index
    %c0_4 = arith.constant 0 : index
    %c0_5 = arith.constant 0 : index
    %2 = vector.load %arg1[%c0_3, %c0_4, %c0_5] : memref<4x48x640xbf16, #tpu.memory_space<vmem>>, vector<1x48x640xbf16>
    %3 = vector.shape_cast %2 : vector<1x48x640xbf16> to vector<48x640xbf16>
    %cst = arith.constant dense<0.000000e+00> : vector<8x640xf32>
    %4 = tpu.matmul %0, %3, %cst {dimension_numbers = #tpu.dot_dimension_numbers<[1], [0], [0], [1], [0, 0, 1, 1], [], []>} : vector<8x48xbf16>, vector<48x640xbf16>, vector<8x640xf32> -> vector<8x640xf32>
    %5 = vector.broadcast %1 : vector<8x1xf32> to vector<8x640xf32>
    %6 = arith.addf %4, %5 : vector<8x640xf32>
    %cst_6 = arith.constant 0.000000e+00 : f32
    %7 = vector.broadcast %cst_6 : f32 to vector<8x640xf32>
    %8 = arith.cmpf ogt, %6, %7 : vector<8x640xf32>
    %cst_7 = arith.constant 2.000000e-01 : f32
    %9 = vector.broadcast %cst_7 : f32 to vector<8x640xf32>
    %10 = arith.mulf %9, %6 : vector<8x640xf32>
    %11 = arith.select %8, %6, %10 : vector<8x640xi1>, vector<8x640xf32>
    %c0_8 = arith.constant 0 : index
    %c0_9 = arith.constant 0 : index
    %c0_10 = arith.constant 0 : index
    %12 = vector.load %arg2[%c0_8, %c0_9, %c0_10] : memref<4x1x640xf32, #tpu.memory_space<vmem>>, vector<1x1x640xf32>
    %13 = vector.shape_cast %12 : vector<1x1x640xf32> to vector<1x640xf32>
    %14 = vector.broadcast %13 : vector<1x640xf32> to vector<8x640xf32>
    %15 = arith.mulf %11, %14 : vector<8x640xf32>
    %c1 = arith.constant 1 : index
    %c0_11 = arith.constant 0 : index
    %c0_12 = arith.constant 0 : index
    %16 = vector.load %arg1[%c1, %c0_11, %c0_12] : memref<4x48x640xbf16, #tpu.memory_space<vmem>>, vector<1x48x640xbf16>
    %17 = vector.shape_cast %16 : vector<1x48x640xbf16> to vector<48x640xbf16>
    %cst_13 = arith.constant dense<0.000000e+00> : vector<8x640xf32>
    %18 = tpu.matmul %0, %17, %cst_13 {dimension_numbers = #tpu.dot_dimension_numbers<[1], [0], [0], [1], [0, 0, 1, 1], [], []>} : vector<8x48xbf16>, vector<48x640xbf16>, vector<8x640xf32> -> vector<8x640xf32>
    %19 = vector.broadcast %1 : vector<8x1xf32> to vector<8x640xf32>
    %20 = arith.addf %18, %19 : vector<8x640xf32>
    %cst_14 = arith.constant 0.000000e+00 : f32
    %21 = vector.broadcast %cst_14 : f32 to vector<8x640xf32>
    %22 = arith.cmpf ogt, %20, %21 : vector<8x640xf32>
    %cst_15 = arith.constant 2.000000e-01 : f32
    %23 = vector.broadcast %cst_15 : f32 to vector<8x640xf32>
    %24 = arith.mulf %23, %20 : vector<8x640xf32>
    %25 = arith.select %22, %20, %24 : vector<8x640xi1>, vector<8x640xf32>
    %c1_16 = arith.constant 1 : index
    %c0_17 = arith.constant 0 : index
    %c0_18 = arith.constant 0 : index
    %26 = vector.load %arg2[%c1_16, %c0_17, %c0_18] : memref<4x1x640xf32, #tpu.memory_space<vmem>>, vector<1x1x640xf32>
    %27 = vector.shape_cast %26 : vector<1x1x640xf32> to vector<1x640xf32>
    %28 = vector.broadcast %27 : vector<1x640xf32> to vector<8x640xf32>
    %29 = arith.mulf %25, %28 : vector<8x640xf32>
    %c2 = arith.constant 2 : index
    %c0_19 = arith.constant 0 : index
    %c0_20 = arith.constant 0 : index
    %30 = vector.load %arg1[%c2, %c0_19, %c0_20] : memref<4x48x640xbf16, #tpu.memory_space<vmem>>, vector<1x48x640xbf16>
    %31 = vector.shape_cast %30 : vector<1x48x640xbf16> to vector<48x640xbf16>
    %cst_21 = arith.constant dense<0.000000e+00> : vector<8x640xf32>
    %32 = tpu.matmul %0, %31, %cst_21 {dimension_numbers = #tpu.dot_dimension_numbers<[1], [0], [0], [1], [0, 0, 1, 1], [], []>} : vector<8x48xbf16>, vector<48x640xbf16>, vector<8x640xf32> -> vector<8x640xf32>
    %33 = vector.broadcast %1 : vector<8x1xf32> to vector<8x640xf32>
    %34 = arith.addf %32, %33 : vector<8x640xf32>
    %cst_22 = arith.constant 0.000000e+00 : f32
    %35 = vector.broadcast %cst_22 : f32 to vector<8x640xf32>
    %36 = arith.cmpf ogt, %34, %35 : vector<8x640xf32>
    %cst_23 = arith.constant 2.000000e-01 : f32
    %37 = vector.broadcast %cst_23 : f32 to vector<8x640xf32>
    %38 = arith.mulf %37, %34 : vector<8x640xf32>
    %39 = arith.select %36, %34, %38 : vector<8x640xi1>, vector<8x640xf32>
    %c2_24 = arith.constant 2 : index
    %c0_25 = arith.constant 0 : index
    %c0_26 = arith.constant 0 : index
    %40 = vector.load %arg2[%c2_24, %c0_25, %c0_26] : memref<4x1x640xf32, #tpu.memory_space<vmem>>, vector<1x1x640xf32>
    %41 = vector.shape_cast %40 : vector<1x1x640xf32> to vector<1x640xf32>
    %42 = vector.broadcast %41 : vector<1x640xf32> to vector<8x640xf32>
    %43 = arith.mulf %39, %42 : vector<8x640xf32>
    %c3 = arith.constant 3 : index
    %c0_27 = arith.constant 0 : index
    %c0_28 = arith.constant 0 : index
    %44 = vector.load %arg1[%c3, %c0_27, %c0_28] : memref<4x48x640xbf16, #tpu.memory_space<vmem>>, vector<1x48x640xbf16>
    %45 = vector.shape_cast %44 : vector<1x48x640xbf16> to vector<48x640xbf16>
    %cst_29 = arith.constant dense<0.000000e+00> : vector<8x640xf32>
    %46 = tpu.matmul %0, %45, %cst_29 {dimension_numbers = #tpu.dot_dimension_numbers<[1], [0], [0], [1], [0, 0, 1, 1], [], []>} : vector<8x48xbf16>, vector<48x640xbf16>, vector<8x640xf32> -> vector<8x640xf32>
    %47 = vector.broadcast %1 : vector<8x1xf32> to vector<8x640xf32>
    %48 = arith.addf %46, %47 : vector<8x640xf32>
    %cst_30 = arith.constant 0.000000e+00 : f32
    %49 = vector.broadcast %cst_30 : f32 to vector<8x640xf32>
    %50 = arith.cmpf ogt, %48, %49 : vector<8x640xf32>
    %cst_31 = arith.constant 2.000000e-01 : f32
    %51 = vector.broadcast %cst_31 : f32 to vector<8x640xf32>
    %52 = arith.mulf %51, %48 : vector<8x640xf32>
    %53 = arith.select %50, %48, %52 : vector<8x640xi1>, vector<8x640xf32>
    %c3_32 = arith.constant 3 : index
    %c0_33 = arith.constant 0 : index
    %c0_34 = arith.constant 0 : index
    %54 = vector.load %arg2[%c3_32, %c0_33, %c0_34] : memref<4x1x640xf32, #tpu.memory_space<vmem>>, vector<1x1x640xf32>
    %55 = vector.shape_cast %54 : vector<1x1x640xf32> to vector<1x640xf32>
    %56 = vector.broadcast %55 : vector<1x640xf32> to vector<8x640xf32>
    %57 = arith.mulf %53, %56 : vector<8x640xf32>
    %58 = tpu.concatenate %15, %29, %43, %57 in 0 : vector<8x640xf32>, vector<8x640xf32>, vector<8x640xf32>, vector<8x640xf32> -> vector<32x640xf32>
    %59 = arith.truncf %58 : vector<32x640xf32> to vector<32x640xbf16>
    %c0_35 = arith.constant 0 : index
    %c0_36 = arith.constant 0 : index
    %c0_37 = arith.constant 0 : index
    %60 = vector.load %arg5[%c0_35, %c0_36, %c0_37] : memref<4x16x32xbf16, #tpu.memory_space<vmem>>, vector<1x16x32xbf16>
    %61 = vector.shape_cast %60 : vector<1x16x32xbf16> to vector<16x32xbf16>
    %62 = vector.extract_strided_slice %59 {offsets = [0, 0], sizes = [32, 544], strides = [1, 1]} : vector<32x640xbf16> to vector<32x544xbf16>
    %cst_38 = arith.constant dense<0.000000e+00> : vector<16x544xf32>
    %63 = tpu.matmul %61, %62, %cst_38 {dimension_numbers = #tpu.dot_dimension_numbers<[1], [0], [0], [1], [0, 0, 1, 1], [], []>} : vector<16x32xbf16>, vector<32x544xbf16>, vector<16x544xf32> -> vector<16x544xf32>
    %c1_39 = arith.constant 1 : index
    %c0_40 = arith.constant 0 : index
    %c0_41 = arith.constant 0 : index
    %64 = vector.load %arg5[%c1_39, %c0_40, %c0_41] : memref<4x16x32xbf16, #tpu.memory_space<vmem>>, vector<1x16x32xbf16>
    %65 = vector.shape_cast %64 : vector<1x16x32xbf16> to vector<16x32xbf16>
    %66 = vector.extract_strided_slice %59 {offsets = [0, 2], sizes = [32, 544], strides = [1, 1]} : vector<32x640xbf16> to vector<32x544xbf16>
    %cst_42 = arith.constant dense<0.000000e+00> : vector<16x544xf32>
    %67 = tpu.matmul %65, %66, %cst_42 {dimension_numbers = #tpu.dot_dimension_numbers<[1], [0], [0], [1], [0, 0, 1, 1], [], []>} : vector<16x32xbf16>, vector<32x544xbf16>, vector<16x544xf32> -> vector<16x544xf32>
    %68 = arith.addf %63, %67 : vector<16x544xf32>
    %c2_43 = arith.constant 2 : index
    %c0_44 = arith.constant 0 : index
    %c0_45 = arith.constant 0 : index
    %69 = vector.load %arg5[%c2_43, %c0_44, %c0_45] : memref<4x16x32xbf16, #tpu.memory_space<vmem>>, vector<1x16x32xbf16>
    %70 = vector.shape_cast %69 : vector<1x16x32xbf16> to vector<16x32xbf16>
    %71 = vector.extract_strided_slice %59 {offsets = [0, 34], sizes = [32, 544], strides = [1, 1]} : vector<32x640xbf16> to vector<32x544xbf16>
    %cst_46 = arith.constant dense<0.000000e+00> : vector<16x544xf32>
    %72 = tpu.matmul %70, %71, %cst_46 {dimension_numbers = #tpu.dot_dimension_numbers<[1], [0], [0], [1], [0, 0, 1, 1], [], []>} : vector<16x32xbf16>, vector<32x544xbf16>, vector<16x544xf32> -> vector<16x544xf32>
    %73 = arith.addf %68, %72 : vector<16x544xf32>
    %c3_47 = arith.constant 3 : index
    %c0_48 = arith.constant 0 : index
    %c0_49 = arith.constant 0 : index
    %74 = vector.load %arg5[%c3_47, %c0_48, %c0_49] : memref<4x16x32xbf16, #tpu.memory_space<vmem>>, vector<1x16x32xbf16>
    %75 = vector.shape_cast %74 : vector<1x16x32xbf16> to vector<16x32xbf16>
    %76 = vector.extract_strided_slice %59 {offsets = [0, 36], sizes = [32, 544], strides = [1, 1]} : vector<32x640xbf16> to vector<32x544xbf16>
    %cst_50 = arith.constant dense<0.000000e+00> : vector<16x544xf32>
    %77 = tpu.matmul %75, %76, %cst_50 {dimension_numbers = #tpu.dot_dimension_numbers<[1], [0], [0], [1], [0, 0, 1, 1], [], []>} : vector<16x32xbf16>, vector<32x544xbf16>, vector<16x544xf32> -> vector<16x544xf32>
    %78 = arith.addf %73, %77 : vector<16x544xf32>
    %c0_51 = arith.constant 0 : index
    %c0_52 = arith.constant 0 : index
    %79 = vector.load %arg8[%c0_51, %c0_52] : memref<1x544xf32, #tpu.memory_space<vmem>>, vector<1x544xf32>
    %80 = vector.broadcast %79 : vector<1x544xf32> to vector<16x544xf32>
    %81 = arith.mulf %78, %80 : vector<16x544xf32>
    %cst_53 = arith.constant dense<0.000000e+00> : vector<16xf32>
    %82 = vector.multi_reduction <add>, %81, %cst_53 [1] : vector<16x544xf32> to vector<16xf32>
    %83 = vector.shape_cast %82 : vector<16xf32> to vector<16x1xf32>
    %cst_54 = arith.constant 0.001953125 : f32
    %84 = vector.broadcast %cst_54 : f32 to vector<16x1xf32>
    %85 = arith.mulf %83, %84 : vector<16x1xf32>
    %86 = vector.broadcast %85 : vector<16x1xf32> to vector<16x544xf32>
    %87 = arith.subf %78, %86 : vector<16x544xf32>
    %88 = vector.broadcast %79 : vector<1x544xf32> to vector<16x544xf32>
    %89 = arith.mulf %87, %88 : vector<16x544xf32>
    %90 = arith.mulf %89, %89 : vector<16x544xf32>
    %cst_55 = arith.constant dense<0.000000e+00> : vector<16xf32>
    %91 = vector.multi_reduction <add>, %90, %cst_55 [1] : vector<16x544xf32> to vector<16xf32>
    %92 = vector.shape_cast %91 : vector<16xf32> to vector<16x1xf32>
    %cst_56 = arith.constant 0.001953125 : f32
    %93 = vector.broadcast %cst_56 : f32 to vector<16x1xf32>
    %94 = arith.mulf %92, %93 : vector<16x1xf32>
    %c0_57 = arith.constant 0 : index
    %c0_58 = arith.constant 0 : index
    %95 = vector.load %arg6[%c0_57, %c0_58] : memref<16x1xf32, #tpu.memory_space<vmem>>, vector<16x1xf32>
    %cst_59 = arith.constant 9.99999974E-6 : f32
    %96 = vector.broadcast %cst_59 : f32 to vector<16x1xf32>
    %97 = arith.addf %94, %96 : vector<16x1xf32>
    %98 = math.rsqrt %97 : vector<16x1xf32>
    %99 = arith.mulf %95, %98 : vector<16x1xf32>
    %100 = vector.broadcast %85 : vector<16x1xf32> to vector<16x544xf32>
    %101 = arith.subf %78, %100 : vector<16x544xf32>
    %102 = vector.broadcast %99 : vector<16x1xf32> to vector<16x544xf32>
    %103 = arith.mulf %101, %102 : vector<16x544xf32>
    %c0_60 = arith.constant 0 : index
    %c0_61 = arith.constant 0 : index
    %104 = vector.load %arg7[%c0_60, %c0_61] : memref<16x1xf32, #tpu.memory_space<vmem>>, vector<16x1xf32>
    %105 = vector.broadcast %104 : vector<16x1xf32> to vector<16x544xf32>
    %106 = arith.addf %103, %105 : vector<16x544xf32>
    %cst_62 = arith.constant 0.000000e+00 : f32
    %107 = vector.broadcast %cst_62 : f32 to vector<16x544xf32>
    %108 = arith.cmpf ogt, %106, %107 : vector<16x544xf32>
    %cst_63 = arith.constant 2.000000e-01 : f32
    %109 = vector.broadcast %cst_63 : f32 to vector<16x544xf32>
    %110 = arith.mulf %109, %106 : vector<16x544xf32>
    %111 = arith.select %108, %106, %110 : vector<16x544xi1>, vector<16x544xf32>
    %112 = arith.truncf %111 : vector<16x544xf32> to vector<16x544xbf16>
    %113 = tpu.iota {dimensions = array<i32: 0>} : vector<544x256xi32>
    %c0_64 = arith.constant 0 : index
    %c0_65 = arith.constant 0 : index
    %c0_66 = arith.constant 0 : index
    %114 = vector.load %arg9[%c0_64, %c0_65, %c0_66] : memref<4x1x256xi32, #tpu.memory_space<vmem>>, vector<1x1x256xi32>
    %115 = vector.shape_cast %114 : vector<1x1x256xi32> to vector<1x256xi32>
    %116 = vector.broadcast %115 : vector<1x256xi32> to vector<544x256xi32>
    %117 = arith.cmpi eq, %113, %116 : vector<544x256xi32>
    %cst_67 = arith.constant 1.000000e+00 : f32
    %cst_68 = arith.constant 0.000000e+00 : f32
    %118 = vector.broadcast %cst_67 : f32 to vector<544x256xf32>
    %119 = vector.broadcast %cst_68 : f32 to vector<544x256xf32>
    %120 = arith.select %117, %118, %119 : vector<544x256xi1>, vector<544x256xf32>
    %121 = arith.truncf %120 : vector<544x256xf32> to vector<544x256xbf16>
    %cst_69 = arith.constant dense<0.000000e+00> : vector<16x256xf32>
    %122 = tpu.matmul %112, %121, %cst_69 {dimension_numbers = #tpu.dot_dimension_numbers<[1], [0], [0], [1], [0, 0, 1, 1], [], []>} : vector<16x544xbf16>, vector<544x256xbf16>, vector<16x256xf32> -> vector<16x256xf32>
    %c1_70 = arith.constant 1 : index
    %c0_71 = arith.constant 0 : index
    %c0_72 = arith.constant 0 : index
    %123 = vector.load %arg9[%c1_70, %c0_71, %c0_72] : memref<4x1x256xi32, #tpu.memory_space<vmem>>, vector<1x1x256xi32>
    %124 = vector.shape_cast %123 : vector<1x1x256xi32> to vector<1x256xi32>
    %125 = vector.broadcast %124 : vector<1x256xi32> to vector<544x256xi32>
    %126 = arith.cmpi eq, %113, %125 : vector<544x256xi32>
    %cst_73 = arith.constant 1.000000e+00 : f32
    %cst_74 = arith.constant 0.000000e+00 : f32
    %127 = vector.broadcast %cst_73 : f32 to vector<544x256xf32>
    %128 = vector.broadcast %cst_74 : f32 to vector<544x256xf32>
    %129 = arith.select %126, %127, %128 : vector<544x256xi1>, vector<544x256xf32>
    %130 = arith.truncf %129 : vector<544x256xf32> to vector<544x256xbf16>
    %cst_75 = arith.constant dense<0.000000e+00> : vector<16x256xf32>
    %131 = tpu.matmul %112, %130, %cst_75 {dimension_numbers = #tpu.dot_dimension_numbers<[1], [0], [0], [1], [0, 0, 1, 1], [], []>} : vector<16x544xbf16>, vector<544x256xbf16>, vector<16x256xf32> -> vector<16x256xf32>
    %c2_76 = arith.constant 2 : index
    %c0_77 = arith.constant 0 : index
    %c0_78 = arith.constant 0 : index
    %132 = vector.load %arg9[%c2_76, %c0_77, %c0_78] : memref<4x1x256xi32, #tpu.memory_space<vmem>>, vector<1x1x256xi32>
    %133 = vector.shape_cast %132 : vector<1x1x256xi32> to vector<1x256xi32>
    %134 = vector.broadcast %133 : vector<1x256xi32> to vector<544x256xi32>
    %135 = arith.cmpi eq, %113, %134 : vector<544x256xi32>
    %cst_79 = arith.constant 1.000000e+00 : f32
    %cst_80 = arith.constant 0.000000e+00 : f32
    %136 = vector.broadcast %cst_79 : f32 to vector<544x256xf32>
    %137 = vector.broadcast %cst_80 : f32 to vector<544x256xf32>
    %138 = arith.select %135, %136, %137 : vector<544x256xi1>, vector<544x256xf32>
    %139 = arith.truncf %138 : vector<544x256xf32> to vector<544x256xbf16>
    %cst_81 = arith.constant dense<0.000000e+00> : vector<16x256xf32>
    %140 = tpu.matmul %112, %139, %cst_81 {dimension_numbers = #tpu.dot_dimension_numbers<[1], [0], [0], [1], [0, 0, 1, 1], [], []>} : vector<16x544xbf16>, vector<544x256xbf16>, vector<16x256xf32> -> vector<16x256xf32>
    %c3_82 = arith.constant 3 : index
    %c0_83 = arith.constant 0 : index
    %c0_84 = arith.constant 0 : index
    %141 = vector.load %arg9[%c3_82, %c0_83, %c0_84] : memref<4x1x256xi32, #tpu.memory_space<vmem>>, vector<1x1x256xi32>
    %142 = vector.shape_cast %141 : vector<1x1x256xi32> to vector<1x256xi32>
    %143 = vector.broadcast %142 : vector<1x256xi32> to vector<544x256xi32>
    %144 = arith.cmpi eq, %113, %143 : vector<544x256xi32>
    %cst_85 = arith.constant 1.000000e+00 : f32
    %cst_86 = arith.constant 0.000000e+00 : f32
    %145 = vector.broadcast %cst_85 : f32 to vector<544x256xf32>
    %146 = vector.broadcast %cst_86 : f32 to vector<544x256xf32>
    %147 = arith.select %144, %145, %146 : vector<544x256xi1>, vector<544x256xf32>
    %148 = arith.truncf %147 : vector<544x256xf32> to vector<544x256xbf16>
    %cst_87 = arith.constant dense<0.000000e+00> : vector<16x256xf32>
    %149 = tpu.matmul %112, %148, %cst_87 {dimension_numbers = #tpu.dot_dimension_numbers<[1], [0], [0], [1], [0, 0, 1, 1], [], []>} : vector<16x544xbf16>, vector<544x256xbf16>, vector<16x256xf32> -> vector<16x256xf32>
    %150 = tpu.concatenate %122, %131, %140, %149 in 0 : vector<16x256xf32>, vector<16x256xf32>, vector<16x256xf32>, vector<16x256xf32> -> vector<64x256xf32>
    %151 = arith.truncf %150 : vector<64x256xf32> to vector<64x256xbf16>
    %c0_88 = arith.constant 0 : index
    %c0_89 = arith.constant 0 : index
    %c0_90 = arith.constant 0 : index
    %152 = vector.load %arg10[%c0_88, %c0_89, %c0_90] : memref<4x32x64xbf16, #tpu.memory_space<vmem>>, vector<1x32x64xbf16>
    %153 = vector.shape_cast %152 : vector<1x32x64xbf16> to vector<32x64xbf16>
    %154 = vector.extract_strided_slice %151 {offsets = [0, 0], sizes = [64, 144], strides = [1, 1]} : vector<64x256xbf16> to vector<64x144xbf16>
    %cst_91 = arith.constant dense<0.000000e+00> : vector<32x144xf32>
    %155 = tpu.matmul %153, %154, %cst_91 {dimension_numbers = #tpu.dot_dimension_numbers<[1], [0], [0], [1], [0, 0, 1, 1], [], []>} : vector<32x64xbf16>, vector<64x144xbf16>, vector<32x144xf32> -> vector<32x144xf32>
    %c1_92 = arith.constant 1 : index
    %c0_93 = arith.constant 0 : index
    %c0_94 = arith.constant 0 : index
    %156 = vector.load %arg10[%c1_92, %c0_93, %c0_94] : memref<4x32x64xbf16, #tpu.memory_space<vmem>>, vector<1x32x64xbf16>
    %157 = vector.shape_cast %156 : vector<1x32x64xbf16> to vector<32x64xbf16>
    %158 = vector.extract_strided_slice %151 {offsets = [0, 2], sizes = [64, 144], strides = [1, 1]} : vector<64x256xbf16> to vector<64x144xbf16>
    %cst_95 = arith.constant dense<0.000000e+00> : vector<32x144xf32>
    %159 = tpu.matmul %157, %158, %cst_95 {dimension_numbers = #tpu.dot_dimension_numbers<[1], [0], [0], [1], [0, 0, 1, 1], [], []>} : vector<32x64xbf16>, vector<64x144xbf16>, vector<32x144xf32> -> vector<32x144xf32>
    %160 = arith.addf %155, %159 : vector<32x144xf32>
    %c2_96 = arith.constant 2 : index
    %c0_97 = arith.constant 0 : index
    %c0_98 = arith.constant 0 : index
    %161 = vector.load %arg10[%c2_96, %c0_97, %c0_98] : memref<4x32x64xbf16, #tpu.memory_space<vmem>>, vector<1x32x64xbf16>
    %162 = vector.shape_cast %161 : vector<1x32x64xbf16> to vector<32x64xbf16>
    %163 = vector.extract_strided_slice %151 {offsets = [0, 18], sizes = [64, 144], strides = [1, 1]} : vector<64x256xbf16> to vector<64x144xbf16>
    %cst_99 = arith.constant dense<0.000000e+00> : vector<32x144xf32>
    %164 = tpu.matmul %162, %163, %cst_99 {dimension_numbers = #tpu.dot_dimension_numbers<[1], [0], [0], [1], [0, 0, 1, 1], [], []>} : vector<32x64xbf16>, vector<64x144xbf16>, vector<32x144xf32> -> vector<32x144xf32>
    %165 = arith.addf %160, %164 : vector<32x144xf32>
    %c3_100 = arith.constant 3 : index
    %c0_101 = arith.constant 0 : index
    %c0_102 = arith.constant 0 : index
    %166 = vector.load %arg10[%c3_100, %c0_101, %c0_102] : memref<4x32x64xbf16, #tpu.memory_space<vmem>>, vector<1x32x64xbf16>
    %167 = vector.shape_cast %166 : vector<1x32x64xbf16> to vector<32x64xbf16>
    %168 = vector.extract_strided_slice %151 {offsets = [0, 20], sizes = [64, 144], strides = [1, 1]} : vector<64x256xbf16> to vector<64x144xbf16>
    %cst_103 = arith.constant dense<0.000000e+00> : vector<32x144xf32>
    %169 = tpu.matmul %167, %168, %cst_103 {dimension_numbers = #tpu.dot_dimension_numbers<[1], [0], [0], [1], [0, 0, 1, 1], [], []>} : vector<32x64xbf16>, vector<64x144xbf16>, vector<32x144xf32> -> vector<32x144xf32>
    %170 = arith.addf %165, %169 : vector<32x144xf32>
    %c0_104 = arith.constant 0 : index
    %c0_105 = arith.constant 0 : index
    %171 = vector.load %arg13[%c0_104, %c0_105] : memref<1x144xf32, #tpu.memory_space<vmem>>, vector<1x144xf32>
    %172 = vector.broadcast %171 : vector<1x144xf32> to vector<32x144xf32>
    %173 = arith.mulf %170, %172 : vector<32x144xf32>
    %cst_106 = arith.constant dense<0.000000e+00> : vector<32xf32>
    %174 = vector.multi_reduction <add>, %173, %cst_106 [1] : vector<32x144xf32> to vector<32xf32>
    %175 = vector.shape_cast %174 : vector<32xf32> to vector<32x1xf32>
    %cst_107 = arith.constant 7.812500e-03 : f32
    %176 = vector.broadcast %cst_107 : f32 to vector<32x1xf32>
    %177 = arith.mulf %175, %176 : vector<32x1xf32>
    %178 = vector.broadcast %177 : vector<32x1xf32> to vector<32x144xf32>
    %179 = arith.subf %170, %178 : vector<32x144xf32>
    %180 = vector.broadcast %171 : vector<1x144xf32> to vector<32x144xf32>
    %181 = arith.mulf %179, %180 : vector<32x144xf32>
    %182 = arith.mulf %181, %181 : vector<32x144xf32>
    %cst_108 = arith.constant dense<0.000000e+00> : vector<32xf32>
    %183 = vector.multi_reduction <add>, %182, %cst_108 [1] : vector<32x144xf32> to vector<32xf32>
    %184 = vector.shape_cast %183 : vector<32xf32> to vector<32x1xf32>
    %cst_109 = arith.constant 7.812500e-03 : f32
    %185 = vector.broadcast %cst_109 : f32 to vector<32x1xf32>
    %186 = arith.mulf %184, %185 : vector<32x1xf32>
    %c0_110 = arith.constant 0 : index
    %c0_111 = arith.constant 0 : index
    %187 = vector.load %arg11[%c0_110, %c0_111] : memref<32x1xf32, #tpu.memory_space<vmem>>, vector<32x1xf32>
    %cst_112 = arith.constant 9.99999974E-6 : f32
    %188 = vector.broadcast %cst_112 : f32 to vector<32x1xf32>
    %189 = arith.addf %186, %188 : vector<32x1xf32>
    %190 = math.rsqrt %189 : vector<32x1xf32>
    %191 = arith.mulf %187, %190 : vector<32x1xf32>
    %192 = vector.broadcast %177 : vector<32x1xf32> to vector<32x144xf32>
    %193 = arith.subf %170, %192 : vector<32x144xf32>
    %194 = vector.broadcast %191 : vector<32x1xf32> to vector<32x144xf32>
    %195 = arith.mulf %193, %194 : vector<32x144xf32>
    %c0_113 = arith.constant 0 : index
    %c0_114 = arith.constant 0 : index
    %196 = vector.load %arg12[%c0_113, %c0_114] : memref<32x1xf32, #tpu.memory_space<vmem>>, vector<32x1xf32>
    %197 = vector.broadcast %196 : vector<32x1xf32> to vector<32x144xf32>
    %198 = arith.addf %195, %197 : vector<32x144xf32>
    %cst_115 = arith.constant 0.000000e+00 : f32
    %199 = vector.broadcast %cst_115 : f32 to vector<32x144xf32>
    %200 = arith.cmpf ogt, %198, %199 : vector<32x144xf32>
    %cst_116 = arith.constant 2.000000e-01 : f32
    %201 = vector.broadcast %cst_116 : f32 to vector<32x144xf32>
    %202 = arith.mulf %201, %198 : vector<32x144xf32>
    %203 = arith.select %200, %198, %202 : vector<32x144xi1>, vector<32x144xf32>
    %204 = arith.truncf %203 : vector<32x144xf32> to vector<32x144xbf16>
    %205 = tpu.iota {dimensions = array<i32: 0>} : vector<144x128xi32>
    %c0_117 = arith.constant 0 : index
    %c0_118 = arith.constant 0 : index
    %c0_119 = arith.constant 0 : index
    %206 = vector.load %arg14[%c0_117, %c0_118, %c0_119] : memref<4x1x128xi32, #tpu.memory_space<vmem>>, vector<1x1x128xi32>
    %207 = vector.shape_cast %206 : vector<1x1x128xi32> to vector<1x128xi32>
    %208 = vector.broadcast %207 : vector<1x128xi32> to vector<144x128xi32>
    %209 = arith.cmpi eq, %205, %208 : vector<144x128xi32>
    %cst_120 = arith.constant 1.000000e+00 : f32
    %cst_121 = arith.constant 0.000000e+00 : f32
    %210 = vector.broadcast %cst_120 : f32 to vector<144x128xf32>
    %211 = vector.broadcast %cst_121 : f32 to vector<144x128xf32>
    %212 = arith.select %209, %210, %211 : vector<144x128xi1>, vector<144x128xf32>
    %213 = arith.truncf %212 : vector<144x128xf32> to vector<144x128xbf16>
    %cst_122 = arith.constant dense<0.000000e+00> : vector<32x128xf32>
    %214 = tpu.matmul %204, %213, %cst_122 {dimension_numbers = #tpu.dot_dimension_numbers<[1], [0], [0], [1], [0, 0, 1, 1], [], []>} : vector<32x144xbf16>, vector<144x128xbf16>, vector<32x128xf32> -> vector<32x128xf32>
    %c1_123 = arith.constant 1 : index
    %c0_124 = arith.constant 0 : index
    %c0_125 = arith.constant 0 : index
    %215 = vector.load %arg14[%c1_123, %c0_124, %c0_125] : memref<4x1x128xi32, #tpu.memory_space<vmem>>, vector<1x1x128xi32>
    %216 = vector.shape_cast %215 : vector<1x1x128xi32> to vector<1x128xi32>
    %217 = vector.broadcast %216 : vector<1x128xi32> to vector<144x128xi32>
    %218 = arith.cmpi eq, %205, %217 : vector<144x128xi32>
    %cst_126 = arith.constant 1.000000e+00 : f32
    %cst_127 = arith.constant 0.000000e+00 : f32
    %219 = vector.broadcast %cst_126 : f32 to vector<144x128xf32>
    %220 = vector.broadcast %cst_127 : f32 to vector<144x128xf32>
    %221 = arith.select %218, %219, %220 : vector<144x128xi1>, vector<144x128xf32>
    %222 = arith.truncf %221 : vector<144x128xf32> to vector<144x128xbf16>
    %cst_128 = arith.constant dense<0.000000e+00> : vector<32x128xf32>
    %223 = tpu.matmul %204, %222, %cst_128 {dimension_numbers = #tpu.dot_dimension_numbers<[1], [0], [0], [1], [0, 0, 1, 1], [], []>} : vector<32x144xbf16>, vector<144x128xbf16>, vector<32x128xf32> -> vector<32x128xf32>
    %c2_129 = arith.constant 2 : index
    %c0_130 = arith.constant 0 : index
    %c0_131 = arith.constant 0 : index
    %224 = vector.load %arg14[%c2_129, %c0_130, %c0_131] : memref<4x1x128xi32, #tpu.memory_space<vmem>>, vector<1x1x128xi32>
    %225 = vector.shape_cast %224 : vector<1x1x128xi32> to vector<1x128xi32>
    %226 = vector.broadcast %225 : vector<1x128xi32> to vector<144x128xi32>
    %227 = arith.cmpi eq, %205, %226 : vector<144x128xi32>
    %cst_132 = arith.constant 1.000000e+00 : f32
    %cst_133 = arith.constant 0.000000e+00 : f32
    %228 = vector.broadcast %cst_132 : f32 to vector<144x128xf32>
    %229 = vector.broadcast %cst_133 : f32 to vector<144x128xf32>
    %230 = arith.select %227, %228, %229 : vector<144x128xi1>, vector<144x128xf32>
    %231 = arith.truncf %230 : vector<144x128xf32> to vector<144x128xbf16>
    %cst_134 = arith.constant dense<0.000000e+00> : vector<32x128xf32>
    %232 = tpu.matmul %204, %231, %cst_134 {dimension_numbers = #tpu.dot_dimension_numbers<[1], [0], [0], [1], [0, 0, 1, 1], [], []>} : vector<32x144xbf16>, vector<144x128xbf16>, vector<32x128xf32> -> vector<32x128xf32>
    %c3_135 = arith.constant 3 : index
    %c0_136 = arith.constant 0 : index
    %c0_137 = arith.constant 0 : index
    %233 = vector.load %arg14[%c3_135, %c0_136, %c0_137] : memref<4x1x128xi32, #tpu.memory_space<vmem>>, vector<1x1x128xi32>
    %234 = vector.shape_cast %233 : vector<1x1x128xi32> to vector<1x128xi32>
    %235 = vector.broadcast %234 : vector<1x128xi32> to vector<144x128xi32>
    %236 = arith.cmpi eq, %205, %235 : vector<144x128xi32>
    %cst_138 = arith.constant 1.000000e+00 : f32
    %cst_139 = arith.constant 0.000000e+00 : f32
    %237 = vector.broadcast %cst_138 : f32 to vector<144x128xf32>
    %238 = vector.broadcast %cst_139 : f32 to vector<144x128xf32>
    %239 = arith.select %236, %237, %238 : vector<144x128xi1>, vector<144x128xf32>
    %240 = arith.truncf %239 : vector<144x128xf32> to vector<144x128xbf16>
    %cst_140 = arith.constant dense<0.000000e+00> : vector<32x128xf32>
    %241 = tpu.matmul %204, %240, %cst_140 {dimension_numbers = #tpu.dot_dimension_numbers<[1], [0], [0], [1], [0, 0, 1, 1], [], []>} : vector<32x144xbf16>, vector<144x128xbf16>, vector<32x128xf32> -> vector<32x128xf32>
    %242 = tpu.concatenate %214, %223, %232, %241 in 0 : vector<32x128xf32>, vector<32x128xf32>, vector<32x128xf32>, vector<32x128xf32> -> vector<128x128xf32>
    %243 = arith.truncf %242 : vector<128x128xf32> to vector<128x128xbf16>
    %c0_141 = arith.constant 0 : index
    %c0_142 = arith.constant 0 : index
    %c0_143 = arith.constant 0 : index
    %244 = vector.load %arg15[%c0_141, %c0_142, %c0_143] : memref<4x64x128xbf16, #tpu.memory_space<vmem>>, vector<1x64x128xbf16>
    %245 = vector.shape_cast %244 : vector<1x64x128xbf16> to vector<64x128xbf16>
    %246 = vector.extract_strided_slice %243 {offsets = [0, 0], sizes = [128, 40], strides = [1, 1]} : vector<128x128xbf16> to vector<128x40xbf16>
    %cst_144 = arith.constant dense<0.000000e+00> : vector<64x40xf32>
    %247 = tpu.matmul %245, %246, %cst_144 {dimension_numbers = #tpu.dot_dimension_numbers<[1], [0], [0], [1], [0, 0, 1, 1], [], []>} : vector<64x128xbf16>, vector<128x40xbf16>, vector<64x40xf32> -> vector<64x40xf32>
    %c1_145 = arith.constant 1 : index
    %c0_146 = arith.constant 0 : index
    %c0_147 = arith.constant 0 : index
    %248 = vector.load %arg15[%c1_145, %c0_146, %c0_147] : memref<4x64x128xbf16, #tpu.memory_space<vmem>>, vector<1x64x128xbf16>
    %249 = vector.shape_cast %248 : vector<1x64x128xbf16> to vector<64x128xbf16>
    %250 = vector.extract_strided_slice %243 {offsets = [0, 2], sizes = [128, 40], strides = [1, 1]} : vector<128x128xbf16> to vector<128x40xbf16>
    %cst_148 = arith.constant dense<0.000000e+00> : vector<64x40xf32>
    %251 = tpu.matmul %249, %250, %cst_148 {dimension_numbers = #tpu.dot_dimension_numbers<[1], [0], [0], [1], [0, 0, 1, 1], [], []>} : vector<64x128xbf16>, vector<128x40xbf16>, vector<64x40xf32> -> vector<64x40xf32>
    %252 = arith.addf %247, %251 : vector<64x40xf32>
    %c2_149 = arith.constant 2 : index
    %c0_150 = arith.constant 0 : index
    %c0_151 = arith.constant 0 : index
    %253 = vector.load %arg15[%c2_149, %c0_150, %c0_151] : memref<4x64x128xbf16, #tpu.memory_space<vmem>>, vector<1x64x128xbf16>
    %254 = vector.shape_cast %253 : vector<1x64x128xbf16> to vector<64x128xbf16>
    %255 = vector.extract_strided_slice %243 {offsets = [0, 10], sizes = [128, 40], strides = [1, 1]} : vector<128x128xbf16> to vector<128x40xbf16>
    %cst_152 = arith.constant dense<0.000000e+00> : vector<64x40xf32>
    %256 = tpu.matmul %254, %255, %cst_152 {dimension_numbers = #tpu.dot_dimension_numbers<[1], [0], [0], [1], [0, 0, 1, 1], [], []>} : vector<64x128xbf16>, vector<128x40xbf16>, vector<64x40xf32> -> vector<64x40xf32>
    %257 = arith.addf %252, %256 : vector<64x40xf32>
    %c3_153 = arith.constant 3 : index
    %c0_154 = arith.constant 0 : index
    %c0_155 = arith.constant 0 : index
    %258 = vector.load %arg15[%c3_153, %c0_154, %c0_155] : memref<4x64x128xbf16, #tpu.memory_space<vmem>>, vector<1x64x128xbf16>
    %259 = vector.shape_cast %258 : vector<1x64x128xbf16> to vector<64x128xbf16>
    %260 = vector.extract_strided_slice %243 {offsets = [0, 12], sizes = [128, 40], strides = [1, 1]} : vector<128x128xbf16> to vector<128x40xbf16>
    %cst_156 = arith.constant dense<0.000000e+00> : vector<64x40xf32>
    %261 = tpu.matmul %259, %260, %cst_156 {dimension_numbers = #tpu.dot_dimension_numbers<[1], [0], [0], [1], [0, 0, 1, 1], [], []>} : vector<64x128xbf16>, vector<128x40xbf16>, vector<64x40xf32> -> vector<64x40xf32>
    %262 = arith.addf %257, %261 : vector<64x40xf32>
    %c0_157 = arith.constant 0 : index
    %c0_158 = arith.constant 0 : index
    %263 = vector.load %arg18[%c0_157, %c0_158] : memref<1x40xf32, #tpu.memory_space<vmem>>, vector<1x40xf32>
    %264 = vector.broadcast %263 : vector<1x40xf32> to vector<64x40xf32>
    %265 = arith.mulf %262, %264 : vector<64x40xf32>
    %cst_159 = arith.constant dense<0.000000e+00> : vector<64xf32>
    %266 = vector.multi_reduction <add>, %265, %cst_159 [1] : vector<64x40xf32> to vector<64xf32>
    %267 = vector.shape_cast %266 : vector<64xf32> to vector<64x1xf32>
    %cst_160 = arith.constant 3.125000e-02 : f32
    %268 = vector.broadcast %cst_160 : f32 to vector<64x1xf32>
    %269 = arith.mulf %267, %268 : vector<64x1xf32>
    %270 = vector.broadcast %269 : vector<64x1xf32> to vector<64x40xf32>
    %271 = arith.subf %262, %270 : vector<64x40xf32>
    %272 = vector.broadcast %263 : vector<1x40xf32> to vector<64x40xf32>
    %273 = arith.mulf %271, %272 : vector<64x40xf32>
    %274 = arith.mulf %273, %273 : vector<64x40xf32>
    %cst_161 = arith.constant dense<0.000000e+00> : vector<64xf32>
    %275 = vector.multi_reduction <add>, %274, %cst_161 [1] : vector<64x40xf32> to vector<64xf32>
    %276 = vector.shape_cast %275 : vector<64xf32> to vector<64x1xf32>
    %cst_162 = arith.constant 3.125000e-02 : f32
    %277 = vector.broadcast %cst_162 : f32 to vector<64x1xf32>
    %278 = arith.mulf %276, %277 : vector<64x1xf32>
    %c0_163 = arith.constant 0 : index
    %c0_164 = arith.constant 0 : index
    %279 = vector.load %arg16[%c0_163, %c0_164] : memref<64x1xf32, #tpu.memory_space<vmem>>, vector<64x1xf32>
    %cst_165 = arith.constant 9.99999974E-6 : f32
    %280 = vector.broadcast %cst_165 : f32 to vector<64x1xf32>
    %281 = arith.addf %278, %280 : vector<64x1xf32>
    %282 = math.rsqrt %281 : vector<64x1xf32>
    %283 = arith.mulf %279, %282 : vector<64x1xf32>
    %284 = vector.broadcast %269 : vector<64x1xf32> to vector<64x40xf32>
    %285 = arith.subf %262, %284 : vector<64x40xf32>
    %286 = vector.broadcast %283 : vector<64x1xf32> to vector<64x40xf32>
    %287 = arith.mulf %285, %286 : vector<64x40xf32>
    %c0_166 = arith.constant 0 : index
    %c0_167 = arith.constant 0 : index
    %288 = vector.load %arg17[%c0_166, %c0_167] : memref<64x1xf32, #tpu.memory_space<vmem>>, vector<64x1xf32>
    %289 = vector.broadcast %288 : vector<64x1xf32> to vector<64x40xf32>
    %290 = arith.addf %287, %289 : vector<64x40xf32>
    %cst_168 = arith.constant 0.000000e+00 : f32
    %291 = vector.broadcast %cst_168 : f32 to vector<64x40xf32>
    %292 = arith.cmpf ogt, %290, %291 : vector<64x40xf32>
    %cst_169 = arith.constant 2.000000e-01 : f32
    %293 = vector.broadcast %cst_169 : f32 to vector<64x40xf32>
    %294 = arith.mulf %293, %290 : vector<64x40xf32>
    %295 = arith.select %292, %290, %294 : vector<64x40xi1>, vector<64x40xf32>
    %296 = arith.truncf %295 : vector<64x40xf32> to vector<64x40xbf16>
    %297 = tpu.iota {dimensions = array<i32: 0>} : vector<40x256xi32>
    %c0_170 = arith.constant 0 : index
    %c0_171 = arith.constant 0 : index
    %c0_172 = arith.constant 0 : index
    %298 = vector.load %arg19[%c0_170, %c0_171, %c0_172] : memref<4x1x256xi32, #tpu.memory_space<vmem>>, vector<1x1x256xi32>
    %299 = vector.shape_cast %298 : vector<1x1x256xi32> to vector<1x256xi32>
    %300 = vector.broadcast %299 : vector<1x256xi32> to vector<40x256xi32>
    %301 = arith.cmpi eq, %297, %300 : vector<40x256xi32>
    %cst_173 = arith.constant 1.000000e+00 : f32
    %cst_174 = arith.constant 0.000000e+00 : f32
    %302 = vector.broadcast %cst_173 : f32 to vector<40x256xf32>
    %303 = vector.broadcast %cst_174 : f32 to vector<40x256xf32>
    %304 = arith.select %301, %302, %303 : vector<40x256xi1>, vector<40x256xf32>
    %305 = arith.truncf %304 : vector<40x256xf32> to vector<40x256xbf16>
    %cst_175 = arith.constant dense<0.000000e+00> : vector<64x256xf32>
    %306 = tpu.matmul %296, %305, %cst_175 {dimension_numbers = #tpu.dot_dimension_numbers<[1], [0], [0], [1], [0, 0, 1, 1], [], []>} : vector<64x40xbf16>, vector<40x256xbf16>, vector<64x256xf32> -> vector<64x256xf32>
    %c1_176 = arith.constant 1 : index
    %c0_177 = arith.constant 0 : index
    %c0_178 = arith.constant 0 : index
    %307 = vector.load %arg19[%c1_176, %c0_177, %c0_178] : memref<4x1x256xi32, #tpu.memory_space<vmem>>, vector<1x1x256xi32>
    %308 = vector.shape_cast %307 : vector<1x1x256xi32> to vector<1x256xi32>
    %309 = vector.broadcast %308 : vector<1x256xi32> to vector<40x256xi32>
    %310 = arith.cmpi eq, %297, %309 : vector<40x256xi32>
    %cst_179 = arith.constant 1.000000e+00 : f32
    %cst_180 = arith.constant 0.000000e+00 : f32
    %311 = vector.broadcast %cst_179 : f32 to vector<40x256xf32>
    %312 = vector.broadcast %cst_180 : f32 to vector<40x256xf32>
    %313 = arith.select %310, %311, %312 : vector<40x256xi1>, vector<40x256xf32>
    %314 = arith.truncf %313 : vector<40x256xf32> to vector<40x256xbf16>
    %cst_181 = arith.constant dense<0.000000e+00> : vector<64x256xf32>
    %315 = tpu.matmul %296, %314, %cst_181 {dimension_numbers = #tpu.dot_dimension_numbers<[1], [0], [0], [1], [0, 0, 1, 1], [], []>} : vector<64x40xbf16>, vector<40x256xbf16>, vector<64x256xf32> -> vector<64x256xf32>
    %c2_182 = arith.constant 2 : index
    %c0_183 = arith.constant 0 : index
    %c0_184 = arith.constant 0 : index
    %316 = vector.load %arg19[%c2_182, %c0_183, %c0_184] : memref<4x1x256xi32, #tpu.memory_space<vmem>>, vector<1x1x256xi32>
    %317 = vector.shape_cast %316 : vector<1x1x256xi32> to vector<1x256xi32>
    %318 = vector.broadcast %317 : vector<1x256xi32> to vector<40x256xi32>
    %319 = arith.cmpi eq, %297, %318 : vector<40x256xi32>
    %cst_185 = arith.constant 1.000000e+00 : f32
    %cst_186 = arith.constant 0.000000e+00 : f32
    %320 = vector.broadcast %cst_185 : f32 to vector<40x256xf32>
    %321 = vector.broadcast %cst_186 : f32 to vector<40x256xf32>
    %322 = arith.select %319, %320, %321 : vector<40x256xi1>, vector<40x256xf32>
    %323 = arith.truncf %322 : vector<40x256xf32> to vector<40x256xbf16>
    %cst_187 = arith.constant dense<0.000000e+00> : vector<64x256xf32>
    %324 = tpu.matmul %296, %323, %cst_187 {dimension_numbers = #tpu.dot_dimension_numbers<[1], [0], [0], [1], [0, 0, 1, 1], [], []>} : vector<64x40xbf16>, vector<40x256xbf16>, vector<64x256xf32> -> vector<64x256xf32>
    %c3_188 = arith.constant 3 : index
    %c0_189 = arith.constant 0 : index
    %c0_190 = arith.constant 0 : index
    %325 = vector.load %arg19[%c3_188, %c0_189, %c0_190] : memref<4x1x256xi32, #tpu.memory_space<vmem>>, vector<1x1x256xi32>
    %326 = vector.shape_cast %325 : vector<1x1x256xi32> to vector<1x256xi32>
    %327 = vector.broadcast %326 : vector<1x256xi32> to vector<40x256xi32>
    %328 = arith.cmpi eq, %297, %327 : vector<40x256xi32>
    %cst_191 = arith.constant 1.000000e+00 : f32
    %cst_192 = arith.constant 0.000000e+00 : f32
    %329 = vector.broadcast %cst_191 : f32 to vector<40x256xf32>
    %330 = vector.broadcast %cst_192 : f32 to vector<40x256xf32>
    %331 = arith.select %328, %329, %330 : vector<40x256xi1>, vector<40x256xf32>
    %332 = arith.truncf %331 : vector<40x256xf32> to vector<40x256xbf16>
    %cst_193 = arith.constant dense<0.000000e+00> : vector<64x256xf32>
    %333 = tpu.matmul %296, %332, %cst_193 {dimension_numbers = #tpu.dot_dimension_numbers<[1], [0], [0], [1], [0, 0, 1, 1], [], []>} : vector<64x40xbf16>, vector<40x256xbf16>, vector<64x256xf32> -> vector<64x256xf32>
    %334 = tpu.concatenate %306, %315, %324, %333 in 0 : vector<64x256xf32>, vector<64x256xf32>, vector<64x256xf32>, vector<64x256xf32> -> vector<256x256xf32>
    %335 = arith.truncf %334 : vector<256x256xf32> to vector<256x256xbf16>
    %c0_194 = arith.constant 0 : index
    %c0_195 = arith.constant 0 : index
    %c0_196 = arith.constant 0 : index
    %336 = vector.load %arg20[%c0_194, %c0_195, %c0_196] : memref<4x8x256xbf16, #tpu.memory_space<vmem>>, vector<1x8x256xbf16>
    %337 = vector.shape_cast %336 : vector<1x8x256xbf16> to vector<8x256xbf16>
    %338 = vector.extract_strided_slice %335 {offsets = [0, 0], sizes = [256, 128], strides = [1, 1]} : vector<256x256xbf16> to vector<256x128xbf16>
    %cst_197 = arith.constant dense<0.000000e+00> : vector<8x128xf32>
    %339 = tpu.matmul %337, %338, %cst_197 {dimension_numbers = #tpu.dot_dimension_numbers<[1], [0], [0], [1], [0, 0, 1, 1], [], []>} : vector<8x256xbf16>, vector<256x128xbf16>, vector<8x128xf32> -> vector<8x128xf32>
    %c1_198 = arith.constant 1 : index
    %c0_199 = arith.constant 0 : index
    %c0_200 = arith.constant 0 : index
    %340 = vector.load %arg20[%c1_198, %c0_199, %c0_200] : memref<4x8x256xbf16, #tpu.memory_space<vmem>>, vector<1x8x256xbf16>
    %341 = vector.shape_cast %340 : vector<1x8x256xbf16> to vector<8x256xbf16>
    %342 = vector.extract_strided_slice %335 {offsets = [0, 2], sizes = [256, 128], strides = [1, 1]} : vector<256x256xbf16> to vector<256x128xbf16>
    %cst_201 = arith.constant dense<0.000000e+00> : vector<8x128xf32>
    %343 = tpu.matmul %341, %342, %cst_201 {dimension_numbers = #tpu.dot_dimension_numbers<[1], [0], [0], [1], [0, 0, 1, 1], [], []>} : vector<8x256xbf16>, vector<256x128xbf16>, vector<8x128xf32> -> vector<8x128xf32>
    %344 = arith.addf %339, %343 : vector<8x128xf32>
    %c2_202 = arith.constant 2 : index
    %c0_203 = arith.constant 0 : index
    %c0_204 = arith.constant 0 : index
    %345 = vector.load %arg20[%c2_202, %c0_203, %c0_204] : memref<4x8x256xbf16, #tpu.memory_space<vmem>>, vector<1x8x256xbf16>
    %346 = vector.shape_cast %345 : vector<1x8x256xbf16> to vector<8x256xbf16>
    %347 = vector.extract_strided_slice %335 {offsets = [0, 4], sizes = [256, 128], strides = [1, 1]} : vector<256x256xbf16> to vector<256x128xbf16>
    %cst_205 = arith.constant dense<0.000000e+00> : vector<8x128xf32>
    %348 = tpu.matmul %346, %347, %cst_205 {dimension_numbers = #tpu.dot_dimension_numbers<[1], [0], [0], [1], [0, 0, 1, 1], [], []>} : vector<8x256xbf16>, vector<256x128xbf16>, vector<8x128xf32> -> vector<8x128xf32>
    %349 = arith.addf %344, %348 : vector<8x128xf32>
    %c3_206 = arith.constant 3 : index
    %c0_207 = arith.constant 0 : index
    %c0_208 = arith.constant 0 : index
    %350 = vector.load %arg20[%c3_206, %c0_207, %c0_208] : memref<4x8x256xbf16, #tpu.memory_space<vmem>>, vector<1x8x256xbf16>
    %351 = vector.shape_cast %350 : vector<1x8x256xbf16> to vector<8x256xbf16>
    %352 = vector.extract_strided_slice %335 {offsets = [0, 6], sizes = [256, 128], strides = [1, 1]} : vector<256x256xbf16> to vector<256x128xbf16>
    %cst_209 = arith.constant dense<0.000000e+00> : vector<8x128xf32>
    %353 = tpu.matmul %351, %352, %cst_209 {dimension_numbers = #tpu.dot_dimension_numbers<[1], [0], [0], [1], [0, 0, 1, 1], [], []>} : vector<8x256xbf16>, vector<256x128xbf16>, vector<8x128xf32> -> vector<8x128xf32>
    %354 = arith.addf %349, %353 : vector<8x128xf32>
    %c0_210 = arith.constant 0 : index
    %c0_211 = arith.constant 0 : index
    %355 = vector.load %arg21[%c0_210, %c0_211] : memref<8x1xf32, #tpu.memory_space<vmem>>, vector<8x1xf32>
    %356 = vector.broadcast %355 : vector<8x1xf32> to vector<8x128xf32>
    %357 = arith.addf %354, %356 : vector<8x128xf32>
    %358 = arith.negf %357 : vector<8x128xf32>
    %359 = math.exp %358 : vector<8x128xf32>
    %cst_212 = arith.constant 1.000000e+00 : f32
    %360 = vector.broadcast %cst_212 : f32 to vector<8x128xf32>
    %361 = arith.addf %360, %359 : vector<8x128xf32>
    %362 = arith.divf %360, %361 : vector<8x128xf32>
    %c0_213 = arith.constant 0 : index
    %c0_214 = arith.constant 0 : index
    %363 = vector.load %arg22[%c0_213, %c0_214] : memref<8x128xf32, #tpu.memory_space<vmem>>, vector<8x128xf32>
    tpu.vector_store %arg22[%c0_213, %c0_214], %362 {strides = array<i32>} : memref<8x128xf32, #tpu.memory_space<vmem>>, vector<8x128xf32>,
    return
  }
  func.func @transform_0(%arg0: i32) -> (i32, i32, i32) {
    %c0_i32 = arith.constant 0 : i32
    %c0_i32_0 = arith.constant 0 : i32
    %c0_i32_1 = arith.constant 0 : i32
    %c0_i32_2 = arith.constant 0 : i32
    return %c0_i32, %c0_i32_0, %c0_i32_1 : i32, i32, i32
  }
  func.func @transform_1(%arg0: i32) -> (i32, i32, i32) {
    %c0_i32 = arith.constant 0 : i32
    %c0_i32_0 = arith.constant 0 : i32
    %c0_i32_1 = arith.constant 0 : i32
    %c0_i32_2 = arith.constant 0 : i32
    return %c0_i32, %c0_i32_0, %c0_i32_1 : i32, i32, i32
  }
  func.func @transform_2(%arg0: i32) -> (i32, i32) {
    %c0_i32 = arith.constant 0 : i32
    %c0_i32_0 = arith.constant 0 : i32
    %c0_i32_1 = arith.constant 0 : i32
    return %c0_i32, %c0_i32_0 : i32, i32
  }
  func.func @transform_3(%arg0: i32) -> (i32, i32) {
    %c0_i32 = arith.constant 0 : i32
    %c0_i32_0 = arith.constant 0 : i32
    %c0_i32_1 = arith.constant 0 : i32
    return %c0_i32, %c0_i32_0 : i32, i32
  }
  func.func @transform_4(%arg0: i32) -> (i32, i32, i32) {
    %c0_i32 = arith.constant 0 : i32
    %c0_i32_0 = arith.constant 0 : i32
    %c0_i32_1 = arith.constant 0 : i32
    %c0_i32_2 = arith.constant 0 : i32
    return %c0_i32, %c0_i32_0, %c0_i32_1 : i32, i32, i32
  }
  func.func @transform_5(%arg0: i32) -> (i32, i32) {
    %c0_i32 = arith.constant 0 : i32
    %c0_i32_0 = arith.constant 0 : i32
    %c0_i32_1 = arith.constant 0 : i32
    return %c0_i32, %c0_i32_0 : i32, i32
  }
  func.func @transform_6(%arg0: i32) -> (i32, i32) {
    %c0_i32 = arith.constant 0 : i32
    %c0_i32_0 = arith.constant 0 : i32
    %c0_i32_1 = arith.constant 0 : i32
    return %c0_i32, %c0_i32_0 : i32, i32
  }
  func.func @transform_7(%arg0: i32) -> (i32, i32) {
    %c0_i32 = arith.constant 0 : i32
    %c0_i32_0 = arith.constant 0 : i32
    %c0_i32_1 = arith.constant 0 : i32
    return %c0_i32, %c0_i32_0 : i32, i32
  }
  func.func @transform_8(%arg0: i32) -> (i32, i32, i32) {
    %c0_i32 = arith.constant 0 : i32
    %c0_i32_0 = arith.constant 0 : i32
    %c0_i32_1 = arith.constant 0 : i32
    %c0_i32_2 = arith.constant 0 : i32
    return %c0_i32, %c0_i32_0, %c0_i32_1 : i32, i32, i32
  }
  func.func @transform_9(%arg0: i32) -> (i32, i32, i32) {
    %c0_i32 = arith.constant 0 : i32
    %c0_i32_0 = arith.constant 0 : i32
    %c0_i32_1 = arith.constant 0 : i32
    %c0_i32_2 = arith.constant 0 : i32
    return %c0_i32, %c0_i32_0, %c0_i32_1 : i32, i32, i32
  }
  func.func @transform_10(%arg0: i32) -> (i32, i32) {
    %c0_i32 = arith.constant 0 : i32
    %c0_i32_0 = arith.constant 0 : i32
    %c0_i32_1 = arith.constant 0 : i32
    return %c0_i32, %c0_i32_0 : i32, i32
  }
  func.func @transform_11(%arg0: i32) -> (i32, i32) {
    %c0_i32 = arith.constant 0 : i32
    %c0_i32_0 = arith.constant 0 : i32
    %c0_i32_1 = arith.constant 0 : i32
    return %c0_i32, %c0_i32_0 : i32, i32
  }
  func.func @transform_12(%arg0: i32) -> (i32, i32) {
    %c0_i32 = arith.constant 0 : i32
    %c0_i32_0 = arith.constant 0 : i32
    %c0_i32_1 = arith.constant 0 : i32
    return %c0_i32, %c0_i32_0 : i32, i32
  }
  func.func @transform_13(%arg0: i32) -> (i32, i32, i32) {
    %c0_i32 = arith.constant 0 : i32
    %c0_i32_0 = arith.constant 0 : i32
    %c0_i32_1 = arith.constant 0 : i32
    %c0_i32_2 = arith.constant 0 : i32
    return %c0_i32, %c0_i32_0, %c0_i32_1 : i32, i32, i32
  }
  func.func @transform_14(%arg0: i32) -> (i32, i32, i32) {
    %c0_i32 = arith.constant 0 : i32
    %c0_i32_0 = arith.constant 0 : i32
    %c0_i32_1 = arith.constant 0 : i32
    %c0_i32_2 = arith.constant 0 : i32
    return %c0_i32, %c0_i32_0, %c0_i32_1 : i32, i32, i32
  }
  func.func @transform_15(%arg0: i32) -> (i32, i32) {
    %c0_i32 = arith.constant 0 : i32
    %c0_i32_0 = arith.constant 0 : i32
    %c0_i32_1 = arith.constant 0 : i32
    return %c0_i32, %c0_i32_0 : i32, i32
  }
  func.func @transform_16(%arg0: i32) -> (i32, i32) {
    %c0_i32 = arith.constant 0 : i32
    %c0_i32_0 = arith.constant 0 : i32
    %c0_i32_1 = arith.constant 0 : i32
    return %c0_i32, %c0_i32_0 : i32, i32
  }
  func.func @transform_17(%arg0: i32) -> (i32, i32) {
    %c0_i32 = arith.constant 0 : i32
    %c0_i32_0 = arith.constant 0 : i32
    %c0_i32_1 = arith.constant 0 : i32
    return %c0_i32, %c0_i32_0 : i32, i32
  }
  func.func @transform_18(%arg0: i32) -> (i32, i32, i32) {
    %c0_i32 = arith.constant 0 : i32
    %c0_i32_0 = arith.constant 0 : i32
    %c0_i32_1 = arith.constant 0 : i32
    %c0_i32_2 = arith.constant 0 : i32
    return %c0_i32, %c0_i32_0, %c0_i32_1 : i32, i32, i32
  }
  func.func @transform_19(%arg0: i32) -> (i32, i32, i32) {
    %c0_i32 = arith.constant 0 : i32
    %c0_i32_0 = arith.constant 0 : i32
    %c0_i32_1 = arith.constant 0 : i32
    %c0_i32_2 = arith.constant 0 : i32
    return %c0_i32, %c0_i32_0, %c0_i32_1 : i32, i32, i32
  }
  func.func @transform_20(%arg0: i32) -> (i32, i32) {
    %c0_i32 = arith.constant 0 : i32
    %c0_i32_0 = arith.constant 0 : i32
    %c0_i32_1 = arith.constant 0 : i32
    return %c0_i32, %c0_i32_0 : i32, i32
  }
  func.func @transform_21(%arg0: i32) -> (i32, i32) {
    %c0_i32 = arith.constant 0 : i32
    %c0_i32_0 = arith.constant 0 : i32
    %c0_i32_1 = arith.constant 0 : i32
    return %c0_i32, %c0_i32_0 : i32, i32
  }
}

</mosaic_0001>

<llo_original>
// kernel: discriminator_forward.1
$region0: #{discriminator_forward.1}
  #allocation0 [shape = 'u32[]', space=smem, size = 0x4, offset = 0x4, fixed_abs, tag = 'smem constant byte address 0x4 - core index']
  #allocation1 [shape = 'u32[144,128]{1,0:T(1,128)}', space=vmem, size = 0x12000, scoped, tag = 'internal scratch']
  %s0 = inlined_call_operand.vmem [shape: bf16[4,48,640], index: 0, kind: input, shape index: {}]
  %s1 = inlined_call_operand.vmem [shape: f32[4,1,640], index: 1, kind: input, shape index: {}]
  %s2 = inlined_call_operand.vmem [shape: bf16[8,48], index: 2, kind: input, shape index: {}]
  %s3 = inlined_call_operand.vmem [shape: f32[8,1], index: 3, kind: input, shape index: {}]
  %s4 = inlined_call_operand.vmem [shape: bf16[4,16,32], index: 4, kind: input, shape index: {}]
  %s5 = inlined_call_operand.vmem [shape: f32[16,1], index: 5, kind: input, shape index: {}]
  %s6 = inlined_call_operand.vmem [shape: f32[16,1], index: 6, kind: input, shape index: {}]
  %s7 = inlined_call_operand.vmem [shape: f32[1,544], index: 7, kind: input, shape index: {}]
  %s8 = inlined_call_operand.vmem [shape: s32[4,1,256], index: 8, kind: input, shape index: {}]
  %s9 = inlined_call_operand.vmem [shape: bf16[4,32,64], index: 9, kind: input, shape index: {}]
  %s10 = inlined_call_operand.vmem [shape: f32[32,1], index: 10, kind: input, shape index: {}]
  %s11 = inlined_call_operand.vmem [shape: f32[32,1], index: 11, kind: input, shape index: {}]
  %s12 = inlined_call_operand.vmem [shape: f32[1,144], index: 12, kind: input, shape index: {}]
  %s13 = inlined_call_operand.vmem [shape: s32[4,1,128], index: 13, kind: input, shape index: {}]
  %s14 = inlined_call_operand.vmem [shape: bf16[4,64,128], index: 14, kind: input, shape index: {}]
  %s15 = inlined_call_operand.vmem [shape: f32[64,1], index: 15, kind: input, shape index: {}]
  %s16 = inlined_call_operand.vmem [shape: f32[64,1], index: 16, kind: input, shape index: {}]
  %s17 = inlined_call_operand.vmem [shape: f32[1,40], index: 17, kind: input, shape index: {}]
  %s18 = inlined_call_operand.vmem [shape: s32[4,1,256], index: 18, kind: input, shape index: {}]
  %s19 = inlined_call_operand.vmem [shape: bf16[4,8,256], index: 19, kind: input, shape index: {}]
  %s20 = inlined_call_operand.vmem [shape: f32[8,1], index: 20, kind: input, shape index: {}]
  %s21 = inlined_call_operand.vmem [shape: f32[8,128], index: 21, kind: output, shape index: {}]
  %s22 = sld [smem:[#allocation0]]
  $region94: #{discriminator_forward.1} parent=0
    _
  %s24 = ssub.s32 1, %s22
  %s25 = scalar_select 0, %s24, %s22
  // Predicated region
  $region2: #{discriminator_forward.1} parent=0 // pred_check
    _
  $region3: #{discriminator_forward.1} parent=0 // pred_check_branch
    %27 = sbr.rel (0) target = $region5
  $region4: #{discriminator_forward.1} parent=0 // pred_region
    _
  $region5: #{discriminator_forward.1} parent=0 // pred_fallthru
    _
  // Predicated region
  $region6: #{discriminator_forward.1} parent=0 // pred_check
    _
  $region7: #{discriminator_forward.1} parent=0 // pred_check_branch
    %29 = sbr.rel (0) target = $region9
  $region8: #{discriminator_forward.1} parent=0 // pred_region
    _
  $region9: #{discriminator_forward.1} parent=0 // pred_fallthru
    _
  // Predicated region
  $region10: #{discriminator_forward.1} parent=0 // pred_check
    _
  $region11: #{discriminator_forward.1} parent=0 // pred_check_branch
    %31 = sbr.rel (0) target = $region13
  $region12: #{discriminator_forward.1} parent=0 // pred_region
    _
  $region13: #{discriminator_forward.1} parent=0 // pred_fallthru
    _
  // Predicated region
  $region14: #{discriminator_forward.1} parent=0 // pred_check
    _
  $region15: #{discriminator_forward.1} parent=0 // pred_check_branch
    %33 = sbr.rel (0) target = $region17
  $region16: #{discriminator_forward.1} parent=0 // pred_region
    _
  $region17: #{discriminator_forward.1} parent=0 // pred_fallthru
    _
  // Predicated region
  $region18: #{discriminator_forward.1} parent=0 // pred_check
    _
  $region19: #{discriminator_forward.1} parent=0 // pred_check_branch
    %35 = sbr.rel (0) target = $region21
  $region20: #{discriminator_forward.1} parent=0 // pred_region
    _
  $region21: #{discriminator_forward.1} parent=0 // pred_fallthru
    _
  // Predicated region
  $region22: #{discriminator_forward.1} parent=0 // pred_check
    _
  $region23: #{discriminator_forward.1} parent=0 // pred_check_branch
    %37 = sbr.rel (0) target = $region25
  $region24: #{discriminator_forward.1} parent=0 // pred_region
    _
  $region25: #{discriminator_forward.1} parent=0 // pred_fallthru
    _
  // Predicated region
  $region26: #{discriminator_forward.1} parent=0 // pred_check
    _
  $region27: #{discriminator_forward.1} parent=0 // pred_check_branch
    %39 = sbr.rel (0) target = $region29
  $region28: #{discriminator_forward.1} parent=0 // pred_region
    _
  $region29: #{discriminator_forward.1} parent=0 // pred_fallthru
    _
  // Predicated region
  $region30: #{discriminator_forward.1} parent=0 // pred_check
    _
  $region31: #{discriminator_forward.1} parent=0 // pred_check_branch
    %41 = sbr.rel (0) target = $region33
  $region32: #{discriminator_forward.1} parent=0 // pred_region
    _
  $region33: #{discriminator_forward.1} parent=0 // pred_fallthru
    _
  // Predicated region
  $region34: #{discriminator_forward.1} parent=0 // pred_check
    _
  $region35: #{discriminator_forward.1} parent=0 // pred_check_branch
    %43 = sbr.rel (0) target = $region37
  $region36: #{discriminator_forward.1} parent=0 // pred_region
    _
  $region37: #{discriminator_forward.1} parent=0 // pred_fallthru
    _
  // Predicated region
  $region38: #{discriminator_forward.1} parent=0 // pred_check
    _
  $region39: #{discriminator_forward.1} parent=0 // pred_check_branch
    %45 = sbr.rel (0) target = $region41
  $region40: #{discriminator_forward.1} parent=0 // pred_region
    _
  $region41: #{discriminator_forward.1} parent=0 // pred_fallthru
    _
  // Predicated region
  $region42: #{discriminator_forward.1} parent=0 // pred_check
    _
  $region43: #{discriminator_forward.1} parent=0 // pred_check_branch
    %47 = sbr.rel (0) target = $region45
  $region44: #{discriminator_forward.1} parent=0 // pred_region
    _
  $region45: #{discriminator_forward.1} parent=0 // pred_fallthru
    _
  // Predicated region
  $region46: #{discriminator_forward.1} parent=0 // pred_check
    _
  $region47: #{discriminator_forward.1} parent=0 // pred_check_branch
    %49 = sbr.rel (0) target = $region49
  $region48: #{discriminator_forward.1} parent=0 // pred_region
    _
  $region49: #{discriminator_forward.1} parent=0 // pred_fallthru
    _
  // Predicated region
  $region50: #{discriminator_forward.1} parent=0 // pred_check
    _
  $region51: #{discriminator_forward.1} parent=0 // pred_check_branch
    %51 = sbr.rel (0) target = $region53
  $region52: #{discriminator_forward.1} parent=0 // pred_region
    _
  $region53: #{discriminator_forward.1} parent=0 // pred_fallthru
    _
  // Predicated region
  $region54: #{discriminator_forward.1} parent=0 // pred_check
    _
  $region55: #{discriminator_forward.1} parent=0 // pred_check_branch
    %53 = sbr.rel (0) target = $region57
  $region56: #{discriminator_forward.1} parent=0 // pred_region
    _
  $region57: #{discriminator_forward.1} parent=0 // pred_fallthru
    _
  // Predicated region
  $region58: #{discriminator_forward.1} parent=0 // pred_check
    _
  $region59: #{discriminator_forward.1} parent=0 // pred_check_branch
    %55 = sbr.rel (0) target = $region61
  $region60: #{discriminator_forward.1} parent=0 // pred_region
    _
  $region61: #{discriminator_forward.1} parent=0 // pred_fallthru
    _
  // Predicated region
  $region62: #{discriminator_forward.1} parent=0 // pred_check
    _
  $region63: #{discriminator_forward.1} parent=0 // pred_check_branch
    %57 = sbr.rel (0) target = $region65
  $region64: #{discriminator_forward.1} parent=0 // pred_region
    _
  $region65: #{discriminator_forward.1} parent=0 // pred_fallthru
    _
  // Predicated region
  $region66: #{discriminator_forward.1} parent=0 // pred_check
    _
  $region67: #{discriminator_forward.1} parent=0 // pred_check_branch
    %59 = sbr.rel (0) target = $region69
  $region68: #{discriminator_forward.1} parent=0 // pred_region
    _
  $region69: #{discriminator_forward.1} parent=0 // pred_fallthru
    _
  // Predicated region
  $region70: #{discriminator_forward.1} parent=0 // pred_check
    _
  $region71: #{discriminator_forward.1} parent=0 // pred_check_branch
    %61 = sbr.rel (0) target = $region73
  $region72: #{discriminator_forward.1} parent=0 // pred_region
    _
  $region73: #{discriminator_forward.1} parent=0 // pred_fallthru
    _
  // Predicated region
  $region74: #{discriminator_forward.1} parent=0 // pred_check
    _
  $region75: #{discriminator_forward.1} parent=0 // pred_check_branch
    %63 = sbr.rel (0) target = $region77
  $region76: #{discriminator_forward.1} parent=0 // pred_region
    _
  $region77: #{discriminator_forward.1} parent=0 // pred_fallthru
    _
  // Predicated region
  $region78: #{discriminator_forward.1} parent=0 // pred_check
    _
  $region79: #{discriminator_forward.1} parent=0 // pred_check_branch
    %65 = sbr.rel (0) target = $region81
  $region80: #{discriminator_forward.1} parent=0 // pred_region
    _
  $region81: #{discriminator_forward.1} parent=0 // pred_fallthru
    _
  // Predicated region
  $region82: #{discriminator_forward.1} parent=0 // pred_check
    _
  $region83: #{discriminator_forward.1} parent=0 // pred_check_branch
    %67 = sbr.rel (0) target = $region85
  $region84: #{discriminator_forward.1} parent=0 // pred_region
    _
  $region85: #{discriminator_forward.1} parent=0 // pred_fallthru
    _
  %v69 = vld [vmem:[%s2] sm:$0xf]
  %v70 = vld [vmem:[%s3] sm:$0xff]
  %v71 = vld [vmem:[%s0] sm:$0xff]
  %v72 = vld [vmem:[%s0 + $0x8] sm:$0xff]
  %v73 = vld [vmem:[%s0 + $0x10] sm:$0xf]
  %v74 = vld [vmem:[%s0 + $0x14] sm:$0xff]
  %v75 = vld [vmem:[%s0 + $0x1c] sm:$0xff]
  %v76 = vld [vmem:[%s0 + $0x24] sm:$0xf]
  %v77 = vld [vmem:[%s0 + $0x28] sm:$0xff]
  %v78 = vld [vmem:[%s0 + $0x30] sm:$0xff]
  %v79 = vld [vmem:[%s0 + $0x38] sm:$0xf]
  %v80 = vld [vmem:[%s0 + $0x3c] sm:$0xff]
  %v81 = vld [vmem:[%s0 + $0x44] sm:$0xff]
  %v82 = vld [vmem:[%s0 + $0x4c] sm:$0xf]
  %v83 = vld [vmem:[%s0 + $0x50] sm:$0xff]
  %v84 = vld [vmem:[%s0 + $0x58] sm:$0xff]
  %v85 = vld [vmem:[%s0 + $0x60] sm:$0xf]
  %v86 = vld [vmem:[%s0 + $0x64] sm:$0xff]
  %v87 = vld [vmem:[%s0 + $0x6c] sm:$0xff]
  %v88 = vld [vmem:[%s0 + $0x74] sm:$0xf]
  %90 = vset.pattern.permute.xlu0 0
  %91 = vperm.xlu0 %90, %v70
  %v92 = vpop.permute.xlu0 %91
  %v112 = vunpack.c.l.b16 %v71
  %v113 = vunpack.c.h.b16 %v71
  %v114 = vunpack.c.l.b16 %v72
  %v115 = vunpack.c.h.b16 %v72
  %v116 = vunpack.c.l.b16 %v73
  %v117 = vunpack.c.l.b16 %v74
  %v118 = vunpack.c.h.b16 %v74
  %v119 = vunpack.c.l.b16 %v75
  %v120 = vunpack.c.h.b16 %v75
  %v121 = vunpack.c.l.b16 %v76
  %v122 = vunpack.c.l.b16 %v77
  %v123 = vunpack.c.h.b16 %v77
  %v124 = vunpack.c.l.b16 %v78
  %v125 = vunpack.c.h.b16 %v78
  %v126 = vunpack.c.l.b16 %v79
  %v127 = vunpack.c.l.b16 %v80
  %v128 = vunpack.c.h.b16 %v80
  %v129 = vunpack.c.l.b16 %v81
  %v130 = vunpack.c.h.b16 %v81
  %v131 = vunpack.c.l.b16 %v82
  %v132 = vunpack.c.l.b16 %v83
  %v133 = vunpack.c.h.b16 %v83
  %v134 = vunpack.c.l.b16 %v84
  %v135 = vunpack.c.h.b16 %v84
  %v136 = vunpack.c.l.b16 %v85
  %v137 = vunpack.c.l.b16 %v86
  %v138 = vunpack.c.h.b16 %v86
  %v139 = vunpack.c.l.b16 %v87
  %v140 = vunpack.c.h.b16 %v87
  %v141 = vunpack.c.l.b16 %v88
  %v142 = vpack.c.b16 %v117, %v112
  %v143 = vpack.c.b16 %v118, %v113
  %v144 = vpack.c.b16 %v119, %v114
  %v145 = vpack.c.b16 %v120, %v115
  %v146 = vpack.c.b16 %v121, %v116
  %v147 = vpack.c.b16 %v127, %v122
  %v148 = vpack.c.b16 %v128, %v123
  %v149 = vpack.c.b16 %v129, %v124
  %v150 = vpack.c.b16 %v130, %v125
  %v151 = vpack.c.b16 %v131, %v126
  %v152 = vpack.c.b16 %v137, %v132
  %v153 = vpack.c.b16 %v138, %v133
  %v154 = vpack.c.b16 %v139, %v134
  %v155 = vpack.c.b16 %v140, %v135
  %v156 = vpack.c.b16 %v141, %v136
  %vm172 = vcmask 392192
  %v174 = vsel %vm172, %v69, 0
  %176 = vmatprep.subr.bf16.mxu0 0
  %177 = vmatpush1.bf16.msra.mxu0 0
  %178 = vmatprep.subr.bf16.mxu0 0
  %179 = vmatpush1.bf16.msra.mxu0 0
  %180 = vmatprep.subr.bf16.mxu0 0
  %181 = vmatpush1.bf16.msra.mxu0 0
  %182 = vmatprep.subr.bf16.mxu0 0
  %183 = vmatpush1.bf16.msra.mxu0 0
  %184 = vmatprep.subr.bf16.mxu0 0
  %185 = vmatpush1.bf16.msra.mxu0 0
  %186 = vmatprep.subr.bf16.mxu0 %v153
  %187 = vmatpush1.bf16.msra.mxu0 %v152
  %188 = vmatprep.subr.bf16.mxu0 %v148
  %189 = vmatpush1.bf16.msra.mxu0 %v147
  %190 = vmatprep.subr.bf16.mxu0 %v143
  %191 = vmatpush1.bf16.msra.mxu0 %v142
  %192 = vmatprep.subr.bf16.mxu0 0
  %193 = vmatpush2.bf16.msra.mxu0 0
  %194 = vmatprep.subr.bf16.mxu0 0
  %195 = vmatpush2.bf16.msra.mxu0 0
  %196 = vmatprep.subr.bf16.mxu0 0
  %197 = vmatpush2.bf16.msra.mxu0 0
  %198 = vmatprep.subr.bf16.mxu0 0
  %199 = vmatpush2.bf16.msra.mxu0 0
  %200 = vmatprep.subr.bf16.mxu0 0
  %201 = vmatpush2.bf16.msra.mxu0 0
  %202 = vmatprep.subr.bf16.mxu0 0
  %203 = vmatpush2.bf16.msra.mxu0 0
  %204 = vmatprep.subr.bf16.mxu0 0
  %205 = vmatpush2.bf16.msra.mxu0 0
  %206 = vmatprep.subr.bf16.mxu0 0
  %207 = vmatpush2.bf16.msra.mxu0 0
  %208 = vmatprep.mubr.bf16.mxu0 0
  %209 = vmatmul.mubr.bf16.gmra.mxu0 %v174
  %v210 = vpop.f32.mrf.mxu0
  %v211 = vadd.f32 %v92, %v210
  %v212 = vpop.f32.mrf.mxu0
  %v213 = vadd.f32 %v92, %v212
  %v214 = vpop.f32.mrf.mxu0
  %v215 = vpop.f32.mrf.mxu0
  %216 = vdwg.mxu0
  %217 = vmatprep.subr.bf16.mxu0 0
  %218 = vmatpush1.bf16.msra.mxu0 0
  %219 = vmatprep.subr.bf16.mxu0 0
  %220 = vmatpush1.bf16.msra.mxu0 0
  %221 = vmatprep.subr.bf16.mxu0 0
  %222 = vmatpush1.bf16.msra.mxu0 0
  %223 = vmatprep.subr.bf16.mxu0 0
  %224 = vmatpush1.bf16.msra.mxu0 0
  %225 = vmatprep.subr.bf16.mxu0 0
  %226 = vmatpush1.bf16.msra.mxu0 0
  %227 = vmatprep.subr.bf16.mxu0 %v155
  %228 = vmatpush1.bf16.msra.mxu0 %v154
  %229 = vmatprep.subr.bf16.mxu0 %v150
  %230 = vmatpush1.bf16.msra.mxu0 %v149
  %231 = vmatprep.subr.bf16.mxu0 %v145
  %232 = vmatpush1.bf16.msra.mxu0 %v144
  %233 = vmatprep.subr.bf16.mxu0 0
  %234 = vmatpush2.bf16.msra.mxu0 0
  %235 = vmatprep.subr.bf16.mxu0 0
  %236 = vmatpush2.bf16.msra.mxu0 0
  %237 = vmatprep.subr.bf16.mxu0 0
  %238 = vmatpush2.bf16.msra.mxu0 0
  %239 = vmatprep.subr.bf16.mxu0 0
  %240 = vmatpush2.bf16.msra.mxu0 0
  %241 = vmatprep.subr.bf16.mxu0 0
  %242 = vmatpush2.bf16.msra.mxu0 0
  %243 = vmatprep.subr.bf16.mxu0 0
  %244 = vmatpush2.bf16.msra.mxu0 0
  %245 = vmatprep.subr.bf16.mxu0 0
  %246 = vmatpush2.bf16.msra.mxu0 0
  %247 = vmatprep.subr.bf16.mxu0 0
  %248 = vmatpush2.bf16.msra.mxu0 0
  %249 = vmatprep.mubr.bf16.mxu0 0
  %250 = vmatmul.mubr.bf16.gmra.mxu0 %v174
  %v251 = vpop.f32.mrf.mxu0
  %v252 = vadd.f32 %v92, %v251
  %v253 = vpop.f32.mrf.mxu0
  %v254 = vadd.f32 %v92, %v253
  %v255 = vpop.f32.mrf.mxu0
  %v256 = vpop.f32.mrf.mxu0
  %257 = vdwg.mxu0
  %258 = vmatprep.subr.bf16.mxu0 0
  %259 = vmatpush1.bf16.msra.mxu0 0
  %260 = vmatprep.subr.bf16.mxu0 0
  %261 = vmatpush1.bf16.msra.mxu0 0
  %262 = vmatprep.subr.bf16.mxu0 0
  %263 = vmatpush1.bf16.msra.mxu0 0
  %264 = vmatprep.subr.bf16.mxu0 0
  %265 = vmatpush1.bf16.msra.mxu0 0
  %266 = vmatprep.subr.bf16.mxu0 0
  %267 = vmatpush1.bf16.msra.mxu0 0
  %268 = vmatprep.subr.bf16.mxu0 0
  %269 = vmatpush1.bf16.msra.mxu0 %v156
  %270 = vmatprep.subr.bf16.mxu0 0
  %271 = vmatpush1.bf16.msra.mxu0 %v151
  %272 = vmatprep.subr.bf16.mxu0 0
  %273 = vmatpush1.bf16.msra.mxu0 %v146
  %274 = vmatprep.subr.bf16.mxu0 0
  %275 = vmatpush2.bf16.msra.mxu0 0
  %276 = vmatprep.subr.bf16.mxu0 0
  %277 = vmatpush2.bf16.msra.mxu0 0
  %278 = vmatprep.subr.bf16.mxu0 0
  %279 = vmatpush2.bf16.msra.mxu0 0
  %280 = vmatprep.subr.bf16.mxu0 0
  %281 = vmatpush2.bf16.msra.mxu0 0
  %282 = vmatprep.subr.bf16.mxu0 0
  %283 = vmatpush2.bf16.msra.mxu0 0
  %284 = vmatprep.subr.bf16.mxu0 0
  %285 = vmatpush2.bf16.msra.mxu0 0
  %286 = vmatprep.subr.bf16.mxu0 0
  %287 = vmatpush2.bf16.msra.mxu0 0
  %288 = vmatprep.subr.bf16.mxu0 0
  %289 = vmatpush2.bf16.msra.mxu0 0
  %290 = vmatprep.mubr.bf16.mxu0 0
  %291 = vmatmul.mubr.bf16.gmra.mxu0 %v174
  %v292 = vpop.f32.mrf.mxu0
  %v293 = vadd.f32 %v92, %v292
  %v294 = vpop.f32.mrf.mxu0
  %v295 = vpop.f32.mrf.mxu0
  %v296 = vpop.f32.mrf.mxu0
  %297 = vdwg.mxu0
  %vm298 = vcmp.gt.f32.partialorder %v211, 0.0
  %vm299 = vcmp.gt.f32.partialorder %v213, 0.0
  %vm300 = vcmp.gt.f32.partialorder %v252, 0.0
  %vm301 = vcmp.gt.f32.partialorder %v254, 0.0
  %vm302 = vcmp.gt.f32.partialorder %v293, 0.0
  %v303 = vmul.f32 %v211, 0.2
  %v304 = vmul.f32 %v213, 0.2
  %v305 = vmul.f32 %v252, 0.2
  %v306 = vmul.f32 %v254, 0.2
  %v307 = vmul.f32 %v293, 0.2
  %v308 = vsel %vm298, %v211, %v303
  %v309 = vsel %vm299, %v213, %v304
  %v310 = vsel %vm300, %v252, %v305
  %v311 = vsel %vm301, %v254, %v306
  %v312 = vsel %vm302, %v293, %v307
  %v313 = vld [vmem:[%s1] sm:$0x1f]
  %v315 = vlaneseq
  %v316 = vshrl.u32 %v315, 7
  %v317 = vsub.s32 0, %v316
  %v318 = vrot.slane %v313, %v317
  %v319 = vlaneseq
  %v320 = vshrl.u32 %v319, 7
  %v321 = vsub.s32 1, %v320
  %v322 = vrot.slane %v313, %v321
  %v323 = vlaneseq
  %v324 = vshrl.u32 %v323, 7
  %v325 = vsub.s32 2, %v324
  %v326 = vrot.slane %v313, %v325
  %v327 = vlaneseq
  %v328 = vshrl.u32 %v327, 7
  %v329 = vsub.s32 3, %v328
  %v330 = vrot.slane %v313, %v329
  %v331 = vlaneseq
  %v332 = vshrl.u32 %v331, 7
  %v333 = vsub.s32 4, %v332
  %v334 = vrot.slane %v313, %v333
  %v340 = vmul.f32 %v308, %v318
  %v341 = vmul.f32 %v309, %v322
  %v342 = vmul.f32 %v310, %v326
  %v343 = vmul.f32 %v311, %v330
  %v344 = vmul.f32 %v312, %v334
  %s345 = scalar_lea.vmem %s0, 120
  %v346 = vld [vmem:[%s345] sm:$0xff]
  %v347 = vld [vmem:[%s345 + $0x8] sm:$0xff]
  %v348 = vld [vmem:[%s345 + $0x10] sm:$0xf]
  %v349 = vld [vmem:[%s345 + $0x14] sm:$0xff]
  %v350 = vld [vmem:[%s345 + $0x1c] sm:$0xff]
  %v351 = vld [vmem:[%s345 + $0x24] sm:$0xf]
  %v352 = vld [vmem:[%s345 + $0x28] sm:$0xff]
  %v353 = vld [vmem:[%s345 + $0x30] sm:$0xff]
  %v354 = vld [vmem:[%s345 + $0x38] sm:$0xf]
  %v355 = vld [vmem:[%s345 + $0x3c] sm:$0xff]
  %v356 = vld [vmem:[%s345 + $0x44] sm:$0xff]
  %v357 = vld [vmem:[%s345 + $0x4c] sm:$0xf]
  %v358 = vld [vmem:[%s345 + $0x50] sm:$0xff]
  %v359 = vld [vmem:[%s345 + $0x58] sm:$0xff]
  %v360 = vld [vmem:[%s345 + $0x60] sm:$0xf]
  %v361 = vld [vmem:[%s345 + $0x64] sm:$0xff]
  %v362 = vld [vmem:[%s345 + $0x6c] sm:$0xff]
  %v363 = vld [vmem:[%s345 + $0x74] sm:$0xf]
  %v382 = vunpack.c.l.b16 %v346
  %v383 = vunpack.c.h.b16 %v346
  %v384 = vunpack.c.l.b16 %v347
  %v385 = vunpack.c.h.b16 %v347
  %v386 = vunpack.c.l.b16 %v348
  %v387 = vunpack.c.l.b16 %v349
  %v388 = vunpack.c.h.b16 %v349
  %v389 = vunpack.c.l.b16 %v350
  %v390 = vunpack.c.h.b16 %v350
  %v391 = vunpack.c.l.b16 %v351
  %v392 = vunpack.c.l.b16 %v352
  %v393 = vunpack.c.h.b16 %v352
  %v394 = vunpack.c.l.b16 %v353
  %v395 = vunpack.c.h.b16 %v353
  %v396 = vunpack.c.l.b16 %v354
  %v397 = vunpack.c.l.b16 %v355
  %v398 = vunpack.c.h.b16 %v355
  %v399 = vunpack.c.l.b16 %v356
  %v400 = vunpack.c.h.b16 %v356
  %v401 = vunpack.c.l.b16 %v357
  %v402 = vunpack.c.l.b16 %v358
  %v403 = vunpack.c.h.b16 %v358
  %v404 = vunpack.c.l.b16 %v359
  %v405 = vunpack.c.h.b16 %v359
  %v406 = vunpack.c.l.b16 %v360
  %v407 = vunpack.c.l.b16 %v361
  %v408 = vunpack.c.h.b16 %v361
  %v409 = vunpack.c.l.b16 %v362
  %v410 = vunpack.c.h.b16 %v362
  %v411 = vunpack.c.l.b16 %v363
  %v412 = vpack.c.b16 %v387, %v382
  %v413 = vpack.c.b16 %v388, %v383
  %v414 = vpack.c.b16 %v389, %v384
  %v415 = vpack.c.b16 %v390, %v385
  %v416 = vpack.c.b16 %v391, %v386
  %v417 = vpack.c.b16 %v397, %v392
  %v418 = vpack.c.b16 %v398, %v393
  %v419 = vpack.c.b16 %v399, %v394
  %v420 = vpack.c.b16 %v400, %v395
  %v421 = vpack.c.b16 %v401, %v396
  %v422 = vpack.c.b16 %v407, %v402
  %v423 = vpack.c.b16 %v408, %v403
  %v424 = vpack.c.b16 %v409, %v404
  %v425 = vpack.c.b16 %v410, %v405
  %v426 = vpack.c.b16 %v411, %v406
  %442 = vmatprep.subr.bf16.mxu0 0
  %443 = vmatpush1.bf16.msra.mxu0 0
  %444 = vmatprep.subr.bf16.mxu0 0
  %445 = vmatpush1.bf16.msra.mxu0 0
  %446 = vmatprep.subr.bf16.mxu0 0
  %447 = vmatpush1.bf16.msra.mxu0 0
  %448 = vmatprep.subr.bf16.mxu0 0
  %449 = vmatpush1.bf16.msra.mxu0 0
  %450 = vmatprep.subr.bf16.mxu0 0
  %451 = vmatpush1.bf16.msra.mxu0 0
  %452 = vmatprep.subr.bf16.mxu0 %v423
  %453 = vmatpush1.bf16.msra.mxu0 %v422
  %454 = vmatprep.subr.bf16.mxu0 %v418
  %455 = vmatpush1.bf16.msra.mxu0 %v417
  %456 = vmatprep.subr.bf16.mxu0 %v413
  %457 = vmatpush1.bf16.msra.mxu0 %v412
  %458 = vmatprep.subr.bf16.mxu0 0
  %459 = vmatpush2.bf16.msra.mxu0 0
  %460 = vmatprep.subr.bf16.mxu0 0
  %461 = vmatpush2.bf16.msra.mxu0 0
  %462 = vmatprep.subr.bf16.mxu0 0
  %463 = vmatpush2.bf16.msra.mxu0 0
  %464 = vmatprep.subr.bf16.mxu0 0
  %465 = vmatpush2.bf16.msra.mxu0 0
  %466 = vmatprep.subr.bf16.mxu0 0
  %467 = vmatpush2.bf16.msra.mxu0 0
  %468 = vmatprep.subr.bf16.mxu0 0
  %469 = vmatpush2.bf16.msra.mxu0 0
  %470 = vmatprep.subr.bf16.mxu0 0
  %471 = vmatpush2.bf16.msra.mxu0 0
  %472 = vmatprep.subr.bf16.mxu0 0
  %473 = vmatpush2.bf16.msra.mxu0 0
  %474 = vmatprep.mubr.bf16.mxu0 0
  %475 = vmatmul.mubr.bf16.gmra.mxu0 %v174
  %v476 = vpop.f32.mrf.mxu0
  %v477 = vadd.f32 %v92, %v476
  %v478 = vpop.f32.mrf.mxu0
  %v479 = vadd.f32 %v92, %v478
  %v480 = vpop.f32.mrf.mxu0
  %v481 = vpop.f32.mrf.mxu0
  %482 = vdwg.mxu0
  %483 = vmatprep.subr.bf16.mxu0 0
  %484 = vmatpush1.bf16.msra.mxu0 0
  %485 = vmatprep.subr.bf16.mxu0 0
  %486 = vmatpush1.bf16.msra.mxu0 0
  %487 = vmatprep.subr.bf16.mxu0 0
  %488 = vmatpush1.bf16.msra.mxu0 0
  %489 = vmatprep.subr.bf16.mxu0 0
  %490 = vmatpush1.bf16.msra.mxu0 0
  %491 = vmatprep.subr.bf16.mxu0 0
  %492 = vmatpush1.bf16.msra.mxu0 0
  %493 = vmatprep.subr.bf16.mxu0 %v425
  %494 = vmatpush1.bf16.msra.mxu0 %v424
  %495 = vmatprep.subr.bf16.mxu0 %v420
  %496 = vmatpush1.bf16.msra.mxu0 %v419
  %497 = vmatprep.subr.bf16.mxu0 %v415
  %498 = vmatpush1.bf16.msra.mxu0 %v414
  %499 = vmatprep.subr.bf16.mxu0 0
  %500 = vmatpush2.bf16.msra.mxu0 0
  %501 = vmatprep.subr.bf16.mxu0 0
  %502 = vmatpush2.bf16.msra.mxu0 0
  %503 = vmatprep.subr.bf16.mxu0 0
  %504 = vmatpush2.bf16.msra.mxu0 0
  %505 = vmatprep.subr.bf16.mxu0 0
  %506 = vmatpush2.bf16.msra.mxu0 0
  %507 = vmatprep.subr.bf16.mxu0 0
  %508 = vmatpush2.bf16.msra.mxu0 0
  %509 = vmatprep.subr.bf16.mxu0 0
  %510 = vmatpush2.bf16.msra.mxu0 0
  %511 = vmatprep.subr.bf16.mxu0 0
  %512 = vmatpush2.bf16.msra.mxu0 0
  %513 = vmatprep.subr.bf16.mxu0 0
  %514 = vmatpush2.bf16.msra.mxu0 0
  %515 = vmatprep.mubr.bf16.mxu0 0
  %516 = vmatmul.mubr.bf16.gmra.mxu0 %v174
  %v517 = vpop.f32.mrf.mxu0
  %v518 = vadd.f32 %v92, %v517
  %v519 = vpop.f32.mrf.mxu0
  %v520 = vadd.f32 %v92, %v519
  %v521 = vpop.f32.mrf.mxu0
  %v522 = vpop.f32.mrf.mxu0
  %523 = vdwg.mxu0
  %524 = vmatprep.subr.bf16.mxu0 0
  %525 = vmatpush1.bf16.msra.mxu0 0
  %526 = vmatprep.subr.bf16.mxu0 0
  %527 = vmatpush1.bf16.msra.mxu0 0
  %528 = vmatprep.subr.bf16.mxu0 0
  %529 = vmatpush1.bf16.msra.mxu0 0
  %530 = vmatprep.subr.bf16.mxu0 0
  %531 = vmatpush1.bf16.msra.mxu0 0
  %532 = vmatprep.subr.bf16.mxu0 0
  %533 = vmatpush1.bf16.msra.mxu0 0
  %534 = vmatprep.subr.bf16.mxu0 0
  %535 = vmatpush1.bf16.msra.mxu0 %v426
  %536 = vmatprep.subr.bf16.mxu0 0
  %537 = vmatpush1.bf16.msra.mxu0 %v421
  %538 = vmatprep.subr.bf16.mxu0 0
  %539 = vmatpush1.bf16.msra.mxu0 %v416
  %540 = vmatprep.subr.bf16.mxu0 0
  %541 = vmatpush2.bf16.msra.mxu0 0
  %542 = vmatprep.subr.bf16.mxu0 0
  %543 = vmatpush2.bf16.msra.mxu0 0
  %544 = vmatprep.subr.bf16.mxu0 0
  %545 = vmatpush2.bf16.msra.mxu0 0
  %546 = vmatprep.subr.bf16.mxu0 0
  %547 = vmatpush2.bf16.msra.mxu0 0
  %548 = vmatprep.subr.bf16.mxu0 0
  %549 = vmatpush2.bf16.msra.mxu0 0
  %550 = vmatprep.subr.bf16.mxu0 0
  %551 = vmatpush2.bf16.msra.mxu0 0
  %552 = vmatprep.subr.bf16.mxu0 0
  %553 = vmatpush2.bf16.msra.mxu0 0
  %554 = vmatprep.subr.bf16.mxu0 0
  %555 = vmatpush2.bf16.msra.mxu0 0
  %556 = vmatprep.mubr.bf16.mxu0 0
  %557 = vmatmul.mubr.bf16.gmra.mxu0 %v174
  %v558 = vpop.f32.mrf.mxu0
  %v559 = vadd.f32 %v92, %v558
  %v560 = vpop.f32.mrf.mxu0
  %v561 = vpop.f32.mrf.mxu0
  %v562 = vpop.f32.mrf.mxu0
  %563 = vdwg.mxu0
  %vm564 = vcmp.gt.f32.partialorder %v477, 0.0
  %vm565 = vcmp.gt.f32.partialorder %v479, 0.0
  %vm566 = vcmp.gt.f32.partialorder %v518, 0.0
  %vm567 = vcmp.gt.f32.partialorder %v520, 0.0
  %vm568 = vcmp.gt.f32.partialorder %v559, 0.0
  %v569 = vmul.f32 %v477, 0.2
  %v570 = vmul.f32 %v479, 0.2
  %v571 = vmul.f32 %v518, 0.2
  %v572 = vmul.f32 %v520, 0.2
  %v573 = vmul.f32 %v559, 0.2
  %v574 = vsel %vm564, %v477, %v569
  %v575 = vsel %vm565, %v479, %v570
  %v576 = vsel %vm566, %v518, %v571
  %v577 = vsel %vm567, %v520, %v572
  %v578 = vsel %vm568, %v559, %v573
  %s579 = scalar_lea.vmem %s1, 5
  %v580 = vld [vmem:[%s579] sm:$0x1f]
  %v582 = vlaneseq
  %v583 = vshrl.u32 %v582, 7
  %v584 = vsub.s32 0, %v583
  %v585 = vrot.slane %v580, %v584
  %v586 = vlaneseq
  %v587 = vshrl.u32 %v586, 7
  %v588 = vsub.s32 1, %v587
  %v589 = vrot.slane %v580, %v588
  %v590 = vlaneseq
  %v591 = vshrl.u32 %v590, 7
  %v592 = vsub.s32 2, %v591
  %v593 = vrot.slane %v580, %v592
  %v594 = vlaneseq
  %v595 = vshrl.u32 %v594, 7
  %v596 = vsub.s32 3, %v595
  %v597 = vrot.slane %v580, %v596
  %v598 = vlaneseq
  %v599 = vshrl.u32 %v598, 7
  %v600 = vsub.s32 4, %v599
  %v601 = vrot.slane %v580, %v600
  %v607 = vmul.f32 %v574, %v585
  %v608 = vmul.f32 %v575, %v589
  %v609 = vmul.f32 %v576, %v593
  %v610 = vmul.f32 %v577, %v597
  %v611 = vmul.f32 %v578, %v601
  %s612 = scalar_lea.vmem %s0, 240
  %v613 = vld [vmem:[%s612] sm:$0xff]
  %v614 = vld [vmem:[%s612 + $0x8] sm:$0xff]
  %v615 = vld [vmem:[%s612 + $0x10] sm:$0xf]
  %v616 = vld [vmem:[%s612 + $0x14] sm:$0xff]
  %v617 = vld [vmem:[%s612 + $0x1c] sm:$0xff]
  %v618 = vld [vmem:[%s612 + $0x24] sm:$0xf]
  %v619 = vld [vmem:[%s612 + $0x28] sm:$0xff]
  %v620 = vld [vmem:[%s612 + $0x30] sm:$0xff]
  %v621 = vld [vmem:[%s612 + $0x38] sm:$0xf]
  %v622 = vld [vmem:[%s612 + $0x3c] sm:$0xff]
  %v623 = vld [vmem:[%s612 + $0x44] sm:$0xff]
  %v624 = vld [vmem:[%s612 + $0x4c] sm:$0xf]
  %v625 = vld [vmem:[%s612 + $0x50] sm:$0xff]
  %v626 = vld [vmem:[%s612 + $0x58] sm:$0xff]
  %v627 = vld [vmem:[%s612 + $0x60] sm:$0xf]
  %v628 = vld [vmem:[%s612 + $0x64] sm:$0xff]
  %v629 = vld [vmem:[%s612 + $0x6c] sm:$0xff]
  %v630 = vld [vmem:[%s612 + $0x74] sm:$0xf]
  %v649 = vunpack.c.l.b16 %v613
  %v650 = vunpack.c.h.b16 %v613
  %v651 = vunpack.c.l.b16 %v614
  %v652 = vunpack.c.h.b16 %v614
  %v653 = vunpack.c.l.b16 %v615
  %v654 = vunpack.c.l.b16 %v616
  %v655 = vunpack.c.h.b16 %v616
  %v656 = vunpack.c.l.b16 %v617
  %v657 = vunpack.c.h.b16 %v617
  %v658 = vunpack.c.l.b16 %v618
  %v659 = vunpack.c.l.b16 %v619
  %v660 = vunpack.c.h.b16 %v619
  %v661 = vunpack.c.l.b16 %v620
  %v662 = vunpack.c.h.b16 %v620
  %v663 = vunpack.c.l.b16 %v621
  %v664 = vunpack.c.l.b16 %v622
  %v665 = vunpack.c.h.b16 %v622
  %v666 = vunpack.c.l.b16 %v623
  %v667 = vunpack.c.h.b16 %v623
  %v668 = vunpack.c.l.b16 %v624
  %v669 = vunpack.c.l.b16 %v625
  %v670 = vunpack.c.h.b16 %v625
  %v671 = vunpack.c.l.b16 %v626
  %v672 = vunpack.c.h.b16 %v626
  %v673 = vunpack.c.l.b16 %v627
  %v674 = vunpack.c.l.b16 %v628
  %v675 = vunpack.c.h.b16 %v628
  %v676 = vunpack.c.l.b16 %v629
  %v677 = vunpack.c.h.b16 %v629
  %v678 = vunpack.c.l.b16 %v630
  %v679 = vpack.c.b16 %v654, %v649
  %v680 = vpack.c.b16 %v655, %v650
  %v681 = vpack.c.b16 %v656, %v651
  %v682 = vpack.c.b16 %v657, %v652
  %v683 = vpack.c.b16 %v658, %v653
  %v684 = vpack.c.b16 %v664, %v659
  %v685 = vpack.c.b16 %v665, %v660
  %v686 = vpack.c.b16 %v666, %v661
  %v687 = vpack.c.b16 %v667, %v662
  %v688 = vpack.c.b16 %v668, %v663
  %v689 = vpack.c.b16 %v674, %v669
  %v690 = vpack.c.b16 %v675, %v670
  %v691 = vpack.c.b16 %v676, %v671
  %v692 = vpack.c.b16 %v677, %v672
  %v693 = vpack.c.b16 %v678, %v673
  %709 = vmatprep.subr.bf16.mxu0 0
  %710 = vmatpush1.bf16.msra.mxu0 0
  %711 = vmatprep.subr.bf16.mxu0 0
  %712 = vmatpush1.bf16.msra.mxu0 0
  %713 = vmatprep.subr.bf16.mxu0 0
  %714 = vmatpush1.bf16.msra.mxu0 0
  %715 = vmatprep.subr.bf16.mxu0 0
  %716 = vmatpush1.bf16.msra.mxu0 0
  %717 = vmatprep.subr.bf16.mxu0 0
  %718 = vmatpush1.bf16.msra.mxu0 0
  %719 = vmatprep.subr.bf16.mxu0 %v690
  %720 = vmatpush1.bf16.msra.mxu0 %v689
  %721 = vmatprep.subr.bf16.mxu0 %v685
  %722 = vmatpush1.bf16.msra.mxu0 %v684
  %723 = vmatprep.subr.bf16.mxu0 %v680
  %724 = vmatpush1.bf16.msra.mxu0 %v679
  %725 = vmatprep.subr.bf16.mxu0 0
  %726 = vmatpush2.bf16.msra.mxu0 0
  %727 = vmatprep.subr.bf16.mxu0 0
  %728 = vmatpush2.bf16.msra.mxu0 0
  %729 = vmatprep.subr.bf16.mxu0 0
  %730 = vmatpush2.bf16.msra.mxu0 0
  %731 = vmatprep.subr.bf16.mxu0 0
  %732 = vmatpush2.bf16.msra.mxu0 0
  %733 = vmatprep.subr.bf16.mxu0 0
  %734 = vmatpush2.bf16.msra.mxu0 0
  %735 = vmatprep.subr.bf16.mxu0 0
  %736 = vmatpush2.bf16.msra.mxu0 0
  %737 = vmatprep.subr.bf16.mxu0 0
  %738 = vmatpush2.bf16.msra.mxu0 0
  %739 = vmatprep.subr.bf16.mxu0 0
  %740 = vmatpush2.bf16.msra.mxu0 0
  %741 = vmatprep.mubr.bf16.mxu0 0
  %742 = vmatmul.mubr.bf16.gmra.mxu0 %v174
  %v743 = vpop.f32.mrf.mxu0
  %v744 = vadd.f32 %v92, %v743
  %v745 = vpop.f32.mrf.mxu0
  %v746 = vadd.f32 %v92, %v745
  %v747 = vpop.f32.mrf.mxu0
  %v748 = vpop.f32.mrf.mxu0
  %749 = vdwg.mxu0
  %750 = vmatprep.subr.bf16.mxu0 0
  %751 = vmatpush1.bf16.msra.mxu0 0
  %752 = vmatprep.subr.bf16.mxu0 0
  %753 = vmatpush1.bf16.msra.mxu0 0
  %754 = vmatprep.subr.bf16.mxu0 0
  %755 = vmatpush1.bf16.msra.mxu0 0
  %756 = vmatprep.subr.bf16.mxu0 0
  %757 = vmatpush1.bf16.msra.mxu0 0
  %758 = vmatprep.subr.bf16.mxu0 0
  %759 = vmatpush1.bf16.msra.mxu0 0
  %760 = vmatprep.subr.bf16.mxu0 %v692
  %761 = vmatpush1.bf16.msra.mxu0 %v691
  %762 = vmatprep.subr.bf16.mxu0 %v687
  %763 = vmatpush1.bf16.msra.mxu0 %v686
  %764 = vmatprep.subr.bf16.mxu0 %v682
  %765 = vmatpush1.bf16.msra.mxu0 %v681
  %766 = vmatprep.subr.bf16.mxu0 0
  %767 = vmatpush2.bf16.msra.mxu0 0
  %768 = vmatprep.subr.bf16.mxu0 0
  %769 = vmatpush2.bf16.msra.mxu0 0
  %770 = vmatprep.subr.bf16.mxu0 0
  %771 = vmatpush2.bf16.msra.mxu0 0
  %772 = vmatprep.subr.bf16.mxu0 0
  %773 = vmatpush2.bf16.msra.mxu0 0
  %774 = vmatprep.subr.bf16.mxu0 0
  %775 = vmatpush2.bf16.msra.mxu0 0
  %776 = vmatprep.subr.bf16.mxu0 0
  %777 = vmatpush2.bf16.msra.mxu0 0
  %778 = vmatprep.subr.bf16.mxu0 0
  %779 = vmatpush2.bf16.msra.mxu0 0
  %780 = vmatprep.subr.bf16.mxu0 0
  %781 = vmatpush2.bf16.msra.mxu0 0
  %782 = vmatprep.mubr.bf16.mxu0 0
  %783 = vmatmul.mubr.bf16.gmra.mxu0 %v174
  %v784 = vpop.f32.mrf.mxu0
  %v785 = vadd.f32 %v92, %v784
  %v786 = vpop.f32.mrf.mxu0
  %v787 = vadd.f32 %v92, %v786
  %v788 = vpop.f32.mrf.mxu0
  %v789 = vpop.f32.mrf.mxu0
  %790 = vdwg.mxu0
  %791 = vmatprep.subr.bf16.mxu0 0
  %792 = vmatpush1.bf16.msra.mxu0 0
  %793 = vmatprep.subr.bf16.mxu0 0
  %794 = vmatpush1.bf16.msra.mxu0 0
  %795 = vmatprep.subr.bf16.mxu0 0
  %796 = vmatpush1.bf16.msra.mxu0 0
  %797 = vmatprep.subr.bf16.mxu0 0
  %798 = vmatpush1.bf16.msra.mxu0 0
  %799 = vmatprep.subr.bf16.mxu0 0
  %800 = vmatpush1.bf16.msra.mxu0 0
  %801 = vmatprep.subr.bf16.mxu0 0
  %802 = vmatpush1.bf16.msra.mxu0 %v693
  %803 = vmatprep.subr.bf16.mxu0 0
  %804 = vmatpush1.bf16.msra.mxu0 %v688
  %805 = vmatprep.subr.bf16.mxu0 0
  %806 = vmatpush1.bf16.msra.mxu0 %v683
  %807 = vmatprep.subr.bf16.mxu0 0
  %808 = vmatpush2.bf16.msra.mxu0 0
  %809 = vmatprep.subr.bf16.mxu0 0
  %810 = vmatpush2.bf16.msra.mxu0 0
  %811 = vmatprep.subr.bf16.mxu0 0
  %812 = vmatpush2.bf16.msra.mxu0 0
  %813 = vmatprep.subr.bf16.mxu0 0
  %814 = vmatpush2.bf16.msra.mxu0 0
  %815 = vmatprep.subr.bf16.mxu0 0
  %816 = vmatpush2.bf16.msra.mxu0 0
  %817 = vmatprep.subr.bf16.mxu0 0
  %818 = vmatpush2.bf16.msra.mxu0 0
  %819 = vmatprep.subr.bf16.mxu0 0
  %820 = vmatpush2.bf16.msra.mxu0 0
  %821 = vmatprep.subr.bf16.mxu0 0
  %822 = vmatpush2.bf16.msra.mxu0 0
  %823 = vmatprep.mubr.bf16.mxu0 0
  %824 = vmatmul.mubr.bf16.gmra.mxu0 %v174
  %v825 = vpop.f32.mrf.mxu0
  %v826 = vadd.f32 %v92, %v825
  %v827 = vpop.f32.mrf.mxu0
  %v828 = vpop.f32.mrf.mxu0
  %v829 = vpop.f32.mrf.mxu0
  %830 = vdwg.mxu0
  %vm831 = vcmp.gt.f32.partialorder %v744, 0.0
  %vm832 = vcmp.gt.f32.partialorder %v746, 0.0
  %vm833 = vcmp.gt.f32.partialorder %v785, 0.0
  %vm834 = vcmp.gt.f32.partialorder %v787, 0.0
  %vm835 = vcmp.gt.f32.partialorder %v826, 0.0
  %v836 = vmul.f32 %v744, 0.2
  %v837 = vmul.f32 %v746, 0.2
  %v838 = vmul.f32 %v785, 0.2
  %v839 = vmul.f32 %v787, 0.2
  %v840 = vmul.f32 %v826, 0.2
  %v841 = vsel %vm831, %v744, %v836
  %v842 = vsel %vm832, %v746, %v837
  %v843 = vsel %vm833, %v785, %v838
  %v844 = vsel %vm834, %v787, %v839
  %v845 = vsel %vm835, %v826, %v840
  %s846 = scalar_lea.vmem %s1, 10
  %v847 = vld [vmem:[%s846] sm:$0x1f]
  %v849 = vlaneseq
  %v850 = vshrl.u32 %v849, 7
  %v851 = vsub.s32 0, %v850
  %v852 = vrot.slane %v847, %v851
  %v853 = vlaneseq
  %v854 = vshrl.u32 %v853, 7
  %v855 = vsub.s32 1, %v854
  %v856 = vrot.slane %v847, %v855
  %v857 = vlaneseq
  %v858 = vshrl.u32 %v857, 7
  %v859 = vsub.s32 2, %v858
  %v860 = vrot.slane %v847, %v859
  %v861 = vlaneseq
  %v862 = vshrl.u32 %v861, 7
  %v863 = vsub.s32 3, %v862
  %v864 = vrot.slane %v847, %v863
  %v865 = vlaneseq
  %v866 = vshrl.u32 %v865, 7
  %v867 = vsub.s32 4, %v866
  %v868 = vrot.slane %v847, %v867
  %v874 = vmul.f32 %v841, %v852
  %v875 = vmul.f32 %v842, %v856
  %v876 = vmul.f32 %v843, %v860
  %v877 = vmul.f32 %v844, %v864
  %v878 = vmul.f32 %v845, %v868
  %s879 = scalar_lea.vmem %s0, 360
  %v880 = vld [vmem:[%s879] sm:$0xff]
  %v881 = vld [vmem:[%s879 + $0x8] sm:$0xff]
  %v882 = vld [vmem:[%s879 + $0x10] sm:$0xf]
  %v883 = vld [vmem:[%s879 + $0x14] sm:$0xff]
  %v884 = vld [vmem:[%s879 + $0x1c] sm:$0xff]
  %v885 = vld [vmem:[%s879 + $0x24] sm:$0xf]
  %v886 = vld [vmem:[%s879 + $0x28] sm:$0xff]
  %v887 = vld [vmem:[%s879 + $0x30] sm:$0xff]
  %v888 = vld [vmem:[%s879 + $0x38] sm:$0xf]
  %v889 = vld [vmem:[%s879 + $0x3c] sm:$0xff]
  %v890 = vld [vmem:[%s879 + $0x44] sm:$0xff]
  %v891 = vld [vmem:[%s879 + $0x4c] sm:$0xf]
  %v892 = vld [vmem:[%s879 + $0x50] sm:$0xff]
  %v893 = vld [vmem:[%s879 + $0x58] sm:$0xff]
  %v894 = vld [vmem:[%s879 + $0x60] sm:$0xf]
  %v895 = vld [vmem:[%s879 + $0x64] sm:$0xff]
  %v896 = vld [vmem:[%s879 + $0x6c] sm:$0xff]
  %v897 = vld [vmem:[%s879 + $0x74] sm:$0xf]
  %v916 = vunpack.c.l.b16 %v880
  %v917 = vunpack.c.h.b16 %v880
  %v918 = vunpack.c.l.b16 %v881
  %v919 = vunpack.c.h.b16 %v881
  %v920 = vunpack.c.l.b16 %v882
  %v921 = vunpack.c.l.b16 %v883
  %v922 = vunpack.c.h.b16 %v883
  %v923 = vunpack.c.l.b16 %v884
  %v924 = vunpack.c.h.b16 %v884
  %v925 = vunpack.c.l.b16 %v885
  %v926 = vunpack.c.l.b16 %v886
  %v927 = vunpack.c.h.b16 %v886
  %v928 = vunpack.c.l.b16 %v887
  %v929 = vunpack.c.h.b16 %v887
  %v930 = vunpack.c.l.b16 %v888
  %v931 = vunpack.c.l.b16 %v889
  %v932 = vunpack.c.h.b16 %v889
  %v933 = vunpack.c.l.b16 %v890
  %v934 = vunpack.c.h.b16 %v890
  %v935 = vunpack.c.l.b16 %v891
  %v936 = vunpack.c.l.b16 %v892
  %v937 = vunpack.c.h.b16 %v892
  %v938 = vunpack.c.l.b16 %v893
  %v939 = vunpack.c.h.b16 %v893
  %v940 = vunpack.c.l.b16 %v894
  %v941 = vunpack.c.l.b16 %v895
  %v942 = vunpack.c.h.b16 %v895
  %v943 = vunpack.c.l.b16 %v896
  %v944 = vunpack.c.h.b16 %v896
  %v945 = vunpack.c.l.b16 %v897
  %v946 = vpack.c.b16 %v921, %v916
  %v947 = vpack.c.b16 %v922, %v917
  %v948 = vpack.c.b16 %v923, %v918
  %v949 = vpack.c.b16 %v924, %v919
  %v950 = vpack.c.b16 %v925, %v920
  %v951 = vpack.c.b16 %v931, %v926
  %v952 = vpack.c.b16 %v932, %v927
  %v953 = vpack.c.b16 %v933, %v928
  %v954 = vpack.c.b16 %v934, %v929
  %v955 = vpack.c.b16 %v935, %v930
  %v956 = vpack.c.b16 %v941, %v936
  %v957 = vpack.c.b16 %v942, %v937
  %v958 = vpack.c.b16 %v943, %v938
  %v959 = vpack.c.b16 %v944, %v939
  %v960 = vpack.c.b16 %v945, %v940
  %976 = vmatprep.subr.bf16.mxu0 0
  %977 = vmatpush1.bf16.msra.mxu0 0
  %978 = vmatprep.subr.bf16.mxu0 0
  %979 = vmatpush1.bf16.msra.mxu0 0
  %980 = vmatprep.subr.bf16.mxu0 0
  %981 = vmatpush1.bf16.msra.mxu0 0
  %982 = vmatprep.subr.bf16.mxu0 0
  %983 = vmatpush1.bf16.msra.mxu0 0
  %984 = vmatprep.subr.bf16.mxu0 0
  %985 = vmatpush1.bf16.msra.mxu0 0
  %986 = vmatprep.subr.bf16.mxu0 %v957
  %987 = vmatpush1.bf16.msra.mxu0 %v956
  %988 = vmatprep.subr.bf16.mxu0 %v952
  %989 = vmatpush1.bf16.msra.mxu0 %v951
  %990 = vmatprep.subr.bf16.mxu0 %v947
  %991 = vmatpush1.bf16.msra.mxu0 %v946
  %992 = vmatprep.subr.bf16.mxu0 0
  %993 = vmatpush2.bf16.msra.mxu0 0
  %994 = vmatprep.subr.bf16.mxu0 0
  %995 = vmatpush2.bf16.msra.mxu0 0
  %996 = vmatprep.subr.bf16.mxu0 0
  %997 = vmatpush2.bf16.msra.mxu0 0
  %998 = vmatprep.subr.bf16.mxu0 0
  %999 = vmatpush2.bf16.msra.mxu0 0
  %1000 = vmatprep.subr.bf16.mxu0 0
  %1001 = vmatpush2.bf16.msra.mxu0 0
  %1002 = vmatprep.subr.bf16.mxu0 0
  %1003 = vmatpush2.bf16.msra.mxu0 0
  %1004 = vmatprep.subr.bf16.mxu0 0
  %1005 = vmatpush2.bf16.msra.mxu0 0
  %1006 = vmatprep.subr.bf16.mxu0 0
  %1007 = vmatpush2.bf16.msra.mxu0 0
  %1008 = vmatprep.mubr.bf16.mxu0 0
  %1009 = vmatmul.mubr.bf16.gmra.mxu0 %v174
  %v1010 = vpop.f32.mrf.mxu0
  %v1011 = vadd.f32 %v92, %v1010
  %v1012 = vpop.f32.mrf.mxu0
  %v1013 = vadd.f32 %v92, %v1012
  %v1014 = vpop.f32.mrf.mxu0
  %v1015 = vpop.f32.mrf.mxu0
  %1016 = vdwg.mxu0
  %1017 = vmatprep.subr.bf16.mxu0 0
  %1018 = vmatpush1.bf16.msra.mxu0 0
  %1019 = vmatprep.subr.bf16.mxu0 0
  %1020 = vmatpush1.bf16.msra.mxu0 0
  %1021 = vmatprep.subr.bf16.mxu0 0
  %1022 = vmatpush1.bf16.msra.mxu0 0
  %1023 = vmatprep.subr.bf16.mxu0 0
  %1024 = vmatpush1.bf16.msra.mxu0 0
  %1025 = vmatprep.subr.bf16.mxu0 0
  %1026 = vmatpush1.bf16.msra.mxu0 0
  %1027 = vmatprep.subr.bf16.mxu0 %v959
  %1028 = vmatpush1.bf16.msra.mxu0 %v958
  %1029 = vmatprep.subr.bf16.mxu0 %v954
  %1030 = vmatpush1.bf16.msra.mxu0 %v953
  %1031 = vmatprep.subr.bf16.mxu0 %v949
  %1032 = vmatpush1.bf16.msra.mxu0 %v948
  %1033 = vmatprep.subr.bf16.mxu0 0
  %1034 = vmatpush2.bf16.msra.mxu0 0
  %1035 = vmatprep.subr.bf16.mxu0 0
  %1036 = vmatpush2.bf16.msra.mxu0 0
  %1037 = vmatprep.subr.bf16.mxu0 0
  %1038 = vmatpush2.bf16.msra.mxu0 0
  %1039 = vmatprep.subr.bf16.mxu0 0
  %1040 = vmatpush2.bf16.msra.mxu0 0
  %1041 = vmatprep.subr.bf16.mxu0 0
  %1042 = vmatpush2.bf16.msra.mxu0 0
  %1043 = vmatprep.subr.bf16.mxu0 0
  %1044 = vmatpush2.bf16.msra.mxu0 0
  %1045 = vmatprep.subr.bf16.mxu0 0
  %1046 = vmatpush2.bf16.msra.mxu0 0
  %1047 = vmatprep.subr.bf16.mxu0 0
  %1048 = vmatpush2.bf16.msra.mxu0 0
  %1049 = vmatprep.mubr.bf16.mxu0 0
  %1050 = vmatmul.mubr.bf16.gmra.mxu0 %v174
  %v1051 = vpop.f32.mrf.mxu0
  %v1052 = vadd.f32 %v92, %v1051
  %v1053 = vpop.f32.mrf.mxu0
  %v1054 = vadd.f32 %v92, %v1053
  %v1055 = vpop.f32.mrf.mxu0
  %v1056 = vpop.f32.mrf.mxu0
  %1057 = vdwg.mxu0
  %1058 = vmatprep.subr.bf16.mxu0 0
  %1059 = vmatpush1.bf16.msra.mxu0 0
  %1060 = vmatprep.subr.bf16.mxu0 0
  %1061 = vmatpush1.bf16.msra.mxu0 0
  %1062 = vmatprep.subr.bf16.mxu0 0
  %1063 = vmatpush1.bf16.msra.mxu0 0
  %1064 = vmatprep.subr.bf16.mxu0 0
  %1065 = vmatpush1.bf16.msra.mxu0 0
  %1066 = vmatprep.subr.bf16.mxu0 0
  %1067 = vmatpush1.bf16.msra.mxu0 0
  %1068 = vmatprep.subr.bf16.mxu0 0
  %1069 = vmatpush1.bf16.msra.mxu0 %v960
  %1070 = vmatprep.subr.bf16.mxu0 0
  %1071 = vmatpush1.bf16.msra.mxu0 %v955
  %1072 = vmatprep.subr.bf16.mxu0 0
  %1073 = vmatpush1.bf16.msra.mxu0 %v950
  %1074 = vmatprep.subr.bf16.mxu0 0
  %1075 = vmatpush2.bf16.msra.mxu0 0
  %1076 = vmatprep.subr.bf16.mxu0 0
  %1077 = vmatpush2.bf16.msra.mxu0 0
  %1078 = vmatprep.subr.bf16.mxu0 0
  %1079 = vmatpush2.bf16.msra.mxu0 0
  %1080 = vmatprep.subr.bf16.mxu0 0
  %1081 = vmatpush2.bf16.msra.mxu0 0
  %1082 = vmatprep.subr.bf16.mxu0 0
  %1083 = vmatpush2.bf16.msra.mxu0 0
  %1084 = vmatprep.subr.bf16.mxu0 0
  %1085 = vmatpush2.bf16.msra.mxu0 0
  %1086 = vmatprep.subr.bf16.mxu0 0
  %1087 = vmatpush2.bf16.msra.mxu0 0
  %1088 = vmatprep.subr.bf16.mxu0 0
  %1089 = vmatpush2.bf16.msra.mxu0 0
  %1090 = vmatprep.mubr.bf16.mxu0 0
  %1091 = vmatmul.mubr.bf16.gmra.mxu0 %v174
  %v1092 = vpop.f32.mrf.mxu0
  %v1093 = vadd.f32 %v92, %v1092
  %v1094 = vpop.f32.mrf.mxu0
  %v1095 = vpop.f32.mrf.mxu0
  %v1096 = vpop.f32.mrf.mxu0
  %1097 = vdwg.mxu0
  %vm1098 = vcmp.gt.f32.partialorder %v1011, 0.0
  %vm1099 = vcmp.gt.f32.partialorder %v1013, 0.0
  %vm1100 = vcmp.gt.f32.partialorder %v1052, 0.0
  %vm1101 = vcmp.gt.f32.partialorder %v1054, 0.0
  %vm1102 = vcmp.gt.f32.partialorder %v1093, 0.0
  %v1103 = vmul.f32 %v1011, 0.2
  %v1104 = vmul.f32 %v1013, 0.2
  %v1105 = vmul.f32 %v1052, 0.2
  %v1106 = vmul.f32 %v1054, 0.2
  %v1107 = vmul.f32 %v1093, 0.2
  %v1108 = vsel %vm1098, %v1011, %v1103
  %v1109 = vsel %vm1099, %v1013, %v1104
  %v1110 = vsel %vm1100, %v1052, %v1105
  %v1111 = vsel %vm1101, %v1054, %v1106
  %v1112 = vsel %vm1102, %v1093, %v1107
  %s1113 = scalar_lea.vmem %s1, 15
  %v1114 = vld [vmem:[%s1113] sm:$0x1f]
  %v1116 = vlaneseq
  %v1117 = vshrl.u32 %v1116, 7
  %v1118 = vsub.s32 0, %v1117
  %v1119 = vrot.slane %v1114, %v1118
  %v1120 = vlaneseq
  %v1121 = vshrl.u32 %v1120, 7
  %v1122 = vsub.s32 1, %v1121
  %v1123 = vrot.slane %v1114, %v1122
  %v1124 = vlaneseq
  %v1125 = vshrl.u32 %v1124, 7
  %v1126 = vsub.s32 2, %v1125
  %v1127 = vrot.slane %v1114, %v1126
  %v1128 = vlaneseq
  %v1129 = vshrl.u32 %v1128, 7
  %v1130 = vsub.s32 3, %v1129
  %v1131 = vrot.slane %v1114, %v1130
  %v1132 = vlaneseq
  %v1133 = vshrl.u32 %v1132, 7
  %v1134 = vsub.s32 4, %v1133
  %v1135 = vrot.slane %v1114, %v1134
  %v1141 = vmul.f32 %v1108, %v1119
  %v1142 = vmul.f32 %v1109, %v1123
  %v1143 = vmul.f32 %v1110, %v1127
  %v1144 = vmul.f32 %v1111, %v1131
  %v1145 = vmul.f32 %v1112, %v1135
  %v1146 = vpack.c.bf16 %v607, %v340
  %v1147 = vpack.c.bf16 %v608, %v341
  %v1148 = vpack.c.bf16 %v609, %v342
  %v1149 = vpack.c.bf16 %v610, %v343
  %v1150 = vpack.c.bf16 %v611, %v344
  %v1151 = vpack.c.bf16 %v1141, %v874
  %v1152 = vpack.c.bf16 %v1142, %v875
  %v1153 = vpack.c.bf16 %v1143, %v876
  %v1154 = vpack.c.bf16 %v1144, %v877
  %v1155 = vpack.c.bf16 %v1145, %v878
  %v1156 = vld [vmem:[%s4] sm:$0xf]
  %v1157 = vld [vmem:[%s4 + $0x4] sm:$0xf]
  %s1158 = scalar_lea.vmem %s4, 8
  %v1159 = vld [vmem:[%s1158] sm:$0xf]
  %v1160 = vld [vmem:[%s1158 + $0x4] sm:$0xf]
  %v1163 = vunpack.c.l.b16 %v1159
  %v1164 = vunpack.c.l.b16 %v1160
  %v1165 = vpack.c.b16 %v1164, %v1163
  %1176 = vrot.lane.b32.xlu0 %v1146, 126
  %v1177 = vpop.permute.xlu0 %1176
  %1178 = vrot.lane.b32.xlu0 %v1147, 126
  %v1179 = vpop.permute.xlu0 %1178
  %1180 = vrot.lane.b32.xlu0 %v1148, 126
  %v1181 = vpop.permute.xlu0 %1180
  %1182 = vrot.lane.b32.xlu0 %v1149, 126
  %v1183 = vpop.permute.xlu0 %1182
  %1184 = vrot.lane.b32.xlu0 %v1150, 126
  %v1185 = vpop.permute.xlu0 %1184
  %1186 = vrot.lane.b32.xlu0 %v1151, 126
  %v1187 = vpop.permute.xlu0 %1186
  %1188 = vrot.lane.b32.xlu0 %v1152, 126
  %v1189 = vpop.permute.xlu0 %1188
  %1190 = vrot.lane.b32.xlu0 %v1153, 126
  %v1191 = vpop.permute.xlu0 %1190
  %1192 = vrot.lane.b32.xlu0 %v1154, 126
  %v1193 = vpop.permute.xlu0 %1192
  %1194 = vrot.lane.b32.xlu0 %v1155, 126
  %v1195 = vpop.permute.xlu0 %1194
  %vm1196 = vcmask 1031168
  %v1197 = vsel %vm1196, %v1177, %v1179
  %v1198 = vsel %vm1196, %v1179, %v1181
  %v1199 = vsel %vm1196, %v1181, %v1183
  %v1200 = vsel %vm1196, %v1183, %v1185
  %v1201 = vsel %vm1196, %v1187, %v1189
  %v1202 = vsel %vm1196, %v1189, %v1191
  %v1203 = vsel %vm1196, %v1191, %v1193
  %v1204 = vsel %vm1196, %v1193, %v1195
  %vm1215 = vcmask 261120
  %v1217 = vsel %vm1215, %v1165, 0
  %1219 = vmatprep.subr.bf16.mxu0 0
  %1220 = vmatpush1.bf16.msra.mxu0 0
  %1221 = vmatprep.subr.bf16.mxu0 0
  %1222 = vmatpush1.bf16.msra.mxu0 0
  %1223 = vmatprep.subr.bf16.mxu0 0
  %1224 = vmatpush1.bf16.msra.mxu0 0
  %1225 = vmatprep.subr.bf16.mxu0 0
  %1226 = vmatpush1.bf16.msra.mxu0 0
  %1227 = vmatprep.subr.bf16.mxu0 0
  %1228 = vmatpush1.bf16.msra.mxu0 0
  %1229 = vmatprep.subr.bf16.mxu0 0
  %1230 = vmatpush1.bf16.msra.mxu0 0
  %1231 = vmatprep.subr.bf16.mxu0 %v1202
  %1232 = vmatpush1.bf16.msra.mxu0 %v1201
  %1233 = vmatprep.subr.bf16.mxu0 %v1198
  %1234 = vmatpush1.bf16.msra.mxu0 %v1197
  %1235 = vmatprep.subr.bf16.mxu0 0
  %1236 = vmatpush2.bf16.msra.mxu0 0
  %1237 = vmatprep.subr.bf16.mxu0 0
  %1238 = vmatpush2.bf16.msra.mxu0 0
  %1239 = vmatprep.subr.bf16.mxu0 0
  %1240 = vmatpush2.bf16.msra.mxu0 0
  %1241 = vmatprep.subr.bf16.mxu0 0
  %1242 = vmatpush2.bf16.msra.mxu0 0
  %1243 = vmatprep.subr.bf16.mxu0 0
  %1244 = vmatpush2.bf16.msra.mxu0 0
  %1245 = vmatprep.subr.bf16.mxu0 0
  %1246 = vmatpush2.bf16.msra.mxu0 0
  %1247 = vmatprep.subr.bf16.mxu0 0
  %1248 = vmatpush2.bf16.msra.mxu0 0
  %1249 = vmatprep.subr.bf16.mxu0 0
  %1250 = vmatpush2.bf16.msra.mxu0 0
  %1251 = vmatprep.mubr.bf16.mxu0 0
  %1252 = vmatmul.mubr.bf16.gmra.mxu0 %v1217
  %v1253 = vpop.f32.mrf.mxu0
  %v1254 = vadd.f32 0.0, %v1253
  %v1255 = vpop.f32.mrf.mxu0
  %v1256 = vadd.f32 0.0, %v1255
  %v1257 = vpop.f32.mrf.mxu0
  %v1258 = vadd.f32 0.0, %v1257
  %v1259 = vpop.f32.mrf.mxu0
  %v1260 = vadd.f32 0.0, %v1259
  %1261 = vdwg.mxu0
  %1262 = vmatprep.subr.bf16.mxu0 0
  %1263 = vmatpush1.bf16.msra.mxu0 0
  %1264 = vmatprep.subr.bf16.mxu0 0
  %1265 = vmatpush1.bf16.msra.mxu0 0
  %1266 = vmatprep.subr.bf16.mxu0 0
  %1267 = vmatpush1.bf16.msra.mxu0 0
  %1268 = vmatprep.subr.bf16.mxu0 0
  %1269 = vmatpush1.bf16.msra.mxu0 0
  %1270 = vmatprep.subr.bf16.mxu0 0
  %1271 = vmatpush1.bf16.msra.mxu0 0
  %1272 = vmatprep.subr.bf16.mxu0 0
  %1273 = vmatpush1.bf16.msra.mxu0 0
  %1274 = vmatprep.subr.bf16.mxu0 %v1204
  %1275 = vmatpush1.bf16.msra.mxu0 %v1203
  %1276 = vmatprep.subr.bf16.mxu0 %v1200
  %1277 = vmatpush1.bf16.msra.mxu0 %v1199
  %1278 = vmatprep.subr.bf16.mxu0 0
  %1279 = vmatpush2.bf16.msra.mxu0 0
  %1280 = vmatprep.subr.bf16.mxu0 0
  %1281 = vmatpush2.bf16.msra.mxu0 0
  %1282 = vmatprep.subr.bf16.mxu0 0
  %1283 = vmatpush2.bf16.msra.mxu0 0
  %1284 = vmatprep.subr.bf16.mxu0 0
  %1285 = vmatpush2.bf16.msra.mxu0 0
  %1286 = vmatprep.subr.bf16.mxu0 0
  %1287 = vmatpush2.bf16.msra.mxu0 0
  %1288 = vmatprep.subr.bf16.mxu0 0
  %1289 = vmatpush2.bf16.msra.mxu0 0
  %1290 = vmatprep.subr.bf16.mxu0 0
  %1291 = vmatpush2.bf16.msra.mxu0 0
  %1292 = vmatprep.subr.bf16.mxu0 0
  %1293 = vmatpush2.bf16.msra.mxu0 0
  %1294 = vmatprep.mubr.bf16.mxu0 0
  %1295 = vmatmul.mubr.bf16.gmra.mxu0 %v1217
  %v1296 = vpop.f32.mrf.mxu0
  %v1297 = vadd.f32 0.0, %v1296
  %v1298 = vpop.f32.mrf.mxu0
  %v1299 = vadd.f32 0.0, %v1298
  %v1300 = vpop.f32.mrf.mxu0
  %v1301 = vadd.f32 0.0, %v1300
  %v1302 = vpop.f32.mrf.mxu0
  %v1303 = vadd.f32 0.0, %v1302
  %1304 = vdwg.mxu0
  %1305 = vmatprep.subr.bf16.mxu0 0
  %1306 = vmatpush1.bf16.msra.mxu0 0
  %1307 = vmatprep.subr.bf16.mxu0 0
  %1308 = vmatpush1.bf16.msra.mxu0 0
  %1309 = vmatprep.subr.bf16.mxu0 0
  %1310 = vmatpush1.bf16.msra.mxu0 0
  %1311 = vmatprep.subr.bf16.mxu0 0
  %1312 = vmatpush1.bf16.msra.mxu0 0
  %1313 = vmatprep.subr.bf16.mxu0 0
  %1314 = vmatpush1.bf16.msra.mxu0 0
  %1315 = vmatprep.subr.bf16.mxu0 0
  %1316 = vmatpush1.bf16.msra.mxu0 0
  %1317 = vmatprep.subr.bf16.mxu0 0
  %1318 = vmatpush1.bf16.msra.mxu0 %v1195
  %1319 = vmatprep.subr.bf16.mxu0 0
  %1320 = vmatpush1.bf16.msra.mxu0 %v1185
  %1321 = vmatprep.subr.bf16.mxu0 0
  %1322 = vmatpush2.bf16.msra.mxu0 0
  %1323 = vmatprep.subr.bf16.mxu0 0
  %1324 = vmatpush2.bf16.msra.mxu0 0
  %1325 = vmatprep.subr.bf16.mxu0 0
  %1326 = vmatpush2.bf16.msra.mxu0 0
  %1327 = vmatprep.subr.bf16.mxu0 0
  %1328 = vmatpush2.bf16.msra.mxu0 0
  %1329 = vmatprep.subr.bf16.mxu0 0
  %1330 = vmatpush2.bf16.msra.mxu0 0
  %1331 = vmatprep.subr.bf16.mxu0 0
  %1332 = vmatpush2.bf16.msra.mxu0 0
  %1333 = vmatprep.subr.bf16.mxu0 0
  %1334 = vmatpush2.bf16.msra.mxu0 0
  %1335 = vmatprep.subr.bf16.mxu0 0
  %1336 = vmatpush2.bf16.msra.mxu0 0
  %1337 = vmatprep.mubr.bf16.mxu0 0
  %1338 = vmatmul.mubr.bf16.gmra.mxu0 %v1217
  %v1339 = vpop.f32.mrf.mxu0
  %v1340 = vadd.f32 0.0, %v1339
  %v1341 = vpop.f32.mrf.mxu0
  %v1342 = vpop.f32.mrf.mxu0
  %v1343 = vadd.f32 0.0, %v1342
  %v1344 = vpop.f32.mrf.mxu0
  %1345 = vdwg.mxu0
  %v1348 = vunpack.c.l.b16 %v1156
  %v1349 = vunpack.c.l.b16 %v1157
  %v1350 = vpack.c.b16 %v1349, %v1348
  %v1352 = vsel %vm1215, %v1350, 0
  %1354 = vmatprep.subr.bf16.mxu0 0
  %1355 = vmatpush1.bf16.msra.mxu0 0
  %1356 = vmatprep.subr.bf16.mxu0 0
  %1357 = vmatpush1.bf16.msra.mxu0 0
  %1358 = vmatprep.subr.bf16.mxu0 0
  %1359 = vmatpush1.bf16.msra.mxu0 0
  %1360 = vmatprep.subr.bf16.mxu0 0
  %1361 = vmatpush1.bf16.msra.mxu0 0
  %1362 = vmatprep.subr.bf16.mxu0 0
  %1363 = vmatpush1.bf16.msra.mxu0 0
  %1364 = vmatprep.subr.bf16.mxu0 0
  %1365 = vmatpush1.bf16.msra.mxu0 0
  %1366 = vmatprep.subr.bf16.mxu0 %v1152
  %1367 = vmatpush1.bf16.msra.mxu0 %v1151
  %1368 = vmatprep.subr.bf16.mxu0 %v1147
  %1369 = vmatpush1.bf16.msra.mxu0 %v1146
  %1370 = vmatprep.subr.bf16.mxu0 0
  %1371 = vmatpush2.bf16.msra.mxu0 0
  %1372 = vmatprep.subr.bf16.mxu0 0
  %1373 = vmatpush2.bf16.msra.mxu0 0
  %1374 = vmatprep.subr.bf16.mxu0 0
  %1375 = vmatpush2.bf16.msra.mxu0 0
  %1376 = vmatprep.subr.bf16.mxu0 0
  %1377 = vmatpush2.bf16.msra.mxu0 0
  %1378 = vmatprep.subr.bf16.mxu0 0
  %1379 = vmatpush2.bf16.msra.mxu0 0
  %1380 = vmatprep.subr.bf16.mxu0 0
  %1381 = vmatpush2.bf16.msra.mxu0 0
  %1382 = vmatprep.subr.bf16.mxu0 0
  %1383 = vmatpush2.bf16.msra.mxu0 0
  %1384 = vmatprep.subr.bf16.mxu0 0
  %1385 = vmatpush2.bf16.msra.mxu0 0
  %1386 = vmatprep.mubr.bf16.mxu0 0
  %1387 = vmatmul.mubr.bf16.gmra.mxu0 %v1352
  %v1388 = vpop.f32.mrf.mxu0
  %v1389 = vadd.f32 %v1254, %v1388
  %v1390 = vpop.f32.mrf.mxu0
  %v1391 = vadd.f32 %v1256, %v1390
  %v1392 = vpop.f32.mrf.mxu0
  %v1393 = vadd.f32 %v1258, %v1392
  %v1394 = vpop.f32.mrf.mxu0
  %v1395 = vadd.f32 %v1260, %v1394
  %1396 = vdwg.mxu0
  %1397 = vmatprep.subr.bf16.mxu0 0
  %1398 = vmatpush1.bf16.msra.mxu0 0
  %1399 = vmatprep.subr.bf16.mxu0 0
  %1400 = vmatpush1.bf16.msra.mxu0 0
  %1401 = vmatprep.subr.bf16.mxu0 0
  %1402 = vmatpush1.bf16.msra.mxu0 0
  %1403 = vmatprep.subr.bf16.mxu0 0
  %1404 = vmatpush1.bf16.msra.mxu0 0
  %1405 = vmatprep.subr.bf16.mxu0 0
  %1406 = vmatpush1.bf16.msra.mxu0 0
  %1407 = vmatprep.subr.bf16.mxu0 0
  %1408 = vmatpush1.bf16.msra.mxu0 0
  %1409 = vmatprep.subr.bf16.mxu0 %v1154
  %1410 = vmatpush1.bf16.msra.mxu0 %v1153
  %1411 = vmatprep.subr.bf16.mxu0 %v1149
  %1412 = vmatpush1.bf16.msra.mxu0 %v1148
  %1413 = vmatprep.subr.bf16.mxu0 0
  %1414 = vmatpush2.bf16.msra.mxu0 0
  %1415 = vmatprep.subr.bf16.mxu0 0
  %1416 = vmatpush2.bf16.msra.mxu0 0
  %1417 = vmatprep.subr.bf16.mxu0 0
  %1418 = vmatpush2.bf16.msra.mxu0 0
  %1419 = vmatprep.subr.bf16.mxu0 0
  %1420 = vmatpush2.bf16.msra.mxu0 0
  %1421 = vmatprep.subr.bf16.mxu0 0
  %1422 = vmatpush2.bf16.msra.mxu0 0
  %1423 = vmatprep.subr.bf16.mxu0 0
  %1424 = vmatpush2.bf16.msra.mxu0 0
  %1425 = vmatprep.subr.bf16.mxu0 0
  %1426 = vmatpush2.bf16.msra.mxu0 0
  %1427 = vmatprep.subr.bf16.mxu0 0
  %1428 = vmatpush2.bf16.msra.mxu0 0
  %1429 = vmatprep.mubr.bf16.mxu0 0
  %1430 = vmatmul.mubr.bf16.gmra.mxu0 %v1352
  %v1431 = vpop.f32.mrf.mxu0
  %v1432 = vadd.f32 %v1297, %v1431
  %v1433 = vpop.f32.mrf.mxu0
  %v1434 = vadd.f32 %v1299, %v1433
  %v1435 = vpop.f32.mrf.mxu0
  %v1436 = vadd.f32 %v1301, %v1435
  %v1437 = vpop.f32.mrf.mxu0
  %v1438 = vadd.f32 %v1303, %v1437
  %1439 = vdwg.mxu0
  %1440 = vmatprep.subr.bf16.mxu0 0
  %1441 = vmatpush1.bf16.msra.mxu0 0
  %1442 = vmatprep.subr.bf16.mxu0 0
  %1443 = vmatpush1.bf16.msra.mxu0 0
  %1444 = vmatprep.subr.bf16.mxu0 0
  %1445 = vmatpush1.bf16.msra.mxu0 0
  %1446 = vmatprep.subr.bf16.mxu0 0
  %1447 = vmatpush1.bf16.msra.mxu0 0
  %1448 = vmatprep.subr.bf16.mxu0 0
  %1449 = vmatpush1.bf16.msra.mxu0 0
  %1450 = vmatprep.subr.bf16.mxu0 0
  %1451 = vmatpush1.bf16.msra.mxu0 0
  %1452 = vmatprep.subr.bf16.mxu0 0
  %1453 = vmatpush1.bf16.msra.mxu0 %v1155
  %1454 = vmatprep.subr.bf16.mxu0 0
  %1455 = vmatpush1.bf16.msra.mxu0 %v1150
  %1456 = vmatprep.subr.bf16.mxu0 0
  %1457 = vmatpush2.bf16.msra.mxu0 0
  %1458 = vmatprep.subr.bf16.mxu0 0
  %1459 = vmatpush2.bf16.msra.mxu0 0
  %1460 = vmatprep.subr.bf16.mxu0 0
  %1461 = vmatpush2.bf16.msra.mxu0 0
  %1462 = vmatprep.subr.bf16.mxu0 0
  %1463 = vmatpush2.bf16.msra.mxu0 0
  %1464 = vmatprep.subr.bf16.mxu0 0
  %1465 = vmatpush2.bf16.msra.mxu0 0
  %1466 = vmatprep.subr.bf16.mxu0 0
  %1467 = vmatpush2.bf16.msra.mxu0 0
  %1468 = vmatprep.subr.bf16.mxu0 0
  %1469 = vmatpush2.bf16.msra.mxu0 0
  %1470 = vmatprep.subr.bf16.mxu0 0
  %1471 = vmatpush2.bf16.msra.mxu0 0
  %1472 = vmatprep.mubr.bf16.mxu0 0
  %1473 = vmatmul.mubr.bf16.gmra.mxu0 %v1352
  %v1474 = vpop.f32.mrf.mxu0
  %v1475 = vadd.f32 %v1340, %v1474
  %v1476 = vpop.f32.mrf.mxu0
  %v1477 = vpop.f32.mrf.mxu0
  %v1478 = vadd.f32 %v1343, %v1477
  %v1479 = vpop.f32.mrf.mxu0
  %1480 = vdwg.mxu0
  %s1481 = scalar_lea.vmem %s4, 16
  %v1482 = vld [vmem:[%s1481] sm:$0xf]
  %v1483 = vld [vmem:[%s1481 + $0x4] sm:$0xf]
  %v1486 = vunpack.c.l.b16 %v1482
  %v1487 = vunpack.c.l.b16 %v1483
  %v1488 = vpack.c.b16 %v1487, %v1486
  %1489 = vrot.lane.b32.xlu0 %v1146, 94
  %v1490 = vpop.permute.xlu0 %1489
  %1491 = vrot.lane.b32.xlu0 %v1147, 94
  %v1492 = vpop.permute.xlu0 %1491
  %1493 = vrot.lane.b32.xlu0 %v1148, 94
  %v1494 = vpop.permute.xlu0 %1493
  %1495 = vrot.lane.b32.xlu0 %v1149, 94
  %v1496 = vpop.permute.xlu0 %1495
  %1497 = vrot.lane.b32.xlu0 %v1150, 94
  %v1498 = vpop.permute.xlu0 %1497
  %1499 = vrot.lane.b32.xlu0 %v1151, 94
  %v1500 = vpop.permute.xlu0 %1499
  %1501 = vrot.lane.b32.xlu0 %v1152, 94
  %v1502 = vpop.permute.xlu0 %1501
  %1503 = vrot.lane.b32.xlu0 %v1153, 94
  %v1504 = vpop.permute.xlu0 %1503
  %1505 = vrot.lane.b32.xlu0 %v1154, 94
  %v1506 = vpop.permute.xlu0 %1505
  %1507 = vrot.lane.b32.xlu0 %v1155, 94
  %v1508 = vpop.permute.xlu0 %1507
  %vm1509 = vcmask 769024
  %v1510 = vsel %vm1509, %v1490, %v1492
  %v1511 = vsel %vm1509, %v1492, %v1494
  %v1512 = vsel %vm1509, %v1494, %v1496
  %v1513 = vsel %vm1509, %v1496, %v1498
  %v1514 = vsel %vm1509, %v1500, %v1502
  %v1515 = vsel %vm1509, %v1502, %v1504
  %v1516 = vsel %vm1509, %v1504, %v1506
  %v1517 = vsel %vm1509, %v1506, %v1508
  %v1529 = vsel %vm1215, %v1488, 0
  %1531 = vmatprep.subr.bf16.mxu0 0
  %1532 = vmatpush1.bf16.msra.mxu0 0
  %1533 = vmatprep.subr.bf16.mxu0 0
  %1534 = vmatpush1.bf16.msra.mxu0 0
  %1535 = vmatprep.subr.bf16.mxu0 0
  %1536 = vmatpush1.bf16.msra.mxu0 0
  %1537 = vmatprep.subr.bf16.mxu0 0
  %1538 = vmatpush1.bf16.msra.mxu0 0
  %1539 = vmatprep.subr.bf16.mxu0 0
  %1540 = vmatpush1.bf16.msra.mxu0 0
  %1541 = vmatprep.subr.bf16.mxu0 0
  %1542 = vmatpush1.bf16.msra.mxu0 0
  %1543 = vmatprep.subr.bf16.mxu0 %v1515
  %1544 = vmatpush1.bf16.msra.mxu0 %v1514
  %1545 = vmatprep.subr.bf16.mxu0 %v1511
  %1546 = vmatpush1.bf16.msra.mxu0 %v1510
  %1547 = vmatprep.subr.bf16.mxu0 0
  %1548 = vmatpush2.bf16.msra.mxu0 0
  %1549 = vmatprep.subr.bf16.mxu0 0
  %1550 = vmatpush2.bf16.msra.mxu0 0
  %1551 = vmatprep.subr.bf16.mxu0 0
  %1552 = vmatpush2.bf16.msra.mxu0 0
  %1553 = vmatprep.subr.bf16.mxu0 0
  %1554 = vmatpush2.bf16.msra.mxu0 0
  %1555 = vmatprep.subr.bf16.mxu0 0
  %1556 = vmatpush2.bf16.msra.mxu0 0
  %1557 = vmatprep.subr.bf16.mxu0 0
  %1558 = vmatpush2.bf16.msra.mxu0 0
  %1559 = vmatprep.subr.bf16.mxu0 0
  %1560 = vmatpush2.bf16.msra.mxu0 0
  %1561 = vmatprep.subr.bf16.mxu0 0
  %1562 = vmatpush2.bf16.msra.mxu0 0
  %1563 = vmatprep.mubr.bf16.mxu0 0
  %1564 = vmatmul.mubr.bf16.gmra.mxu0 %v1529
  %v1565 = vpop.f32.mrf.mxu0
  %v1566 = vadd.f32 0.0, %v1565
  %v1567 = vpop.f32.mrf.mxu0
  %v1568 = vadd.f32 0.0, %v1567
  %v1569 = vpop.f32.mrf.mxu0
  %v1570 = vadd.f32 0.0, %v1569
  %v1571 = vpop.f32.mrf.mxu0
  %v1572 = vadd.f32 0.0, %v1571
  %1573 = vdwg.mxu0
  %1574 = vmatprep.subr.bf16.mxu0 0
  %1575 = vmatpush1.bf16.msra.mxu0 0
  %1576 = vmatprep.subr.bf16.mxu0 0
  %1577 = vmatpush1.bf16.msra.mxu0 0
  %1578 = vmatprep.subr.bf16.mxu0 0
  %1579 = vmatpush1.bf16.msra.mxu0 0
  %1580 = vmatprep.subr.bf16.mxu0 0
  %1581 = vmatpush1.bf16.msra.mxu0 0
  %1582 = vmatprep.subr.bf16.mxu0 0
  %1583 = vmatpush1.bf16.msra.mxu0 0
  %1584 = vmatprep.subr.bf16.mxu0 0
  %1585 = vmatpush1.bf16.msra.mxu0 0
  %1586 = vmatprep.subr.bf16.mxu0 %v1517
  %1587 = vmatpush1.bf16.msra.mxu0 %v1516
  %1588 = vmatprep.subr.bf16.mxu0 %v1513
  %1589 = vmatpush1.bf16.msra.mxu0 %v1512
  %1590 = vmatprep.subr.bf16.mxu0 0
  %1591 = vmatpush2.bf16.msra.mxu0 0
  %1592 = vmatprep.subr.bf16.mxu0 0
  %1593 = vmatpush2.bf16.msra.mxu0 0
  %1594 = vmatprep.subr.bf16.mxu0 0
  %1595 = vmatpush2.bf16.msra.mxu0 0
  %1596 = vmatprep.subr.bf16.mxu0 0
  %1597 = vmatpush2.bf16.msra.mxu0 0
  %1598 = vmatprep.subr.bf16.mxu0 0
  %1599 = vmatpush2.bf16.msra.mxu0 0
  %1600 = vmatprep.subr.bf16.mxu0 0
  %1601 = vmatpush2.bf16.msra.mxu0 0
  %1602 = vmatprep.subr.bf16.mxu0 0
  %1603 = vmatpush2.bf16.msra.mxu0 0
  %1604 = vmatprep.subr.bf16.mxu0 0
  %1605 = vmatpush2.bf16.msra.mxu0 0
  %1606 = vmatprep.mubr.bf16.mxu0 0
  %1607 = vmatmul.mubr.bf16.gmra.mxu0 %v1529
  %v1608 = vpop.f32.mrf.mxu0
  %v1609 = vadd.f32 0.0, %v1608
  %v1610 = vpop.f32.mrf.mxu0
  %v1611 = vadd.f32 0.0, %v1610
  %v1612 = vpop.f32.mrf.mxu0
  %v1613 = vadd.f32 0.0, %v1612
  %v1614 = vpop.f32.mrf.mxu0
  %v1615 = vadd.f32 0.0, %v1614
  %1616 = vdwg.mxu0
  %1617 = vmatprep.subr.bf16.mxu0 0
  %1618 = vmatpush1.bf16.msra.mxu0 0
  %1619 = vmatprep.subr.bf16.mxu0 0
  %1620 = vmatpush1.bf16.msra.mxu0 0
  %1621 = vmatprep.subr.bf16.mxu0 0
  %1622 = vmatpush1.bf16.msra.mxu0 0
  %1623 = vmatprep.subr.bf16.mxu0 0
  %1624 = vmatpush1.bf16.msra.mxu0 0
  %1625 = vmatprep.subr.bf16.mxu0 0
  %1626 = vmatpush1.bf16.msra.mxu0 0
  %1627 = vmatprep.subr.bf16.mxu0 0
  %1628 = vmatpush1.bf16.msra.mxu0 0
  %1629 = vmatprep.subr.bf16.mxu0 0
  %1630 = vmatpush1.bf16.msra.mxu0 %v1508
  %1631 = vmatprep.subr.bf16.mxu0 0
  %1632 = vmatpush1.bf16.msra.mxu0 %v1498
  %1633 = vmatprep.subr.bf16.mxu0 0
  %1634 = vmatpush2.bf16.msra.mxu0 0
  %1635 = vmatprep.subr.bf16.mxu0 0
  %1636 = vmatpush2.bf16.msra.mxu0 0
  %1637 = vmatprep.subr.bf16.mxu0 0
  %1638 = vmatpush2.bf16.msra.mxu0 0
  %1639 = vmatprep.subr.bf16.mxu0 0
  %1640 = vmatpush2.bf16.msra.mxu0 0
  %1641 = vmatprep.subr.bf16.mxu0 0
  %1642 = vmatpush2.bf16.msra.mxu0 0
  %1643 = vmatprep.subr.bf16.mxu0 0
  %1644 = vmatpush2.bf16.msra.mxu0 0
  %1645 = vmatprep.subr.bf16.mxu0 0
  %1646 = vmatpush2.bf16.msra.mxu0 0
  %1647 = vmatprep.subr.bf16.mxu0 0
  %1648 = vmatpush2.bf16.msra.mxu0 0
  %1649 = vmatprep.mubr.bf16.mxu0 0
  %1650 = vmatmul.mubr.bf16.gmra.mxu0 %v1529
  %v1651 = vpop.f32.mrf.mxu0
  %v1652 = vadd.f32 0.0, %v1651
  %v1653 = vpop.f32.mrf.mxu0
  %v1654 = vpop.f32.mrf.mxu0
  %v1655 = vadd.f32 0.0, %v1654
  %v1656 = vpop.f32.mrf.mxu0
  %1657 = vdwg.mxu0
  %v1658 = vadd.f32 %v1389, %v1566
  %v1659 = vadd.f32 %v1391, %v1568
  %v1660 = vadd.f32 %v1432, %v1609
  %v1661 = vadd.f32 %v1434, %v1611
  %v1662 = vadd.f32 %v1475, %v1652
  %v1663 = vadd.f32 %v1393, %v1570
  %v1664 = vadd.f32 %v1395, %v1572
  %v1665 = vadd.f32 %v1436, %v1613
  %v1666 = vadd.f32 %v1438, %v1615
  %v1667 = vadd.f32 %v1478, %v1655
  %s1668 = scalar_lea.vmem %s4, 24
  %v1669 = vld [vmem:[%s1668] sm:$0xf]
  %v1670 = vld [vmem:[%s1668 + $0x4] sm:$0xf]
  %v1673 = vunpack.c.l.b16 %v1669
  %v1674 = vunpack.c.l.b16 %v1670
  %v1675 = vpack.c.b16 %v1674, %v1673
  %1676 = vrot.lane.b32.xlu0 %v1146, 92
  %v1677 = vpop.permute.xlu0 %1676
  %1678 = vrot.lane.b32.xlu0 %v1147, 92
  %v1679 = vpop.permute.xlu0 %1678
  %1680 = vrot.lane.b32.xlu0 %v1148, 92
  %v1681 = vpop.permute.xlu0 %1680
  %1682 = vrot.lane.b32.xlu0 %v1149, 92
  %v1683 = vpop.permute.xlu0 %1682
  %1684 = vrot.lane.b32.xlu0 %v1150, 92
  %v1685 = vpop.permute.xlu0 %1684
  %1686 = vrot.lane.b32.xlu0 %v1151, 92
  %v1687 = vpop.permute.xlu0 %1686
  %1688 = vrot.lane.b32.xlu0 %v1152, 92
  %v1689 = vpop.permute.xlu0 %1688
  %1690 = vrot.lane.b32.xlu0 %v1153, 92
  %v1691 = vpop.permute.xlu0 %1690
  %1692 = vrot.lane.b32.xlu0 %v1154, 92
  %v1693 = vpop.permute.xlu0 %1692
  %1694 = vrot.lane.b32.xlu0 %v1155, 92
  %v1695 = vpop.permute.xlu0 %1694
  %vm1696 = vcmask 752640
  %v1697 = vsel %vm1696, %v1677, %v1679
  %v1698 = vsel %vm1696, %v1679, %v1681
  %v1699 = vsel %vm1696, %v1681, %v1683
  %v1700 = vsel %vm1696, %v1683, %v1685
  %v1701 = vsel %vm1696, %v1687, %v1689
  %v1702 = vsel %vm1696, %v1689, %v1691
  %v1703 = vsel %vm1696, %v1691, %v1693
  %v1704 = vsel %vm1696, %v1693, %v1695
  %v1716 = vsel %vm1215, %v1675, 0
  %1718 = vmatprep.subr.bf16.mxu0 0
  %1719 = vmatpush1.bf16.msra.mxu0 0
  %1720 = vmatprep.subr.bf16.mxu0 0
  %1721 = vmatpush1.bf16.msra.mxu0 0
  %1722 = vmatprep.subr.bf16.mxu0 0
  %1723 = vmatpush1.bf16.msra.mxu0 0
  %1724 = vmatprep.subr.bf16.mxu0 0
  %1725 = vmatpush1.bf16.msra.mxu0 0
  %1726 = vmatprep.subr.bf16.mxu0 0
  %1727 = vmatpush1.bf16.msra.mxu0 0
  %1728 = vmatprep.subr.bf16.mxu0 0
  %1729 = vmatpush1.bf16.msra.mxu0 0
  %1730 = vmatprep.subr.bf16.mxu0 %v1702
  %1731 = vmatpush1.bf16.msra.mxu0 %v1701
  %1732 = vmatprep.subr.bf16.mxu0 %v1698
  %1733 = vmatpush1.bf16.msra.mxu0 %v1697
  %1734 = vmatprep.subr.bf16.mxu0 0
  %1735 = vmatpush2.bf16.msra.mxu0 0
  %1736 = vmatprep.subr.bf16.mxu0 0
  %1737 = vmatpush2.bf16.msra.mxu0 0
  %1738 = vmatprep.subr.bf16.mxu0 0
  %1739 = vmatpush2.bf16.msra.mxu0 0
  %1740 = vmatprep.subr.bf16.mxu0 0
  %1741 = vmatpush2.bf16.msra.mxu0 0
  %1742 = vmatprep.subr.bf16.mxu0 0
  %1743 = vmatpush2.bf16.msra.mxu0 0
  %1744 = vmatprep.subr.bf16.mxu0 0
  %1745 = vmatpush2.bf16.msra.mxu0 0
  %1746 = vmatprep.subr.bf16.mxu0 0
  %1747 = vmatpush2.bf16.msra.mxu0 0
  %1748 = vmatprep.subr.bf16.mxu0 0
  %1749 = vmatpush2.bf16.msra.mxu0 0
  %1750 = vmatprep.mubr.bf16.mxu0 0
  %1751 = vmatmul.mubr.bf16.gmra.mxu0 %v1716
  %v1752 = vpop.f32.mrf.mxu0
  %v1753 = vadd.f32 0.0, %v1752
  %v1754 = vpop.f32.mrf.mxu0
  %v1755 = vadd.f32 0.0, %v1754
  %v1756 = vpop.f32.mrf.mxu0
  %v1757 = vadd.f32 0.0, %v1756
  %v1758 = vpop.f32.mrf.mxu0
  %v1759 = vadd.f32 0.0, %v1758
  %1760 = vdwg.mxu0
  %1761 = vmatprep.subr.bf16.mxu0 0
  %1762 = vmatpush1.bf16.msra.mxu0 0
  %1763 = vmatprep.subr.bf16.mxu0 0
  %1764 = vmatpush1.bf16.msra.mxu0 0
  %1765 = vmatprep.subr.bf16.mxu0 0
  %1766 = vmatpush1.bf16.msra.mxu0 0
  %1767 = vmatprep.subr.bf16.mxu0 0
  %1768 = vmatpush1.bf16.msra.mxu0 0
  %1769 = vmatprep.subr.bf16.mxu0 0
  %1770 = vmatpush1.bf16.msra.mxu0 0
  %1771 = vmatprep.subr.bf16.mxu0 0
  %1772 = vmatpush1.bf16.msra.mxu0 0
  %1773 = vmatprep.subr.bf16.mxu0 %v1704
  %1774 = vmatpush1.bf16.msra.mxu0 %v1703
  %1775 = vmatprep.subr.bf16.mxu0 %v1700
  %1776 = vmatpush1.bf16.msra.mxu0 %v1699
  %1777 = vmatprep.subr.bf16.mxu0 0
  %1778 = vmatpush2.bf16.msra.mxu0 0
  %1779 = vmatprep.subr.bf16.mxu0 0
  %1780 = vmatpush2.bf16.msra.mxu0 0
  %1781 = vmatprep.subr.bf16.mxu0 0
  %1782 = vmatpush2.bf16.msra.mxu0 0
  %1783 = vmatprep.subr.bf16.mxu0 0
  %1784 = vmatpush2.bf16.msra.mxu0 0
  %1785 = vmatprep.subr.bf16.mxu0 0
  %1786 = vmatpush2.bf16.msra.mxu0 0
  %1787 = vmatprep.subr.bf16.mxu0 0
  %1788 = vmatpush2.bf16.msra.mxu0 0
  %1789 = vmatprep.subr.bf16.mxu0 0
  %1790 = vmatpush2.bf16.msra.mxu0 0
  %1791 = vmatprep.subr.bf16.mxu0 0
  %1792 = vmatpush2.bf16.msra.mxu0 0
  %1793 = vmatprep.mubr.bf16.mxu0 0
  %1794 = vmatmul.mubr.bf16.gmra.mxu0 %v1716
  %v1795 = vpop.f32.mrf.mxu0
  %v1796 = vadd.f32 0.0, %v1795
  %v1797 = vpop.f32.mrf.mxu0
  %v1798 = vadd.f32 0.0, %v1797
  %v1799 = vpop.f32.mrf.mxu0
  %v1800 = vadd.f32 0.0, %v1799
  %v1801 = vpop.f32.mrf.mxu0
  %v1802 = vadd.f32 0.0, %v1801
  %1803 = vdwg.mxu0
  %1804 = vmatprep.subr.bf16.mxu0 0
  %1805 = vmatpush1.bf16.msra.mxu0 0
  %1806 = vmatprep.subr.bf16.mxu0 0
  %1807 = vmatpush1.bf16.msra.mxu0 0
  %1808 = vmatprep.subr.bf16.mxu0 0
  %1809 = vmatpush1.bf16.msra.mxu0 0
  %1810 = vmatprep.subr.bf16.mxu0 0
  %1811 = vmatpush1.bf16.msra.mxu0 0
  %1812 = vmatprep.subr.bf16.mxu0 0
  %1813 = vmatpush1.bf16.msra.mxu0 0
  %1814 = vmatprep.subr.bf16.mxu0 0
  %1815 = vmatpush1.bf16.msra.mxu0 0
  %1816 = vmatprep.subr.bf16.mxu0 0
  %1817 = vmatpush1.bf16.msra.mxu0 %v1695
  %1818 = vmatprep.subr.bf16.mxu0 0
  %1819 = vmatpush1.bf16.msra.mxu0 %v1685
  %1820 = vmatprep.subr.bf16.mxu0 0
  %1821 = vmatpush2.bf16.msra.mxu0 0
  %1822 = vmatprep.subr.bf16.mxu0 0
  %1823 = vmatpush2.bf16.msra.mxu0 0
  %1824 = vmatprep.subr.bf16.mxu0 0
  %1825 = vmatpush2.bf16.msra.mxu0 0
  %1826 = vmatprep.subr.bf16.mxu0 0
  %1827 = vmatpush2.bf16.msra.mxu0 0
  %1828 = vmatprep.subr.bf16.mxu0 0
  %1829 = vmatpush2.bf16.msra.mxu0 0
  %1830 = vmatprep.subr.bf16.mxu0 0
  %1831 = vmatpush2.bf16.msra.mxu0 0
  %1832 = vmatprep.subr.bf16.mxu0 0
  %1833 = vmatpush2.bf16.msra.mxu0 0
  %1834 = vmatprep.subr.bf16.mxu0 0
  %1835 = vmatpush2.bf16.msra.mxu0 0
  %1836 = vmatprep.mubr.bf16.mxu0 0
  %1837 = vmatmul.mubr.bf16.gmra.mxu0 %v1716
  %v1838 = vpop.f32.mrf.mxu0
  %v1839 = vadd.f32 0.0, %v1838
  %v1840 = vpop.f32.mrf.mxu0
  %v1841 = vpop.f32.mrf.mxu0
  %v1842 = vadd.f32 0.0, %v1841
  %v1843 = vpop.f32.mrf.mxu0
  %1844 = vdwg.mxu0
  %v1845 = vadd.f32 %v1658, %v1753
  %v1846 = vadd.f32 %v1659, %v1755
  %v1847 = vadd.f32 %v1660, %v1796
  %v1848 = vadd.f32 %v1661, %v1798
  %v1849 = vadd.f32 %v1662, %v1839
  %v1850 = vadd.f32 %v1663, %v1757
  %v1851 = vadd.f32 %v1664, %v1759
  %v1852 = vadd.f32 %v1665, %v1800
  %v1853 = vadd.f32 %v1666, %v1802
  %v1854 = vadd.f32 %v1667, %v1842
  %v1855 = vld [vmem:[%s7] sm:$0x1f]
  %v1857 = vlaneseq
  %v1858 = vshrl.u32 %v1857, 7
  %v1859 = vsub.s32 0, %v1858
  %v1860 = vrot.slane %v1855, %v1859
  %v1861 = vlaneseq
  %v1862 = vshrl.u32 %v1861, 7
  %v1863 = vsub.s32 1, %v1862
  %v1864 = vrot.slane %v1855, %v1863
  %v1865 = vlaneseq
  %v1866 = vshrl.u32 %v1865, 7
  %v1867 = vsub.s32 2, %v1866
  %v1868 = vrot.slane %v1855, %v1867
  %v1869 = vlaneseq
  %v1870 = vshrl.u32 %v1869, 7
  %v1871 = vsub.s32 3, %v1870
  %v1872 = vrot.slane %v1855, %v1871
  %v1873 = vlaneseq
  %v1874 = vshrl.u32 %v1873, 7
  %v1875 = vsub.s32 4, %v1874
  %v1876 = vrot.slane %v1855, %v1875
  %v1882 = vmul.f32 %v1845, %v1860
  %v1883 = vmul.f32 %v1846, %v1864
  %v1884 = vmul.f32 %v1847, %v1868
  %v1885 = vmul.f32 %v1848, %v1872
  %v1886 = vmul.f32 %v1849, %v1876
  %v1887 = vmul.f32 %v1850, %v1860
  %v1888 = vmul.f32 %v1851, %v1864
  %v1889 = vmul.f32 %v1852, %v1868
  %v1890 = vmul.f32 %v1853, %v1872
  %v1891 = vmul.f32 %v1854, %v1876
  %v1892 = vadd.f32 %v1882, %v1883
  %v1893 = vadd.f32 %v1892, %v1884
  %v1894 = vadd.f32 %v1893, %v1885
  %v1895 = vsel %vm1215, %v1886, 0.0
  %v1896 = vadd.f32 %v1894, %v1895
  %1897 = vadd.xlane.f32.xlu0 %v1896
  %v1898 = vpop.xlane.xlu0 %1897
  %v1899 = vadd.f32 %v1887, %v1888
  %v1900 = vadd.f32 %v1899, %v1889
  %v1901 = vadd.f32 %v1900, %v1890
  %v1902 = vsel %vm1215, %v1891, 0.0
  %v1903 = vadd.f32 %v1901, %v1902
  %1904 = vadd.xlane.f32.xlu0 %v1903
  %v1905 = vpop.xlane.xlu0 %1904
  %v1906 = vmul.f32 %v1898, 0.001953125
  %v1907 = vmul.f32 %v1905, 0.001953125
  %v1908 = vsub.f32 %v1845, %v1906
  %v1909 = vsub.f32 %v1846, %v1906
  %v1910 = vsub.f32 %v1847, %v1906
  %v1911 = vsub.f32 %v1848, %v1906
  %v1912 = vsub.f32 %v1849, %v1906
  %v1913 = vsub.f32 %v1850, %v1907
  %v1914 = vsub.f32 %v1851, %v1907
  %v1915 = vsub.f32 %v1852, %v1907
  %v1916 = vsub.f32 %v1853, %v1907
  %v1917 = vsub.f32 %v1854, %v1907
  %v1918 = vmul.f32 %v1908, %v1860
  %v1919 = vmul.f32 %v1909, %v1864
  %v1920 = vmul.f32 %v1910, %v1868
  %v1921 = vmul.f32 %v1911, %v1872
  %v1922 = vmul.f32 %v1912, %v1876
  %v1923 = vmul.f32 %v1913, %v1860
  %v1924 = vmul.f32 %v1914, %v1864
  %v1925 = vmul.f32 %v1915, %v1868
  %v1926 = vmul.f32 %v1916, %v1872
  %v1927 = vmul.f32 %v1917, %v1876
  %v1928 = vmul.f32 %v1918, %v1918
  %v1929 = vmul.f32 %v1919, %v1919
  %v1930 = vmul.f32 %v1920, %v1920
  %v1931 = vmul.f32 %v1921, %v1921
  %v1932 = vmul.f32 %v1922, %v1922
  %v1933 = vmul.f32 %v1923, %v1923
  %v1934 = vmul.f32 %v1924, %v1924
  %v1935 = vmul.f32 %v1925, %v1925
  %v1936 = vmul.f32 %v1926, %v1926
  %v1937 = vmul.f32 %v1927, %v1927
  %v1938 = vadd.f32 %v1928, %v1929
  %v1939 = vadd.f32 %v1938, %v1930
  %v1940 = vadd.f32 %v1939, %v1931
  %v1941 = vsel %vm1215, %v1932, 0.0
  %v1942 = vadd.f32 %v1940, %v1941
  %1943 = vadd.xlane.f32.xlu0 %v1942
  %v1944 = vpop.xlane.xlu0 %1943
  %v1945 = vadd.f32 %v1933, %v1934
  %v1946 = vadd.f32 %v1945, %v1935
  %v1947 = vadd.f32 %v1946, %v1936
  %v1948 = vsel %vm1215, %v1937, 0.0
  %v1949 = vadd.f32 %v1947, %v1948
  %1950 = vadd.xlane.f32.xlu0 %v1949
  %v1951 = vpop.xlane.xlu0 %1950
  %v1952 = vmul.f32 %v1944, 0.001953125
  %v1953 = vmul.f32 %v1951, 0.001953125
  %v1954 = vld [vmem:[%s5] sm:$0xff]
  %v1955 = vld [vmem:[%s5 + $0x8] sm:$0xff]
  %v1956 = vadd.f32 %v1952, 1e-05
  %v1957 = vadd.f32 %v1953, 1e-05
  %v1958 = vrsqrt.pop %v1956
  %v1959 = vrsqrt.pop %v1957
  %v1960 = vmul.f32 %v1954, %v1958
  %v1961 = vmul.f32 %v1955, %v1959
  %1963 = vset.pattern.permute.xlu0 0
  %1964 = vperm.xlu0 %1963, %v1960
  %v1965 = vpop.permute.xlu0 %1964
  %1968 = vset.pattern.permute.xlu0 0
  %1969 = vperm.xlu0 %1968, %v1961
  %v1970 = vpop.permute.xlu0 %1969
  %v1972 = vmul.f32 %v1908, %v1965
  %v1973 = vmul.f32 %v1909, %v1965
  %v1974 = vmul.f32 %v1910, %v1965
  %v1975 = vmul.f32 %v1911, %v1965
  %v1976 = vmul.f32 %v1912, %v1965
  %v1977 = vmul.f32 %v1913, %v1970
  %v1978 = vmul.f32 %v1914, %v1970
  %v1979 = vmul.f32 %v1915, %v1970
  %v1980 = vmul.f32 %v1916, %v1970
  %v1981 = vmul.f32 %v1917, %v1970
  %v1982 = vld [vmem:[%s6] sm:$0xff]
  %v1983 = vld [vmem:[%s6 + $0x8] sm:$0xff]
  %1985 = vset.pattern.permute.xlu0 0
  %1986 = vperm.xlu0 %1985, %v1982
  %v1987 = vpop.permute.xlu0 %1986
  %1990 = vset.pattern.permute.xlu0 0
  %1991 = vperm.xlu0 %1990, %v1983
  %v1992 = vpop.permute.xlu0 %1991
  %v1994 = vadd.f32 %v1972, %v1987
  %v1995 = vadd.f32 %v1973, %v1987
  %v1996 = vadd.f32 %v1974, %v1987
  %v1997 = vadd.f32 %v1975, %v1987
  %v1998 = vadd.f32 %v1976, %v1987
  %v1999 = vadd.f32 %v1977, %v1992
  %v2000 = vadd.f32 %v1978, %v1992
  %v2001 = vadd.f32 %v1979, %v1992
  %v2002 = vadd.f32 %v1980, %v1992
  %v2003 = vadd.f32 %v1981, %v1992
  %vm2004 = vcmp.gt.f32.partialorder %v1994, 0.0
  %vm2005 = vcmp.gt.f32.partialorder %v1995, 0.0
  %vm2006 = vcmp.gt.f32.partialorder %v1996, 0.0
  %vm2007 = vcmp.gt.f32.partialorder %v1997, 0.0
  %vm2008 = vcmp.gt.f32.partialorder %v1998, 0.0
  %vm2009 = vcmp.gt.f32.partialorder %v1999, 0.0
  %vm2010 = vcmp.gt.f32.partialorder %v2000, 0.0
  %vm2011 = vcmp.gt.f32.partialorder %v2001, 0.0
  %vm2012 = vcmp.gt.f32.partialorder %v2002, 0.0
  %vm2013 = vcmp.gt.f32.partialorder %v2003, 0.0
  %v2014 = vmul.f32 %v1994, 0.2
  %v2015 = vmul.f32 %v1995, 0.2
  %v2016 = vmul.f32 %v1996, 0.2
  %v2017 = vmul.f32 %v1997, 0.2
  %v2018 = vmul.f32 %v1998, 0.2
  %v2019 = vmul.f32 %v1999, 0.2
  %v2020 = vmul.f32 %v2000, 0.2
  %v2021 = vmul.f32 %v2001, 0.2
  %v2022 = vmul.f32 %v2002, 0.2
  %v2023 = vmul.f32 %v2003, 0.2
  %v2024 = vsel %vm2004, %v1994, %v2014
  %v2025 = vsel %vm2005, %v1995, %v2015
  %v2026 = vsel %vm2006, %v1996, %v2016
  %v2027 = vsel %vm2007, %v1997, %v2017
  %v2028 = vsel %vm2008, %v1998, %v2018
  %v2029 = vsel %vm2009, %v1999, %v2019
  %v2030 = vsel %vm2010, %v2000, %v2020
  %v2031 = vsel %vm2011, %v2001, %v2021
  %v2032 = vsel %vm2012, %v2002, %v2022
  %v2033 = vsel %vm2013, %v2003, %v2023
  %v2034 = vpack.c.bf16 %v2029, %v2024
  %v2035 = vpack.c.bf16 %v2030, %v2025
  %v2036 = vpack.c.bf16 %v2031, %v2026
  %v2037 = vpack.c.bf16 %v2032, %v2027
  %v2038 = vpack.c.bf16 %v2033, %v2028
  %v2039 = vlaneseq
  %v2040 = vshrl.u32 %v2039, 7
  %v2041 = vadd.s32 %v2040, 8
  %v2042 = vadd.s32 %v2040, 16
  %v2043 = vadd.s32 %v2040, 24
  %v2044 = vadd.s32 %v2040, 32
  %v2045 = vadd.s32 %v2040, 40
  %v2046 = vadd.s32 %v2040, 48
  %v2047 = vadd.s32 %v2040, 56
  %v2048 = vadd.s32 %v2040, 64
  %v2049 = vadd.s32 %v2040, 72
  %v2050 = vadd.s32 %v2040, 80
  %v2051 = vadd.s32 %v2040, 88
  %v2052 = vadd.s32 %v2040, 96
  %v2053 = vadd.s32 %v2040, 104
  %v2054 = vadd.s32 %v2040, 112
  %v2055 = vadd.s32 %v2040, 120
  %v2056 = vadd.s32 %v2040, 128
  %v2057 = vadd.s32 %v2040, 136
  %v2058 = vadd.s32 %v2040, 144
  %v2059 = vadd.s32 %v2040, 152
  %v2060 = vadd.s32 %v2040, 160
  %v2061 = vadd.s32 %v2040, 168
  %v2062 = vadd.s32 %v2040, 176
  %v2063 = vadd.s32 %v2040, 184
  %v2064 = vadd.s32 %v2040, 192
  %v2065 = vadd.s32 %v2040, 200
  %v2066 = vadd.s32 %v2040, 208
  %v2067 = vadd.s32 %v2040, 216
  %v2068 = vadd.s32 %v2040, 224
  %v2069 = vadd.s32 %v2040, 232
  %v2070 = vadd.s32 %v2040, 240
  %v2071 = vadd.s32 %v2040, 248
  %v2072 = vadd.s32 %v2040, 256
  %v2073 = vadd.s32 %v2040, 264
  %v2074 = vadd.s32 %v2040, 272
  %v2075 = vadd.s32 %v2040, 280
  %v2076 = vadd.s32 %v2040, 288
  %v2077 = vadd.s32 %v2040, 296
  %v2078 = vadd.s32 %v2040, 304
  %v2079 = vadd.s32 %v2040, 312
  %v2080 = vadd.s32 %v2040, 320
  %v2081 = vadd.s32 %v2040, 328
  %v2082 = vadd.s32 %v2040, 336
  %v2083 = vadd.s32 %v2040, 344
  %v2084 = vadd.s32 %v2040, 352
  %v2085 = vadd.s32 %v2040, 360
  %v2086 = vadd.s32 %v2040, 368
  %v2087 = vadd.s32 %v2040, 376
  %v2088 = vadd.s32 %v2040, 384
  %v2089 = vadd.s32 %v2040, 392
  %v2090 = vadd.s32 %v2040, 400
  %v2091 = vadd.s32 %v2040, 408
  %v2092 = vadd.s32 %v2040, 416
  %v2093 = vadd.s32 %v2040, 424
  %v2094 = vadd.s32 %v2040, 432
  %v2095 = vadd.s32 %v2040, 440
  %v2096 = vadd.s32 %v2040, 448
  %v2097 = vadd.s32 %v2040, 456
  %v2098 = vadd.s32 %v2040, 464
  %v2099 = vadd.s32 %v2040, 472
  %v2100 = vadd.s32 %v2040, 480
  %v2101 = vadd.s32 %v2040, 488
  %v2102 = vadd.s32 %v2040, 496
  %v2103 = vadd.s32 %v2040, 504
  %v2104 = vadd.s32 %v2040, 512
  %v2105 = vadd.s32 %v2040, 520
  %v2106 = vadd.s32 %v2040, 528
  %v2107 = vadd.s32 %v2040, 536
  %v2108 = vld [vmem:[%s8] sm:$0x3]
  %v2109 = vlaneseq
  %v2110 = vshrl.u32 %v2109, 7
  %v2111 = vsub.s32 0, %v2110
  %v2112 = vrot.slane %v2108, %v2111
  %v2113 = vlaneseq
  %v2114 = vshrl.u32 %v2113, 7
  %v2115 = vsub.s32 1, %v2114
  %v2116 = vrot.slane %v2108, %v2115
  %vm2117 = vcmp.eq.s32.totalorder %v2040, %v2112
  %vm2118 = vcmp.eq.s32.totalorder %v2040, %v2116
  %vm2119 = vcmp.eq.s32.totalorder %v2041, %v2112
  %vm2120 = vcmp.eq.s32.totalorder %v2041, %v2116
  %vm2121 = vcmp.eq.s32.totalorder %v2042, %v2112
  %vm2122 = vcmp.eq.s32.totalorder %v2042, %v2116
  %vm2123 = vcmp.eq.s32.totalorder %v2043, %v2112
  %vm2124 = vcmp.eq.s32.totalorder %v2043, %v2116
  %vm2125 = vcmp.eq.s32.totalorder %v2044, %v2112
  %vm2126 = vcmp.eq.s32.totalorder %v2044, %v2116
  %vm2127 = vcmp.eq.s32.totalorder %v2045, %v2112
  %vm2128 = vcmp.eq.s32.totalorder %v2045, %v2116
  %vm2129 = vcmp.eq.s32.totalorder %v2046, %v2112
  %vm2130 = vcmp.eq.s32.totalorder %v2046, %v2116
  %vm2131 = vcmp.eq.s32.totalorder %v2047, %v2112
  %vm2132 = vcmp.eq.s32.totalorder %v2047, %v2116
  %vm2133 = vcmp.eq.s32.totalorder %v2048, %v2112
  %vm2134 = vcmp.eq.s32.totalorder %v2048, %v2116
  %vm2135 = vcmp.eq.s32.totalorder %v2049, %v2112
  %vm2136 = vcmp.eq.s32.totalorder %v2049, %v2116
  %vm2137 = vcmp.eq.s32.totalorder %v2050, %v2112
  %vm2138 = vcmp.eq.s32.totalorder %v2050, %v2116
  %vm2139 = vcmp.eq.s32.totalorder %v2051, %v2112
  %vm2140 = vcmp.eq.s32.totalorder %v2051, %v2116
  %vm2141 = vcmp.eq.s32.totalorder %v2052, %v2112
  %vm2142 = vcmp.eq.s32.totalorder %v2052, %v2116
  %vm2143 = vcmp.eq.s32.totalorder %v2053, %v2112
  %vm2144 = vcmp.eq.s32.totalorder %v2053, %v2116
  %vm2145 = vcmp.eq.s32.totalorder %v2054, %v2112
  %vm2146 = vcmp.eq.s32.totalorder %v2054, %v2116
  %vm2147 = vcmp.eq.s32.totalorder %v2055, %v2112
  %vm2148 = vcmp.eq.s32.totalorder %v2055, %v2116
  %vm2149 = vcmp.eq.s32.totalorder %v2056, %v2112
  %vm2150 = vcmp.eq.s32.totalorder %v2056, %v2116
  %vm2151 = vcmp.eq.s32.totalorder %v2057, %v2112
  %vm2152 = vcmp.eq.s32.totalorder %v2057, %v2116
  %vm2153 = vcmp.eq.s32.totalorder %v2058, %v2112
  %vm2154 = vcmp.eq.s32.totalorder %v2058, %v2116
  %vm2155 = vcmp.eq.s32.totalorder %v2059, %v2112
  %vm2156 = vcmp.eq.s32.totalorder %v2059, %v2116
  %vm2157 = vcmp.eq.s32.totalorder %v2060, %v2112
  %vm2158 = vcmp.eq.s32.totalorder %v2060, %v2116
  %vm2159 = vcmp.eq.s32.totalorder %v2061, %v2112
  %vm2160 = vcmp.eq.s32.totalorder %v2061, %v2116
  %vm2161 = vcmp.eq.s32.totalorder %v2062, %v2112
  %vm2162 = vcmp.eq.s32.totalorder %v2062, %v2116
  %vm2163 = vcmp.eq.s32.totalorder %v2063, %v2112
  %vm2164 = vcmp.eq.s32.totalorder %v2063, %v2116
  %vm2165 = vcmp.eq.s32.totalorder %v2064, %v2112
  %vm2166 = vcmp.eq.s32.totalorder %v2064, %v2116
  %vm2167 = vcmp.eq.s32.totalorder %v2065, %v2112
  %vm2168 = vcmp.eq.s32.totalorder %v2065, %v2116
  %vm2169 = vcmp.eq.s32.totalorder %v2066, %v2112
  %vm2170 = vcmp.eq.s32.totalorder %v2066, %v2116
  %vm2171 = vcmp.eq.s32.totalorder %v2067, %v2112
  %vm2172 = vcmp.eq.s32.totalorder %v2067, %v2116
  %vm2173 = vcmp.eq.s32.totalorder %v2068, %v2112
  %vm2174 = vcmp.eq.s32.totalorder %v2068, %v2116
  %vm2175 = vcmp.eq.s32.totalorder %v2069, %v2112
  %vm2176 = vcmp.eq.s32.totalorder %v2069, %v2116
  %vm2177 = vcmp.eq.s32.totalorder %v2070, %v2112
  %vm2178 = vcmp.eq.s32.totalorder %v2070, %v2116
  %vm2179 = vcmp.eq.s32.totalorder %v2071, %v2112
  %vm2180 = vcmp.eq.s32.totalorder %v2071, %v2116
  %vm2181 = vcmp.eq.s32.totalorder %v2072, %v2112
  %vm2182 = vcmp.eq.s32.totalorder %v2072, %v2116
  %vm2183 = vcmp.eq.s32.totalorder %v2073, %v2112
  %vm2184 = vcmp.eq.s32.totalorder %v2073, %v2116
  %vm2185 = vcmp.eq.s32.totalorder %v2074, %v2112
  %vm2186 = vcmp.eq.s32.totalorder %v2074, %v2116
  %vm2187 = vcmp.eq.s32.totalorder %v2075, %v2112
  %vm2188 = vcmp.eq.s32.totalorder %v2075, %v2116
  %vm2189 = vcmp.eq.s32.totalorder %v2076, %v2112
  %vm2190 = vcmp.eq.s32.totalorder %v2076, %v2116
  %vm2191 = vcmp.eq.s32.totalorder %v2077, %v2112
  %vm2192 = vcmp.eq.s32.totalorder %v2077, %v2116
  %vm2193 = vcmp.eq.s32.totalorder %v2078, %v2112
  %vm2194 = vcmp.eq.s32.totalorder %v2078, %v2116
  %vm2195 = vcmp.eq.s32.totalorder %v2079, %v2112
  %vm2196 = vcmp.eq.s32.totalorder %v2079, %v2116
  %vm2197 = vcmp.eq.s32.totalorder %v2080, %v2112
  %vm2198 = vcmp.eq.s32.totalorder %v2080, %v2116
  %vm2199 = vcmp.eq.s32.totalorder %v2081, %v2112
  %vm2200 = vcmp.eq.s32.totalorder %v2081, %v2116
  %vm2201 = vcmp.eq.s32.totalorder %v2082, %v2112
  %vm2202 = vcmp.eq.s32.totalorder %v2082, %v2116
  %vm2203 = vcmp.eq.s32.totalorder %v2083, %v2112
  %vm2204 = vcmp.eq.s32.totalorder %v2083, %v2116
  %vm2205 = vcmp.eq.s32.totalorder %v2084, %v2112
  %vm2206 = vcmp.eq.s32.totalorder %v2084, %v2116
  %vm2207 = vcmp.eq.s32.totalorder %v2085, %v2112
  %vm2208 = vcmp.eq.s32.totalorder %v2085, %v2116
  %vm2209 = vcmp.eq.s32.totalorder %v2086, %v2112
  %vm2210 = vcmp.eq.s32.totalorder %v2086, %v2116
  %vm2211 = vcmp.eq.s32.totalorder %v2087, %v2112
  %vm2212 = vcmp.eq.s32.totalorder %v2087, %v2116
  %vm2213 = vcmp.eq.s32.totalorder %v2088, %v2112
  %vm2214 = vcmp.eq.s32.totalorder %v2088, %v2116
  %vm2215 = vcmp.eq.s32.totalorder %v2089, %v2112
  %vm2216 = vcmp.eq.s32.totalorder %v2089, %v2116
  %vm2217 = vcmp.eq.s32.totalorder %v2090, %v2112
  %vm2218 = vcmp.eq.s32.totalorder %v2090, %v2116
  %vm2219 = vcmp.eq.s32.totalorder %v2091, %v2112
  %vm2220 = vcmp.eq.s32.totalorder %v2091, %v2116
  %vm2221 = vcmp.eq.s32.totalorder %v2092, %v2112
  %vm2222 = vcmp.eq.s32.totalorder %v2092, %v2116
  %vm2223 = vcmp.eq.s32.totalorder %v2093, %v2112
  %vm2224 = vcmp.eq.s32.totalorder %v2093, %v2116
  %vm2225 = vcmp.eq.s32.totalorder %v2094, %v2112
  %vm2226 = vcmp.eq.s32.totalorder %v2094, %v2116
  %vm2227 = vcmp.eq.s32.totalorder %v2095, %v2112
  %vm2228 = vcmp.eq.s32.totalorder %v2095, %v2116
  %vm2229 = vcmp.eq.s32.totalorder %v2096, %v2112
  %vm2230 = vcmp.eq.s32.totalorder %v2096, %v2116
  %vm2231 = vcmp.eq.s32.totalorder %v2097, %v2112
  %vm2232 = vcmp.eq.s32.totalorder %v2097, %v2116
  %vm2233 = vcmp.eq.s32.totalorder %v2098, %v2112
  %vm2234 = vcmp.eq.s32.totalorder %v2098, %v2116
  %vm2235 = vcmp.eq.s32.totalorder %v2099, %v2112
  %vm2236 = vcmp.eq.s32.totalorder %v2099, %v2116
  %vm2237 = vcmp.eq.s32.totalorder %v2100, %v2112
  %vm2238 = vcmp.eq.s32.totalorder %v2100, %v2116
  %vm2239 = vcmp.eq.s32.totalorder %v2101, %v2112
  %vm2240 = vcmp.eq.s32.totalorder %v2101, %v2116
  %vm2241 = vcmp.eq.s32.totalorder %v2102, %v2112
  %vm2242 = vcmp.eq.s32.totalorder %v2102, %v2116
  %vm2243 = vcmp.eq.s32.totalorder %v2103, %v2112
  %vm2244 = vcmp.eq.s32.totalorder %v2103, %v2116
  %vm2245 = vcmp.eq.s32.totalorder %v2104, %v2112
  %vm2246 = vcmp.eq.s32.totalorder %v2104, %v2116
  %vm2247 = vcmp.eq.s32.totalorder %v2105, %v2112
  %vm2248 = vcmp.eq.s32.totalorder %v2105, %v2116
  %vm2249 = vcmp.eq.s32.totalorder %v2106, %v2112
  %vm2250 = vcmp.eq.s32.totalorder %v2106, %v2116
  %vm2251 = vcmp.eq.s32.totalorder %v2107, %v2112
  %vm2252 = vcmp.eq.s32.totalorder %v2107, %v2116
  %v2253 = vsel %vm2117, 1.0, 0.0
  %v2254 = vsel %vm2118, 1.0, 0.0
  %v2255 = vsel %vm2119, 1.0, 0.0
  %v2256 = vsel %vm2120, 1.0, 0.0
  %v2257 = vsel %vm2121, 1.0, 0.0
  %v2258 = vsel %vm2122, 1.0, 0.0
  %v2259 = vsel %vm2123, 1.0, 0.0
  %v2260 = vsel %vm2124, 1.0, 0.0
  %v2261 = vsel %vm2125, 1.0, 0.0
  %v2262 = vsel %vm2126, 1.0, 0.0
  %v2263 = vsel %vm2127, 1.0, 0.0
  %v2264 = vsel %vm2128, 1.0, 0.0
  %v2265 = vsel %vm2129, 1.0, 0.0
  %v2266 = vsel %vm2130, 1.0, 0.0
  %v2267 = vsel %vm2131, 1.0, 0.0
  %v2268 = vsel %vm2132, 1.0, 0.0
  %v2269 = vsel %vm2133, 1.0, 0.0
  %v2270 = vsel %vm2134, 1.0, 0.0
  %v2271 = vsel %vm2135, 1.0, 0.0
  %v2272 = vsel %vm2136, 1.0, 0.0
  %v2273 = vsel %vm2137, 1.0, 0.0
  %v2274 = vsel %vm2138, 1.0, 0.0
  %v2275 = vsel %vm2139, 1.0, 0.0
  %v2276 = vsel %vm2140, 1.0, 0.0
  %v2277 = vsel %vm2141, 1.0, 0.0
  %v2278 = vsel %vm2142, 1.0, 0.0
  %v2279 = vsel %vm2143, 1.0, 0.0
  %v2280 = vsel %vm2144, 1.0, 0.0
  %v2281 = vsel %vm2145, 1.0, 0.0
  %v2282 = vsel %vm2146, 1.0, 0.0
  %v2283 = vsel %vm2147, 1.0, 0.0
  %v2284 = vsel %vm2148, 1.0, 0.0
  %v2285 = vsel %vm2149, 1.0, 0.0
  %v2286 = vsel %vm2150, 1.0, 0.0
  %v2287 = vsel %vm2151, 1.0, 0.0
  %v2288 = vsel %vm2152, 1.0, 0.0
  %v2289 = vsel %vm2153, 1.0, 0.0
  %v2290 = vsel %vm2154, 1.0, 0.0
  %v2291 = vsel %vm2155, 1.0, 0.0
  %v2292 = vsel %vm2156, 1.0, 0.0
  %v2293 = vsel %vm2157, 1.0, 0.0
  %v2294 = vsel %vm2158, 1.0, 0.0
  %v2295 = vsel %vm2159, 1.0, 0.0
  %v2296 = vsel %vm2160, 1.0, 0.0
  %v2297 = vsel %vm2161, 1.0, 0.0
  %v2298 = vsel %vm2162, 1.0, 0.0
  %v2299 = vsel %vm2163, 1.0, 0.0
  %v2300 = vsel %vm2164, 1.0, 0.0
  %v2301 = vsel %vm2165, 1.0, 0.0
  %v2302 = vsel %vm2166, 1.0, 0.0
  %v2303 = vsel %vm2167, 1.0, 0.0
  %v2304 = vsel %vm2168, 1.0, 0.0
  %v2305 = vsel %vm2169, 1.0, 0.0
  %v2306 = vsel %vm2170, 1.0, 0.0
  %v2307 = vsel %vm2171, 1.0, 0.0
  %v2308 = vsel %vm2172, 1.0, 0.0
  %v2309 = vsel %vm2173, 1.0, 0.0
  %v2310 = vsel %vm2174, 1.0, 0.0
  %v2311 = vsel %vm2175, 1.0, 0.0
  %v2312 = vsel %vm2176, 1.0, 0.0
  %v2313 = vsel %vm2177, 1.0, 0.0
  %v2314 = vsel %vm2178, 1.0, 0.0
  %v2315 = vsel %vm2179, 1.0, 0.0
  %v2316 = vsel %vm2180, 1.0, 0.0
  %v2317 = vsel %vm2181, 1.0, 0.0
  %v2318 = vsel %vm2182, 1.0, 0.0
  %v2319 = vsel %vm2183, 1.0, 0.0
  %v2320 = vsel %vm2184, 1.0, 0.0
  %v2321 = vsel %vm2185, 1.0, 0.0
  %v2322 = vsel %vm2186, 1.0, 0.0
  %v2323 = vsel %vm2187, 1.0, 0.0
  %v2324 = vsel %vm2188, 1.0, 0.0
  %v2325 = vsel %vm2189, 1.0, 0.0
  %v2326 = vsel %vm2190, 1.0, 0.0
  %v2327 = vsel %vm2191, 1.0, 0.0
  %v2328 = vsel %vm2192, 1.0, 0.0
  %v2329 = vsel %vm2193, 1.0, 0.0
  %v2330 = vsel %vm2194, 1.0, 0.0
  %v2331 = vsel %vm2195, 1.0, 0.0
  %v2332 = vsel %vm2196, 1.0, 0.0
  %v2333 = vsel %vm2197, 1.0, 0.0
  %v2334 = vsel %vm2198, 1.0, 0.0
  %v2335 = vsel %vm2199, 1.0, 0.0
  %v2336 = vsel %vm2200, 1.0, 0.0
  %v2337 = vsel %vm2201, 1.0, 0.0
  %v2338 = vsel %vm2202, 1.0, 0.0
  %v2339 = vsel %vm2203, 1.0, 0.0
  %v2340 = vsel %vm2204, 1.0, 0.0
  %v2341 = vsel %vm2205, 1.0, 0.0
  %v2342 = vsel %vm2206, 1.0, 0.0
  %v2343 = vsel %vm2207, 1.0, 0.0
  %v2344 = vsel %vm2208, 1.0, 0.0
  %v2345 = vsel %vm2209, 1.0, 0.0
  %v2346 = vsel %vm2210, 1.0, 0.0
  %v2347 = vsel %vm2211, 1.0, 0.0
  %v2348 = vsel %vm2212, 1.0, 0.0
  %v2349 = vsel %vm2213, 1.0, 0.0
  %v2350 = vsel %vm2214, 1.0, 0.0
  %v2351 = vsel %vm2215, 1.0, 0.0
  %v2352 = vsel %vm2216, 1.0, 0.0
  %v2353 = vsel %vm2217, 1.0, 0.0
  %v2354 = vsel %vm2218, 1.0, 0.0
  %v2355 = vsel %vm2219, 1.0, 0.0
  %v2356 = vsel %vm2220, 1.0, 0.0
  %v2357 = vsel %vm2221, 1.0, 0.0
  %v2358 = vsel %vm2222, 1.0, 0.0
  %v2359 = vsel %vm2223, 1.0, 0.0
  %v2360 = vsel %vm2224, 1.0, 0.0
  %v2361 = vsel %vm2225, 1.0, 0.0
  %v2362 = vsel %vm2226, 1.0, 0.0
  %v2363 = vsel %vm2227, 1.0, 0.0
  %v2364 = vsel %vm2228, 1.0, 0.0
  %v2365 = vsel %vm2229, 1.0, 0.0
  %v2366 = vsel %vm2230, 1.0, 0.0
  %v2367 = vsel %vm2231, 1.0, 0.0
  %v2368 = vsel %vm2232, 1.0, 0.0
  %v2369 = vsel %vm2233, 1.0, 0.0
  %v2370 = vsel %vm2234, 1.0, 0.0
  %v2371 = vsel %vm2235, 1.0, 0.0
  %v2372 = vsel %vm2236, 1.0, 0.0
  %v2373 = vsel %vm2237, 1.0, 0.0
  %v2374 = vsel %vm2238, 1.0, 0.0
  %v2375 = vsel %vm2239, 1.0, 0.0
  %v2376 = vsel %vm2240, 1.0, 0.0
  %v2377 = vsel %vm2241, 1.0, 0.0
  %v2378 = vsel %vm2242, 1.0, 0.0
  %v2379 = vsel %vm2243, 1.0, 0.0
  %v2380 = vsel %vm2244, 1.0, 0.0
  %v2381 = vsel %vm2245, 1.0, 0.0
  %v2382 = vsel %vm2246, 1.0, 0.0
  %v2383 = vsel %vm2247, 1.0, 0.0
  %v2384 = vsel %vm2248, 1.0, 0.0
  %v2385 = vsel %vm2249, 1.0, 0.0
  %v2386 = vsel %vm2250, 1.0, 0.0
  %v2387 = vsel %vm2251, 1.0, 0.0
  %v2388 = vsel %vm2252, 1.0, 0.0
  %v2389 = vpack.c.bf16 %v2255, %v2253
  %v2390 = vpack.c.bf16 %v2256, %v2254
  %v2391 = vpack.c.bf16 %v2259, %v2257
  %v2392 = vpack.c.bf16 %v2260, %v2258
  %v2393 = vpack.c.bf16 %v2263, %v2261
  %v2394 = vpack.c.bf16 %v2264, %v2262
  %v2395 = vpack.c.bf16 %v2267, %v2265
  %v2396 = vpack.c.bf16 %v2268, %v2266
  %v2397 = vpack.c.bf16 %v2271, %v2269
  %v2398 = vpack.c.bf16 %v2272, %v2270
  %v2399 = vpack.c.bf16 %v2275, %v2273
  %v2400 = vpack.c.bf16 %v2276, %v2274
  %v2401 = vpack.c.bf16 %v2279, %v2277
  %v2402 = vpack.c.bf16 %v2280, %v2278
  %v2403 = vpack.c.bf16 %v2283, %v2281
  %v2404 = vpack.c.bf16 %v2284, %v2282
  %v2405 = vpack.c.bf16 %v2287, %v2285
  %v2406 = vpack.c.bf16 %v2288, %v2286
  %v2407 = vpack.c.bf16 %v2291, %v2289
  %v2408 = vpack.c.bf16 %v2292, %v2290
  %v2409 = vpack.c.bf16 %v2295, %v2293
  %v2410 = vpack.c.bf16 %v2296, %v2294
  %v2411 = vpack.c.bf16 %v2299, %v2297
  %v2412 = vpack.c.bf16 %v2300, %v2298
  %v2413 = vpack.c.bf16 %v2303, %v2301
  %v2414 = vpack.c.bf16 %v2304, %v2302
  %v2415 = vpack.c.bf16 %v2307, %v2305
  %v2416 = vpack.c.bf16 %v2308, %v2306
  %v2417 = vpack.c.bf16 %v2311, %v2309
  %v2418 = vpack.c.bf16 %v2312, %v2310
  %v2419 = vpack.c.bf16 %v2315, %v2313
  %v2420 = vpack.c.bf16 %v2316, %v2314
  %v2421 = vpack.c.bf16 %v2319, %v2317
  %v2422 = vpack.c.bf16 %v2320, %v2318
  %v2423 = vpack.c.bf16 %v2323, %v2321
  %v2424 = vpack.c.bf16 %v2324, %v2322
  %v2425 = vpack.c.bf16 %v2327, %v2325
  %v2426 = vpack.c.bf16 %v2328, %v2326
  %v2427 = vpack.c.bf16 %v2331, %v2329
  %v2428 = vpack.c.bf16 %v2332, %v2330
  %v2429 = vpack.c.bf16 %v2335, %v2333
  %v2430 = vpack.c.bf16 %v2336, %v2334
  %v2431 = vpack.c.bf16 %v2339, %v2337
  %v2432 = vpack.c.bf16 %v2340, %v2338
  %v2433 = vpack.c.bf16 %v2343, %v2341
  %v2434 = vpack.c.bf16 %v2344, %v2342
  %v2435 = vpack.c.bf16 %v2347, %v2345
  %v2436 = vpack.c.bf16 %v2348, %v2346
  %v2437 = vpack.c.bf16 %v2351, %v2349
  %v2438 = vpack.c.bf16 %v2352, %v2350
  %v2439 = vpack.c.bf16 %v2355, %v2353
  %v2440 = vpack.c.bf16 %v2356, %v2354
  %v2441 = vpack.c.bf16 %v2359, %v2357
  %v2442 = vpack.c.bf16 %v2360, %v2358
  %v2443 = vpack.c.bf16 %v2363, %v2361
  %v2444 = vpack.c.bf16 %v2364, %v2362
  %v2445 = vpack.c.bf16 %v2367, %v2365
  %v2446 = vpack.c.bf16 %v2368, %v2366
  %v2447 = vpack.c.bf16 %v2371, %v2369
  %v2448 = vpack.c.bf16 %v2372, %v2370
  %v2449 = vpack.c.bf16 %v2375, %v2373
  %v2450 = vpack.c.bf16 %v2376, %v2374
  %v2451 = vpack.c.bf16 %v2379, %v2377
  %v2452 = vpack.c.bf16 %v2380, %v2378
  %v2453 = vpack.c.bf16 %v2383, %v2381
  %v2454 = vpack.c.bf16 %v2384, %v2382
  %v2455 = vpack.c.bf16 %v2387, %v2385
  %v2456 = vpack.c.bf16 %v2388, %v2386
  %v2458 = vsel %vm1215, %v2038, 0
  %2460 = vmatprep.subr.bf16.mxu0 %v2404
  %2461 = vmatpush1.bf16.msra.mxu0 %v2403
  %2462 = vmatprep.subr.bf16.mxu0 %v2402
  %2463 = vmatpush1.bf16.msra.mxu0 %v2401
  %2464 = vmatprep.subr.bf16.mxu0 %v2400
  %2465 = vmatpush1.bf16.msra.mxu0 %v2399
  %2466 = vmatprep.subr.bf16.mxu0 %v2398
  %2467 = vmatpush1.bf16.msra.mxu0 %v2397
  %2468 = vmatprep.subr.bf16.mxu0 %v2396
  %2469 = vmatpush1.bf16.msra.mxu0 %v2395
  %2470 = vmatprep.subr.bf16.mxu0 %v2394
  %2471 = vmatpush1.bf16.msra.mxu0 %v2393
  %2472 = vmatprep.subr.bf16.mxu0 %v2392
  %2473 = vmatpush1.bf16.msra.mxu0 %v2391
  %2474 = vmatprep.subr.bf16.mxu0 %v2390
  %2475 = vmatpush1.bf16.msra.mxu0 %v2389
  %2476 = vmatprep.subr.bf16.mxu0 %v2420
  %2477 = vmatpush2.bf16.msra.mxu0 %v2419
  %2478 = vmatprep.subr.bf16.mxu0 %v2418
  %2479 = vmatpush2.bf16.msra.mxu0 %v2417
  %2480 = vmatprep.subr.bf16.mxu0 %v2416
  %2481 = vmatpush2.bf16.msra.mxu0 %v2415
  %2482 = vmatprep.subr.bf16.mxu0 %v2414
  %2483 = vmatpush2.bf16.msra.mxu0 %v2413
  %2484 = vmatprep.subr.bf16.mxu0 %v2412
  %2485 = vmatpush2.bf16.msra.mxu0 %v2411
  %2486 = vmatprep.subr.bf16.mxu0 %v2410
  %2487 = vmatpush2.bf16.msra.mxu0 %v2409
  %2488 = vmatprep.subr.bf16.mxu0 %v2408
  %2489 = vmatpush2.bf16.msra.mxu0 %v2407
  %2490 = vmatprep.subr.bf16.mxu0 %v2406
  %2491 = vmatpush2.bf16.msra.mxu0 %v2405
  %2492 = vmatprep.mubr.bf16.mxu0 %v2035
  %2493 = vmatmul.mubr.bf16.gmra.mxu0 %v2034
  %v2494 = vpop.f32.mrf.mxu0
  %v2495 = vadd.f32 0.0, %v2494
  %v2496 = vpop.f32.mrf.mxu0
  %v2497 = vadd.f32 0.0, %v2496
  %v2498 = vpop.f32.mrf.mxu0
  %v2499 = vadd.f32 0.0, %v2498
  %v2500 = vpop.f32.mrf.mxu0
  %v2501 = vadd.f32 0.0, %v2500
  %2502 = vdwg.mxu0
  %2503 = vmatprep.subr.bf16.mxu0 %v2436
  %2504 = vmatpush1.bf16.msra.mxu0 %v2435
  %2505 = vmatprep.subr.bf16.mxu0 %v2434
  %2506 = vmatpush1.bf16.msra.mxu0 %v2433
  %2507 = vmatprep.subr.bf16.mxu0 %v2432
  %2508 = vmatpush1.bf16.msra.mxu0 %v2431
  %2509 = vmatprep.subr.bf16.mxu0 %v2430
  %2510 = vmatpush1.bf16.msra.mxu0 %v2429
  %2511 = vmatprep.subr.bf16.mxu0 %v2428
  %2512 = vmatpush1.bf16.msra.mxu0 %v2427
  %2513 = vmatprep.subr.bf16.mxu0 %v2426
  %2514 = vmatpush1.bf16.msra.mxu0 %v2425
  %2515 = vmatprep.subr.bf16.mxu0 %v2424
  %2516 = vmatpush1.bf16.msra.mxu0 %v2423
  %2517 = vmatprep.subr.bf16.mxu0 %v2422
  %2518 = vmatpush1.bf16.msra.mxu0 %v2421
  %2519 = vmatprep.subr.bf16.mxu0 %v2452
  %2520 = vmatpush2.bf16.msra.mxu0 %v2451
  %2521 = vmatprep.subr.bf16.mxu0 %v2450
  %2522 = vmatpush2.bf16.msra.mxu0 %v2449
  %2523 = vmatprep.subr.bf16.mxu0 %v2448
  %2524 = vmatpush2.bf16.msra.mxu0 %v2447
  %2525 = vmatprep.subr.bf16.mxu0 %v2446
  %2526 = vmatpush2.bf16.msra.mxu0 %v2445
  %2527 = vmatprep.subr.bf16.mxu0 %v2444
  %2528 = vmatpush2.bf16.msra.mxu0 %v2443
  %2529 = vmatprep.subr.bf16.mxu0 %v2442
  %2530 = vmatpush2.bf16.msra.mxu0 %v2441
  %2531 = vmatprep.subr.bf16.mxu0 %v2440
  %2532 = vmatpush2.bf16.msra.mxu0 %v2439
  %2533 = vmatprep.subr.bf16.mxu0 %v2438
  %2534 = vmatpush2.bf16.msra.mxu0 %v2437
  %2535 = vmatprep.mubr.bf16.mxu0 %v2037
  %2536 = vmatmul.mubr.bf16.gmra.mxu0 %v2036
  %v2537 = vpop.f32.mrf.mxu0
  %v2538 = vadd.f32 %v2495, %v2537
  %v2539 = vpop.f32.mrf.mxu0
  %v2540 = vadd.f32 %v2497, %v2539
  %v2541 = vpop.f32.mrf.mxu0
  %v2542 = vadd.f32 %v2499, %v2541
  %v2543 = vpop.f32.mrf.mxu0
  %v2544 = vadd.f32 %v2501, %v2543
  %2545 = vdwg.mxu0
  %2546 = vmatprep.subr.bf16.mxu0 0
  %2547 = vmatpush1.bf16.msra.mxu0 0
  %2548 = vmatprep.subr.bf16.mxu0 0
  %2549 = vmatpush1.bf16.msra.mxu0 0
  %2550 = vmatprep.subr.bf16.mxu0 0
  %2551 = vmatpush1.bf16.msra.mxu0 0
  %2552 = vmatprep.subr.bf16.mxu0 0
  %2553 = vmatpush1.bf16.msra.mxu0 0
  %2554 = vmatprep.subr.bf16.mxu0 0
  %2555 = vmatpush1.bf16.msra.mxu0 0
  %2556 = vmatprep.subr.bf16.mxu0 0
  %2557 = vmatpush1.bf16.msra.mxu0 0
  %2558 = vmatprep.subr.bf16.mxu0 %v2456
  %2559 = vmatpush1.bf16.msra.mxu0 %v2455
  %2560 = vmatprep.subr.bf16.mxu0 %v2454
  %2561 = vmatpush1.bf16.msra.mxu0 %v2453
  %2562 = vmatprep.subr.bf16.mxu0 0
  %2563 = vmatpush2.bf16.msra.mxu0 0
  %2564 = vmatprep.subr.bf16.mxu0 0
  %2565 = vmatpush2.bf16.msra.mxu0 0
  %2566 = vmatprep.subr.bf16.mxu0 0
  %2567 = vmatpush2.bf16.msra.mxu0 0
  %2568 = vmatprep.subr.bf16.mxu0 0
  %2569 = vmatpush2.bf16.msra.mxu0 0
  %2570 = vmatprep.subr.bf16.mxu0 0
  %2571 = vmatpush2.bf16.msra.mxu0 0
  %2572 = vmatprep.subr.bf16.mxu0 0
  %2573 = vmatpush2.bf16.msra.mxu0 0
  %2574 = vmatprep.subr.bf16.mxu0 0
  %2575 = vmatpush2.bf16.msra.mxu0 0
  %2576 = vmatprep.subr.bf16.mxu0 0
  %2577 = vmatpush2.bf16.msra.mxu0 0
  %2578 = vmatprep.mubr.bf16.mxu0 0
  %2579 = vmatmul.mubr.bf16.gmra.mxu0 %v2458
  %v2580 = vpop.f32.mrf.mxu0
  %v2581 = vadd.f32 %v2538, %v2580
  %v2582 = vpop.f32.mrf.mxu0
  %v2583 = vadd.f32 %v2540, %v2582
  %v2584 = vpop.f32.mrf.mxu0
  %v2585 = vadd.f32 %v2542, %v2584
  %v2586 = vpop.f32.mrf.mxu0
  %v2587 = vadd.f32 %v2544, %v2586
  %2588 = vdwg.mxu0
  %s2589 = scalar_lea.vmem %s8, 2
  %v2590 = vld [vmem:[%s2589] sm:$0x3]
  %v2591 = vlaneseq
  %v2592 = vshrl.u32 %v2591, 7
  %v2593 = vsub.s32 0, %v2592
  %v2594 = vrot.slane %v2590, %v2593
  %v2595 = vlaneseq
  %v2596 = vshrl.u32 %v2595, 7
  %v2597 = vsub.s32 1, %v2596
  %v2598 = vrot.slane %v2590, %v2597
  %vm2599 = vcmp.eq.s32.totalorder %v2040, %v2594
  %vm2600 = vcmp.eq.s32.totalorder %v2040, %v2598
  %vm2601 = vcmp.eq.s32.totalorder %v2041, %v2594
  %vm2602 = vcmp.eq.s32.totalorder %v2041, %v2598
  %vm2603 = vcmp.eq.s32.totalorder %v2042, %v2594
  %vm2604 = vcmp.eq.s32.totalorder %v2042, %v2598
  %vm2605 = vcmp.eq.s32.totalorder %v2043, %v2594
  %vm2606 = vcmp.eq.s32.totalorder %v2043, %v2598
  %vm2607 = vcmp.eq.s32.totalorder %v2044, %v2594
  %vm2608 = vcmp.eq.s32.totalorder %v2044, %v2598
  %vm2609 = vcmp.eq.s32.totalorder %v2045, %v2594
  %vm2610 = vcmp.eq.s32.totalorder %v2045, %v2598
  %vm2611 = vcmp.eq.s32.totalorder %v2046, %v2594
  %vm2612 = vcmp.eq.s32.totalorder %v2046, %v2598
  %vm2613 = vcmp.eq.s32.totalorder %v2047, %v2594
  %vm2614 = vcmp.eq.s32.totalorder %v2047, %v2598
  %vm2615 = vcmp.eq.s32.totalorder %v2048, %v2594
  %vm2616 = vcmp.eq.s32.totalorder %v2048, %v2598
  %vm2617 = vcmp.eq.s32.totalorder %v2049, %v2594
  %vm2618 = vcmp.eq.s32.totalorder %v2049, %v2598
  %vm2619 = vcmp.eq.s32.totalorder %v2050, %v2594
  %vm2620 = vcmp.eq.s32.totalorder %v2050, %v2598
  %vm2621 = vcmp.eq.s32.totalorder %v2051, %v2594
  %vm2622 = vcmp.eq.s32.totalorder %v2051, %v2598
  %vm2623 = vcmp.eq.s32.totalorder %v2052, %v2594
  %vm2624 = vcmp.eq.s32.totalorder %v2052, %v2598
  %vm2625 = vcmp.eq.s32.totalorder %v2053, %v2594
  %vm2626 = vcmp.eq.s32.totalorder %v2053, %v2598
  %vm2627 = vcmp.eq.s32.totalorder %v2054, %v2594
  %vm2628 = vcmp.eq.s32.totalorder %v2054, %v2598
  %vm2629 = vcmp.eq.s32.totalorder %v2055, %v2594
  %vm2630 = vcmp.eq.s32.totalorder %v2055, %v2598
  %vm2631 = vcmp.eq.s32.totalorder %v2056, %v2594
  %vm2632 = vcmp.eq.s32.totalorder %v2056, %v2598
  %vm2633 = vcmp.eq.s32.totalorder %v2057, %v2594
  %vm2634 = vcmp.eq.s32.totalorder %v2057, %v2598
  %vm2635 = vcmp.eq.s32.totalorder %v2058, %v2594
  %vm2636 = vcmp.eq.s32.totalorder %v2058, %v2598
  %vm2637 = vcmp.eq.s32.totalorder %v2059, %v2594
  %vm2638 = vcmp.eq.s32.totalorder %v2059, %v2598
  %vm2639 = vcmp.eq.s32.totalorder %v2060, %v2594
  %vm2640 = vcmp.eq.s32.totalorder %v2060, %v2598
  %vm2641 = vcmp.eq.s32.totalorder %v2061, %v2594
  %vm2642 = vcmp.eq.s32.totalorder %v2061, %v2598
  %vm2643 = vcmp.eq.s32.totalorder %v2062, %v2594
  %vm2644 = vcmp.eq.s32.totalorder %v2062, %v2598
  %vm2645 = vcmp.eq.s32.totalorder %v2063, %v2594
  %vm2646 = vcmp.eq.s32.totalorder %v2063, %v2598
  %vm2647 = vcmp.eq.s32.totalorder %v2064, %v2594
  %vm2648 = vcmp.eq.s32.totalorder %v2064, %v2598
  %vm2649 = vcmp.eq.s32.totalorder %v2065, %v2594
  %vm2650 = vcmp.eq.s32.totalorder %v2065, %v2598
  %vm2651 = vcmp.eq.s32.totalorder %v2066, %v2594
  %vm2652 = vcmp.eq.s32.totalorder %v2066, %v2598
  %vm2653 = vcmp.eq.s32.totalorder %v2067, %v2594
  %vm2654 = vcmp.eq.s32.totalorder %v2067, %v2598
  %vm2655 = vcmp.eq.s32.totalorder %v2068, %v2594
  %vm2656 = vcmp.eq.s32.totalorder %v2068, %v2598
  %vm2657 = vcmp.eq.s32.totalorder %v2069, %v2594
  %vm2658 = vcmp.eq.s32.totalorder %v2069, %v2598
  %vm2659 = vcmp.eq.s32.totalorder %v2070, %v2594
  %vm2660 = vcmp.eq.s32.totalorder %v2070, %v2598
  %vm2661 = vcmp.eq.s32.totalorder %v2071, %v2594
  %vm2662 = vcmp.eq.s32.totalorder %v2071, %v2598
  %vm2663 = vcmp.eq.s32.totalorder %v2072, %v2594
  %vm2664 = vcmp.eq.s32.totalorder %v2072, %v2598
  %vm2665 = vcmp.eq.s32.totalorder %v2073, %v2594
  %vm2666 = vcmp.eq.s32.totalorder %v2073, %v2598
  %vm2667 = vcmp.eq.s32.totalorder %v2074, %v2594
  %vm2668 = vcmp.eq.s32.totalorder %v2074, %v2598
  %vm2669 = vcmp.eq.s32.totalorder %v2075, %v2594
  %vm2670 = vcmp.eq.s32.totalorder %v2075, %v2598
  %vm2671 = vcmp.eq.s32.totalorder %v2076, %v2594
  %vm2672 = vcmp.eq.s32.totalorder %v2076, %v2598
  %vm2673 = vcmp.eq.s32.totalorder %v2077, %v2594
  %vm2674 = vcmp.eq.s32.totalorder %v2077, %v2598
  %vm2675 = vcmp.eq.s32.totalorder %v2078, %v2594
  %vm2676 = vcmp.eq.s32.totalorder %v2078, %v2598
  %vm2677 = vcmp.eq.s32.totalorder %v2079, %v2594
  %vm2678 = vcmp.eq.s32.totalorder %v2079, %v2598
  %vm2679 = vcmp.eq.s32.totalorder %v2080, %v2594
  %vm2680 = vcmp.eq.s32.totalorder %v2080, %v2598
  %vm2681 = vcmp.eq.s32.totalorder %v2081, %v2594
  %vm2682 = vcmp.eq.s32.totalorder %v2081, %v2598
  %vm2683 = vcmp.eq.s32.totalorder %v2082, %v2594
  %vm2684 = vcmp.eq.s32.totalorder %v2082, %v2598
  %vm2685 = vcmp.eq.s32.totalorder %v2083, %v2594
  %vm2686 = vcmp.eq.s32.totalorder %v2083, %v2598
  %vm2687 = vcmp.eq.s32.totalorder %v2084, %v2594
  %vm2688 = vcmp.eq.s32.totalorder %v2084, %v2598
  %vm2689 = vcmp.eq.s32.totalorder %v2085, %v2594
  %vm2690 = vcmp.eq.s32.totalorder %v2085, %v2598
  %vm2691 = vcmp.eq.s32.totalorder %v2086, %v2594
  %vm2692 = vcmp.eq.s32.totalorder %v2086, %v2598
  %vm2693 = vcmp.eq.s32.totalorder %v2087, %v2594
  %vm2694 = vcmp.eq.s32.totalorder %v2087, %v2598
  %vm2695 = vcmp.eq.s32.totalorder %v2088, %v2594
  %vm2696 = vcmp.eq.s32.totalorder %v2088, %v2598
  %vm2697 = vcmp.eq.s32.totalorder %v2089, %v2594
  %vm2698 = vcmp.eq.s32.totalorder %v2089, %v2598
  %vm2699 = vcmp.eq.s32.totalorder %v2090, %v2594
  %vm2700 = vcmp.eq.s32.totalorder %v2090, %v2598
  %vm2701 = vcmp.eq.s32.totalorder %v2091, %v2594
  %vm2702 = vcmp.eq.s32.totalorder %v2091, %v2598
  %vm2703 = vcmp.eq.s32.totalorder %v2092, %v2594
  %vm2704 = vcmp.eq.s32.totalorder %v2092, %v2598
  %vm2705 = vcmp.eq.s32.totalorder %v2093, %v2594
  %vm2706 = vcmp.eq.s32.totalorder %v2093, %v2598
  %vm2707 = vcmp.eq.s32.totalorder %v2094, %v2594
  %vm2708 = vcmp.eq.s32.totalorder %v2094, %v2598
  %vm2709 = vcmp.eq.s32.totalorder %v2095, %v2594
  %vm2710 = vcmp.eq.s32.totalorder %v2095, %v2598
  %vm2711 = vcmp.eq.s32.totalorder %v2096, %v2594
  %vm2712 = vcmp.eq.s32.totalorder %v2096, %v2598
  %vm2713 = vcmp.eq.s32.totalorder %v2097, %v2594
  %vm2714 = vcmp.eq.s32.totalorder %v2097, %v2598
  %vm2715 = vcmp.eq.s32.totalorder %v2098, %v2594
  %vm2716 = vcmp.eq.s32.totalorder %v2098, %v2598
  %vm2717 = vcmp.eq.s32.totalorder %v2099, %v2594
  %vm2718 = vcmp.eq.s32.totalorder %v2099, %v2598
  %vm2719 = vcmp.eq.s32.totalorder %v2100, %v2594
  %vm2720 = vcmp.eq.s32.totalorder %v2100, %v2598
  %vm2721 = vcmp.eq.s32.totalorder %v2101, %v2594
  %vm2722 = vcmp.eq.s32.totalorder %v2101, %v2598
  %vm2723 = vcmp.eq.s32.totalorder %v2102, %v2594
  %vm2724 = vcmp.eq.s32.totalorder %v2102, %v2598
  %vm2725 = vcmp.eq.s32.totalorder %v2103, %v2594
  %vm2726 = vcmp.eq.s32.totalorder %v2103, %v2598
  %vm2727 = vcmp.eq.s32.totalorder %v2104, %v2594
  %vm2728 = vcmp.eq.s32.totalorder %v2104, %v2598
  %vm2729 = vcmp.eq.s32.totalorder %v2105, %v2594
  %vm2730 = vcmp.eq.s32.totalorder %v2105, %v2598
  %vm2731 = vcmp.eq.s32.totalorder %v2106, %v2594
  %vm2732 = vcmp.eq.s32.totalorder %v2106, %v2598
  %vm2733 = vcmp.eq.s32.totalorder %v2107, %v2594
  %vm2734 = vcmp.eq.s32.totalorder %v2107, %v2598
  %v2735 = vsel %vm2599, 1.0, 0.0
  %v2736 = vsel %vm2600, 1.0, 0.0
  %v2737 = vsel %vm2601, 1.0, 0.0
  %v2738 = vsel %vm2602, 1.0, 0.0
  %v2739 = vsel %vm2603, 1.0, 0.0
  %v2740 = vsel %vm2604, 1.0, 0.0
  %v2741 = vsel %vm2605, 1.0, 0.0
  %v2742 = vsel %vm2606, 1.0, 0.0
  %v2743 = vsel %vm2607, 1.0, 0.0
  %v2744 = vsel %vm2608, 1.0, 0.0
  %v2745 = vsel %vm2609, 1.0, 0.0
  %v2746 = vsel %vm2610, 1.0, 0.0
  %v2747 = vsel %vm2611, 1.0, 0.0
  %v2748 = vsel %vm2612, 1.0, 0.0
  %v2749 = vsel %vm2613, 1.0, 0.0
  %v2750 = vsel %vm2614, 1.0, 0.0
  %v2751 = vsel %vm2615, 1.0, 0.0
  %v2752 = vsel %vm2616, 1.0, 0.0
  %v2753 = vsel %vm2617, 1.0, 0.0
  %v2754 = vsel %vm2618, 1.0, 0.0
  %v2755 = vsel %vm2619, 1.0, 0.0
  %v2756 = vsel %vm2620, 1.0, 0.0
  %v2757 = vsel %vm2621, 1.0, 0.0
  %v2758 = vsel %vm2622, 1.0, 0.0
  %v2759 = vsel %vm2623, 1.0, 0.0
  %v2760 = vsel %vm2624, 1.0, 0.0
  %v2761 = vsel %vm2625, 1.0, 0.0
  %v2762 = vsel %vm2626, 1.0, 0.0
  %v2763 = vsel %vm2627, 1.0, 0.0
  %v2764 = vsel %vm2628, 1.0, 0.0
  %v2765 = vsel %vm2629, 1.0, 0.0
  %v2766 = vsel %vm2630, 1.0, 0.0
  %v2767 = vsel %vm2631, 1.0, 0.0
  %v2768 = vsel %vm2632, 1.0, 0.0
  %v2769 = vsel %vm2633, 1.0, 0.0
  %v2770 = vsel %vm2634, 1.0, 0.0
  %v2771 = vsel %vm2635, 1.0, 0.0
  %v2772 = vsel %vm2636, 1.0, 0.0
  %v2773 = vsel %vm2637, 1.0, 0.0
  %v2774 = vsel %vm2638, 1.0, 0.0
  %v2775 = vsel %vm2639, 1.0, 0.0
  %v2776 = vsel %vm2640, 1.0, 0.0
  %v2777 = vsel %vm2641, 1.0, 0.0
  %v2778 = vsel %vm2642, 1.0, 0.0
  %v2779 = vsel %vm2643, 1.0, 0.0
  %v2780 = vsel %vm2644, 1.0, 0.0
  %v2781 = vsel %vm2645, 1.0, 0.0
  %v2782 = vsel %vm2646, 1.0, 0.0
  %v2783 = vsel %vm2647, 1.0, 0.0
  %v2784 = vsel %vm2648, 1.0, 0.0
  %v2785 = vsel %vm2649, 1.0, 0.0
  %v2786 = vsel %vm2650, 1.0, 0.0
  %v2787 = vsel %vm2651, 1.0, 0.0
  %v2788 = vsel %vm2652, 1.0, 0.0
  %v2789 = vsel %vm2653, 1.0, 0.0
  %v2790 = vsel %vm2654, 1.0, 0.0
  %v2791 = vsel %vm2655, 1.0, 0.0
  %v2792 = vsel %vm2656, 1.0, 0.0
  %v2793 = vsel %vm2657, 1.0, 0.0
  %v2794 = vsel %vm2658, 1.0, 0.0
  %v2795 = vsel %vm2659, 1.0, 0.0
  %v2796 = vsel %vm2660, 1.0, 0.0
  %v2797 = vsel %vm2661, 1.0, 0.0
  %v2798 = vsel %vm2662, 1.0, 0.0
  %v2799 = vsel %vm2663, 1.0, 0.0
  %v2800 = vsel %vm2664, 1.0, 0.0
  %v2801 = vsel %vm2665, 1.0, 0.0
  %v2802 = vsel %vm2666, 1.0, 0.0
  %v2803 = vsel %vm2667, 1.0, 0.0
  %v2804 = vsel %vm2668, 1.0, 0.0
  %v2805 = vsel %vm2669, 1.0, 0.0
  %v2806 = vsel %vm2670, 1.0, 0.0
  %v2807 = vsel %vm2671, 1.0, 0.0
  %v2808 = vsel %vm2672, 1.0, 0.0
  %v2809 = vsel %vm2673, 1.0, 0.0
  %v2810 = vsel %vm2674, 1.0, 0.0
  %v2811 = vsel %vm2675, 1.0, 0.0
  %v2812 = vsel %vm2676, 1.0, 0.0
  %v2813 = vsel %vm2677, 1.0, 0.0
  %v2814 = vsel %vm2678, 1.0, 0.0
  %v2815 = vsel %vm2679, 1.0, 0.0
  %v2816 = vsel %vm2680, 1.0, 0.0
  %v2817 = vsel %vm2681, 1.0, 0.0
  %v2818 = vsel %vm2682, 1.0, 0.0
  %v2819 = vsel %vm2683, 1.0, 0.0
  %v2820 = vsel %vm2684, 1.0, 0.0
  %v2821 = vsel %vm2685, 1.0, 0.0
  %v2822 = vsel %vm2686, 1.0, 0.0
  %v2823 = vsel %vm2687, 1.0, 0.0
  %v2824 = vsel %vm2688, 1.0, 0.0
  %v2825 = vsel %vm2689, 1.0, 0.0
  %v2826 = vsel %vm2690, 1.0, 0.0
  %v2827 = vsel %vm2691, 1.0, 0.0
  %v2828 = vsel %vm2692, 1.0, 0.0
  %v2829 = vsel %vm2693, 1.0, 0.0
  %v2830 = vsel %vm2694, 1.0, 0.0
  %v2831 = vsel %vm2695, 1.0, 0.0
  %v2832 = vsel %vm2696, 1.0, 0.0
  %v2833 = vsel %vm2697, 1.0, 0.0
  %v2834 = vsel %vm2698, 1.0, 0.0
  %v2835 = vsel %vm2699, 1.0, 0.0
  %v2836 = vsel %vm2700, 1.0, 0.0
  %v2837 = vsel %vm2701, 1.0, 0.0
  %v2838 = vsel %vm2702, 1.0, 0.0
  %v2839 = vsel %vm2703, 1.0, 0.0
  %v2840 = vsel %vm2704, 1.0, 0.0
  %v2841 = vsel %vm2705, 1.0, 0.0
  %v2842 = vsel %vm2706, 1.0, 0.0
  %v2843 = vsel %vm2707, 1.0, 0.0
  %v2844 = vsel %vm2708, 1.0, 0.0
  %v2845 = vsel %vm2709, 1.0, 0.0
  %v2846 = vsel %vm2710, 1.0, 0.0
  %v2847 = vsel %vm2711, 1.0, 0.0
  %v2848 = vsel %vm2712, 1.0, 0.0
  %v2849 = vsel %vm2713, 1.0, 0.0
  %v2850 = vsel %vm2714, 1.0, 0.0
  %v2851 = vsel %vm2715, 1.0, 0.0
  %v2852 = vsel %vm2716, 1.0, 0.0
  %v2853 = vsel %vm2717, 1.0, 0.0
  %v2854 = vsel %vm2718, 1.0, 0.0
  %v2855 = vsel %vm2719, 1.0, 0.0
  %v2856 = vsel %vm2720, 1.0, 0.0
  %v2857 = vsel %vm2721, 1.0, 0.0
  %v2858 = vsel %vm2722, 1.0, 0.0
  %v2859 = vsel %vm2723, 1.0, 0.0
  %v2860 = vsel %vm2724, 1.0, 0.0
  %v2861 = vsel %vm2725, 1.0, 0.0
  %v2862 = vsel %vm2726, 1.0, 0.0
  %v2863 = vsel %vm2727, 1.0, 0.0
  %v2864 = vsel %vm2728, 1.0, 0.0
  %v2865 = vsel %vm2729, 1.0, 0.0
  %v2866 = vsel %vm2730, 1.0, 0.0
  %v2867 = vsel %vm2731, 1.0, 0.0
  %v2868 = vsel %vm2732, 1.0, 0.0
  %v2869 = vsel %vm2733, 1.0, 0.0
  %v2870 = vsel %vm2734, 1.0, 0.0
  %v2871 = vpack.c.bf16 %v2737, %v2735
  %v2872 = vpack.c.bf16 %v2738, %v2736
  %v2873 = vpack.c.bf16 %v2741, %v2739
  %v2874 = vpack.c.bf16 %v2742, %v2740
  %v2875 = vpack.c.bf16 %v2745, %v2743
  %v2876 = vpack.c.bf16 %v2746, %v2744
  %v2877 = vpack.c.bf16 %v2749, %v2747
  %v2878 = vpack.c.bf16 %v2750, %v2748
  %v2879 = vpack.c.bf16 %v2753, %v2751
  %v2880 = vpack.c.bf16 %v2754, %v2752
  %v2881 = vpack.c.bf16 %v2757, %v2755
  %v2882 = vpack.c.bf16 %v2758, %v2756
  %v2883 = vpack.c.bf16 %v2761, %v2759
  %v2884 = vpack.c.bf16 %v2762, %v2760
  %v2885 = vpack.c.bf16 %v2765, %v2763
  %v2886 = vpack.c.bf16 %v2766, %v2764
  %v2887 = vpack.c.bf16 %v2769, %v2767
  %v2888 = vpack.c.bf16 %v2770, %v2768
  %v2889 = vpack.c.bf16 %v2773, %v2771
  %v2890 = vpack.c.bf16 %v2774, %v2772
  %v2891 = vpack.c.bf16 %v2777, %v2775
  %v2892 = vpack.c.bf16 %v2778, %v2776
  %v2893 = vpack.c.bf16 %v2781, %v2779
  %v2894 = vpack.c.bf16 %v2782, %v2780
  %v2895 = vpack.c.bf16 %v2785, %v2783
  %v2896 = vpack.c.bf16 %v2786, %v2784
  %v2897 = vpack.c.bf16 %v2789, %v2787
  %v2898 = vpack.c.bf16 %v2790, %v2788
  %v2899 = vpack.c.bf16 %v2793, %v2791
  %v2900 = vpack.c.bf16 %v2794, %v2792
  %v2901 = vpack.c.bf16 %v2797, %v2795
  %v2902 = vpack.c.bf16 %v2798, %v2796
  %v2903 = vpack.c.bf16 %v2801, %v2799
  %v2904 = vpack.c.bf16 %v2802, %v2800
  %v2905 = vpack.c.bf16 %v2805, %v2803
  %v2906 = vpack.c.bf16 %v2806, %v2804
  %v2907 = vpack.c.bf16 %v2809, %v2807
  %v2908 = vpack.c.bf16 %v2810, %v2808
  %v2909 = vpack.c.bf16 %v2813, %v2811
  %v2910 = vpack.c.bf16 %v2814, %v2812
  %v2911 = vpack.c.bf16 %v2817, %v2815
  %v2912 = vpack.c.bf16 %v2818, %v2816
  %v2913 = vpack.c.bf16 %v2821, %v2819
  %v2914 = vpack.c.bf16 %v2822, %v2820
  %v2915 = vpack.c.bf16 %v2825, %v2823
  %v2916 = vpack.c.bf16 %v2826, %v2824
  %v2917 = vpack.c.bf16 %v2829, %v2827
  %v2918 = vpack.c.bf16 %v2830, %v2828
  %v2919 = vpack.c.bf16 %v2833, %v2831
  %v2920 = vpack.c.bf16 %v2834, %v2832
  %v2921 = vpack.c.bf16 %v2837, %v2835
  %v2922 = vpack.c.bf16 %v2838, %v2836
  %v2923 = vpack.c.bf16 %v2841, %v2839
  %v2924 = vpack.c.bf16 %v2842, %v2840
  %v2925 = vpack.c.bf16 %v2845, %v2843
  %v2926 = vpack.c.bf16 %v2846, %v2844
  %v2927 = vpack.c.bf16 %v2849, %v2847
  %v2928 = vpack.c.bf16 %v2850, %v2848
  %v2929 = vpack.c.bf16 %v2853, %v2851
  %v2930 = vpack.c.bf16 %v2854, %v2852
  %v2931 = vpack.c.bf16 %v2857, %v2855
  %v2932 = vpack.c.bf16 %v2858, %v2856
  %v2933 = vpack.c.bf16 %v2861, %v2859
  %v2934 = vpack.c.bf16 %v2862, %v2860
  %v2935 = vpack.c.bf16 %v2865, %v2863
  %v2936 = vpack.c.bf16 %v2866, %v2864
  %v2937 = vpack.c.bf16 %v2869, %v2867
  %v2938 = vpack.c.bf16 %v2870, %v2868
  %2939 = vmatprep.subr.bf16.mxu0 %v2886
  %2940 = vmatpush1.bf16.msra.mxu0 %v2885
  %2941 = vmatprep.subr.bf16.mxu0 %v2884
  %2942 = vmatpush1.bf16.msra.mxu0 %v2883
  %2943 = vmatprep.subr.bf16.mxu0 %v2882
  %2944 = vmatpush1.bf16.msra.mxu0 %v2881
  %2945 = vmatprep.subr.bf16.mxu0 %v2880
  %2946 = vmatpush1.bf16.msra.mxu0 %v2879
  %2947 = vmatprep.subr.bf16.mxu0 %v2878
  %2948 = vmatpush1.bf16.msra.mxu0 %v2877
  %2949 = vmatprep.subr.bf16.mxu0 %v2876
  %2950 = vmatpush1.bf16.msra.mxu0 %v2875
  %2951 = vmatprep.subr.bf16.mxu0 %v2874
  %2952 = vmatpush1.bf16.msra.mxu0 %v2873
  %2953 = vmatprep.subr.bf16.mxu0 %v2872
  %2954 = vmatpush1.bf16.msra.mxu0 %v2871
  %2955 = vmatprep.subr.bf16.mxu0 %v2902
  %2956 = vmatpush2.bf16.msra.mxu0 %v2901
  %2957 = vmatprep.subr.bf16.mxu0 %v2900
  %2958 = vmatpush2.bf16.msra.mxu0 %v2899
  %2959 = vmatprep.subr.bf16.mxu0 %v2898
  %2960 = vmatpush2.bf16.msra.mxu0 %v2897
  %2961 = vmatprep.subr.bf16.mxu0 %v2896
  %2962 = vmatpush2.bf16.msra.mxu0 %v2895
  %2963 = vmatprep.subr.bf16.mxu0 %v2894
  %2964 = vmatpush2.bf16.msra.mxu0 %v2893
  %2965 = vmatprep.subr.bf16.mxu0 %v2892
  %2966 = vmatpush2.bf16.msra.mxu0 %v2891
  %2967 = vmatprep.subr.bf16.mxu0 %v2890
  %2968 = vmatpush2.bf16.msra.mxu0 %v2889
  %2969 = vmatprep.subr.bf16.mxu0 %v2888
  %2970 = vmatpush2.bf16.msra.mxu0 %v2887
  %2971 = vmatprep.mubr.bf16.mxu0 %v2035
  %2972 = vmatmul.mubr.bf16.gmra.mxu0 %v2034
  %v2973 = vpop.f32.mrf.mxu0
  %v2974 = vadd.f32 0.0, %v2973
  %v2975 = vpop.f32.mrf.mxu0
  %v2976 = vadd.f32 0.0, %v2975
  %v2977 = vpop.f32.mrf.mxu0
  %v2978 = vadd.f32 0.0, %v2977
  %v2979 = vpop.f32.mrf.mxu0
  %v2980 = vadd.f32 0.0, %v2979
  %2981 = vdwg.mxu0
  %2982 = vmatprep.subr.bf16.mxu0 %v2918
  %2983 = vmatpush1.bf16.msra.mxu0 %v2917
  %2984 = vmatprep.subr.bf16.mxu0 %v2916
  %2985 = vmatpush1.bf16.msra.mxu0 %v2915
  %2986 = vmatprep.subr.bf16.mxu0 %v2914
  %2987 = vmatpush1.bf16.msra.mxu0 %v2913
  %2988 = vmatprep.subr.bf16.mxu0 %v2912
  %2989 = vmatpush1.bf16.msra.mxu0 %v2911
  %2990 = vmatprep.subr.bf16.mxu0 %v2910
  %2991 = vmatpush1.bf16.msra.mxu0 %v2909
  %2992 = vmatprep.subr.bf16.mxu0 %v2908
  %2993 = vmatpush1.bf16.msra.mxu0 %v2907
  %2994 = vmatprep.subr.bf16.mxu0 %v2906
  %2995 = vmatpush1.bf16.msra.mxu0 %v2905
  %2996 = vmatprep.subr.bf16.mxu0 %v2904
  %2997 = vmatpush1.bf16.msra.mxu0 %v2903
  %2998 = vmatprep.subr.bf16.mxu0 %v2934
  %2999 = vmatpush2.bf16.msra.mxu0 %v2933
  %3000 = vmatprep.subr.bf16.mxu0 %v2932
  %3001 = vmatpush2.bf16.msra.mxu0 %v2931
  %3002 = vmatprep.subr.bf16.mxu0 %v2930
  %3003 = vmatpush2.bf16.msra.mxu0 %v2929
  %3004 = vmatprep.subr.bf16.mxu0 %v2928
  %3005 = vmatpush2.bf16.msra.mxu0 %v2927
  %3006 = vmatprep.subr.bf16.mxu0 %v2926
  %3007 = vmatpush2.bf16.msra.mxu0 %v2925
  %3008 = vmatprep.subr.bf16.mxu0 %v2924
  %3009 = vmatpush2.bf16.msra.mxu0 %v2923
  %3010 = vmatprep.subr.bf16.mxu0 %v2922
  %3011 = vmatpush2.bf16.msra.mxu0 %v2921
  %3012 = vmatprep.subr.bf16.mxu0 %v2920
  %3013 = vmatpush2.bf16.msra.mxu0 %v2919
  %3014 = vmatprep.mubr.bf16.mxu0 %v2037
  %3015 = vmatmul.mubr.bf16.gmra.mxu0 %v2036
  %v3016 = vpop.f32.mrf.mxu0
  %v3017 = vadd.f32 %v2974, %v3016
  %v3018 = vpop.f32.mrf.mxu0
  %v3019 = vadd.f32 %v2976, %v3018
  %v3020 = vpop.f32.mrf.mxu0
  %v3021 = vadd.f32 %v2978, %v3020
  %v3022 = vpop.f32.mrf.mxu0
  %v3023 = vadd.f32 %v2980, %v3022
  %3024 = vdwg.mxu0
  %3025 = vmatprep.subr.bf16.mxu0 0
  %3026 = vmatpush1.bf16.msra.mxu0 0
  %3027 = vmatprep.subr.bf16.mxu0 0
  %3028 = vmatpush1.bf16.msra.mxu0 0
  %3029 = vmatprep.subr.bf16.mxu0 0
  %3030 = vmatpush1.bf16.msra.mxu0 0
  %3031 = vmatprep.subr.bf16.mxu0 0
  %3032 = vmatpush1.bf16.msra.mxu0 0
  %3033 = vmatprep.subr.bf16.mxu0 0
  %3034 = vmatpush1.bf16.msra.mxu0 0
  %3035 = vmatprep.subr.bf16.mxu0 0
  %3036 = vmatpush1.bf16.msra.mxu0 0
  %3037 = vmatprep.subr.bf16.mxu0 %v2938
  %3038 = vmatpush1.bf16.msra.mxu0 %v2937
  %3039 = vmatprep.subr.bf16.mxu0 %v2936
  %3040 = vmatpush1.bf16.msra.mxu0 %v2935
  %3041 = vmatprep.subr.bf16.mxu0 0
  %3042 = vmatpush2.bf16.msra.mxu0 0
  %3043 = vmatprep.subr.bf16.mxu0 0
  %3044 = vmatpush2.bf16.msra.mxu0 0
  %3045 = vmatprep.subr.bf16.mxu0 0
  %3046 = vmatpush2.bf16.msra.mxu0 0
  %3047 = vmatprep.subr.bf16.mxu0 0
  %3048 = vmatpush2.bf16.msra.mxu0 0
  %3049 = vmatprep.subr.bf16.mxu0 0
  %3050 = vmatpush2.bf16.msra.mxu0 0
  %3051 = vmatprep.subr.bf16.mxu0 0
  %3052 = vmatpush2.bf16.msra.mxu0 0
  %3053 = vmatprep.subr.bf16.mxu0 0
  %3054 = vmatpush2.bf16.msra.mxu0 0
  %3055 = vmatprep.subr.bf16.mxu0 0
  %3056 = vmatpush2.bf16.msra.mxu0 0
  %3057 = vmatprep.mubr.bf16.mxu0 0
  %3058 = vmatmul.mubr.bf16.gmra.mxu0 %v2458
  %v3059 = vpop.f32.mrf.mxu0
  %v3060 = vadd.f32 %v3017, %v3059
  %v3061 = vpop.f32.mrf.mxu0
  %v3062 = vadd.f32 %v3019, %v3061
  %v3063 = vpop.f32.mrf.mxu0
  %v3064 = vadd.f32 %v3021, %v3063
  %v3065 = vpop.f32.mrf.mxu0
  %v3066 = vadd.f32 %v3023, %v3065
  %3067 = vdwg.mxu0
  %s3068 = scalar_lea.vmem %s8, 4
  %v3069 = vld [vmem:[%s3068] sm:$0x3]
  %v3070 = vlaneseq
  %v3071 = vshrl.u32 %v3070, 7
  %v3072 = vsub.s32 0, %v3071
  %v3073 = vrot.slane %v3069, %v3072
  %v3074 = vlaneseq
  %v3075 = vshrl.u32 %v3074, 7
  %v3076 = vsub.s32 1, %v3075
  %v3077 = vrot.slane %v3069, %v3076
  %vm3078 = vcmp.eq.s32.totalorder %v2040, %v3073
  %vm3079 = vcmp.eq.s32.totalorder %v2040, %v3077
  %vm3080 = vcmp.eq.s32.totalorder %v2041, %v3073
  %vm3081 = vcmp.eq.s32.totalorder %v2041, %v3077
  %vm3082 = vcmp.eq.s32.totalorder %v2042, %v3073
  %vm3083 = vcmp.eq.s32.totalorder %v2042, %v3077
  %vm3084 = vcmp.eq.s32.totalorder %v2043, %v3073
  %vm3085 = vcmp.eq.s32.totalorder %v2043, %v3077
  %vm3086 = vcmp.eq.s32.totalorder %v2044, %v3073
  %vm3087 = vcmp.eq.s32.totalorder %v2044, %v3077
  %vm3088 = vcmp.eq.s32.totalorder %v2045, %v3073
  %vm3089 = vcmp.eq.s32.totalorder %v2045, %v3077
  %vm3090 = vcmp.eq.s32.totalorder %v2046, %v3073
  %vm3091 = vcmp.eq.s32.totalorder %v2046, %v3077
  %vm3092 = vcmp.eq.s32.totalorder %v2047, %v3073
  %vm3093 = vcmp.eq.s32.totalorder %v2047, %v3077
  %vm3094 = vcmp.eq.s32.totalorder %v2048, %v3073
  %vm3095 = vcmp.eq.s32.totalorder %v2048, %v3077
  %vm3096 = vcmp.eq.s32.totalorder %v2049, %v3073
  %vm3097 = vcmp.eq.s32.totalorder %v2049, %v3077
  %vm3098 = vcmp.eq.s32.totalorder %v2050, %v3073
  %vm3099 = vcmp.eq.s32.totalorder %v2050, %v3077
  %vm3100 = vcmp.eq.s32.totalorder %v2051, %v3073
  %vm3101 = vcmp.eq.s32.totalorder %v2051, %v3077
  %vm3102 = vcmp.eq.s32.totalorder %v2052, %v3073
  %vm3103 = vcmp.eq.s32.totalorder %v2052, %v3077
  %vm3104 = vcmp.eq.s32.totalorder %v2053, %v3073
  %vm3105 = vcmp.eq.s32.totalorder %v2053, %v3077
  %vm3106 = vcmp.eq.s32.totalorder %v2054, %v3073
  %vm3107 = vcmp.eq.s32.totalorder %v2054, %v3077
  %vm3108 = vcmp.eq.s32.totalorder %v2055, %v3073
  %vm3109 = vcmp.eq.s32.totalorder %v2055, %v3077
  %vm3110 = vcmp.eq.s32.totalorder %v2056, %v3073
  %vm3111 = vcmp.eq.s32.totalorder %v2056, %v3077
  %vm3112 = vcmp.eq.s32.totalorder %v2057, %v3073
  %vm3113 = vcmp.eq.s32.totalorder %v2057, %v3077
  %vm3114 = vcmp.eq.s32.totalorder %v2058, %v3073
  %vm3115 = vcmp.eq.s32.totalorder %v2058, %v3077
  %vm3116 = vcmp.eq.s32.totalorder %v2059, %v3073
  %vm3117 = vcmp.eq.s32.totalorder %v2059, %v3077
  %vm3118 = vcmp.eq.s32.totalorder %v2060, %v3073
  %vm3119 = vcmp.eq.s32.totalorder %v2060, %v3077
  %vm3120 = vcmp.eq.s32.totalorder %v2061, %v3073
  %vm3121 = vcmp.eq.s32.totalorder %v2061, %v3077
  %vm3122 = vcmp.eq.s32.totalorder %v2062, %v3073
  %vm3123 = vcmp.eq.s32.totalorder %v2062, %v3077
  %vm3124 = vcmp.eq.s32.totalorder %v2063, %v3073
  %vm3125 = vcmp.eq.s32.totalorder %v2063, %v3077
  %vm3126 = vcmp.eq.s32.totalorder %v2064, %v3073
  %vm3127 = vcmp.eq.s32.totalorder %v2064, %v3077
  %vm3128 = vcmp.eq.s32.totalorder %v2065, %v3073
  %vm3129 = vcmp.eq.s32.totalorder %v2065, %v3077
  %vm3130 = vcmp.eq.s32.totalorder %v2066, %v3073
  %vm3131 = vcmp.eq.s32.totalorder %v2066, %v3077
  %vm3132 = vcmp.eq.s32.totalorder %v2067, %v3073
  %vm3133 = vcmp.eq.s32.totalorder %v2067, %v3077
  %vm3134 = vcmp.eq.s32.totalorder %v2068, %v3073
  %vm3135 = vcmp.eq.s32.totalorder %v2068, %v3077
  %vm3136 = vcmp.eq.s32.totalorder %v2069, %v3073
  %vm3137 = vcmp.eq.s32.totalorder %v2069, %v3077
  %vm3138 = vcmp.eq.s32.totalorder %v2070, %v3073
  %vm3139 = vcmp.eq.s32.totalorder %v2070, %v3077
  %vm3140 = vcmp.eq.s32.totalorder %v2071, %v3073
  %vm3141 = vcmp.eq.s32.totalorder %v2071, %v3077
  %vm3142 = vcmp.eq.s32.totalorder %v2072, %v3073
  %vm3143 = vcmp.eq.s32.totalorder %v2072, %v3077
  %vm3144 = vcmp.eq.s32.totalorder %v2073, %v3073
  %vm3145 = vcmp.eq.s32.totalorder %v2073, %v3077
  %vm3146 = vcmp.eq.s32.totalorder %v2074, %v3073
  %vm3147 = vcmp.eq.s32.totalorder %v2074, %v3077
  %vm3148 = vcmp.eq.s32.totalorder %v2075, %v3073
  %vm3149 = vcmp.eq.s32.totalorder %v2075, %v3077
  %vm3150 = vcmp.eq.s32.totalorder %v2076, %v3073
  %vm3151 = vcmp.eq.s32.totalorder %v2076, %v3077
  %vm3152 = vcmp.eq.s32.totalorder %v2077, %v3073
  %vm3153 = vcmp.eq.s32.totalorder %v2077, %v3077
  %vm3154 = vcmp.eq.s32.totalorder %v2078, %v3073
  %vm3155 = vcmp.eq.s32.totalorder %v2078, %v3077
  %vm3156 = vcmp.eq.s32.totalorder %v2079, %v3073
  %vm3157 = vcmp.eq.s32.totalorder %v2079, %v3077
  %vm3158 = vcmp.eq.s32.totalorder %v2080, %v3073
  %vm3159 = vcmp.eq.s32.totalorder %v2080, %v3077
  %vm3160 = vcmp.eq.s32.totalorder %v2081, %v3073
  %vm3161 = vcmp.eq.s32.totalorder %v2081, %v3077
  %vm3162 = vcmp.eq.s32.totalorder %v2082, %v3073
  %vm3163 = vcmp.eq.s32.totalorder %v2082, %v3077
  %vm3164 = vcmp.eq.s32.totalorder %v2083, %v3073
  %vm3165 = vcmp.eq.s32.totalorder %v2083, %v3077
  %vm3166 = vcmp.eq.s32.totalorder %v2084, %v3073
  %vm3167 = vcmp.eq.s32.totalorder %v2084, %v3077
  %vm3168 = vcmp.eq.s32.totalorder %v2085, %v3073
  %vm3169 = vcmp.eq.s32.totalorder %v2085, %v3077
  %vm3170 = vcmp.eq.s32.totalorder %v2086, %v3073
  %vm3171 = vcmp.eq.s32.totalorder %v2086, %v3077
  %vm3172 = vcmp.eq.s32.totalorder %v2087, %v3073
  %vm3173 = vcmp.eq.s32.totalorder %v2087, %v3077
  %vm3174 = vcmp.eq.s32.totalorder %v2088, %v3073
  %vm3175 = vcmp.eq.s32.totalorder %v2088, %v3077
  %vm3176 = vcmp.eq.s32.totalorder %v2089, %v3073
  %vm3177 = vcmp.eq.s32.totalorder %v2089, %v3077
  %vm3178 = vcmp.eq.s32.totalorder %v2090, %v3073
  %vm3179 = vcmp.eq.s32.totalorder %v2090, %v3077
  %vm3180 = vcmp.eq.s32.totalorder %v2091, %v3073
  %vm3181 = vcmp.eq.s32.totalorder %v2091, %v3077
  %vm3182 = vcmp.eq.s32.totalorder %v2092, %v3073
  %vm3183 = vcmp.eq.s32.totalorder %v2092, %v3077
  %vm3184 = vcmp.eq.s32.totalorder %v2093, %v3073
  %vm3185 = vcmp.eq.s32.totalorder %v2093, %v3077
  %vm3186 = vcmp.eq.s32.totalorder %v2094, %v3073
  %vm3187 = vcmp.eq.s32.totalorder %v2094, %v3077
  %vm3188 = vcmp.eq.s32.totalorder %v2095, %v3073
  %vm3189 = vcmp.eq.s32.totalorder %v2095, %v3077
  %vm3190 = vcmp.eq.s32.totalorder %v2096, %v3073
  %vm3191 = vcmp.eq.s32.totalorder %v2096, %v3077
  %vm3192 = vcmp.eq.s32.totalorder %v2097, %v3073
  %vm3193 = vcmp.eq.s32.totalorder %v2097, %v3077
  %vm3194 = vcmp.eq.s32.totalorder %v2098, %v3073
  %vm3195 = vcmp.eq.s32.totalorder %v2098, %v3077
  %vm3196 = vcmp.eq.s32.totalorder %v2099, %v3073
  %vm3197 = vcmp.eq.s32.totalorder %v2099, %v3077
  %vm3198 = vcmp.eq.s32.totalorder %v2100, %v3073
  %vm3199 = vcmp.eq.s32.totalorder %v2100, %v3077
  %vm3200 = vcmp.eq.s32.totalorder %v2101, %v3073
  %vm3201 = vcmp.eq.s32.totalorder %v2101, %v3077
  %vm3202 = vcmp.eq.s32.totalorder %v2102, %v3073
  %vm3203 = vcmp.eq.s32.totalorder %v2102, %v3077
  %vm3204 = vcmp.eq.s32.totalorder %v2103, %v3073
  %vm3205 = vcmp.eq.s32.totalorder %v2103, %v3077
  %vm3206 = vcmp.eq.s32.totalorder %v2104, %v3073
  %vm3207 = vcmp.eq.s32.totalorder %v2104, %v3077
  %vm3208 = vcmp.eq.s32.totalorder %v2105, %v3073
  %vm3209 = vcmp.eq.s32.totalorder %v2105, %v3077
  %vm3210 = vcmp.eq.s32.totalorder %v2106, %v3073
  %vm3211 = vcmp.eq.s32.totalorder %v2106, %v3077
  %vm3212 = vcmp.eq.s32.totalorder %v2107, %v3073
  %vm3213 = vcmp.eq.s32.totalorder %v2107, %v3077
  %v3214 = vsel %vm3078, 1.0, 0.0
  %v3215 = vsel %vm3079, 1.0, 0.0
  %v3216 = vsel %vm3080, 1.0, 0.0
  %v3217 = vsel %vm3081, 1.0, 0.0
  %v3218 = vsel %vm3082, 1.0, 0.0
  %v3219 = vsel %vm3083, 1.0, 0.0
  %v3220 = vsel %vm3084, 1.0, 0.0
  %v3221 = vsel %vm3085, 1.0, 0.0
  %v3222 = vsel %vm3086, 1.0, 0.0
  %v3223 = vsel %vm3087, 1.0, 0.0
  %v3224 = vsel %vm3088, 1.0, 0.0
  %v3225 = vsel %vm3089, 1.0, 0.0
  %v3226 = vsel %vm3090, 1.0, 0.0
  %v3227 = vsel %vm3091, 1.0, 0.0
  %v3228 = vsel %vm3092, 1.0, 0.0
  %v3229 = vsel %vm3093, 1.0, 0.0
  %v3230 = vsel %vm3094, 1.0, 0.0
  %v3231 = vsel %vm3095, 1.0, 0.0
  %v3232 = vsel %vm3096, 1.0, 0.0
  %v3233 = vsel %vm3097, 1.0, 0.0
  %v3234 = vsel %vm3098, 1.0, 0.0
  %v3235 = vsel %vm3099, 1.0, 0.0
  %v3236 = vsel %vm3100, 1.0, 0.0
  %v3237 = vsel %vm3101, 1.0, 0.0
  %v3238 = vsel %vm3102, 1.0, 0.0
  %v3239 = vsel %vm3103, 1.0, 0.0
  %v3240 = vsel %vm3104, 1.0, 0.0
  %v3241 = vsel %vm3105, 1.0, 0.0
  %v3242 = vsel %vm3106, 1.0, 0.0
  %v3243 = vsel %vm3107, 1.0, 0.0
  %v3244 = vsel %vm3108, 1.0, 0.0
  %v3245 = vsel %vm3109, 1.0, 0.0
  %v3246 = vsel %vm3110, 1.0, 0.0
  %v3247 = vsel %vm3111, 1.0, 0.0
  %v3248 = vsel %vm3112, 1.0, 0.0
  %v3249 = vsel %vm3113, 1.0, 0.0
  %v3250 = vsel %vm3114, 1.0, 0.0
  %v3251 = vsel %vm3115, 1.0, 0.0
  %v3252 = vsel %vm3116, 1.0, 0.0
  %v3253 = vsel %vm3117, 1.0, 0.0
  %v3254 = vsel %vm3118, 1.0, 0.0
  %v3255 = vsel %vm3119, 1.0, 0.0
  %v3256 = vsel %vm3120, 1.0, 0.0
  %v3257 = vsel %vm3121, 1.0, 0.0
  %v3258 = vsel %vm3122, 1.0, 0.0
  %v3259 = vsel %vm3123, 1.0, 0.0
  %v3260 = vsel %vm3124, 1.0, 0.0
  %v3261 = vsel %vm3125, 1.0, 0.0
  %v3262 = vsel %vm3126, 1.0, 0.0
  %v3263 = vsel %vm3127, 1.0, 0.0
  %v3264 = vsel %vm3128, 1.0, 0.0
  %v3265 = vsel %vm3129, 1.0, 0.0
  %v3266 = vsel %vm3130, 1.0, 0.0
  %v3267 = vsel %vm3131, 1.0, 0.0
  %v3268 = vsel %vm3132, 1.0, 0.0
  %v3269 = vsel %vm3133, 1.0, 0.0
  %v3270 = vsel %vm3134, 1.0, 0.0
  %v3271 = vsel %vm3135, 1.0, 0.0
  %v3272 = vsel %vm3136, 1.0, 0.0
  %v3273 = vsel %vm3137, 1.0, 0.0
  %v3274 = vsel %vm3138, 1.0, 0.0
  %v3275 = vsel %vm3139, 1.0, 0.0
  %v3276 = vsel %vm3140, 1.0, 0.0
  %v3277 = vsel %vm3141, 1.0, 0.0
  %v3278 = vsel %vm3142, 1.0, 0.0
  %v3279 = vsel %vm3143, 1.0, 0.0
  %v3280 = vsel %vm3144, 1.0, 0.0
  %v3281 = vsel %vm3145, 1.0, 0.0
  %v3282 = vsel %vm3146, 1.0, 0.0
  %v3283 = vsel %vm3147, 1.0, 0.0
  %v3284 = vsel %vm3148, 1.0, 0.0
  %v3285 = vsel %vm3149, 1.0, 0.0
  %v3286 = vsel %vm3150, 1.0, 0.0
  %v3287 = vsel %vm3151, 1.0, 0.0
  %v3288 = vsel %vm3152, 1.0, 0.0
  %v3289 = vsel %vm3153, 1.0, 0.0
  %v3290 = vsel %vm3154, 1.0, 0.0
  %v3291 = vsel %vm3155, 1.0, 0.0
  %v3292 = vsel %vm3156, 1.0, 0.0
  %v3293 = vsel %vm3157, 1.0, 0.0
  %v3294 = vsel %vm3158, 1.0, 0.0
  %v3295 = vsel %vm3159, 1.0, 0.0
  %v3296 = vsel %vm3160, 1.0, 0.0
  %v3297 = vsel %vm3161, 1.0, 0.0
  %v3298 = vsel %vm3162, 1.0, 0.0
  %v3299 = vsel %vm3163, 1.0, 0.0
  %v3300 = vsel %vm3164, 1.0, 0.0
  %v3301 = vsel %vm3165, 1.0, 0.0
  %v3302 = vsel %vm3166, 1.0, 0.0
  %v3303 = vsel %vm3167, 1.0, 0.0
  %v3304 = vsel %vm3168, 1.0, 0.0
  %v3305 = vsel %vm3169, 1.0, 0.0
  %v3306 = vsel %vm3170, 1.0, 0.0
  %v3307 = vsel %vm3171, 1.0, 0.0
  %v3308 = vsel %vm3172, 1.0, 0.0
  %v3309 = vsel %vm3173, 1.0, 0.0
  %v3310 = vsel %vm3174, 1.0, 0.0
  %v3311 = vsel %vm3175, 1.0, 0.0
  %v3312 = vsel %vm3176, 1.0, 0.0
  %v3313 = vsel %vm3177, 1.0, 0.0
  %v3314 = vsel %vm3178, 1.0, 0.0
  %v3315 = vsel %vm3179, 1.0, 0.0
  %v3316 = vsel %vm3180, 1.0, 0.0
  %v3317 = vsel %vm3181, 1.0, 0.0
  %v3318 = vsel %vm3182, 1.0, 0.0
  %v3319 = vsel %vm3183, 1.0, 0.0
  %v3320 = vsel %vm3184, 1.0, 0.0
  %v3321 = vsel %vm3185, 1.0, 0.0
  %v3322 = vsel %vm3186, 1.0, 0.0
  %v3323 = vsel %vm3187, 1.0, 0.0
  %v3324 = vsel %vm3188, 1.0, 0.0
  %v3325 = vsel %vm3189, 1.0, 0.0
  %v3326 = vsel %vm3190, 1.0, 0.0
  %v3327 = vsel %vm3191, 1.0, 0.0
  %v3328 = vsel %vm3192, 1.0, 0.0
  %v3329 = vsel %vm3193, 1.0, 0.0
  %v3330 = vsel %vm3194, 1.0, 0.0
  %v3331 = vsel %vm3195, 1.0, 0.0
  %v3332 = vsel %vm3196, 1.0, 0.0
  %v3333 = vsel %vm3197, 1.0, 0.0
  %v3334 = vsel %vm3198, 1.0, 0.0
  %v3335 = vsel %vm3199, 1.0, 0.0
  %v3336 = vsel %vm3200, 1.0, 0.0
  %v3337 = vsel %vm3201, 1.0, 0.0
  %v3338 = vsel %vm3202, 1.0, 0.0
  %v3339 = vsel %vm3203, 1.0, 0.0
  %v3340 = vsel %vm3204, 1.0, 0.0
  %v3341 = vsel %vm3205, 1.0, 0.0
  %v3342 = vsel %vm3206, 1.0, 0.0
  %v3343 = vsel %vm3207, 1.0, 0.0
  %v3344 = vsel %vm3208, 1.0, 0.0
  %v3345 = vsel %vm3209, 1.0, 0.0
  %v3346 = vsel %vm3210, 1.0, 0.0
  %v3347 = vsel %vm3211, 1.0, 0.0
  %v3348 = vsel %vm3212, 1.0, 0.0
  %v3349 = vsel %vm3213, 1.0, 0.0
  %v3350 = vpack.c.bf16 %v3216, %v3214
  %v3351 = vpack.c.bf16 %v3217, %v3215
  %v3352 = vpack.c.bf16 %v3220, %v3218
  %v3353 = vpack.c.bf16 %v3221, %v3219
  %v3354 = vpack.c.bf16 %v3224, %v3222
  %v3355 = vpack.c.bf16 %v3225, %v3223
  %v3356 = vpack.c.bf16 %v3228, %v3226
  %v3357 = vpack.c.bf16 %v3229, %v3227
  %v3358 = vpack.c.bf16 %v3232, %v3230
  %v3359 = vpack.c.bf16 %v3233, %v3231
  %v3360 = vpack.c.bf16 %v3236, %v3234
  %v3361 = vpack.c.bf16 %v3237, %v3235
  %v3362 = vpack.c.bf16 %v3240, %v3238
  %v3363 = vpack.c.bf16 %v3241, %v3239
  %v3364 = vpack.c.bf16 %v3244, %v3242
  %v3365 = vpack.c.bf16 %v3245, %v3243
  %v3366 = vpack.c.bf16 %v3248, %v3246
  %v3367 = vpack.c.bf16 %v3249, %v3247
  %v3368 = vpack.c.bf16 %v3252, %v3250
  %v3369 = vpack.c.bf16 %v3253, %v3251
  %v3370 = vpack.c.bf16 %v3256, %v3254
  %v3371 = vpack.c.bf16 %v3257, %v3255
  %v3372 = vpack.c.bf16 %v3260, %v3258
  %v3373 = vpack.c.bf16 %v3261, %v3259
  %v3374 = vpack.c.bf16 %v3264, %v3262
  %v3375 = vpack.c.bf16 %v3265, %v3263
  %v3376 = vpack.c.bf16 %v3268, %v3266
  %v3377 = vpack.c.bf16 %v3269, %v3267
  %v3378 = vpack.c.bf16 %v3272, %v3270
  %v3379 = vpack.c.bf16 %v3273, %v3271
  %v3380 = vpack.c.bf16 %v3276, %v3274
  %v3381 = vpack.c.bf16 %v3277, %v3275
  %v3382 = vpack.c.bf16 %v3280, %v3278
  %v3383 = vpack.c.bf16 %v3281, %v3279
  %v3384 = vpack.c.bf16 %v3284, %v3282
  %v3385 = vpack.c.bf16 %v3285, %v3283
  %v3386 = vpack.c.bf16 %v3288, %v3286
  %v3387 = vpack.c.bf16 %v3289, %v3287
  %v3388 = vpack.c.bf16 %v3292, %v3290
  %v3389 = vpack.c.bf16 %v3293, %v3291
  %v3390 = vpack.c.bf16 %v3296, %v3294
  %v3391 = vpack.c.bf16 %v3297, %v3295
  %v3392 = vpack.c.bf16 %v3300, %v3298
  %v3393 = vpack.c.bf16 %v3301, %v3299
  %v3394 = vpack.c.bf16 %v3304, %v3302
  %v3395 = vpack.c.bf16 %v3305, %v3303
  %v3396 = vpack.c.bf16 %v3308, %v3306
  %v3397 = vpack.c.bf16 %v3309, %v3307
  %v3398 = vpack.c.bf16 %v3312, %v3310
  %v3399 = vpack.c.bf16 %v3313, %v3311
  %v3400 = vpack.c.bf16 %v3316, %v3314
  %v3401 = vpack.c.bf16 %v3317, %v3315
  %v3402 = vpack.c.bf16 %v3320, %v3318
  %v3403 = vpack.c.bf16 %v3321, %v3319
  %v3404 = vpack.c.bf16 %v3324, %v3322
  %v3405 = vpack.c.bf16 %v3325, %v3323
  %v3406 = vpack.c.bf16 %v3328, %v3326
  %v3407 = vpack.c.bf16 %v3329, %v3327
  %v3408 = vpack.c.bf16 %v3332, %v3330
  %v3409 = vpack.c.bf16 %v3333, %v3331
  %v3410 = vpack.c.bf16 %v3336, %v3334
  %v3411 = vpack.c.bf16 %v3337, %v3335
  %v3412 = vpack.c.bf16 %v3340, %v3338
  %v3413 = vpack.c.bf16 %v3341, %v3339
  %v3414 = vpack.c.bf16 %v3344, %v3342
  %v3415 = vpack.c.bf16 %v3345, %v3343
  %v3416 = vpack.c.bf16 %v3348, %v3346
  %v3417 = vpack.c.bf16 %v3349, %v3347
  %3418 = vmatprep.subr.bf16.mxu0 %v3365
  %3419 = vmatpush1.bf16.msra.mxu0 %v3364
  %3420 = vmatprep.subr.bf16.mxu0 %v3363
  %3421 = vmatpush1.bf16.msra.mxu0 %v3362
  %3422 = vmatprep.subr.bf16.mxu0 %v3361
  %3423 = vmatpush1.bf16.msra.mxu0 %v3360
  %3424 = vmatprep.subr.bf16.mxu0 %v3359
  %3425 = vmatpush1.bf16.msra.mxu0 %v3358
  %3426 = vmatprep.subr.bf16.mxu0 %v3357
  %3427 = vmatpush1.bf16.msra.mxu0 %v3356
  %3428 = vmatprep.subr.bf16.mxu0 %v3355
  %3429 = vmatpush1.bf16.msra.mxu0 %v3354
  %3430 = vmatprep.subr.bf16.mxu0 %v3353
  %3431 = vmatpush1.bf16.msra.mxu0 %v3352
  %3432 = vmatprep.subr.bf16.mxu0 %v3351
  %3433 = vmatpush1.bf16.msra.mxu0 %v3350
  %3434 = vmatprep.subr.bf16.mxu0 %v3381
  %3435 = vmatpush2.bf16.msra.mxu0 %v3380
  %3436 = vmatprep.subr.bf16.mxu0 %v3379
  %3437 = vmatpush2.bf16.msra.mxu0 %v3378
  %3438 = vmatprep.subr.bf16.mxu0 %v3377
  %3439 = vmatpush2.bf16.msra.mxu0 %v3376
  %3440 = vmatprep.subr.bf16.mxu0 %v3375
  %3441 = vmatpush2.bf16.msra.mxu0 %v3374
  %3442 = vmatprep.subr.bf16.mxu0 %v3373
  %3443 = vmatpush2.bf16.msra.mxu0 %v3372
  %3444 = vmatprep.subr.bf16.mxu0 %v3371
  %3445 = vmatpush2.bf16.msra.mxu0 %v3370
  %3446 = vmatprep.subr.bf16.mxu0 %v3369
  %3447 = vmatpush2.bf16.msra.mxu0 %v3368
  %3448 = vmatprep.subr.bf16.mxu0 %v3367
  %3449 = vmatpush2.bf16.msra.mxu0 %v3366
  %3450 = vmatprep.mubr.bf16.mxu0 %v2035
  %3451 = vmatmul.mubr.bf16.gmra.mxu0 %v2034
  %v3452 = vpop.f32.mrf.mxu0
  %v3453 = vadd.f32 0.0, %v3452
  %v3454 = vpop.f32.mrf.mxu0
  %v3455 = vadd.f32 0.0, %v3454
  %v3456 = vpop.f32.mrf.mxu0
  %v3457 = vadd.f32 0.0, %v3456
  %v3458 = vpop.f32.mrf.mxu0
  %v3459 = vadd.f32 0.0, %v3458
  %3460 = vdwg.mxu0
  %3461 = vmatprep.subr.bf16.mxu0 %v3397
  %3462 = vmatpush1.bf16.msra.mxu0 %v3396
  %3463 = vmatprep.subr.bf16.mxu0 %v3395
  %3464 = vmatpush1.bf16.msra.mxu0 %v3394
  %3465 = vmatprep.subr.bf16.mxu0 %v3393
  %3466 = vmatpush1.bf16.msra.mxu0 %v3392
  %3467 = vmatprep.subr.bf16.mxu0 %v3391
  %3468 = vmatpush1.bf16.msra.mxu0 %v3390
  %3469 = vmatprep.subr.bf16.mxu0 %v3389
  %3470 = vmatpush1.bf16.msra.mxu0 %v3388
  %3471 = vmatprep.subr.bf16.mxu0 %v3387
  %3472 = vmatpush1.bf16.msra.mxu0 %v3386
  %3473 = vmatprep.subr.bf16.mxu0 %v3385
  %3474 = vmatpush1.bf16.msra.mxu0 %v3384
  %3475 = vmatprep.subr.bf16.mxu0 %v3383
  %3476 = vmatpush1.bf16.msra.mxu0 %v3382
  %3477 = vmatprep.subr.bf16.mxu0 %v3413
  %3478 = vmatpush2.bf16.msra.mxu0 %v3412
  %3479 = vmatprep.subr.bf16.mxu0 %v3411
  %3480 = vmatpush2.bf16.msra.mxu0 %v3410
  %3481 = vmatprep.subr.bf16.mxu0 %v3409
  %3482 = vmatpush2.bf16.msra.mxu0 %v3408
  %3483 = vmatprep.subr.bf16.mxu0 %v3407
  %3484 = vmatpush2.bf16.msra.mxu0 %v3406
  %3485 = vmatprep.subr.bf16.mxu0 %v3405
  %3486 = vmatpush2.bf16.msra.mxu0 %v3404
  %3487 = vmatprep.subr.bf16.mxu0 %v3403
  %3488 = vmatpush2.bf16.msra.mxu0 %v3402
  %3489 = vmatprep.subr.bf16.mxu0 %v3401
  %3490 = vmatpush2.bf16.msra.mxu0 %v3400
  %3491 = vmatprep.subr.bf16.mxu0 %v3399
  %3492 = vmatpush2.bf16.msra.mxu0 %v3398
  %3493 = vmatprep.mubr.bf16.mxu0 %v2037
  %3494 = vmatmul.mubr.bf16.gmra.mxu0 %v2036
  %v3495 = vpop.f32.mrf.mxu0
  %v3496 = vadd.f32 %v3453, %v3495
  %v3497 = vpop.f32.mrf.mxu0
  %v3498 = vadd.f32 %v3455, %v3497
  %v3499 = vpop.f32.mrf.mxu0
  %v3500 = vadd.f32 %v3457, %v3499
  %v3501 = vpop.f32.mrf.mxu0
  %v3502 = vadd.f32 %v3459, %v3501
  %3503 = vdwg.mxu0
  %3504 = vmatprep.subr.bf16.mxu0 0
  %3505 = vmatpush1.bf16.msra.mxu0 0
  %3506 = vmatprep.subr.bf16.mxu0 0
  %3507 = vmatpush1.bf16.msra.mxu0 0
  %3508 = vmatprep.subr.bf16.mxu0 0
  %3509 = vmatpush1.bf16.msra.mxu0 0
  %3510 = vmatprep.subr.bf16.mxu0 0
  %3511 = vmatpush1.bf16.msra.mxu0 0
  %3512 = vmatprep.subr.bf16.mxu0 0
  %3513 = vmatpush1.bf16.msra.mxu0 0
  %3514 = vmatprep.subr.bf16.mxu0 0
  %3515 = vmatpush1.bf16.msra.mxu0 0
  %3516 = vmatprep.subr.bf16.mxu0 %v3417
  %3517 = vmatpush1.bf16.msra.mxu0 %v3416
  %3518 = vmatprep.subr.bf16.mxu0 %v3415
  %3519 = vmatpush1.bf16.msra.mxu0 %v3414
  %3520 = vmatprep.subr.bf16.mxu0 0
  %3521 = vmatpush2.bf16.msra.mxu0 0
  %3522 = vmatprep.subr.bf16.mxu0 0
  %3523 = vmatpush2.bf16.msra.mxu0 0
  %3524 = vmatprep.subr.bf16.mxu0 0
  %3525 = vmatpush2.bf16.msra.mxu0 0
  %3526 = vmatprep.subr.bf16.mxu0 0
  %3527 = vmatpush2.bf16.msra.mxu0 0
  %3528 = vmatprep.subr.bf16.mxu0 0
  %3529 = vmatpush2.bf16.msra.mxu0 0
  %3530 = vmatprep.subr.bf16.mxu0 0
  %3531 = vmatpush2.bf16.msra.mxu0 0
  %3532 = vmatprep.subr.bf16.mxu0 0
  %3533 = vmatpush2.bf16.msra.mxu0 0
  %3534 = vmatprep.subr.bf16.mxu0 0
  %3535 = vmatpush2.bf16.msra.mxu0 0
  %3536 = vmatprep.mubr.bf16.mxu0 0
  %3537 = vmatmul.mubr.bf16.gmra.mxu0 %v2458
  %v3538 = vpop.f32.mrf.mxu0
  %v3539 = vadd.f32 %v3496, %v3538
  %v3540 = vpop.f32.mrf.mxu0
  %v3541 = vadd.f32 %v3498, %v3540
  %v3542 = vpop.f32.mrf.mxu0
  %v3543 = vadd.f32 %v3500, %v3542
  %v3544 = vpop.f32.mrf.mxu0
  %v3545 = vadd.f32 %v3502, %v3544
  %3546 = vdwg.mxu0
  %s3547 = scalar_lea.vmem %s8, 6
  %v3548 = vld [vmem:[%s3547] sm:$0x3]
  %v3549 = vlaneseq
  %v3550 = vshrl.u32 %v3549, 7
  %v3551 = vsub.s32 0, %v3550
  %v3552 = vrot.slane %v3548, %v3551
  %v3553 = vlaneseq
  %v3554 = vshrl.u32 %v3553, 7
  %v3555 = vsub.s32 1, %v3554
  %v3556 = vrot.slane %v3548, %v3555
  %vm3557 = vcmp.eq.s32.totalorder %v2040, %v3552
  %vm3558 = vcmp.eq.s32.totalorder %v2040, %v3556
  %vm3559 = vcmp.eq.s32.totalorder %v2041, %v3552
  %vm3560 = vcmp.eq.s32.totalorder %v2041, %v3556
  %vm3561 = vcmp.eq.s32.totalorder %v2042, %v3552
  %vm3562 = vcmp.eq.s32.totalorder %v2042, %v3556
  %vm3563 = vcmp.eq.s32.totalorder %v2043, %v3552
  %vm3564 = vcmp.eq.s32.totalorder %v2043, %v3556
  %vm3565 = vcmp.eq.s32.totalorder %v2044, %v3552
  %vm3566 = vcmp.eq.s32.totalorder %v2044, %v3556
  %vm3567 = vcmp.eq.s32.totalorder %v2045, %v3552
  %vm3568 = vcmp.eq.s32.totalorder %v2045, %v3556
  %vm3569 = vcmp.eq.s32.totalorder %v2046, %v3552
  %vm3570 = vcmp.eq.s32.totalorder %v2046, %v3556
  %vm3571 = vcmp.eq.s32.totalorder %v2047, %v3552
  %vm3572 = vcmp.eq.s32.totalorder %v2047, %v3556
  %vm3573 = vcmp.eq.s32.totalorder %v2048, %v3552
  %vm3574 = vcmp.eq.s32.totalorder %v2048, %v3556
  %vm3575 = vcmp.eq.s32.totalorder %v2049, %v3552
  %vm3576 = vcmp.eq.s32.totalorder %v2049, %v3556
  %vm3577 = vcmp.eq.s32.totalorder %v2050, %v3552
  %vm3578 = vcmp.eq.s32.totalorder %v2050, %v3556
  %vm3579 = vcmp.eq.s32.totalorder %v2051, %v3552
  %vm3580 = vcmp.eq.s32.totalorder %v2051, %v3556
  %vm3581 = vcmp.eq.s32.totalorder %v2052, %v3552
  %vm3582 = vcmp.eq.s32.totalorder %v2052, %v3556
  %vm3583 = vcmp.eq.s32.totalorder %v2053, %v3552
  %vm3584 = vcmp.eq.s32.totalorder %v2053, %v3556
  %vm3585 = vcmp.eq.s32.totalorder %v2054, %v3552
  %vm3586 = vcmp.eq.s32.totalorder %v2054, %v3556
  %vm3587 = vcmp.eq.s32.totalorder %v2055, %v3552
  %vm3588 = vcmp.eq.s32.totalorder %v2055, %v3556
  %vm3589 = vcmp.eq.s32.totalorder %v2056, %v3552
  %vm3590 = vcmp.eq.s32.totalorder %v2056, %v3556
  %vm3591 = vcmp.eq.s32.totalorder %v2057, %v3552
  %vm3592 = vcmp.eq.s32.totalorder %v2057, %v3556
  %vm3593 = vcmp.eq.s32.totalorder %v2058, %v3552
  %vm3594 = vcmp.eq.s32.totalorder %v2058, %v3556
  %vm3595 = vcmp.eq.s32.totalorder %v2059, %v3552
  %vm3596 = vcmp.eq.s32.totalorder %v2059, %v3556
  %vm3597 = vcmp.eq.s32.totalorder %v2060, %v3552
  %vm3598 = vcmp.eq.s32.totalorder %v2060, %v3556
  %vm3599 = vcmp.eq.s32.totalorder %v2061, %v3552
  %vm3600 = vcmp.eq.s32.totalorder %v2061, %v3556
  %vm3601 = vcmp.eq.s32.totalorder %v2062, %v3552
  %vm3602 = vcmp.eq.s32.totalorder %v2062, %v3556
  %vm3603 = vcmp.eq.s32.totalorder %v2063, %v3552
  %vm3604 = vcmp.eq.s32.totalorder %v2063, %v3556
  %vm3605 = vcmp.eq.s32.totalorder %v2064, %v3552
  %vm3606 = vcmp.eq.s32.totalorder %v2064, %v3556
  %vm3607 = vcmp.eq.s32.totalorder %v2065, %v3552
  %vm3608 = vcmp.eq.s32.totalorder %v2065, %v3556
  %vm3609 = vcmp.eq.s32.totalorder %v2066, %v3552
  %vm3610 = vcmp.eq.s32.totalorder %v2066, %v3556
  %vm3611 = vcmp.eq.s32.totalorder %v2067, %v3552
  %vm3612 = vcmp.eq.s32.totalorder %v2067, %v3556
  %vm3613 = vcmp.eq.s32.totalorder %v2068, %v3552
  %vm3614 = vcmp.eq.s32.totalorder %v2068, %v3556
  %vm3615 = vcmp.eq.s32.totalorder %v2069, %v3552
  %vm3616 = vcmp.eq.s32.totalorder %v2069, %v3556
  %vm3617 = vcmp.eq.s32.totalorder %v2070, %v3552
  %vm3618 = vcmp.eq.s32.totalorder %v2070, %v3556
  %vm3619 = vcmp.eq.s32.totalorder %v2071, %v3552
  %vm3620 = vcmp.eq.s32.totalorder %v2071, %v3556
  %vm3621 = vcmp.eq.s32.totalorder %v2072, %v3552
  %vm3622 = vcmp.eq.s32.totalorder %v2072, %v3556
  %vm3623 = vcmp.eq.s32.totalorder %v2073, %v3552
  %vm3624 = vcmp.eq.s32.totalorder %v2073, %v3556
  %vm3625 = vcmp.eq.s32.totalorder %v2074, %v3552
  %vm3626 = vcmp.eq.s32.totalorder %v2074, %v3556
  %vm3627 = vcmp.eq.s32.totalorder %v2075, %v3552
  %vm3628 = vcmp.eq.s32.totalorder %v2075, %v3556
  %vm3629 = vcmp.eq.s32.totalorder %v2076, %v3552
  %vm3630 = vcmp.eq.s32.totalorder %v2076, %v3556
  %vm3631 = vcmp.eq.s32.totalorder %v2077, %v3552
  %vm3632 = vcmp.eq.s32.totalorder %v2077, %v3556
  %vm3633 = vcmp.eq.s32.totalorder %v2078, %v3552
  %vm3634 = vcmp.eq.s32.totalorder %v2078, %v3556
  %vm3635 = vcmp.eq.s32.totalorder %v2079, %v3552
  %vm3636 = vcmp.eq.s32.totalorder %v2079, %v3556
  %vm3637 = vcmp.eq.s32.totalorder %v2080, %v3552
  %vm3638 = vcmp.eq.s32.totalorder %v2080, %v3556
  %vm3639 = vcmp.eq.s32.totalorder %v2081, %v3552
  %vm3640 = vcmp.eq.s32.totalorder %v2081, %v3556
  %vm3641 = vcmp.eq.s32.totalorder %v2082, %v3552
  %vm3642 = vcmp.eq.s32.totalorder %v2082, %v3556
  %vm3643 = vcmp.eq.s32.totalorder %v2083, %v3552
  %vm3644 = vcmp.eq.s32.totalorder %v2083, %v3556
  %vm3645 = vcmp.eq.s32.totalorder %v2084, %v3552
  %vm3646 = vcmp.eq.s32.totalorder %v2084, %v3556
  %vm3647 = vcmp.eq.s32.totalorder %v2085, %v3552
  %vm3648 = vcmp.eq.s32.totalorder %v2085, %v3556
  %vm3649 = vcmp.eq.s32.totalorder %v2086, %v3552
  %vm3650 = vcmp.eq.s32.totalorder %v2086, %v3556
  %vm3651 = vcmp.eq.s32.totalorder %v2087, %v3552
  %vm3652 = vcmp.eq.s32.totalorder %v2087, %v3556
  %vm3653 = vcmp.eq.s32.totalorder %v2088, %v3552
  %vm3654 = vcmp.eq.s32.totalorder %v2088, %v3556
  %vm3655 = vcmp.eq.s32.totalorder %v2089, %v3552
  %vm3656 = vcmp.eq.s32.totalorder %v2089, %v3556
  %vm3657 = vcmp.eq.s32.totalorder %v2090, %v3552
  %vm3658 = vcmp.eq.s32.totalorder %v2090, %v3556
  %vm3659 = vcmp.eq.s32.totalorder %v2091, %v3552
  %vm3660 = vcmp.eq.s32.totalorder %v2091, %v3556
  %vm3661 = vcmp.eq.s32.totalorder %v2092, %v3552
  %vm3662 = vcmp.eq.s32.totalorder %v2092, %v3556
  %vm3663 = vcmp.eq.s32.totalorder %v2093, %v3552
  %vm3664 = vcmp.eq.s32.totalorder %v2093, %v3556
  %vm3665 = vcmp.eq.s32.totalorder %v2094, %v3552
  %vm3666 = vcmp.eq.s32.totalorder %v2094, %v3556
  %vm3667 = vcmp.eq.s32.totalorder %v2095, %v3552
  %vm3668 = vcmp.eq.s32.totalorder %v2095, %v3556
  %vm3669 = vcmp.eq.s32.totalorder %v2096, %v3552
  %vm3670 = vcmp.eq.s32.totalorder %v2096, %v3556
  %vm3671 = vcmp.eq.s32.totalorder %v2097, %v3552
  %vm3672 = vcmp.eq.s32.totalorder %v2097, %v3556
  %vm3673 = vcmp.eq.s32.totalorder %v2098, %v3552
  %vm3674 = vcmp.eq.s32.totalorder %v2098, %v3556
  %vm3675 = vcmp.eq.s32.totalorder %v2099, %v3552
  %vm3676 = vcmp.eq.s32.totalorder %v2099, %v3556
  %vm3677 = vcmp.eq.s32.totalorder %v2100, %v3552
  %vm3678 = vcmp.eq.s32.totalorder %v2100, %v3556
  %vm3679 = vcmp.eq.s32.totalorder %v2101, %v3552
  %vm3680 = vcmp.eq.s32.totalorder %v2101, %v3556
  %vm3681 = vcmp.eq.s32.totalorder %v2102, %v3552
  %vm3682 = vcmp.eq.s32.totalorder %v2102, %v3556
  %vm3683 = vcmp.eq.s32.totalorder %v2103, %v3552
  %vm3684 = vcmp.eq.s32.totalorder %v2103, %v3556
  %vm3685 = vcmp.eq.s32.totalorder %v2104, %v3552
  %vm3686 = vcmp.eq.s32.totalorder %v2104, %v3556
  %vm3687 = vcmp.eq.s32.totalorder %v2105, %v3552
  %vm3688 = vcmp.eq.s32.totalorder %v2105, %v3556
  %vm3689 = vcmp.eq.s32.totalorder %v2106, %v3552
  %vm3690 = vcmp.eq.s32.totalorder %v2106, %v3556
  %vm3691 = vcmp.eq.s32.totalorder %v2107, %v3552
  %vm3692 = vcmp.eq.s32.totalorder %v2107, %v3556
  %v3693 = vsel %vm3557, 1.0, 0.0
  %v3694 = vsel %vm3558, 1.0, 0.0
  %v3695 = vsel %vm3559, 1.0, 0.0
  %v3696 = vsel %vm3560, 1.0, 0.0
  %v3697 = vsel %vm3561, 1.0, 0.0
  %v3698 = vsel %vm3562, 1.0, 0.0
  %v3699 = vsel %vm3563, 1.0, 0.0
  %v3700 = vsel %vm3564, 1.0, 0.0
  %v3701 = vsel %vm3565, 1.0, 0.0
  %v3702 = vsel %vm3566, 1.0, 0.0
  %v3703 = vsel %vm3567, 1.0, 0.0
  %v3704 = vsel %vm3568, 1.0, 0.0
  %v3705 = vsel %vm3569, 1.0, 0.0
  %v3706 = vsel %vm3570, 1.0, 0.0
  %v3707 = vsel %vm3571, 1.0, 0.0
  %v3708 = vsel %vm3572, 1.0, 0.0
  %v3709 = vsel %vm3573, 1.0, 0.0
  %v3710 = vsel %vm3574, 1.0, 0.0
  %v3711 = vsel %vm3575, 1.0, 0.0
  %v3712 = vsel %vm3576, 1.0, 0.0
  %v3713 = vsel %vm3577, 1.0, 0.0
  %v3714 = vsel %vm3578, 1.0, 0.0
  %v3715 = vsel %vm3579, 1.0, 0.0
  %v3716 = vsel %vm3580, 1.0, 0.0
  %v3717 = vsel %vm3581, 1.0, 0.0
  %v3718 = vsel %vm3582, 1.0, 0.0
  %v3719 = vsel %vm3583, 1.0, 0.0
  %v3720 = vsel %vm3584, 1.0, 0.0
  %v3721 = vsel %vm3585, 1.0, 0.0
  %v3722 = vsel %vm3586, 1.0, 0.0
  %v3723 = vsel %vm3587, 1.0, 0.0
  %v3724 = vsel %vm3588, 1.0, 0.0
  %v3725 = vsel %vm3589, 1.0, 0.0
  %v3726 = vsel %vm3590, 1.0, 0.0
  %v3727 = vsel %vm3591, 1.0, 0.0
  %v3728 = vsel %vm3592, 1.0, 0.0
  %v3729 = vsel %vm3593, 1.0, 0.0
  %v3730 = vsel %vm3594, 1.0, 0.0
  %v3731 = vsel %vm3595, 1.0, 0.0
  %v3732 = vsel %vm3596, 1.0, 0.0
  %v3733 = vsel %vm3597, 1.0, 0.0
  %v3734 = vsel %vm3598, 1.0, 0.0
  %v3735 = vsel %vm3599, 1.0, 0.0
  %v3736 = vsel %vm3600, 1.0, 0.0
  %v3737 = vsel %vm3601, 1.0, 0.0
  %v3738 = vsel %vm3602, 1.0, 0.0
  %v3739 = vsel %vm3603, 1.0, 0.0
  %v3740 = vsel %vm3604, 1.0, 0.0
  %v3741 = vsel %vm3605, 1.0, 0.0
  %v3742 = vsel %vm3606, 1.0, 0.0
  %v3743 = vsel %vm3607, 1.0, 0.0
  %v3744 = vsel %vm3608, 1.0, 0.0
  %v3745 = vsel %vm3609, 1.0, 0.0
  %v3746 = vsel %vm3610, 1.0, 0.0
  %v3747 = vsel %vm3611, 1.0, 0.0
  %v3748 = vsel %vm3612, 1.0, 0.0
  %v3749 = vsel %vm3613, 1.0, 0.0
  %v3750 = vsel %vm3614, 1.0, 0.0
  %v3751 = vsel %vm3615, 1.0, 0.0
  %v3752 = vsel %vm3616, 1.0, 0.0
  %v3753 = vsel %vm3617, 1.0, 0.0
  %v3754 = vsel %vm3618, 1.0, 0.0
  %v3755 = vsel %vm3619, 1.0, 0.0
  %v3756 = vsel %vm3620, 1.0, 0.0
  %v3757 = vsel %vm3621, 1.0, 0.0
  %v3758 = vsel %vm3622, 1.0, 0.0
  %v3759 = vsel %vm3623, 1.0, 0.0
  %v3760 = vsel %vm3624, 1.0, 0.0
  %v3761 = vsel %vm3625, 1.0, 0.0
  %v3762 = vsel %vm3626, 1.0, 0.0
  %v3763 = vsel %vm3627, 1.0, 0.0
  %v3764 = vsel %vm3628, 1.0, 0.0
  %v3765 = vsel %vm3629, 1.0, 0.0
  %v3766 = vsel %vm3630, 1.0, 0.0
  %v3767 = vsel %vm3631, 1.0, 0.0
  %v3768 = vsel %vm3632, 1.0, 0.0
  %v3769 = vsel %vm3633, 1.0, 0.0
  %v3770 = vsel %vm3634, 1.0, 0.0
  %v3771 = vsel %vm3635, 1.0, 0.0
  %v3772 = vsel %vm3636, 1.0, 0.0
  %v3773 = vsel %vm3637, 1.0, 0.0
  %v3774 = vsel %vm3638, 1.0, 0.0
  %v3775 = vsel %vm3639, 1.0, 0.0
  %v3776 = vsel %vm3640, 1.0, 0.0
  %v3777 = vsel %vm3641, 1.0, 0.0
  %v3778 = vsel %vm3642, 1.0, 0.0
  %v3779 = vsel %vm3643, 1.0, 0.0
  %v3780 = vsel %vm3644, 1.0, 0.0
  %v3781 = vsel %vm3645, 1.0, 0.0
  %v3782 = vsel %vm3646, 1.0, 0.0
  %v3783 = vsel %vm3647, 1.0, 0.0
  %v3784 = vsel %vm3648, 1.0, 0.0
  %v3785 = vsel %vm3649, 1.0, 0.0
  %v3786 = vsel %vm3650, 1.0, 0.0
  %v3787 = vsel %vm3651, 1.0, 0.0
  %v3788 = vsel %vm3652, 1.0, 0.0
  %v3789 = vsel %vm3653, 1.0, 0.0
  %v3790 = vsel %vm3654, 1.0, 0.0
  %v3791 = vsel %vm3655, 1.0, 0.0
  %v3792 = vsel %vm3656, 1.0, 0.0
  %v3793 = vsel %vm3657, 1.0, 0.0
  %v3794 = vsel %vm3658, 1.0, 0.0
  %v3795 = vsel %vm3659, 1.0, 0.0
  %v3796 = vsel %vm3660, 1.0, 0.0
  %v3797 = vsel %vm3661, 1.0, 0.0
  %v3798 = vsel %vm3662, 1.0, 0.0
  %v3799 = vsel %vm3663, 1.0, 0.0
  %v3800 = vsel %vm3664, 1.0, 0.0
  %v3801 = vsel %vm3665, 1.0, 0.0
  %v3802 = vsel %vm3666, 1.0, 0.0
  %v3803 = vsel %vm3667, 1.0, 0.0
  %v3804 = vsel %vm3668, 1.0, 0.0
  %v3805 = vsel %vm3669, 1.0, 0.0
  %v3806 = vsel %vm3670, 1.0, 0.0
  %v3807 = vsel %vm3671, 1.0, 0.0
  %v3808 = vsel %vm3672, 1.0, 0.0
  %v3809 = vsel %vm3673, 1.0, 0.0
  %v3810 = vsel %vm3674, 1.0, 0.0
  %v3811 = vsel %vm3675, 1.0, 0.0
  %v3812 = vsel %vm3676, 1.0, 0.0
  %v3813 = vsel %vm3677, 1.0, 0.0
  %v3814 = vsel %vm3678, 1.0, 0.0
  %v3815 = vsel %vm3679, 1.0, 0.0
  %v3816 = vsel %vm3680, 1.0, 0.0
  %v3817 = vsel %vm3681, 1.0, 0.0
  %v3818 = vsel %vm3682, 1.0, 0.0
  %v3819 = vsel %vm3683, 1.0, 0.0
  %v3820 = vsel %vm3684, 1.0, 0.0
  %v3821 = vsel %vm3685, 1.0, 0.0
  %v3822 = vsel %vm3686, 1.0, 0.0
  %v3823 = vsel %vm3687, 1.0, 0.0
  %v3824 = vsel %vm3688, 1.0, 0.0
  %v3825 = vsel %vm3689, 1.0, 0.0
  %v3826 = vsel %vm3690, 1.0, 0.0
  %v3827 = vsel %vm3691, 1.0, 0.0
  %v3828 = vsel %vm3692, 1.0, 0.0
  %v3829 = vpack.c.bf16 %v3695, %v3693
  %v3830 = vpack.c.bf16 %v3696, %v3694
  %v3831 = vpack.c.bf16 %v3699, %v3697
  %v3832 = vpack.c.bf16 %v3700, %v3698
  %v3833 = vpack.c.bf16 %v3703, %v3701
  %v3834 = vpack.c.bf16 %v3704, %v3702
  %v3835 = vpack.c.bf16 %v3707, %v3705
  %v3836 = vpack.c.bf16 %v3708, %v3706
  %v3837 = vpack.c.bf16 %v3711, %v3709
  %v3838 = vpack.c.bf16 %v3712, %v3710
  %v3839 = vpack.c.bf16 %v3715, %v3713
  %v3840 = vpack.c.bf16 %v3716, %v3714
  %v3841 = vpack.c.bf16 %v3719, %v3717
  %v3842 = vpack.c.bf16 %v3720, %v3718
  %v3843 = vpack.c.bf16 %v3723, %v3721
  %v3844 = vpack.c.bf16 %v3724, %v3722
  %v3845 = vpack.c.bf16 %v3727, %v3725
  %v3846 = vpack.c.bf16 %v3728, %v3726
  %v3847 = vpack.c.bf16 %v3731, %v3729
  %v3848 = vpack.c.bf16 %v3732, %v3730
  %v3849 = vpack.c.bf16 %v3735, %v3733
  %v3850 = vpack.c.bf16 %v3736, %v3734
  %v3851 = vpack.c.bf16 %v3739, %v3737
  %v3852 = vpack.c.bf16 %v3740, %v3738
  %v3853 = vpack.c.bf16 %v3743, %v3741
  %v3854 = vpack.c.bf16 %v3744, %v3742
  %v3855 = vpack.c.bf16 %v3747, %v3745
  %v3856 = vpack.c.bf16 %v3748, %v3746
  %v3857 = vpack.c.bf16 %v3751, %v3749
  %v3858 = vpack.c.bf16 %v3752, %v3750
  %v3859 = vpack.c.bf16 %v3755, %v3753
  %v3860 = vpack.c.bf16 %v3756, %v3754
  %v3861 = vpack.c.bf16 %v3759, %v3757
  %v3862 = vpack.c.bf16 %v3760, %v3758
  %v3863 = vpack.c.bf16 %v3763, %v3761
  %v3864 = vpack.c.bf16 %v3764, %v3762
  %v3865 = vpack.c.bf16 %v3767, %v3765
  %v3866 = vpack.c.bf16 %v3768, %v3766
  %v3867 = vpack.c.bf16 %v3771, %v3769
  %v3868 = vpack.c.bf16 %v3772, %v3770
  %v3869 = vpack.c.bf16 %v3775, %v3773
  %v3870 = vpack.c.bf16 %v3776, %v3774
  %v3871 = vpack.c.bf16 %v3779, %v3777
  %v3872 = vpack.c.bf16 %v3780, %v3778
  %v3873 = vpack.c.bf16 %v3783, %v3781
  %v3874 = vpack.c.bf16 %v3784, %v3782
  %v3875 = vpack.c.bf16 %v3787, %v3785
  %v3876 = vpack.c.bf16 %v3788, %v3786
  %v3877 = vpack.c.bf16 %v3791, %v3789
  %v3878 = vpack.c.bf16 %v3792, %v3790
  %v3879 = vpack.c.bf16 %v3795, %v3793
  %v3880 = vpack.c.bf16 %v3796, %v3794
  %v3881 = vpack.c.bf16 %v3799, %v3797
  %v3882 = vpack.c.bf16 %v3800, %v3798
  %v3883 = vpack.c.bf16 %v3803, %v3801
  %v3884 = vpack.c.bf16 %v3804, %v3802
  %v3885 = vpack.c.bf16 %v3807, %v3805
  %v3886 = vpack.c.bf16 %v3808, %v3806
  %v3887 = vpack.c.bf16 %v3811, %v3809
  %v3888 = vpack.c.bf16 %v3812, %v3810
  %v3889 = vpack.c.bf16 %v3815, %v3813
  %v3890 = vpack.c.bf16 %v3816, %v3814
  %v3891 = vpack.c.bf16 %v3819, %v3817
  %v3892 = vpack.c.bf16 %v3820, %v3818
  %v3893 = vpack.c.bf16 %v3823, %v3821
  %v3894 = vpack.c.bf16 %v3824, %v3822
  %v3895 = vpack.c.bf16 %v3827, %v3825
  %v3896 = vpack.c.bf16 %v3828, %v3826
  %3897 = vmatprep.subr.bf16.mxu0 %v3844
  %3898 = vmatpush1.bf16.msra.mxu0 %v3843
  %3899 = vmatprep.subr.bf16.mxu0 %v3842
  %3900 = vmatpush1.bf16.msra.mxu0 %v3841
  %3901 = vmatprep.subr.bf16.mxu0 %v3840
  %3902 = vmatpush1.bf16.msra.mxu0 %v3839
  %3903 = vmatprep.subr.bf16.mxu0 %v3838
  %3904 = vmatpush1.bf16.msra.mxu0 %v3837
  %3905 = vmatprep.subr.bf16.mxu0 %v3836
  %3906 = vmatpush1.bf16.msra.mxu0 %v3835
  %3907 = vmatprep.subr.bf16.mxu0 %v3834
  %3908 = vmatpush1.bf16.msra.mxu0 %v3833
  %3909 = vmatprep.subr.bf16.mxu0 %v3832
  %3910 = vmatpush1.bf16.msra.mxu0 %v3831
  %3911 = vmatprep.subr.bf16.mxu0 %v3830
  %3912 = vmatpush1.bf16.msra.mxu0 %v3829
  %3913 = vmatprep.subr.bf16.mxu0 %v3860
  %3914 = vmatpush2.bf16.msra.mxu0 %v3859
  %3915 = vmatprep.subr.bf16.mxu0 %v3858
  %3916 = vmatpush2.bf16.msra.mxu0 %v3857
  %3917 = vmatprep.subr.bf16.mxu0 %v3856
  %3918 = vmatpush2.bf16.msra.mxu0 %v3855
  %3919 = vmatprep.subr.bf16.mxu0 %v3854
  %3920 = vmatpush2.bf16.msra.mxu0 %v3853
  %3921 = vmatprep.subr.bf16.mxu0 %v3852
  %3922 = vmatpush2.bf16.msra.mxu0 %v3851
  %3923 = vmatprep.subr.bf16.mxu0 %v3850
  %3924 = vmatpush2.bf16.msra.mxu0 %v3849
  %3925 = vmatprep.subr.bf16.mxu0 %v3848
  %3926 = vmatpush2.bf16.msra.mxu0 %v3847
  %3927 = vmatprep.subr.bf16.mxu0 %v3846
  %3928 = vmatpush2.bf16.msra.mxu0 %v3845
  %3929 = vmatprep.mubr.bf16.mxu0 %v2035
  %3930 = vmatmul.mubr.bf16.gmra.mxu0 %v2034
  %v3931 = vpop.f32.mrf.mxu0
  %v3932 = vadd.f32 0.0, %v3931
  %v3933 = vpop.f32.mrf.mxu0
  %v3934 = vadd.f32 0.0, %v3933
  %v3935 = vpop.f32.mrf.mxu0
  %v3936 = vadd.f32 0.0, %v3935
  %v3937 = vpop.f32.mrf.mxu0
  %v3938 = vadd.f32 0.0, %v3937
  %3939 = vdwg.mxu0
  %3940 = vmatprep.subr.bf16.mxu0 %v3876
  %3941 = vmatpush1.bf16.msra.mxu0 %v3875
  %3942 = vmatprep.subr.bf16.mxu0 %v3874
  %3943 = vmatpush1.bf16.msra.mxu0 %v3873
  %3944 = vmatprep.subr.bf16.mxu0 %v3872
  %3945 = vmatpush1.bf16.msra.mxu0 %v3871
  %3946 = vmatprep.subr.bf16.mxu0 %v3870
  %3947 = vmatpush1.bf16.msra.mxu0 %v3869
  %3948 = vmatprep.subr.bf16.mxu0 %v3868
  %3949 = vmatpush1.bf16.msra.mxu0 %v3867
  %3950 = vmatprep.subr.bf16.mxu0 %v3866
  %3951 = vmatpush1.bf16.msra.mxu0 %v3865
  %3952 = vmatprep.subr.bf16.mxu0 %v3864
  %3953 = vmatpush1.bf16.msra.mxu0 %v3863
  %3954 = vmatprep.subr.bf16.mxu0 %v3862
  %3955 = vmatpush1.bf16.msra.mxu0 %v3861
  %3956 = vmatprep.subr.bf16.mxu0 %v3892
  %3957 = vmatpush2.bf16.msra.mxu0 %v3891
  %3958 = vmatprep.subr.bf16.mxu0 %v3890
  %3959 = vmatpush2.bf16.msra.mxu0 %v3889
  %3960 = vmatprep.subr.bf16.mxu0 %v3888
  %3961 = vmatpush2.bf16.msra.mxu0 %v3887
  %3962 = vmatprep.subr.bf16.mxu0 %v3886
  %3963 = vmatpush2.bf16.msra.mxu0 %v3885
  %3964 = vmatprep.subr.bf16.mxu0 %v3884
  %3965 = vmatpush2.bf16.msra.mxu0 %v3883
  %3966 = vmatprep.subr.bf16.mxu0 %v3882
  %3967 = vmatpush2.bf16.msra.mxu0 %v3881
  %3968 = vmatprep.subr.bf16.mxu0 %v3880
  %3969 = vmatpush2.bf16.msra.mxu0 %v3879
  %3970 = vmatprep.subr.bf16.mxu0 %v3878
  %3971 = vmatpush2.bf16.msra.mxu0 %v3877
  %3972 = vmatprep.mubr.bf16.mxu0 %v2037
  %3973 = vmatmul.mubr.bf16.gmra.mxu0 %v2036
  %v3974 = vpop.f32.mrf.mxu0
  %v3975 = vadd.f32 %v3932, %v3974
  %v3976 = vpop.f32.mrf.mxu0
  %v3977 = vadd.f32 %v3934, %v3976
  %v3978 = vpop.f32.mrf.mxu0
  %v3979 = vadd.f32 %v3936, %v3978
  %v3980 = vpop.f32.mrf.mxu0
  %v3981 = vadd.f32 %v3938, %v3980
  %3982 = vdwg.mxu0
  %3983 = vmatprep.subr.bf16.mxu0 0
  %3984 = vmatpush1.bf16.msra.mxu0 0
  %3985 = vmatprep.subr.bf16.mxu0 0
  %3986 = vmatpush1.bf16.msra.mxu0 0
  %3987 = vmatprep.subr.bf16.mxu0 0
  %3988 = vmatpush1.bf16.msra.mxu0 0
  %3989 = vmatprep.subr.bf16.mxu0 0
  %3990 = vmatpush1.bf16.msra.mxu0 0
  %3991 = vmatprep.subr.bf16.mxu0 0
  %3992 = vmatpush1.bf16.msra.mxu0 0
  %3993 = vmatprep.subr.bf16.mxu0 0
  %3994 = vmatpush1.bf16.msra.mxu0 0
  %3995 = vmatprep.subr.bf16.mxu0 %v3896
  %3996 = vmatpush1.bf16.msra.mxu0 %v3895
  %3997 = vmatprep.subr.bf16.mxu0 %v3894
  %3998 = vmatpush1.bf16.msra.mxu0 %v3893
  %3999 = vmatprep.subr.bf16.mxu0 0
  %4000 = vmatpush2.bf16.msra.mxu0 0
  %4001 = vmatprep.subr.bf16.mxu0 0
  %4002 = vmatpush2.bf16.msra.mxu0 0
  %4003 = vmatprep.subr.bf16.mxu0 0
  %4004 = vmatpush2.bf16.msra.mxu0 0
  %4005 = vmatprep.subr.bf16.mxu0 0
  %4006 = vmatpush2.bf16.msra.mxu0 0
  %4007 = vmatprep.subr.bf16.mxu0 0
  %4008 = vmatpush2.bf16.msra.mxu0 0
  %4009 = vmatprep.subr.bf16.mxu0 0
  %4010 = vmatpush2.bf16.msra.mxu0 0
  %4011 = vmatprep.subr.bf16.mxu0 0
  %4012 = vmatpush2.bf16.msra.mxu0 0
  %4013 = vmatprep.subr.bf16.mxu0 0
  %4014 = vmatpush2.bf16.msra.mxu0 0
  %4015 = vmatprep.mubr.bf16.mxu0 0
  %4016 = vmatmul.mubr.bf16.gmra.mxu0 %v2458
  %v4017 = vpop.f32.mrf.mxu0
  %v4018 = vadd.f32 %v3975, %v4017
  %v4019 = vpop.f32.mrf.mxu0
  %v4020 = vadd.f32 %v3977, %v4019
  %v4021 = vpop.f32.mrf.mxu0
  %v4022 = vadd.f32 %v3979, %v4021
  %v4023 = vpop.f32.mrf.mxu0
  %v4024 = vadd.f32 %v3981, %v4023
  %4025 = vdwg.mxu0
  %v4026 = vpack.c.bf16 %v2585, %v2581
  %v4027 = vpack.c.bf16 %v2587, %v2583
  %v4028 = vpack.c.bf16 %v3064, %v3060
  %v4029 = vpack.c.bf16 %v3066, %v3062
  %v4030 = vpack.c.bf16 %v3543, %v3539
  %v4031 = vpack.c.bf16 %v3545, %v3541
  %v4032 = vpack.c.bf16 %v4022, %v4018
  %v4033 = vpack.c.bf16 %v4024, %v4020
  %v4034 = vld [vmem:[%s9] sm:$0xf]
  %v4035 = vld [vmem:[%s9 + $0x4] sm:$0xf]
  %v4036 = vld [vmem:[%s9 + $0x8] sm:$0xf]
  %v4037 = vld [vmem:[%s9 + $0xc] sm:$0xf]
  %s4038 = scalar_lea.vmem %s9, 16
  %v4039 = vld [vmem:[%s4038] sm:$0xf]
  %v4040 = vld [vmem:[%s4038 + $0x4] sm:$0xf]
  %v4041 = vld [vmem:[%s4038 + $0x8] sm:$0xf]
  %v4042 = vld [vmem:[%s4038 + $0xc] sm:$0xf]
  %v4047 = vunpack.c.l.b16 %v4039
  %v4048 = vunpack.c.l.b16 %v4040
  %v4049 = vunpack.c.l.b16 %v4041
  %v4050 = vunpack.c.l.b16 %v4042
  %v4051 = vpack.c.b16 %v4048, %v4047
  %v4052 = vpack.c.b16 %v4050, %v4049
  %4061 = vrot.lane.b32.xlu0 %v4026, 126
  %v4062 = vpop.permute.xlu0 %4061
  %4063 = vrot.lane.b32.xlu0 %v4027, 126
  %v4064 = vpop.permute.xlu0 %4063
  %4065 = vrot.lane.b32.xlu0 %v4028, 126
  %v4066 = vpop.permute.xlu0 %4065
  %4067 = vrot.lane.b32.xlu0 %v4029, 126
  %v4068 = vpop.permute.xlu0 %4067
  %4069 = vrot.lane.b32.xlu0 %v4030, 126
  %v4070 = vpop.permute.xlu0 %4069
  %4071 = vrot.lane.b32.xlu0 %v4031, 126
  %v4072 = vpop.permute.xlu0 %4071
  %4073 = vrot.lane.b32.xlu0 %v4032, 126
  %v4074 = vpop.permute.xlu0 %4073
  %4075 = vrot.lane.b32.xlu0 %v4033, 126
  %v4076 = vpop.permute.xlu0 %4075
  %v4077 = vsel %vm1196, %v4062, %v4064
  %v4078 = vsel %vm1196, %v4066, %v4068
  %v4079 = vsel %vm1196, %v4070, %v4072
  %v4080 = vsel %vm1196, %v4074, %v4076
  %vm4089 = vcmask 523264
  %v4091 = vsel %vm4089, %v4051, 0
  %v4094 = vsel %vm4089, %v4052, 0
  %4096 = vmatprep.subr.bf16.mxu0 0
  %4097 = vmatpush1.bf16.msra.mxu0 0
  %4098 = vmatprep.subr.bf16.mxu0 0
  %4099 = vmatpush1.bf16.msra.mxu0 0
  %4100 = vmatprep.subr.bf16.mxu0 0
  %4101 = vmatpush1.bf16.msra.mxu0 0
  %4102 = vmatprep.subr.bf16.mxu0 0
  %4103 = vmatpush1.bf16.msra.mxu0 0
  %4104 = vmatprep.subr.bf16.mxu0 %v4076
  %4105 = vmatpush1.bf16.msra.mxu0 %v4080
  %4106 = vmatprep.subr.bf16.mxu0 %v4072
  %4107 = vmatpush1.bf16.msra.mxu0 %v4079
  %4108 = vmatprep.subr.bf16.mxu0 %v4068
  %4109 = vmatpush1.bf16.msra.mxu0 %v4078
  %4110 = vmatprep.subr.bf16.mxu0 %v4064
  %4111 = vmatpush1.bf16.msra.mxu0 %v4077
  %4112 = vmatprep.subr.bf16.mxu0 0
  %4113 = vmatpush2.bf16.msra.mxu0 0
  %4114 = vmatprep.subr.bf16.mxu0 0
  %4115 = vmatpush2.bf16.msra.mxu0 0
  %4116 = vmatprep.subr.bf16.mxu0 0
  %4117 = vmatpush2.bf16.msra.mxu0 0
  %4118 = vmatprep.subr.bf16.mxu0 0
  %4119 = vmatpush2.bf16.msra.mxu0 0
  %4120 = vmatprep.subr.bf16.mxu0 0
  %4121 = vmatpush2.bf16.msra.mxu0 0
  %4122 = vmatprep.subr.bf16.mxu0 0
  %4123 = vmatpush2.bf16.msra.mxu0 0
  %4124 = vmatprep.subr.bf16.mxu0 0
  %4125 = vmatpush2.bf16.msra.mxu0 0
  %4126 = vmatprep.subr.bf16.mxu0 0
  %4127 = vmatpush2.bf16.msra.mxu0 0
  %4128 = vmatprep.mubr.bf16.mxu0 0
  %4129 = vmatmul.mubr.bf16.gmra.mxu0 %v4091
  %v4130 = vpop.f32.mrf.mxu0
  %v4131 = vadd.f32 0.0, %v4130
  %v4132 = vpop.f32.mrf.mxu0
  %v4133 = vadd.f32 0.0, %v4132
  %v4134 = vpop.f32.mrf.mxu0
  %v4135 = vadd.f32 0.0, %v4134
  %v4136 = vpop.f32.mrf.mxu0
  %v4137 = vadd.f32 0.0, %v4136
  %4138 = vmatprep.mubr.bf16.mxu0 0
  %4139 = vmatmul.mubr.bf16.gmra.mxu0 %v4094
  %v4140 = vpop.f32.mrf.mxu0
  %v4141 = vadd.f32 0.0, %v4140
  %v4142 = vpop.f32.mrf.mxu0
  %v4143 = vadd.f32 0.0, %v4142
  %v4144 = vpop.f32.mrf.mxu0
  %v4145 = vadd.f32 0.0, %v4144
  %v4146 = vpop.f32.mrf.mxu0
  %v4147 = vadd.f32 0.0, %v4146
  %4148 = vdwg.mxu0
  %v4153 = vunpack.c.l.b16 %v4034
  %v4154 = vunpack.c.l.b16 %v4035
  %v4155 = vunpack.c.l.b16 %v4036
  %v4156 = vunpack.c.l.b16 %v4037
  %v4157 = vpack.c.b16 %v4154, %v4153
  %v4158 = vpack.c.b16 %v4156, %v4155
  %v4160 = vsel %vm4089, %v4157, 0
  %v4163 = vsel %vm4089, %v4158, 0
  %4165 = vmatprep.subr.bf16.mxu0 0
  %4166 = vmatpush1.bf16.msra.mxu0 0
  %4167 = vmatprep.subr.bf16.mxu0 0
  %4168 = vmatpush1.bf16.msra.mxu0 0
  %4169 = vmatprep.subr.bf16.mxu0 0
  %4170 = vmatpush1.bf16.msra.mxu0 0
  %4171 = vmatprep.subr.bf16.mxu0 0
  %4172 = vmatpush1.bf16.msra.mxu0 0
  %4173 = vmatprep.subr.bf16.mxu0 %v4033
  %4174 = vmatpush1.bf16.msra.mxu0 %v4032
  %4175 = vmatprep.subr.bf16.mxu0 %v4031
  %4176 = vmatpush1.bf16.msra.mxu0 %v4030
  %4177 = vmatprep.subr.bf16.mxu0 %v4029
  %4178 = vmatpush1.bf16.msra.mxu0 %v4028
  %4179 = vmatprep.subr.bf16.mxu0 %v4027
  %4180 = vmatpush1.bf16.msra.mxu0 %v4026
  %4181 = vmatprep.subr.bf16.mxu0 0
  %4182 = vmatpush2.bf16.msra.mxu0 0
  %4183 = vmatprep.subr.bf16.mxu0 0
  %4184 = vmatpush2.bf16.msra.mxu0 0
  %4185 = vmatprep.subr.bf16.mxu0 0
  %4186 = vmatpush2.bf16.msra.mxu0 0
  %4187 = vmatprep.subr.bf16.mxu0 0
  %4188 = vmatpush2.bf16.msra.mxu0 0
  %4189 = vmatprep.subr.bf16.mxu0 0
  %4190 = vmatpush2.bf16.msra.mxu0 0
  %4191 = vmatprep.subr.bf16.mxu0 0
  %4192 = vmatpush2.bf16.msra.mxu0 0
  %4193 = vmatprep.subr.bf16.mxu0 0
  %4194 = vmatpush2.bf16.msra.mxu0 0
  %4195 = vmatprep.subr.bf16.mxu0 0
  %4196 = vmatpush2.bf16.msra.mxu0 0
  %4197 = vmatprep.mubr.bf16.mxu0 0
  %4198 = vmatmul.mubr.bf16.gmra.mxu0 %v4160
  %v4199 = vpop.f32.mrf.mxu0
  %v4200 = vadd.f32 %v4131, %v4199
  %v4201 = vpop.f32.mrf.mxu0
  %v4202 = vadd.f32 %v4133, %v4201
  %v4203 = vpop.f32.mrf.mxu0
  %v4204 = vadd.f32 %v4135, %v4203
  %v4205 = vpop.f32.mrf.mxu0
  %v4206 = vadd.f32 %v4137, %v4205
  %4207 = vmatprep.mubr.bf16.mxu0 0
  %4208 = vmatmul.mubr.bf16.gmra.mxu0 %v4163
  %v4209 = vpop.f32.mrf.mxu0
  %v4210 = vadd.f32 %v4141, %v4209
  %v4211 = vpop.f32.mrf.mxu0
  %v4212 = vadd.f32 %v4143, %v4211
  %v4213 = vpop.f32.mrf.mxu0
  %v4214 = vadd.f32 %v4145, %v4213
  %v4215 = vpop.f32.mrf.mxu0
  %v4216 = vadd.f32 %v4147, %v4215
  %4217 = vdwg.mxu0
  %s4218 = scalar_lea.vmem %s9, 32
  %v4219 = vld [vmem:[%s4218] sm:$0xf]
  %v4220 = vld [vmem:[%s4218 + $0x4] sm:$0xf]
  %v4221 = vld [vmem:[%s4218 + $0x8] sm:$0xf]
  %v4222 = vld [vmem:[%s4218 + $0xc] sm:$0xf]
  %v4227 = vunpack.c.l.b16 %v4219
  %v4228 = vunpack.c.l.b16 %v4220
  %v4229 = vunpack.c.l.b16 %v4221
  %v4230 = vunpack.c.l.b16 %v4222
  %v4231 = vpack.c.b16 %v4228, %v4227
  %v4232 = vpack.c.b16 %v4230, %v4229
  %4233 = vrot.lane.b32.xlu0 %v4026, 110
  %v4234 = vpop.permute.xlu0 %4233
  %4235 = vrot.lane.b32.xlu0 %v4027, 110
  %v4236 = vpop.permute.xlu0 %4235
  %4237 = vrot.lane.b32.xlu0 %v4028, 110
  %v4238 = vpop.permute.xlu0 %4237
  %4239 = vrot.lane.b32.xlu0 %v4029, 110
  %v4240 = vpop.permute.xlu0 %4239
  %4241 = vrot.lane.b32.xlu0 %v4030, 110
  %v4242 = vpop.permute.xlu0 %4241
  %4243 = vrot.lane.b32.xlu0 %v4031, 110
  %v4244 = vpop.permute.xlu0 %4243
  %4245 = vrot.lane.b32.xlu0 %v4032, 110
  %v4246 = vpop.permute.xlu0 %4245
  %4247 = vrot.lane.b32.xlu0 %v4033, 110
  %v4248 = vpop.permute.xlu0 %4247
  %vm4249 = vcmask 900096
  %v4250 = vsel %vm4249, %v4234, %v4236
  %v4251 = vsel %vm4249, %v4238, %v4240
  %v4252 = vsel %vm4249, %v4242, %v4244
  %v4253 = vsel %vm4249, %v4246, %v4248
  %v4263 = vsel %vm4089, %v4231, 0
  %v4266 = vsel %vm4089, %v4232, 0
  %4268 = vmatprep.subr.bf16.mxu0 0
  %4269 = vmatpush1.bf16.msra.mxu0 0
  %4270 = vmatprep.subr.bf16.mxu0 0
  %4271 = vmatpush1.bf16.msra.mxu0 0
  %4272 = vmatprep.subr.bf16.mxu0 0
  %4273 = vmatpush1.bf16.msra.mxu0 0
  %4274 = vmatprep.subr.bf16.mxu0 0
  %4275 = vmatpush1.bf16.msra.mxu0 0
  %4276 = vmatprep.subr.bf16.mxu0 %v4248
  %4277 = vmatpush1.bf16.msra.mxu0 %v4253
  %4278 = vmatprep.subr.bf16.mxu0 %v4244
  %4279 = vmatpush1.bf16.msra.mxu0 %v4252
  %4280 = vmatprep.subr.bf16.mxu0 %v4240
  %4281 = vmatpush1.bf16.msra.mxu0 %v4251
  %4282 = vmatprep.subr.bf16.mxu0 %v4236
  %4283 = vmatpush1.bf16.msra.mxu0 %v4250
  %4284 = vmatprep.subr.bf16.mxu0 0
  %4285 = vmatpush2.bf16.msra.mxu0 0
  %4286 = vmatprep.subr.bf16.mxu0 0
  %4287 = vmatpush2.bf16.msra.mxu0 0
  %4288 = vmatprep.subr.bf16.mxu0 0
  %4289 = vmatpush2.bf16.msra.mxu0 0
  %4290 = vmatprep.subr.bf16.mxu0 0
  %4291 = vmatpush2.bf16.msra.mxu0 0
  %4292 = vmatprep.subr.bf16.mxu0 0
  %4293 = vmatpush2.bf16.msra.mxu0 0
  %4294 = vmatprep.subr.bf16.mxu0 0
  %4295 = vmatpush2.bf16.msra.mxu0 0
  %4296 = vmatprep.subr.bf16.mxu0 0
  %4297 = vmatpush2.bf16.msra.mxu0 0
  %4298 = vmatprep.subr.bf16.mxu0 0
  %4299 = vmatpush2.bf16.msra.mxu0 0
  %4300 = vmatprep.mubr.bf16.mxu0 0
  %4301 = vmatmul.mubr.bf16.gmra.mxu0 %v4263
  %v4302 = vpop.f32.mrf.mxu0
  %v4303 = vadd.f32 0.0, %v4302
  %v4304 = vpop.f32.mrf.mxu0
  %v4305 = vadd.f32 0.0, %v4304
  %v4306 = vpop.f32.mrf.mxu0
  %v4307 = vadd.f32 0.0, %v4306
  %v4308 = vpop.f32.mrf.mxu0
  %v4309 = vadd.f32 0.0, %v4308
  %4310 = vmatprep.mubr.bf16.mxu0 0
  %4311 = vmatmul.mubr.bf16.gmra.mxu0 %v4266
  %v4312 = vpop.f32.mrf.mxu0
  %v4313 = vadd.f32 0.0, %v4312
  %v4314 = vpop.f32.mrf.mxu0
  %v4315 = vadd.f32 0.0, %v4314
  %v4316 = vpop.f32.mrf.mxu0
  %v4317 = vadd.f32 0.0, %v4316
  %v4318 = vpop.f32.mrf.mxu0
  %v4319 = vadd.f32 0.0, %v4318
  %4320 = vdwg.mxu0
  %v4321 = vadd.f32 %v4200, %v4303
  %v4322 = vadd.f32 %v4202, %v4305
  %v4323 = vadd.f32 %v4204, %v4307
  %v4324 = vadd.f32 %v4206, %v4309
  %v4325 = vadd.f32 %v4210, %v4313
  %v4326 = vadd.f32 %v4212, %v4315
  %v4327 = vadd.f32 %v4214, %v4317
  %v4328 = vadd.f32 %v4216, %v4319
  %s4329 = scalar_lea.vmem %s9, 48
  %v4330 = vld [vmem:[%s4329] sm:$0xf]
  %v4331 = vld [vmem:[%s4329 + $0x4] sm:$0xf]
  %v4332 = vld [vmem:[%s4329 + $0x8] sm:$0xf]
  %v4333 = vld [vmem:[%s4329 + $0xc] sm:$0xf]
  %v4338 = vunpack.c.l.b16 %v4330
  %v4339 = vunpack.c.l.b16 %v4331
  %v4340 = vunpack.c.l.b16 %v4332
  %v4341 = vunpack.c.l.b16 %v4333
  %v4342 = vpack.c.b16 %v4339, %v4338
  %v4343 = vpack.c.b16 %v4341, %v4340
  %4344 = vrot.lane.b32.xlu0 %v4026, 108
  %v4345 = vpop.permute.xlu0 %4344
  %4346 = vrot.lane.b32.xlu0 %v4027, 108
  %v4347 = vpop.permute.xlu0 %4346
  %4348 = vrot.lane.b32.xlu0 %v4028, 108
  %v4349 = vpop.permute.xlu0 %4348
  %4350 = vrot.lane.b32.xlu0 %v4029, 108
  %v4351 = vpop.permute.xlu0 %4350
  %4352 = vrot.lane.b32.xlu0 %v4030, 108
  %v4353 = vpop.permute.xlu0 %4352
  %4354 = vrot.lane.b32.xlu0 %v4031, 108
  %v4355 = vpop.permute.xlu0 %4354
  %4356 = vrot.lane.b32.xlu0 %v4032, 108
  %v4357 = vpop.permute.xlu0 %4356
  %4358 = vrot.lane.b32.xlu0 %v4033, 108
  %v4359 = vpop.permute.xlu0 %4358
  %vm4360 = vcmask 883712
  %v4361 = vsel %vm4360, %v4345, %v4347
  %v4362 = vsel %vm4360, %v4349, %v4351
  %v4363 = vsel %vm4360, %v4353, %v4355
  %v4364 = vsel %vm4360, %v4357, %v4359
  %v4374 = vsel %vm4089, %v4342, 0
  %v4377 = vsel %vm4089, %v4343, 0
  %4379 = vmatprep.subr.bf16.mxu0 0
  %4380 = vmatpush1.bf16.msra.mxu0 0
  %4381 = vmatprep.subr.bf16.mxu0 0
  %4382 = vmatpush1.bf16.msra.mxu0 0
  %4383 = vmatprep.subr.bf16.mxu0 0
  %4384 = vmatpush1.bf16.msra.mxu0 0
  %4385 = vmatprep.subr.bf16.mxu0 0
  %4386 = vmatpush1.bf16.msra.mxu0 0
  %4387 = vmatprep.subr.bf16.mxu0 %v4359
  %4388 = vmatpush1.bf16.msra.mxu0 %v4364
  %4389 = vmatprep.subr.bf16.mxu0 %v4355
  %4390 = vmatpush1.bf16.msra.mxu0 %v4363
  %4391 = vmatprep.subr.bf16.mxu0 %v4351
  %4392 = vmatpush1.bf16.msra.mxu0 %v4362
  %4393 = vmatprep.subr.bf16.mxu0 %v4347
  %4394 = vmatpush1.bf16.msra.mxu0 %v4361
  %4395 = vmatprep.subr.bf16.mxu0 0
  %4396 = vmatpush2.bf16.msra.mxu0 0
  %4397 = vmatprep.subr.bf16.mxu0 0
  %4398 = vmatpush2.bf16.msra.mxu0 0
  %4399 = vmatprep.subr.bf16.mxu0 0
  %4400 = vmatpush2.bf16.msra.mxu0 0
  %4401 = vmatprep.subr.bf16.mxu0 0
  %4402 = vmatpush2.bf16.msra.mxu0 0
  %4403 = vmatprep.subr.bf16.mxu0 0
  %4404 = vmatpush2.bf16.msra.mxu0 0
  %4405 = vmatprep.subr.bf16.mxu0 0
  %4406 = vmatpush2.bf16.msra.mxu0 0
  %4407 = vmatprep.subr.bf16.mxu0 0
  %4408 = vmatpush2.bf16.msra.mxu0 0
  %4409 = vmatprep.subr.bf16.mxu0 0
  %4410 = vmatpush2.bf16.msra.mxu0 0
  %4411 = vmatprep.mubr.bf16.mxu0 0
  %4412 = vmatmul.mubr.bf16.gmra.mxu0 %v4374
  %v4413 = vpop.f32.mrf.mxu0
  %v4414 = vadd.f32 0.0, %v4413
  %v4415 = vpop.f32.mrf.mxu0
  %v4416 = vadd.f32 0.0, %v4415
  %v4417 = vpop.f32.mrf.mxu0
  %v4418 = vadd.f32 0.0, %v4417
  %v4419 = vpop.f32.mrf.mxu0
  %v4420 = vadd.f32 0.0, %v4419
  %4421 = vmatprep.mubr.bf16.mxu0 0
  %4422 = vmatmul.mubr.bf16.gmra.mxu0 %v4377
  %v4423 = vpop.f32.mrf.mxu0
  %v4424 = vadd.f32 0.0, %v4423
  %v4425 = vpop.f32.mrf.mxu0
  %v4426 = vadd.f32 0.0, %v4425
  %v4427 = vpop.f32.mrf.mxu0
  %v4428 = vadd.f32 0.0, %v4427
  %v4429 = vpop.f32.mrf.mxu0
  %v4430 = vadd.f32 0.0, %v4429
  %4431 = vdwg.mxu0
  %v4432 = vadd.f32 %v4321, %v4414
  %v4433 = vadd.f32 %v4322, %v4416
  %v4434 = vadd.f32 %v4323, %v4418
  %v4435 = vadd.f32 %v4324, %v4420
  %v4436 = vadd.f32 %v4325, %v4424
  %v4437 = vadd.f32 %v4326, %v4426
  %v4438 = vadd.f32 %v4327, %v4428
  %v4439 = vadd.f32 %v4328, %v4430
  %v4440 = vld [vmem:[%s12] sm:$0x3]
  %v4442 = vlaneseq
  %v4443 = vshrl.u32 %v4442, 7
  %v4444 = vsub.s32 0, %v4443
  %v4445 = vrot.slane %v4440, %v4444
  %v4446 = vlaneseq
  %v4447 = vshrl.u32 %v4446, 7
  %v4448 = vsub.s32 1, %v4447
  %v4449 = vrot.slane %v4440, %v4448
  %v4452 = vmul.f32 %v4432, %v4445
  %v4453 = vmul.f32 %v4433, %v4449
  %v4454 = vmul.f32 %v4434, %v4445
  %v4455 = vmul.f32 %v4435, %v4449
  %v4456 = vmul.f32 %v4436, %v4445
  %v4457 = vmul.f32 %v4437, %v4449
  %v4458 = vmul.f32 %v4438, %v4445
  %v4459 = vmul.f32 %v4439, %v4449
  %vm4460 = vcmask 130048
  %v4461 = vsel %vm4460, %v4453, 0.0
  %v4462 = vadd.f32 %v4452, %v4461
  %4463 = vadd.xlane.f32.xlu0 %v4462
  %v4464 = vpop.xlane.xlu0 %4463
  %v4465 = vsel %vm4460, %v4455, 0.0
  %v4466 = vadd.f32 %v4454, %v4465
  %4467 = vadd.xlane.f32.xlu0 %v4466
  %v4468 = vpop.xlane.xlu0 %4467
  %v4469 = vsel %vm4460, %v4457, 0.0
  %v4470 = vadd.f32 %v4456, %v4469
  %4471 = vadd.xlane.f32.xlu0 %v4470
  %v4472 = vpop.xlane.xlu0 %4471
  %v4473 = vsel %vm4460, %v4459, 0.0
  %v4474 = vadd.f32 %v4458, %v4473
  %4475 = vadd.xlane.f32.xlu0 %v4474
  %v4476 = vpop.xlane.xlu0 %4475
  %v4477 = vmul.f32 %v4464, 0.0078125
  %v4478 = vmul.f32 %v4468, 0.0078125
  %v4479 = vmul.f32 %v4472, 0.0078125
  %v4480 = vmul.f32 %v4476, 0.0078125
  %v4481 = vsub.f32 %v4432, %v4477
  %v4482 = vsub.f32 %v4433, %v4477
  %v4483 = vsub.f32 %v4434, %v4478
  %v4484 = vsub.f32 %v4435, %v4478
  %v4485 = vsub.f32 %v4436, %v4479
  %v4486 = vsub.f32 %v4437, %v4479
  %v4487 = vsub.f32 %v4438, %v4480
  %v4488 = vsub.f32 %v4439, %v4480
  %v4489 = vmul.f32 %v4481, %v4445
  %v4490 = vmul.f32 %v4482, %v4449
  %v4491 = vmul.f32 %v4483, %v4445
  %v4492 = vmul.f32 %v4484, %v4449
  %v4493 = vmul.f32 %v4485, %v4445
  %v4494 = vmul.f32 %v4486, %v4449
  %v4495 = vmul.f32 %v4487, %v4445
  %v4496 = vmul.f32 %v4488, %v4449
  %v4497 = vmul.f32 %v4489, %v4489
  %v4498 = vmul.f32 %v4490, %v4490
  %v4499 = vmul.f32 %v4491, %v4491
  %v4500 = vmul.f32 %v4492, %v4492
  %v4501 = vmul.f32 %v4493, %v4493
  %v4502 = vmul.f32 %v4494, %v4494
  %v4503 = vmul.f32 %v4495, %v4495
  %v4504 = vmul.f32 %v4496, %v4496
  %v4505 = vsel %vm4460, %v4498, 0.0
  %v4506 = vadd.f32 %v4497, %v4505
  %4507 = vadd.xlane.f32.xlu0 %v4506
  %v4508 = vpop.xlane.xlu0 %4507
  %v4509 = vsel %vm4460, %v4500, 0.0
  %v4510 = vadd.f32 %v4499, %v4509
  %4511 = vadd.xlane.f32.xlu0 %v4510
  %v4512 = vpop.xlane.xlu0 %4511
  %v4513 = vsel %vm4460, %v4502, 0.0
  %v4514 = vadd.f32 %v4501, %v4513
  %4515 = vadd.xlane.f32.xlu0 %v4514
  %v4516 = vpop.xlane.xlu0 %4515
  %v4517 = vsel %vm4460, %v4504, 0.0
  %v4518 = vadd.f32 %v4503, %v4517
  %4519 = vadd.xlane.f32.xlu0 %v4518
  %v4520 = vpop.xlane.xlu0 %4519
  %v4521 = vmul.f32 %v4508, 0.0078125
  %v4522 = vmul.f32 %v4512, 0.0078125
  %v4523 = vmul.f32 %v4516, 0.0078125
  %v4524 = vmul.f32 %v4520, 0.0078125
  %v4525 = vld [vmem:[%s10] sm:$0xff]
  %v4526 = vld [vmem:[%s10 + $0x8] sm:$0xff]
  %v4527 = vld [vmem:[%s10 + $0x10] sm:$0xff]
  %v4528 = vld [vmem:[%s10 + $0x18] sm:$0xff]
  %v4529 = vadd.f32 %v4521, 1e-05
  %v4530 = vadd.f32 %v4522, 1e-05
  %v4531 = vadd.f32 %v4523, 1e-05
  %v4532 = vadd.f32 %v4524, 1e-05
  %v4533 = vrsqrt.pop %v4529
  %v4534 = vrsqrt.pop %v4530
  %v4535 = vrsqrt.pop %v4531
  %v4536 = vrsqrt.pop %v4532
  %v4537 = vmul.f32 %v4525, %v4533
  %v4538 = vmul.f32 %v4526, %v4534
  %v4539 = vmul.f32 %v4527, %v4535
  %v4540 = vmul.f32 %v4528, %v4536
  %4542 = vset.pattern.permute.xlu0 0
  %4543 = vperm.xlu0 %4542, %v4537
  %v4544 = vpop.permute.xlu0 %4543
  %4547 = vset.pattern.permute.xlu0 0
  %4548 = vperm.xlu0 %4547, %v4538
  %v4549 = vpop.permute.xlu0 %4548
  %4552 = vset.pattern.permute.xlu0 0
  %4553 = vperm.xlu0 %4552, %v4539
  %v4554 = vpop.permute.xlu0 %4553
  %4557 = vset.pattern.permute.xlu0 0
  %4558 = vperm.xlu0 %4557, %v4540
  %v4559 = vpop.permute.xlu0 %4558
  %v4561 = vmul.f32 %v4481, %v4544
  %v4562 = vmul.f32 %v4482, %v4544
  %v4563 = vmul.f32 %v4483, %v4549
  %v4564 = vmul.f32 %v4484, %v4549
  %v4565 = vmul.f32 %v4485, %v4554
  %v4566 = vmul.f32 %v4486, %v4554
  %v4567 = vmul.f32 %v4487, %v4559
  %v4568 = vmul.f32 %v4488, %v4559
  %v4569 = vld [vmem:[%s11] sm:$0xff]
  %v4570 = vld [vmem:[%s11 + $0x8] sm:$0xff]
  %v4571 = vld [vmem:[%s11 + $0x10] sm:$0xff]
  %v4572 = vld [vmem:[%s11 + $0x18] sm:$0xff]
  %4574 = vset.pattern.permute.xlu0 0
  %4575 = vperm.xlu0 %4574, %v4569
  %v4576 = vpop.permute.xlu0 %4575
  %4579 = vset.pattern.permute.xlu0 0
  %4580 = vperm.xlu0 %4579, %v4570
  %v4581 = vpop.permute.xlu0 %4580
  %4584 = vset.pattern.permute.xlu0 0
  %4585 = vperm.xlu0 %4584, %v4571
  %v4586 = vpop.permute.xlu0 %4585
  %4589 = vset.pattern.permute.xlu0 0
  %4590 = vperm.xlu0 %4589, %v4572
  %v4591 = vpop.permute.xlu0 %4590
  %v4593 = vadd.f32 %v4561, %v4576
  %v4594 = vadd.f32 %v4562, %v4576
  %v4595 = vadd.f32 %v4563, %v4581
  %v4596 = vadd.f32 %v4564, %v4581
  %v4597 = vadd.f32 %v4565, %v4586
  %v4598 = vadd.f32 %v4566, %v4586
  %v4599 = vadd.f32 %v4567, %v4591
  %v4600 = vadd.f32 %v4568, %v4591
  %vm4601 = vcmp.gt.f32.partialorder %v4593, 0.0
  %vm4602 = vcmp.gt.f32.partialorder %v4594, 0.0
  %vm4603 = vcmp.gt.f32.partialorder %v4595, 0.0
  %vm4604 = vcmp.gt.f32.partialorder %v4596, 0.0
  %vm4605 = vcmp.gt.f32.partialorder %v4597, 0.0
  %vm4606 = vcmp.gt.f32.partialorder %v4598, 0.0
  %vm4607 = vcmp.gt.f32.partialorder %v4599, 0.0
  %vm4608 = vcmp.gt.f32.partialorder %v4600, 0.0
  %v4609 = vmul.f32 %v4593, 0.2
  %v4610 = vmul.f32 %v4594, 0.2
  %v4611 = vmul.f32 %v4595, 0.2
  %v4612 = vmul.f32 %v4596, 0.2
  %v4613 = vmul.f32 %v4597, 0.2
  %v4614 = vmul.f32 %v4598, 0.2
  %v4615 = vmul.f32 %v4599, 0.2
  %v4616 = vmul.f32 %v4600, 0.2
  %v4617 = vsel %vm4601, %v4593, %v4609
  %v4618 = vsel %vm4602, %v4594, %v4610
  %v4619 = vsel %vm4603, %v4595, %v4611
  %v4620 = vsel %vm4604, %v4596, %v4612
  %v4621 = vsel %vm4605, %v4597, %v4613
  %v4622 = vsel %vm4606, %v4598, %v4614
  %v4623 = vsel %vm4607, %v4599, %v4615
  %v4624 = vsel %vm4608, %v4600, %v4616
  %v4625 = vpack.c.bf16 %v4619, %v4617
  %v4626 = vpack.c.bf16 %v4620, %v4618
  %v4627 = vpack.c.bf16 %v4623, %v4621
  %v4628 = vpack.c.bf16 %v4624, %v4622
  %v4629 = vld [vmem:[%s13] sm:$0x1]
  %v4630 = vlaneseq
  %v4631 = vshrl.u32 %v4630, 7
  %v4632 = vsub.s32 0, %v4631
  %v4633 = vrot.slane %v4629, %v4632
  %vm4634 = vcmp.eq.s32.totalorder %v2040, %v4633
  %vm4635 = vcmp.eq.s32.totalorder %v2041, %v4633
  %vm4636 = vcmp.eq.s32.totalorder %v2042, %v4633
  %vm4637 = vcmp.eq.s32.totalorder %v2043, %v4633
  %vm4638 = vcmp.eq.s32.totalorder %v2044, %v4633
  %vm4639 = vcmp.eq.s32.totalorder %v2045, %v4633
  %vm4640 = vcmp.eq.s32.totalorder %v2046, %v4633
  %vm4641 = vcmp.eq.s32.totalorder %v2047, %v4633
  %vm4642 = vcmp.eq.s32.totalorder %v2048, %v4633
  %vm4643 = vcmp.eq.s32.totalorder %v2049, %v4633
  %vm4644 = vcmp.eq.s32.totalorder %v2050, %v4633
  %vm4645 = vcmp.eq.s32.totalorder %v2051, %v4633
  %vm4646 = vcmp.eq.s32.totalorder %v2052, %v4633
  %vm4647 = vcmp.eq.s32.totalorder %v2053, %v4633
  %vm4648 = vcmp.eq.s32.totalorder %v2054, %v4633
  %vm4649 = vcmp.eq.s32.totalorder %v2055, %v4633
  %vm4650 = vcmp.eq.s32.totalorder %v2056, %v4633
  %vm4651 = vcmp.eq.s32.totalorder %v2057, %v4633
  %v4652 = vsel %vm4634, 1.0, 0.0
  %v4653 = vsel %vm4635, 1.0, 0.0
  %v4654 = vsel %vm4636, 1.0, 0.0
  %v4655 = vsel %vm4637, 1.0, 0.0
  %v4656 = vsel %vm4638, 1.0, 0.0
  %v4657 = vsel %vm4639, 1.0, 0.0
  %v4658 = vsel %vm4640, 1.0, 0.0
  %v4659 = vsel %vm4641, 1.0, 0.0
  %v4660 = vsel %vm4642, 1.0, 0.0
  %v4661 = vsel %vm4643, 1.0, 0.0
  %v4662 = vsel %vm4644, 1.0, 0.0
  %v4663 = vsel %vm4645, 1.0, 0.0
  %v4664 = vsel %vm4646, 1.0, 0.0
  %v4665 = vsel %vm4647, 1.0, 0.0
  %v4666 = vsel %vm4648, 1.0, 0.0
  %v4667 = vsel %vm4649, 1.0, 0.0
  %v4668 = vsel %vm4650, 1.0, 0.0
  %v4669 = vsel %vm4651, 1.0, 0.0
  %v4670 = vpack.c.bf16 %v4653, %v4652
  %v4671 = vpack.c.bf16 %v4655, %v4654
  %v4672 = vpack.c.bf16 %v4657, %v4656
  %v4673 = vpack.c.bf16 %v4659, %v4658
  %v4674 = vpack.c.bf16 %v4661, %v4660
  %v4675 = vpack.c.bf16 %v4663, %v4662
  %v4676 = vpack.c.bf16 %v4665, %v4664
  %v4677 = vpack.c.bf16 %v4667, %v4666
  %v4678 = vpack.c.bf16 %v4669, %v4668
  %v4680 = vsel %vm4460, %v4626, 0
  %v4683 = vsel %vm4460, %v4628, 0
  %4685 = vmatprep.subr.bf16.mxu0 0
  %4686 = vmatpush1.bf16.msra.mxu0 %v4677
  %4687 = vmatprep.subr.bf16.mxu0 0
  %4688 = vmatpush1.bf16.msra.mxu0 %v4676
  %4689 = vmatprep.subr.bf16.mxu0 0
  %4690 = vmatpush1.bf16.msra.mxu0 %v4675
  %4691 = vmatprep.subr.bf16.mxu0 0
  %4692 = vmatpush1.bf16.msra.mxu0 %v4674
  %4693 = vmatprep.subr.bf16.mxu0 0
  %4694 = vmatpush1.bf16.msra.mxu0 %v4673
  %4695 = vmatprep.subr.bf16.mxu0 0
  %4696 = vmatpush1.bf16.msra.mxu0 %v4672
  %4697 = vmatprep.subr.bf16.mxu0 0
  %4698 = vmatpush1.bf16.msra.mxu0 %v4671
  %4699 = vmatprep.subr.bf16.mxu0 0
  %4700 = vmatpush1.bf16.msra.mxu0 %v4670
  %4701 = vmatprep.subr.bf16.mxu0 0
  %4702 = vmatpush2.bf16.msra.mxu0 0
  %4703 = vmatprep.subr.bf16.mxu0 0
  %4704 = vmatpush2.bf16.msra.mxu0 0
  %4705 = vmatprep.subr.bf16.mxu0 0
  %4706 = vmatpush2.bf16.msra.mxu0 0
  %4707 = vmatprep.subr.bf16.mxu0 0
  %4708 = vmatpush2.bf16.msra.mxu0 0
  %4709 = vmatprep.subr.bf16.mxu0 0
  %4710 = vmatpush2.bf16.msra.mxu0 0
  %4711 = vmatprep.subr.bf16.mxu0 0
  %4712 = vmatpush2.bf16.msra.mxu0 0
  %4713 = vmatprep.subr.bf16.mxu0 0
  %4714 = vmatpush2.bf16.msra.mxu0 0
  %4715 = vmatprep.subr.bf16.mxu0 0
  %4716 = vmatpush2.bf16.msra.mxu0 %v4678
  %4717 = vmatprep.mubr.bf16.mxu0 %v4680
  %4718 = vmatmul.mubr.bf16.gmra.mxu0 %v4625
  %v4719 = vpop.f32.mrf.mxu0
  %v4720 = vadd.f32 0.0, %v4719
  %v4721 = vpop.f32.mrf.mxu0
  %v4722 = vpop.f32.mrf.mxu0
  %v4723 = vadd.f32 0.0, %v4722
  %v4724 = vpop.f32.mrf.mxu0
  %4725 = vmatprep.mubr.bf16.mxu0 %v4683
  %4726 = vmatmul.mubr.bf16.gmra.mxu0 %v4627
  %v4727 = vpop.f32.mrf.mxu0
  %v4728 = vadd.f32 0.0, %v4727
  %v4729 = vpop.f32.mrf.mxu0
  %v4730 = vpop.f32.mrf.mxu0
  %v4731 = vadd.f32 0.0, %v4730
  %v4732 = vpop.f32.mrf.mxu0
  %4733 = vdwg.mxu0
  %s4734 = scalar_lea.vmem %s13, 1
  %v4735 = vld [vmem:[%s4734] sm:$0x1]
  %v4736 = vlaneseq
  %v4737 = vshrl.u32 %v4736, 7
  %v4738 = vsub.s32 0, %v4737
  %v4739 = vrot.slane %v4735, %v4738
  %vm4740 = vcmp.eq.s32.totalorder %v2040, %v4739
  %vm4741 = vcmp.eq.s32.totalorder %v2041, %v4739
  %vm4742 = vcmp.eq.s32.totalorder %v2042, %v4739
  %vm4743 = vcmp.eq.s32.totalorder %v2043, %v4739
  %vm4744 = vcmp.eq.s32.totalorder %v2044, %v4739
  %vm4745 = vcmp.eq.s32.totalorder %v2045, %v4739
  %vm4746 = vcmp.eq.s32.totalorder %v2046, %v4739
  %vm4747 = vcmp.eq.s32.totalorder %v2047, %v4739
  %vm4748 = vcmp.eq.s32.totalorder %v2048, %v4739
  %vm4749 = vcmp.eq.s32.totalorder %v2049, %v4739
  %vm4750 = vcmp.eq.s32.totalorder %v2050, %v4739
  %vm4751 = vcmp.eq.s32.totalorder %v2051, %v4739
  %vm4752 = vcmp.eq.s32.totalorder %v2052, %v4739
  %vm4753 = vcmp.eq.s32.totalorder %v2053, %v4739
  %vm4754 = vcmp.eq.s32.totalorder %v2054, %v4739
  %vm4755 = vcmp.eq.s32.totalorder %v2055, %v4739
  %vm4756 = vcmp.eq.s32.totalorder %v2056, %v4739
  %vm4757 = vcmp.eq.s32.totalorder %v2057, %v4739
  %v4758 = vsel %vm4740, 1.0, 0.0
  %v4759 = vsel %vm4741, 1.0, 0.0
  %v4760 = vsel %vm4742, 1.0, 0.0
  %v4761 = vsel %vm4743, 1.0, 0.0
  %v4762 = vsel %vm4744, 1.0, 0.0
  %v4763 = vsel %vm4745, 1.0, 0.0
  %v4764 = vsel %vm4746, 1.0, 0.0
  %v4765 = vsel %vm4747, 1.0, 0.0
  %v4766 = vsel %vm4748, 1.0, 0.0
  %v4767 = vsel %vm4749, 1.0, 0.0
  %v4768 = vsel %vm4750, 1.0, 0.0
  %v4769 = vsel %vm4751, 1.0, 0.0
  %v4770 = vsel %vm4752, 1.0, 0.0
  %v4771 = vsel %vm4753, 1.0, 0.0
  %v4772 = vsel %vm4754, 1.0, 0.0
  %v4773 = vsel %vm4755, 1.0, 0.0
  %v4774 = vsel %vm4756, 1.0, 0.0
  %v4775 = vsel %vm4757, 1.0, 0.0
  %v4776 = vpack.c.bf16 %v4759, %v4758
  %v4777 = vpack.c.bf16 %v4761, %v4760
  %v4778 = vpack.c.bf16 %v4763, %v4762
  %v4779 = vpack.c.bf16 %v4765, %v4764
  %v4780 = vpack.c.bf16 %v4767, %v4766
  %v4781 = vpack.c.bf16 %v4769, %v4768
  %v4782 = vpack.c.bf16 %v4771, %v4770
  %v4783 = vpack.c.bf16 %v4773, %v4772
  %v4784 = vpack.c.bf16 %v4775, %v4774
  %4785 = vmatprep.subr.bf16.mxu0 0
  %4786 = vmatpush1.bf16.msra.mxu0 %v4783
  %4787 = vmatprep.subr.bf16.mxu0 0
  %4788 = vmatpush1.bf16.msra.mxu0 %v4782
  %4789 = vmatprep.subr.bf16.mxu0 0
  %4790 = vmatpush1.bf16.msra.mxu0 %v4781
  %4791 = vmatprep.subr.bf16.mxu0 0
  %4792 = vmatpush1.bf16.msra.mxu0 %v4780
  %4793 = vmatprep.subr.bf16.mxu0 0
  %4794 = vmatpush1.bf16.msra.mxu0 %v4779
  %4795 = vmatprep.subr.bf16.mxu0 0
  %4796 = vmatpush1.bf16.msra.mxu0 %v4778
  %4797 = vmatprep.subr.bf16.mxu0 0
  %4798 = vmatpush1.bf16.msra.mxu0 %v4777
  %4799 = vmatprep.subr.bf16.mxu0 0
  %4800 = vmatpush1.bf16.msra.mxu0 %v4776
  %4801 = vmatprep.subr.bf16.mxu0 0
  %4802 = vmatpush2.bf16.msra.mxu0 0
  %4803 = vmatprep.subr.bf16.mxu0 0
  %4804 = vmatpush2.bf16.msra.mxu0 0
  %4805 = vmatprep.subr.bf16.mxu0 0
  %4806 = vmatpush2.bf16.msra.mxu0 0
  %4807 = vmatprep.subr.bf16.mxu0 0
  %4808 = vmatpush2.bf16.msra.mxu0 0
  %4809 = vmatprep.subr.bf16.mxu0 0
  %4810 = vmatpush2.bf16.msra.mxu0 0
  %4811 = vmatprep.subr.bf16.mxu0 0
  %4812 = vmatpush2.bf16.msra.mxu0 0
  %4813 = vmatprep.subr.bf16.mxu0 0
  %4814 = vmatpush2.bf16.msra.mxu0 0
  %4815 = vmatprep.subr.bf16.mxu0 0
  %4816 = vmatpush2.bf16.msra.mxu0 %v4784
  %4817 = vmatprep.mubr.bf16.mxu0 %v4680
  %4818 = vmatmul.mubr.bf16.gmra.mxu0 %v4625
  %v4819 = vpop.f32.mrf.mxu0
  %v4820 = vadd.f32 0.0, %v4819
  %v4821 = vpop.f32.mrf.mxu0
  %v4822 = vpop.f32.mrf.mxu0
  %v4823 = vadd.f32 0.0, %v4822
  %v4824 = vpop.f32.mrf.mxu0
  %4825 = vmatprep.mubr.bf16.mxu0 %v4683
  %4826 = vmatmul.mubr.bf16.gmra.mxu0 %v4627
  %v4827 = vpop.f32.mrf.mxu0
  %v4828 = vadd.f32 0.0, %v4827
  %v4829 = vpop.f32.mrf.mxu0
  %v4830 = vpop.f32.mrf.mxu0
  %v4831 = vadd.f32 0.0, %v4830
  %v4832 = vpop.f32.mrf.mxu0
  %4833 = vdwg.mxu0
  %s4834 = scalar_lea.vmem %s13, 2
  %v4835 = vld [vmem:[%s4834] sm:$0x1]
  %v4836 = vlaneseq
  %v4837 = vshrl.u32 %v4836, 7
  %v4838 = vsub.s32 0, %v4837
  %v4839 = vrot.slane %v4835, %v4838
  %vm4840 = vcmp.eq.s32.totalorder %v2040, %v4839
  %vm4841 = vcmp.eq.s32.totalorder %v2041, %v4839
  %vm4842 = vcmp.eq.s32.totalorder %v2042, %v4839
  %vm4843 = vcmp.eq.s32.totalorder %v2043, %v4839
  %vm4844 = vcmp.eq.s32.totalorder %v2044, %v4839
  %vm4845 = vcmp.eq.s32.totalorder %v2045, %v4839
  %vm4846 = vcmp.eq.s32.totalorder %v2046, %v4839
  %vm4847 = vcmp.eq.s32.totalorder %v2047, %v4839
  %vm4848 = vcmp.eq.s32.totalorder %v2048, %v4839
  %vm4849 = vcmp.eq.s32.totalorder %v2049, %v4839
  %vm4850 = vcmp.eq.s32.totalorder %v2050, %v4839
  %vm4851 = vcmp.eq.s32.totalorder %v2051, %v4839
  %vm4852 = vcmp.eq.s32.totalorder %v2052, %v4839
  %vm4853 = vcmp.eq.s32.totalorder %v2053, %v4839
  %vm4854 = vcmp.eq.s32.totalorder %v2054, %v4839
  %vm4855 = vcmp.eq.s32.totalorder %v2055, %v4839
  %vm4856 = vcmp.eq.s32.totalorder %v2056, %v4839
  %vm4857 = vcmp.eq.s32.totalorder %v2057, %v4839
  %v4858 = vsel %vm4840, 1.0, 0.0
  %v4859 = vsel %vm4841, 1.0, 0.0
  %v4860 = vsel %vm4842, 1.0, 0.0
  %v4861 = vsel %vm4843, 1.0, 0.0
  %v4862 = vsel %vm4844, 1.0, 0.0
  %v4863 = vsel %vm4845, 1.0, 0.0
  %v4864 = vsel %vm4846, 1.0, 0.0
  %v4865 = vsel %vm4847, 1.0, 0.0
  %v4866 = vsel %vm4848, 1.0, 0.0
  %v4867 = vsel %vm4849, 1.0, 0.0
  %v4868 = vsel %vm4850, 1.0, 0.0
  %v4869 = vsel %vm4851, 1.0, 0.0
  %v4870 = vsel %vm4852, 1.0, 0.0
  %v4871 = vsel %vm4853, 1.0, 0.0
  %v4872 = vsel %vm4854, 1.0, 0.0
  %v4873 = vsel %vm4855, 1.0, 0.0
  %v4874 = vsel %vm4856, 1.0, 0.0
  %v4875 = vsel %vm4857, 1.0, 0.0
  %v4876 = vpack.c.bf16 %v4859, %v4858
  %v4877 = vpack.c.bf16 %v4861, %v4860
  %v4878 = vpack.c.bf16 %v4863, %v4862
  %v4879 = vpack.c.bf16 %v4865, %v4864
  %v4880 = vpack.c.bf16 %v4867, %v4866
  %v4881 = vpack.c.bf16 %v4869, %v4868
  %v4882 = vpack.c.bf16 %v4871, %v4870
  %v4883 = vpack.c.bf16 %v4873, %v4872
  %v4884 = vpack.c.bf16 %v4875, %v4874
  %4885 = vmatprep.subr.bf16.mxu0 0
  %4886 = vmatpush1.bf16.msra.mxu0 %v4883
  %4887 = vmatprep.subr.bf16.mxu0 0
  %4888 = vmatpush1.bf16.msra.mxu0 %v4882
  %4889 = vmatprep.subr.bf16.mxu0 0
  %4890 = vmatpush1.bf16.msra.mxu0 %v4881
  %4891 = vmatprep.subr.bf16.mxu0 0
  %4892 = vmatpush1.bf16.msra.mxu0 %v4880
  %4893 = vmatprep.subr.bf16.mxu0 0
  %4894 = vmatpush1.bf16.msra.mxu0 %v4879
  %4895 = vmatprep.subr.bf16.mxu0 0
  %4896 = vmatpush1.bf16.msra.mxu0 %v4878
  %4897 = vmatprep.subr.bf16.mxu0 0
  %4898 = vmatpush1.bf16.msra.mxu0 %v4877
  %4899 = vmatprep.subr.bf16.mxu0 0
  %4900 = vmatpush1.bf16.msra.mxu0 %v4876
  %4901 = vmatprep.subr.bf16.mxu0 0
  %4902 = vmatpush2.bf16.msra.mxu0 0
  %4903 = vmatprep.subr.bf16.mxu0 0
  %4904 = vmatpush2.bf16.msra.mxu0 0
  %4905 = vmatprep.subr.bf16.mxu0 0
  %4906 = vmatpush2.bf16.msra.mxu0 0
  %4907 = vmatprep.subr.bf16.mxu0 0
  %4908 = vmatpush2.bf16.msra.mxu0 0
  %4909 = vmatprep.subr.bf16.mxu0 0
  %4910 = vmatpush2.bf16.msra.mxu0 0
  %4911 = vmatprep.subr.bf16.mxu0 0
  %4912 = vmatpush2.bf16.msra.mxu0 0
  %4913 = vmatprep.subr.bf16.mxu0 0
  %4914 = vmatpush2.bf16.msra.mxu0 0
  %4915 = vmatprep.subr.bf16.mxu0 0
  %4916 = vmatpush2.bf16.msra.mxu0 %v4884
  %4917 = vmatprep.mubr.bf16.mxu0 %v4680
  %4918 = vmatmul.mubr.bf16.gmra.mxu0 %v4625
  %v4919 = vpop.f32.mrf.mxu0
  %v4920 = vadd.f32 0.0, %v4919
  %v4921 = vpop.f32.mrf.mxu0
  %v4922 = vpop.f32.mrf.mxu0
  %v4923 = vadd.f32 0.0, %v4922
  %v4924 = vpop.f32.mrf.mxu0
  %4925 = vmatprep.mubr.bf16.mxu0 %v4683
  %4926 = vmatmul.mubr.bf16.gmra.mxu0 %v4627
  %v4927 = vpop.f32.mrf.mxu0
  %v4928 = vadd.f32 0.0, %v4927
  %v4929 = vpop.f32.mrf.mxu0
  %v4930 = vpop.f32.mrf.mxu0
  %v4931 = vadd.f32 0.0, %v4930
  %v4932 = vpop.f32.mrf.mxu0
  %4933 = vdwg.mxu0
  %s4934 = scalar_lea.vmem %s13, 3
  %v4935 = vld [vmem:[%s4934] sm:$0x1]
  %v4936 = vlaneseq
  %v4937 = vshrl.u32 %v4936, 7
  %v4938 = vsub.s32 0, %v4937
  %v4939 = vrot.slane %v4935, %v4938
  %vm4940 = vcmp.eq.s32.totalorder %v2040, %v4939
  %vm4941 = vcmp.eq.s32.totalorder %v2041, %v4939
  %vm4942 = vcmp.eq.s32.totalorder %v2042, %v4939
  %vm4943 = vcmp.eq.s32.totalorder %v2043, %v4939
  %vm4944 = vcmp.eq.s32.totalorder %v2044, %v4939
  %vm4945 = vcmp.eq.s32.totalorder %v2045, %v4939
  %vm4946 = vcmp.eq.s32.totalorder %v2046, %v4939
  %vm4947 = vcmp.eq.s32.totalorder %v2047, %v4939
  %vm4948 = vcmp.eq.s32.totalorder %v2048, %v4939
  %vm4949 = vcmp.eq.s32.totalorder %v2049, %v4939
  %vm4950 = vcmp.eq.s32.totalorder %v2050, %v4939
  %vm4951 = vcmp.eq.s32.totalorder %v2051, %v4939
  %vm4952 = vcmp.eq.s32.totalorder %v2052, %v4939
  %vm4953 = vcmp.eq.s32.totalorder %v2053, %v4939
  %vm4954 = vcmp.eq.s32.totalorder %v2054, %v4939
  %vm4955 = vcmp.eq.s32.totalorder %v2055, %v4939
  %vm4956 = vcmp.eq.s32.totalorder %v2056, %v4939
  %vm4957 = vcmp.eq.s32.totalorder %v2057, %v4939
  %v4958 = vsel %vm4940, 1.0, 0.0
  %v4959 = vsel %vm4941, 1.0, 0.0
  %v4960 = vsel %vm4942, 1.0, 0.0
  %v4961 = vsel %vm4943, 1.0, 0.0
  %v4962 = vsel %vm4944, 1.0, 0.0
  %v4963 = vsel %vm4945, 1.0, 0.0
  %v4964 = vsel %vm4946, 1.0, 0.0
  %v4965 = vsel %vm4947, 1.0, 0.0
  %v4966 = vsel %vm4948, 1.0, 0.0
  %v4967 = vsel %vm4949, 1.0, 0.0
  %v4968 = vsel %vm4950, 1.0, 0.0
  %v4969 = vsel %vm4951, 1.0, 0.0
  %v4970 = vsel %vm4952, 1.0, 0.0
  %v4971 = vsel %vm4953, 1.0, 0.0
  %v4972 = vsel %vm4954, 1.0, 0.0
  %v4973 = vsel %vm4955, 1.0, 0.0
  %v4974 = vsel %vm4956, 1.0, 0.0
  %v4975 = vsel %vm4957, 1.0, 0.0
  %v4976 = vpack.c.bf16 %v4959, %v4958
  %v4977 = vpack.c.bf16 %v4961, %v4960
  %v4978 = vpack.c.bf16 %v4963, %v4962
  %v4979 = vpack.c.bf16 %v4965, %v4964
  %v4980 = vpack.c.bf16 %v4967, %v4966
  %v4981 = vpack.c.bf16 %v4969, %v4968
  %v4982 = vpack.c.bf16 %v4971, %v4970
  %v4983 = vpack.c.bf16 %v4973, %v4972
  %v4984 = vpack.c.bf16 %v4975, %v4974
  %4985 = vmatprep.subr.bf16.mxu0 0
  %4986 = vmatpush1.bf16.msra.mxu0 %v4983
  %4987 = vmatprep.subr.bf16.mxu0 0
  %4988 = vmatpush1.bf16.msra.mxu0 %v4982
  %4989 = vmatprep.subr.bf16.mxu0 0
  %4990 = vmatpush1.bf16.msra.mxu0 %v4981
  %4991 = vmatprep.subr.bf16.mxu0 0
  %4992 = vmatpush1.bf16.msra.mxu0 %v4980
  %4993 = vmatprep.subr.bf16.mxu0 0
  %4994 = vmatpush1.bf16.msra.mxu0 %v4979
  %4995 = vmatprep.subr.bf16.mxu0 0
  %4996 = vmatpush1.bf16.msra.mxu0 %v4978
  %4997 = vmatprep.subr.bf16.mxu0 0
  %4998 = vmatpush1.bf16.msra.mxu0 %v4977
  %4999 = vmatprep.subr.bf16.mxu0 0
  %5000 = vmatpush1.bf16.msra.mxu0 %v4976
  %5001 = vmatprep.subr.bf16.mxu0 0
  %5002 = vmatpush2.bf16.msra.mxu0 0
  %5003 = vmatprep.subr.bf16.mxu0 0
  %5004 = vmatpush2.bf16.msra.mxu0 0
  %5005 = vmatprep.subr.bf16.mxu0 0
  %5006 = vmatpush2.bf16.msra.mxu0 0
  %5007 = vmatprep.subr.bf16.mxu0 0
  %5008 = vmatpush2.bf16.msra.mxu0 0
  %5009 = vmatprep.subr.bf16.mxu0 0
  %5010 = vmatpush2.bf16.msra.mxu0 0
  %5011 = vmatprep.subr.bf16.mxu0 0
  %5012 = vmatpush2.bf16.msra.mxu0 0
  %5013 = vmatprep.subr.bf16.mxu0 0
  %5014 = vmatpush2.bf16.msra.mxu0 0
  %5015 = vmatprep.subr.bf16.mxu0 0
  %5016 = vmatpush2.bf16.msra.mxu0 %v4984
  %5017 = vmatprep.mubr.bf16.mxu0 %v4680
  %5018 = vmatmul.mubr.bf16.gmra.mxu0 %v4625
  %v5019 = vpop.f32.mrf.mxu0
  %v5020 = vadd.f32 0.0, %v5019
  %v5021 = vpop.f32.mrf.mxu0
  %v5022 = vpop.f32.mrf.mxu0
  %v5023 = vadd.f32 0.0, %v5022
  %v5024 = vpop.f32.mrf.mxu0
  %5025 = vmatprep.mubr.bf16.mxu0 %v4683
  %5026 = vmatmul.mubr.bf16.gmra.mxu0 %v4627
  %v5027 = vpop.f32.mrf.mxu0
  %v5028 = vadd.f32 0.0, %v5027
  %v5029 = vpop.f32.mrf.mxu0
  %v5030 = vpop.f32.mrf.mxu0
  %v5031 = vadd.f32 0.0, %v5030
  %v5032 = vpop.f32.mrf.mxu0
  %5033 = vdwg.mxu0
  %v5034 = vpack.c.bf16 %v4723, %v4720
  %v5035 = vpack.c.bf16 %v4731, %v4728
  %v5036 = vpack.c.bf16 %v4823, %v4820
  %v5037 = vpack.c.bf16 %v4831, %v4828
  %v5038 = vpack.c.bf16 %v4923, %v4920
  %v5039 = vpack.c.bf16 %v4931, %v4928
  %v5040 = vpack.c.bf16 %v5023, %v5020
  %v5041 = vpack.c.bf16 %v5031, %v5028
  %v5042 = vld [vmem:[%s14] sm:$0xf]
  %v5043 = vld [vmem:[%s14 + $0x4] sm:$0xf]
  %v5044 = vld [vmem:[%s14 + $0x8] sm:$0xf]
  %v5045 = vld [vmem:[%s14 + $0xc] sm:$0xf]
  %v5046 = vld [vmem:[%s14 + $0x10] sm:$0xf]
  %v5047 = vld [vmem:[%s14 + $0x14] sm:$0xf]
  %v5048 = vld [vmem:[%s14 + $0x18] sm:$0xf]
  %v5049 = vld [vmem:[%s14 + $0x1c] sm:$0xf]
  %s5050 = scalar_lea.vmem %s14, 32
  %v5051 = vld [vmem:[%s5050] sm:$0xf]
  %v5052 = vld [vmem:[%s5050 + $0x4] sm:$0xf]
  %v5053 = vld [vmem:[%s5050 + $0x8] sm:$0xf]
  %v5054 = vld [vmem:[%s5050 + $0xc] sm:$0xf]
  %v5055 = vld [vmem:[%s5050 + $0x10] sm:$0xf]
  %v5056 = vld [vmem:[%s5050 + $0x14] sm:$0xf]
  %v5057 = vld [vmem:[%s5050 + $0x18] sm:$0xf]
  %v5058 = vld [vmem:[%s5050 + $0x1c] sm:$0xf]
  %v5067 = vunpack.c.l.b16 %v5051
  %v5068 = vunpack.c.l.b16 %v5052
  %v5069 = vunpack.c.l.b16 %v5053
  %v5070 = vunpack.c.l.b16 %v5054
  %v5071 = vunpack.c.l.b16 %v5055
  %v5072 = vunpack.c.l.b16 %v5056
  %v5073 = vunpack.c.l.b16 %v5057
  %v5074 = vunpack.c.l.b16 %v5058
  %v5075 = vpack.c.b16 %v5068, %v5067
  %v5076 = vpack.c.b16 %v5070, %v5069
  %v5077 = vpack.c.b16 %v5072, %v5071
  %v5078 = vpack.c.b16 %v5074, %v5073
  %5091 = vrot.lane.b32.xlu0 %v5034, 126
  %v5092 = vpop.permute.xlu0 %5091
  %5093 = vrot.lane.b32.xlu0 %v5035, 126
  %v5094 = vpop.permute.xlu0 %5093
  %5095 = vrot.lane.b32.xlu0 %v5036, 126
  %v5096 = vpop.permute.xlu0 %5095
  %5097 = vrot.lane.b32.xlu0 %v5037, 126
  %v5098 = vpop.permute.xlu0 %5097
  %5099 = vrot.lane.b32.xlu0 %v5038, 126
  %v5100 = vpop.permute.xlu0 %5099
  %5101 = vrot.lane.b32.xlu0 %v5039, 126
  %v5102 = vpop.permute.xlu0 %5101
  %5103 = vrot.lane.b32.xlu0 %v5040, 126
  %v5104 = vpop.permute.xlu0 %5103
  %5105 = vrot.lane.b32.xlu0 %v5041, 126
  %v5106 = vpop.permute.xlu0 %5105
  %5115 = vmatprep.subr.bf16.mxu0 0
  %5116 = vmatpush1.bf16.msra.mxu0 %v5106
  %5117 = vmatprep.subr.bf16.mxu0 0
  %5118 = vmatpush1.bf16.msra.mxu0 %v5104
  %5119 = vmatprep.subr.bf16.mxu0 0
  %5120 = vmatpush1.bf16.msra.mxu0 %v5102
  %5121 = vmatprep.subr.bf16.mxu0 0
  %5122 = vmatpush1.bf16.msra.mxu0 %v5100
  %5123 = vmatprep.subr.bf16.mxu0 0
  %5124 = vmatpush1.bf16.msra.mxu0 %v5098
  %5125 = vmatprep.subr.bf16.mxu0 0
  %5126 = vmatpush1.bf16.msra.mxu0 %v5096
  %5127 = vmatprep.subr.bf16.mxu0 0
  %5128 = vmatpush1.bf16.msra.mxu0 %v5094
  %5129 = vmatprep.subr.bf16.mxu0 0
  %5130 = vmatpush1.bf16.msra.mxu0 %v5092
  %5131 = vmatprep.subr.bf16.mxu0 0
  %5132 = vmatpush2.bf16.msra.mxu0 0
  %5133 = vmatprep.subr.bf16.mxu0 0
  %5134 = vmatpush2.bf16.msra.mxu0 0
  %5135 = vmatprep.subr.bf16.mxu0 0
  %5136 = vmatpush2.bf16.msra.mxu0 0
  %5137 = vmatprep.subr.bf16.mxu0 0
  %5138 = vmatpush2.bf16.msra.mxu0 0
  %5139 = vmatprep.subr.bf16.mxu0 0
  %5140 = vmatpush2.bf16.msra.mxu0 0
  %5141 = vmatprep.subr.bf16.mxu0 0
  %5142 = vmatpush2.bf16.msra.mxu0 0
  %5143 = vmatprep.subr.bf16.mxu0 0
  %5144 = vmatpush2.bf16.msra.mxu0 0
  %5145 = vmatprep.subr.bf16.mxu0 0
  %5146 = vmatpush2.bf16.msra.mxu0 0
  %5147 = vmatprep.mubr.bf16.mxu0 0
  %5148 = vmatmul.mubr.bf16.gmra.mxu0 %v5075
  %v5149 = vpop.f32.mrf.mxu0
  %v5150 = vadd.f32 0.0, %v5149
  %v5151 = vpop.f32.mrf.mxu0
  %v5152 = vpop.f32.mrf.mxu0
  %v5153 = vadd.f32 0.0, %v5152
  %v5154 = vpop.f32.mrf.mxu0
  %5155 = vmatprep.mubr.bf16.mxu0 0
  %5156 = vmatmul.mubr.bf16.gmra.mxu0 %v5076
  %v5157 = vpop.f32.mrf.mxu0
  %v5158 = vadd.f32 0.0, %v5157
  %v5159 = vpop.f32.mrf.mxu0
  %v5160 = vpop.f32.mrf.mxu0
  %v5161 = vadd.f32 0.0, %v5160
  %v5162 = vpop.f32.mrf.mxu0
  %5163 = vmatprep.mubr.bf16.mxu0 0
  %5164 = vmatmul.mubr.bf16.gmra.mxu0 %v5077
  %v5165 = vpop.f32.mrf.mxu0
  %v5166 = vadd.f32 0.0, %v5165
  %v5167 = vpop.f32.mrf.mxu0
  %v5168 = vpop.f32.mrf.mxu0
  %v5169 = vadd.f32 0.0, %v5168
  %v5170 = vpop.f32.mrf.mxu0
  %5171 = vmatprep.mubr.bf16.mxu0 0
  %5172 = vmatmul.mubr.bf16.gmra.mxu0 %v5078
  %v5173 = vpop.f32.mrf.mxu0
  %v5174 = vadd.f32 0.0, %v5173
  %v5175 = vpop.f32.mrf.mxu0
  %v5176 = vpop.f32.mrf.mxu0
  %v5177 = vadd.f32 0.0, %v5176
  %v5178 = vpop.f32.mrf.mxu0
  %5179 = vdwg.mxu0
  %v5188 = vunpack.c.l.b16 %v5042
  %v5189 = vunpack.c.l.b16 %v5043
  %v5190 = vunpack.c.l.b16 %v5044
  %v5191 = vunpack.c.l.b16 %v5045
  %v5192 = vunpack.c.l.b16 %v5046
  %v5193 = vunpack.c.l.b16 %v5047
  %v5194 = vunpack.c.l.b16 %v5048
  %v5195 = vunpack.c.l.b16 %v5049
  %v5196 = vpack.c.b16 %v5189, %v5188
  %v5197 = vpack.c.b16 %v5191, %v5190
  %v5198 = vpack.c.b16 %v5193, %v5192
  %v5199 = vpack.c.b16 %v5195, %v5194
  %5204 = vmatprep.subr.bf16.mxu0 0
  %5205 = vmatpush1.bf16.msra.mxu0 %v5041
  %5206 = vmatprep.subr.bf16.mxu0 0
  %5207 = vmatpush1.bf16.msra.mxu0 %v5040
  %5208 = vmatprep.subr.bf16.mxu0 0
  %5209 = vmatpush1.bf16.msra.mxu0 %v5039
  %5210 = vmatprep.subr.bf16.mxu0 0
  %5211 = vmatpush1.bf16.msra.mxu0 %v5038
  %5212 = vmatprep.subr.bf16.mxu0 0
  %5213 = vmatpush1.bf16.msra.mxu0 %v5037
  %5214 = vmatprep.subr.bf16.mxu0 0
  %5215 = vmatpush1.bf16.msra.mxu0 %v5036
  %5216 = vmatprep.subr.bf16.mxu0 0
  %5217 = vmatpush1.bf16.msra.mxu0 %v5035
  %5218 = vmatprep.subr.bf16.mxu0 0
  %5219 = vmatpush1.bf16.msra.mxu0 %v5034
  %5220 = vmatprep.subr.bf16.mxu0 0
  %5221 = vmatpush2.bf16.msra.mxu0 0
  %5222 = vmatprep.subr.bf16.mxu0 0
  %5223 = vmatpush2.bf16.msra.mxu0 0
  %5224 = vmatprep.subr.bf16.mxu0 0
  %5225 = vmatpush2.bf16.msra.mxu0 0
  %5226 = vmatprep.subr.bf16.mxu0 0
  %5227 = vmatpush2.bf16.msra.mxu0 0
  %5228 = vmatprep.subr.bf16.mxu0 0
  %5229 = vmatpush2.bf16.msra.mxu0 0
  %5230 = vmatprep.subr.bf16.mxu0 0
  %5231 = vmatpush2.bf16.msra.mxu0 0
  %5232 = vmatprep.subr.bf16.mxu0 0
  %5233 = vmatpush2.bf16.msra.mxu0 0
  %5234 = vmatprep.subr.bf16.mxu0 0
  %5235 = vmatpush2.bf16.msra.mxu0 0
  %5236 = vmatprep.mubr.bf16.mxu0 0
  %5237 = vmatmul.mubr.bf16.gmra.mxu0 %v5196
  %v5238 = vpop.f32.mrf.mxu0
  %v5239 = vadd.f32 %v5150, %v5238
  %v5240 = vpop.f32.mrf.mxu0
  %v5241 = vpop.f32.mrf.mxu0
  %v5242 = vadd.f32 %v5153, %v5241
  %v5243 = vpop.f32.mrf.mxu0
  %5244 = vmatprep.mubr.bf16.mxu0 0
  %5245 = vmatmul.mubr.bf16.gmra.mxu0 %v5197
  %v5246 = vpop.f32.mrf.mxu0
  %v5247 = vadd.f32 %v5158, %v5246
  %v5248 = vpop.f32.mrf.mxu0
  %v5249 = vpop.f32.mrf.mxu0
  %v5250 = vadd.f32 %v5161, %v5249
  %v5251 = vpop.f32.mrf.mxu0
  %5252 = vmatprep.mubr.bf16.mxu0 0
  %5253 = vmatmul.mubr.bf16.gmra.mxu0 %v5198
  %v5254 = vpop.f32.mrf.mxu0
  %v5255 = vadd.f32 %v5166, %v5254
  %v5256 = vpop.f32.mrf.mxu0
  %v5257 = vpop.f32.mrf.mxu0
  %v5258 = vadd.f32 %v5169, %v5257
  %v5259 = vpop.f32.mrf.mxu0
  %5260 = vmatprep.mubr.bf16.mxu0 0
  %5261 = vmatmul.mubr.bf16.gmra.mxu0 %v5199
  %v5262 = vpop.f32.mrf.mxu0
  %v5263 = vadd.f32 %v5174, %v5262
  %v5264 = vpop.f32.mrf.mxu0
  %v5265 = vpop.f32.mrf.mxu0
  %v5266 = vadd.f32 %v5177, %v5265
  %v5267 = vpop.f32.mrf.mxu0
  %5268 = vdwg.mxu0
  %s5269 = scalar_lea.vmem %s14, 64
  %v5270 = vld [vmem:[%s5269] sm:$0xf]
  %v5271 = vld [vmem:[%s5269 + $0x4] sm:$0xf]
  %v5272 = vld [vmem:[%s5269 + $0x8] sm:$0xf]
  %v5273 = vld [vmem:[%s5269 + $0xc] sm:$0xf]
  %v5274 = vld [vmem:[%s5269 + $0x10] sm:$0xf]
  %v5275 = vld [vmem:[%s5269 + $0x14] sm:$0xf]
  %v5276 = vld [vmem:[%s5269 + $0x18] sm:$0xf]
  %v5277 = vld [vmem:[%s5269 + $0x1c] sm:$0xf]
  %v5286 = vunpack.c.l.b16 %v5270
  %v5287 = vunpack.c.l.b16 %v5271
  %v5288 = vunpack.c.l.b16 %v5272
  %v5289 = vunpack.c.l.b16 %v5273
  %v5290 = vunpack.c.l.b16 %v5274
  %v5291 = vunpack.c.l.b16 %v5275
  %v5292 = vunpack.c.l.b16 %v5276
  %v5293 = vunpack.c.l.b16 %v5277
  %v5294 = vpack.c.b16 %v5287, %v5286
  %v5295 = vpack.c.b16 %v5289, %v5288
  %v5296 = vpack.c.b16 %v5291, %v5290
  %v5297 = vpack.c.b16 %v5293, %v5292
  %5302 = vrot.lane.b32.xlu0 %v5034, 118
  %v5303 = vpop.permute.xlu0 %5302
  %5304 = vrot.lane.b32.xlu0 %v5035, 118
  %v5305 = vpop.permute.xlu0 %5304
  %5306 = vrot.lane.b32.xlu0 %v5036, 118
  %v5307 = vpop.permute.xlu0 %5306
  %5308 = vrot.lane.b32.xlu0 %v5037, 118
  %v5309 = vpop.permute.xlu0 %5308
  %5310 = vrot.lane.b32.xlu0 %v5038, 118
  %v5311 = vpop.permute.xlu0 %5310
  %5312 = vrot.lane.b32.xlu0 %v5039, 118
  %v5313 = vpop.permute.xlu0 %5312
  %5314 = vrot.lane.b32.xlu0 %v5040, 118
  %v5315 = vpop.permute.xlu0 %5314
  %5316 = vrot.lane.b32.xlu0 %v5041, 118
  %v5317 = vpop.permute.xlu0 %5316
  %5326 = vmatprep.subr.bf16.mxu0 0
  %5327 = vmatpush1.bf16.msra.mxu0 %v5317
  %5328 = vmatprep.subr.bf16.mxu0 0
  %5329 = vmatpush1.bf16.msra.mxu0 %v5315
  %5330 = vmatprep.subr.bf16.mxu0 0
  %5331 = vmatpush1.bf16.msra.mxu0 %v5313
  %5332 = vmatprep.subr.bf16.mxu0 0
  %5333 = vmatpush1.bf16.msra.mxu0 %v5311
  %5334 = vmatprep.subr.bf16.mxu0 0
  %5335 = vmatpush1.bf16.msra.mxu0 %v5309
  %5336 = vmatprep.subr.bf16.mxu0 0
  %5337 = vmatpush1.bf16.msra.mxu0 %v5307
  %5338 = vmatprep.subr.bf16.mxu0 0
  %5339 = vmatpush1.bf16.msra.mxu0 %v5305
  %5340 = vmatprep.subr.bf16.mxu0 0
  %5341 = vmatpush1.bf16.msra.mxu0 %v5303
  %5342 = vmatprep.subr.bf16.mxu0 0
  %5343 = vmatpush2.bf16.msra.mxu0 0
  %5344 = vmatprep.subr.bf16.mxu0 0
  %5345 = vmatpush2.bf16.msra.mxu0 0
  %5346 = vmatprep.subr.bf16.mxu0 0
  %5347 = vmatpush2.bf16.msra.mxu0 0
  %5348 = vmatprep.subr.bf16.mxu0 0
  %5349 = vmatpush2.bf16.msra.mxu0 0
  %5350 = vmatprep.subr.bf16.mxu0 0
  %5351 = vmatpush2.bf16.msra.mxu0 0
  %5352 = vmatprep.subr.bf16.mxu0 0
  %5353 = vmatpush2.bf16.msra.mxu0 0
  %5354 = vmatprep.subr.bf16.mxu0 0
  %5355 = vmatpush2.bf16.msra.mxu0 0
  %5356 = vmatprep.subr.bf16.mxu0 0
  %5357 = vmatpush2.bf16.msra.mxu0 0
  %5358 = vmatprep.mubr.bf16.mxu0 0
  %5359 = vmatmul.mubr.bf16.gmra.mxu0 %v5294
  %v5360 = vpop.f32.mrf.mxu0
  %v5361 = vadd.f32 0.0, %v5360
  %v5362 = vpop.f32.mrf.mxu0
  %v5363 = vpop.f32.mrf.mxu0
  %v5364 = vadd.f32 0.0, %v5363
  %v5365 = vpop.f32.mrf.mxu0
  %5366 = vmatprep.mubr.bf16.mxu0 0
  %5367 = vmatmul.mubr.bf16.gmra.mxu0 %v5295
  %v5368 = vpop.f32.mrf.mxu0
  %v5369 = vadd.f32 0.0, %v5368
  %v5370 = vpop.f32.mrf.mxu0
  %v5371 = vpop.f32.mrf.mxu0
  %v5372 = vadd.f32 0.0, %v5371
  %v5373 = vpop.f32.mrf.mxu0
  %5374 = vmatprep.mubr.bf16.mxu0 0
  %5375 = vmatmul.mubr.bf16.gmra.mxu0 %v5296
  %v5376 = vpop.f32.mrf.mxu0
  %v5377 = vadd.f32 0.0, %v5376
  %v5378 = vpop.f32.mrf.mxu0
  %v5379 = vpop.f32.mrf.mxu0
  %v5380 = vadd.f32 0.0, %v5379
  %v5381 = vpop.f32.mrf.mxu0
  %5382 = vmatprep.mubr.bf16.mxu0 0
  %5383 = vmatmul.mubr.bf16.gmra.mxu0 %v5297
  %v5384 = vpop.f32.mrf.mxu0
  %v5385 = vadd.f32 0.0, %v5384
  %v5386 = vpop.f32.mrf.mxu0
  %v5387 = vpop.f32.mrf.mxu0
  %v5388 = vadd.f32 0.0, %v5387
  %v5389 = vpop.f32.mrf.mxu0
  %5390 = vdwg.mxu0
  %v5391 = vadd.f32 %v5239, %v5361
  %v5392 = vadd.f32 %v5242, %v5364
  %v5393 = vadd.f32 %v5247, %v5369
  %v5394 = vadd.f32 %v5250, %v5372
  %v5395 = vadd.f32 %v5255, %v5377
  %v5396 = vadd.f32 %v5258, %v5380
  %v5397 = vadd.f32 %v5263, %v5385
  %v5398 = vadd.f32 %v5266, %v5388
  %s5399 = scalar_lea.vmem %s14, 96
  %v5400 = vld [vmem:[%s5399] sm:$0xf]
  %v5401 = vld [vmem:[%s5399 + $0x4] sm:$0xf]
  %v5402 = vld [vmem:[%s5399 + $0x8] sm:$0xf]
  %v5403 = vld [vmem:[%s5399 + $0xc] sm:$0xf]
  %v5404 = vld [vmem:[%s5399 + $0x10] sm:$0xf]
  %v5405 = vld [vmem:[%s5399 + $0x14] sm:$0xf]
  %v5406 = vld [vmem:[%s5399 + $0x18] sm:$0xf]
  %v5407 = vld [vmem:[%s5399 + $0x1c] sm:$0xf]
  %v5416 = vunpack.c.l.b16 %v5400
  %v5417 = vunpack.c.l.b16 %v5401
  %v5418 = vunpack.c.l.b16 %v5402
  %v5419 = vunpack.c.l.b16 %v5403
  %v5420 = vunpack.c.l.b16 %v5404
  %v5421 = vunpack.c.l.b16 %v5405
  %v5422 = vunpack.c.l.b16 %v5406
  %v5423 = vunpack.c.l.b16 %v5407
  %v5424 = vpack.c.b16 %v5417, %v5416
  %v5425 = vpack.c.b16 %v5419, %v5418
  %v5426 = vpack.c.b16 %v5421, %v5420
  %v5427 = vpack.c.b16 %v5423, %v5422
  %5432 = vrot.lane.b32.xlu0 %v5034, 116
  %v5433 = vpop.permute.xlu0 %5432
  %5434 = vrot.lane.b32.xlu0 %v5035, 116
  %v5435 = vpop.permute.xlu0 %5434
  %5436 = vrot.lane.b32.xlu0 %v5036, 116
  %v5437 = vpop.permute.xlu0 %5436
  %5438 = vrot.lane.b32.xlu0 %v5037, 116
  %v5439 = vpop.permute.xlu0 %5438
  %5440 = vrot.lane.b32.xlu0 %v5038, 116
  %v5441 = vpop.permute.xlu0 %5440
  %5442 = vrot.lane.b32.xlu0 %v5039, 116
  %v5443 = vpop.permute.xlu0 %5442
  %5444 = vrot.lane.b32.xlu0 %v5040, 116
  %v5445 = vpop.permute.xlu0 %5444
  %5446 = vrot.lane.b32.xlu0 %v5041, 116
  %v5447 = vpop.permute.xlu0 %5446
  %5456 = vmatprep.subr.bf16.mxu0 0
  %5457 = vmatpush1.bf16.msra.mxu0 %v5447
  %5458 = vmatprep.subr.bf16.mxu0 0
  %5459 = vmatpush1.bf16.msra.mxu0 %v5445
  %5460 = vmatprep.subr.bf16.mxu0 0
  %5461 = vmatpush1.bf16.msra.mxu0 %v5443
  %5462 = vmatprep.subr.bf16.mxu0 0
  %5463 = vmatpush1.bf16.msra.mxu0 %v5441
  %5464 = vmatprep.subr.bf16.mxu0 0
  %5465 = vmatpush1.bf16.msra.mxu0 %v5439
  %5466 = vmatprep.subr.bf16.mxu0 0
  %5467 = vmatpush1.bf16.msra.mxu0 %v5437
  %5468 = vmatprep.subr.bf16.mxu0 0
  %5469 = vmatpush1.bf16.msra.mxu0 %v5435
  %5470 = vmatprep.subr.bf16.mxu0 0
  %5471 = vmatpush1.bf16.msra.mxu0 %v5433
  %5472 = vmatprep.subr.bf16.mxu0 0
  %5473 = vmatpush2.bf16.msra.mxu0 0
  %5474 = vmatprep.subr.bf16.mxu0 0
  %5475 = vmatpush2.bf16.msra.mxu0 0
  %5476 = vmatprep.subr.bf16.mxu0 0
  %5477 = vmatpush2.bf16.msra.mxu0 0
  %5478 = vmatprep.subr.bf16.mxu0 0
  %5479 = vmatpush2.bf16.msra.mxu0 0
  %5480 = vmatprep.subr.bf16.mxu0 0
  %5481 = vmatpush2.bf16.msra.mxu0 0
  %5482 = vmatprep.subr.bf16.mxu0 0
  %5483 = vmatpush2.bf16.msra.mxu0 0
  %5484 = vmatprep.subr.bf16.mxu0 0
  %5485 = vmatpush2.bf16.msra.mxu0 0
  %5486 = vmatprep.subr.bf16.mxu0 0
  %5487 = vmatpush2.bf16.msra.mxu0 0
  %5488 = vmatprep.mubr.bf16.mxu0 0
  %5489 = vmatmul.mubr.bf16.gmra.mxu0 %v5424
  %v5490 = vpop.f32.mrf.mxu0
  %v5491 = vadd.f32 0.0, %v5490
  %v5492 = vpop.f32.mrf.mxu0
  %v5493 = vpop.f32.mrf.mxu0
  %v5494 = vadd.f32 0.0, %v5493
  %v5495 = vpop.f32.mrf.mxu0
  %5496 = vmatprep.mubr.bf16.mxu0 0
  %5497 = vmatmul.mubr.bf16.gmra.mxu0 %v5425
  %v5498 = vpop.f32.mrf.mxu0
  %v5499 = vadd.f32 0.0, %v5498
  %v5500 = vpop.f32.mrf.mxu0
  %v5501 = vpop.f32.mrf.mxu0
  %v5502 = vadd.f32 0.0, %v5501
  %v5503 = vpop.f32.mrf.mxu0
  %5504 = vmatprep.mubr.bf16.mxu0 0
  %5505 = vmatmul.mubr.bf16.gmra.mxu0 %v5426
  %v5506 = vpop.f32.mrf.mxu0
  %v5507 = vadd.f32 0.0, %v5506
  %v5508 = vpop.f32.mrf.mxu0
  %v5509 = vpop.f32.mrf.mxu0
  %v5510 = vadd.f32 0.0, %v5509
  %v5511 = vpop.f32.mrf.mxu0
  %5512 = vmatprep.mubr.bf16.mxu0 0
  %5513 = vmatmul.mubr.bf16.gmra.mxu0 %v5427
  %v5514 = vpop.f32.mrf.mxu0
  %v5515 = vadd.f32 0.0, %v5514
  %v5516 = vpop.f32.mrf.mxu0
  %v5517 = vpop.f32.mrf.mxu0
  %v5518 = vadd.f32 0.0, %v5517
  %v5519 = vpop.f32.mrf.mxu0
  %5520 = vdwg.mxu0
  %v5521 = vadd.f32 %v5391, %v5491
  %v5522 = vadd.f32 %v5392, %v5494
  %v5523 = vadd.f32 %v5393, %v5499
  %v5524 = vadd.f32 %v5394, %v5502
  %v5525 = vadd.f32 %v5395, %v5507
  %v5526 = vadd.f32 %v5396, %v5510
  %v5527 = vadd.f32 %v5397, %v5515
  %v5528 = vadd.f32 %v5398, %v5518
  %v5529 = vld [vmem:[%s17] sm:$0x1]
  %v5531 = vlaneseq
  %v5532 = vshrl.u32 %v5531, 7
  %v5533 = vsub.s32 0, %v5532
  %v5534 = vrot.slane %v5529, %v5533
  %v5536 = vmul.f32 %v5521, %v5534
  %v5537 = vmul.f32 %v5522, %v5534
  %v5538 = vmul.f32 %v5523, %v5534
  %v5539 = vmul.f32 %v5524, %v5534
  %v5540 = vmul.f32 %v5525, %v5534
  %v5541 = vmul.f32 %v5526, %v5534
  %v5542 = vmul.f32 %v5527, %v5534
  %v5543 = vmul.f32 %v5528, %v5534
  %vm5544 = vcmask 326656
  %v5545 = vsel %vm5544, %v5536, 0.0
  %5546 = vadd.xlane.f32.xlu0 %v5545
  %v5547 = vpop.xlane.xlu0 %5546
  %v5548 = vsel %vm5544, %v5537, 0.0
  %5549 = vadd.xlane.f32.xlu0 %v5548
  %v5550 = vpop.xlane.xlu0 %5549
  %v5551 = vsel %vm5544, %v5538, 0.0
  %5552 = vadd.xlane.f32.xlu0 %v5551
  %v5553 = vpop.xlane.xlu0 %5552
  %v5554 = vsel %vm5544, %v5539, 0.0
  %5555 = vadd.xlane.f32.xlu0 %v5554
  %v5556 = vpop.xlane.xlu0 %5555
  %v5557 = vsel %vm5544, %v5540, 0.0
  %5558 = vadd.xlane.f32.xlu0 %v5557
  %v5559 = vpop.xlane.xlu0 %5558
  %v5560 = vsel %vm5544, %v5541, 0.0
  %5561 = vadd.xlane.f32.xlu0 %v5560
  %v5562 = vpop.xlane.xlu0 %5561
  %v5563 = vsel %vm5544, %v5542, 0.0
  %5564 = vadd.xlane.f32.xlu0 %v5563
  %v5565 = vpop.xlane.xlu0 %5564
  %v5566 = vsel %vm5544, %v5543, 0.0
  %5567 = vadd.xlane.f32.xlu0 %v5566
  %v5568 = vpop.xlane.xlu0 %5567
  %v5569 = vmul.f32 %v5547, 0.03125
  %v5570 = vmul.f32 %v5550, 0.03125
  %v5571 = vmul.f32 %v5553, 0.03125
  %v5572 = vmul.f32 %v5556, 0.03125
  %v5573 = vmul.f32 %v5559, 0.03125
  %v5574 = vmul.f32 %v5562, 0.03125
  %v5575 = vmul.f32 %v5565, 0.03125
  %v5576 = vmul.f32 %v5568, 0.03125
  %v5577 = vsub.f32 %v5521, %v5569
  %v5578 = vsub.f32 %v5522, %v5570
  %v5579 = vsub.f32 %v5523, %v5571
  %v5580 = vsub.f32 %v5524, %v5572
  %v5581 = vsub.f32 %v5525, %v5573
  %v5582 = vsub.f32 %v5526, %v5574
  %v5583 = vsub.f32 %v5527, %v5575
  %v5584 = vsub.f32 %v5528, %v5576
  %v5585 = vmul.f32 %v5577, %v5534
  %v5586 = vmul.f32 %v5578, %v5534
  %v5587 = vmul.f32 %v5579, %v5534
  %v5588 = vmul.f32 %v5580, %v5534
  %v5589 = vmul.f32 %v5581, %v5534
  %v5590 = vmul.f32 %v5582, %v5534
  %v5591 = vmul.f32 %v5583, %v5534
  %v5592 = vmul.f32 %v5584, %v5534
  %v5593 = vmul.f32 %v5585, %v5585
  %v5594 = vmul.f32 %v5586, %v5586
  %v5595 = vmul.f32 %v5587, %v5587
  %v5596 = vmul.f32 %v5588, %v5588
  %v5597 = vmul.f32 %v5589, %v5589
  %v5598 = vmul.f32 %v5590, %v5590
  %v5599 = vmul.f32 %v5591, %v5591
  %v5600 = vmul.f32 %v5592, %v5592
  %v5601 = vsel %vm5544, %v5593, 0.0
  %5602 = vadd.xlane.f32.xlu0 %v5601
  %v5603 = vpop.xlane.xlu0 %5602
  %v5604 = vsel %vm5544, %v5594, 0.0
  %5605 = vadd.xlane.f32.xlu0 %v5604
  %v5606 = vpop.xlane.xlu0 %5605
  %v5607 = vsel %vm5544, %v5595, 0.0
  %5608 = vadd.xlane.f32.xlu0 %v5607
  %v5609 = vpop.xlane.xlu0 %5608
  %v5610 = vsel %vm5544, %v5596, 0.0
  %5611 = vadd.xlane.f32.xlu0 %v5610
  %v5612 = vpop.xlane.xlu0 %5611
  %v5613 = vsel %vm5544, %v5597, 0.0
  %5614 = vadd.xlane.f32.xlu0 %v5613
  %v5615 = vpop.xlane.xlu0 %5614
  %v5616 = vsel %vm5544, %v5598, 0.0
  %5617 = vadd.xlane.f32.xlu0 %v5616
  %v5618 = vpop.xlane.xlu0 %5617
  %v5619 = vsel %vm5544, %v5599, 0.0
  %5620 = vadd.xlane.f32.xlu0 %v5619
  %v5621 = vpop.xlane.xlu0 %5620
  %v5622 = vsel %vm5544, %v5600, 0.0
  %5623 = vadd.xlane.f32.xlu0 %v5622
  %v5624 = vpop.xlane.xlu0 %5623
  %v5625 = vmul.f32 %v5603, 0.03125
  %v5626 = vmul.f32 %v5606, 0.03125
  %v5627 = vmul.f32 %v5609, 0.03125
  %v5628 = vmul.f32 %v5612, 0.03125
  %v5629 = vmul.f32 %v5615, 0.03125
  %v5630 = vmul.f32 %v5618, 0.03125
  %v5631 = vmul.f32 %v5621, 0.03125
  %v5632 = vmul.f32 %v5624, 0.03125
  %v5633 = vld [vmem:[%s15] sm:$0xff]
  %v5634 = vld [vmem:[%s15 + $0x8] sm:$0xff]
  %v5635 = vld [vmem:[%s15 + $0x10] sm:$0xff]
  %v5636 = vld [vmem:[%s15 + $0x18] sm:$0xff]
  %v5637 = vld [vmem:[%s15 + $0x20] sm:$0xff]
  %v5638 = vld [vmem:[%s15 + $0x28] sm:$0xff]
  %v5639 = vld [vmem:[%s15 + $0x30] sm:$0xff]
  %v5640 = vld [vmem:[%s15 + $0x38] sm:$0xff]
  %v5641 = vadd.f32 %v5625, 1e-05
  %v5642 = vadd.f32 %v5626, 1e-05
  %v5643 = vadd.f32 %v5627, 1e-05
  %v5644 = vadd.f32 %v5628, 1e-05
  %v5645 = vadd.f32 %v5629, 1e-05
  %v5646 = vadd.f32 %v5630, 1e-05
  %v5647 = vadd.f32 %v5631, 1e-05
  %v5648 = vadd.f32 %v5632, 1e-05
  %v5649 = vrsqrt.pop %v5641
  %v5650 = vrsqrt.pop %v5642
  %v5651 = vrsqrt.pop %v5643
  %v5652 = vrsqrt.pop %v5644
  %v5653 = vrsqrt.pop %v5645
  %v5654 = vrsqrt.pop %v5646
  %v5655 = vrsqrt.pop %v5647
  %v5656 = vrsqrt.pop %v5648
  %v5657 = vmul.f32 %v5633, %v5649
  %v5658 = vmul.f32 %v5634, %v5650
  %v5659 = vmul.f32 %v5635, %v5651
  %v5660 = vmul.f32 %v5636, %v5652
  %v5661 = vmul.f32 %v5637, %v5653
  %v5662 = vmul.f32 %v5638, %v5654
  %v5663 = vmul.f32 %v5639, %v5655
  %v5664 = vmul.f32 %v5640, %v5656
  %5666 = vset.pattern.permute.xlu0 0
  %5667 = vperm.xlu0 %5666, %v5657
  %v5668 = vpop.permute.xlu0 %5667
  %5671 = vset.pattern.permute.xlu0 0
  %5672 = vperm.xlu0 %5671, %v5658
  %v5673 = vpop.permute.xlu0 %5672
  %5676 = vset.pattern.permute.xlu0 0
  %5677 = vperm.xlu0 %5676, %v5659
  %v5678 = vpop.permute.xlu0 %5677
  %5681 = vset.pattern.permute.xlu0 0
  %5682 = vperm.xlu0 %5681, %v5660
  %v5683 = vpop.permute.xlu0 %5682
  %5686 = vset.pattern.permute.xlu0 0
  %5687 = vperm.xlu0 %5686, %v5661
  %v5688 = vpop.permute.xlu0 %5687
  %5691 = vset.pattern.permute.xlu0 0
  %5692 = vperm.xlu0 %5691, %v5662
  %v5693 = vpop.permute.xlu0 %5692
  %5696 = vset.pattern.permute.xlu0 0
  %5697 = vperm.xlu0 %5696, %v5663
  %v5698 = vpop.permute.xlu0 %5697
  %5701 = vset.pattern.permute.xlu0 0
  %5702 = vperm.xlu0 %5701, %v5664
  %v5703 = vpop.permute.xlu0 %5702
  %v5705 = vmul.f32 %v5577, %v5668
  %v5706 = vmul.f32 %v5578, %v5673
  %v5707 = vmul.f32 %v5579, %v5678
  %v5708 = vmul.f32 %v5580, %v5683
  %v5709 = vmul.f32 %v5581, %v5688
  %v5710 = vmul.f32 %v5582, %v5693
  %v5711 = vmul.f32 %v5583, %v5698
  %v5712 = vmul.f32 %v5584, %v5703
  %v5713 = vld [vmem:[%s16] sm:$0xff]
  %v5714 = vld [vmem:[%s16 + $0x8] sm:$0xff]
  %v5715 = vld [vmem:[%s16 + $0x10] sm:$0xff]
  %v5716 = vld [vmem:[%s16 + $0x18] sm:$0xff]
  %v5717 = vld [vmem:[%s16 + $0x20] sm:$0xff]
  %v5718 = vld [vmem:[%s16 + $0x28] sm:$0xff]
  %v5719 = vld [vmem:[%s16 + $0x30] sm:$0xff]
  %v5720 = vld [vmem:[%s16 + $0x38] sm:$0xff]
  %5722 = vset.pattern.permute.xlu0 0
  %5723 = vperm.xlu0 %5722, %v5713
  %v5724 = vpop.permute.xlu0 %5723
  %5727 = vset.pattern.permute.xlu0 0
  %5728 = vperm.xlu0 %5727, %v5714
  %v5729 = vpop.permute.xlu0 %5728
  %5732 = vset.pattern.permute.xlu0 0
  %5733 = vperm.xlu0 %5732, %v5715
  %v5734 = vpop.permute.xlu0 %5733
  %5737 = vset.pattern.permute.xlu0 0
  %5738 = vperm.xlu0 %5737, %v5716
  %v5739 = vpop.permute.xlu0 %5738
  %5742 = vset.pattern.permute.xlu0 0
  %5743 = vperm.xlu0 %5742, %v5717
  %v5744 = vpop.permute.xlu0 %5743
  %5747 = vset.pattern.permute.xlu0 0
  %5748 = vperm.xlu0 %5747, %v5718
  %v5749 = vpop.permute.xlu0 %5748
  %5752 = vset.pattern.permute.xlu0 0
  %5753 = vperm.xlu0 %5752, %v5719
  %v5754 = vpop.permute.xlu0 %5753
  %5757 = vset.pattern.permute.xlu0 0
  %5758 = vperm.xlu0 %5757, %v5720
  %v5759 = vpop.permute.xlu0 %5758
  %v5761 = vadd.f32 %v5705, %v5724
  %v5762 = vadd.f32 %v5706, %v5729
  %v5763 = vadd.f32 %v5707, %v5734
  %v5764 = vadd.f32 %v5708, %v5739
  %v5765 = vadd.f32 %v5709, %v5744
  %v5766 = vadd.f32 %v5710, %v5749
  %v5767 = vadd.f32 %v5711, %v5754
  %v5768 = vadd.f32 %v5712, %v5759
  %vm5769 = vcmp.gt.f32.partialorder %v5761, 0.0
  %vm5770 = vcmp.gt.f32.partialorder %v5762, 0.0
  %vm5771 = vcmp.gt.f32.partialorder %v5763, 0.0
  %vm5772 = vcmp.gt.f32.partialorder %v5764, 0.0
  %vm5773 = vcmp.gt.f32.partialorder %v5765, 0.0
  %vm5774 = vcmp.gt.f32.partialorder %v5766, 0.0
  %vm5775 = vcmp.gt.f32.partialorder %v5767, 0.0
  %vm5776 = vcmp.gt.f32.partialorder %v5768, 0.0
  %v5777 = vmul.f32 %v5761, 0.2
  %v5778 = vmul.f32 %v5762, 0.2
  %v5779 = vmul.f32 %v5763, 0.2
  %v5780 = vmul.f32 %v5764, 0.2
  %v5781 = vmul.f32 %v5765, 0.2
  %v5782 = vmul.f32 %v5766, 0.2
  %v5783 = vmul.f32 %v5767, 0.2
  %v5784 = vmul.f32 %v5768, 0.2
  %v5785 = vsel %vm5769, %v5761, %v5777
  %v5786 = vsel %vm5770, %v5762, %v5778
  %v5787 = vsel %vm5771, %v5763, %v5779
  %v5788 = vsel %vm5772, %v5764, %v5780
  %v5789 = vsel %vm5773, %v5765, %v5781
  %v5790 = vsel %vm5774, %v5766, %v5782
  %v5791 = vsel %vm5775, %v5767, %v5783
  %v5792 = vsel %vm5776, %v5768, %v5784
  %v5793 = vpack.c.bf16 %v5786, %v5785
  %v5794 = vpack.c.bf16 %v5788, %v5787
  %v5795 = vpack.c.bf16 %v5790, %v5789
  %v5796 = vpack.c.bf16 %v5792, %v5791
  %v5797 = vld [vmem:[%s18] sm:$0x3]
  %v5798 = vlaneseq
  %v5799 = vshrl.u32 %v5798, 7
  %v5800 = vsub.s32 0, %v5799
  %v5801 = vrot.slane %v5797, %v5800
  %v5802 = vlaneseq
  %v5803 = vshrl.u32 %v5802, 7
  %v5804 = vsub.s32 1, %v5803
  %v5805 = vrot.slane %v5797, %v5804
  %vm5806 = vcmp.eq.s32.totalorder %v2040, %v5801
  %vm5807 = vcmp.eq.s32.totalorder %v2040, %v5805
  %vm5808 = vcmp.eq.s32.totalorder %v2041, %v5801
  %vm5809 = vcmp.eq.s32.totalorder %v2041, %v5805
  %vm5810 = vcmp.eq.s32.totalorder %v2042, %v5801
  %vm5811 = vcmp.eq.s32.totalorder %v2042, %v5805
  %vm5812 = vcmp.eq.s32.totalorder %v2043, %v5801
  %vm5813 = vcmp.eq.s32.totalorder %v2043, %v5805
  %vm5814 = vcmp.eq.s32.totalorder %v2044, %v5801
  %vm5815 = vcmp.eq.s32.totalorder %v2044, %v5805
  %v5816 = vsel %vm5806, 1.0, 0.0
  %v5817 = vsel %vm5807, 1.0, 0.0
  %v5818 = vsel %vm5808, 1.0, 0.0
  %v5819 = vsel %vm5809, 1.0, 0.0
  %v5820 = vsel %vm5810, 1.0, 0.0
  %v5821 = vsel %vm5811, 1.0, 0.0
  %v5822 = vsel %vm5812, 1.0, 0.0
  %v5823 = vsel %vm5813, 1.0, 0.0
  %v5824 = vsel %vm5814, 1.0, 0.0
  %v5825 = vsel %vm5815, 1.0, 0.0
  %v5826 = vpack.c.bf16 %v5818, %v5816
  %v5827 = vpack.c.bf16 %v5819, %v5817
  %v5828 = vpack.c.bf16 %v5822, %v5820
  %v5829 = vpack.c.bf16 %v5823, %v5821
  %v5830 = vpack.c.bf16 %v5824, %v5824
  %v5831 = vpack.c.bf16 %v5825, %v5825
  %v5833 = vsel %vm5544, %v5793, 0
  %v5836 = vsel %vm5544, %v5794, 0
  %v5839 = vsel %vm5544, %v5795, 0
  %v5842 = vsel %vm5544, %v5796, 0
  %vm5844 = vcmask 1043456
  %v5846 = vsel %vm5844, %v5830, 0
  %v5849 = vsel %vm5844, %v5831, 0
  %5851 = vmatprep.subr.bf16.mxu0 0
  %5852 = vmatpush1.bf16.msra.mxu0 0
  %5853 = vmatprep.subr.bf16.mxu0 0
  %5854 = vmatpush1.bf16.msra.mxu0 0
  %5855 = vmatprep.subr.bf16.mxu0 0
  %5856 = vmatpush1.bf16.msra.mxu0 0
  %5857 = vmatprep.subr.bf16.mxu0 0
  %5858 = vmatpush1.bf16.msra.mxu0 0
  %5859 = vmatprep.subr.bf16.mxu0 0
  %5860 = vmatpush1.bf16.msra.mxu0 0
  %5861 = vmatprep.subr.bf16.mxu0 %v5849
  %5862 = vmatpush1.bf16.msra.mxu0 %v5846
  %5863 = vmatprep.subr.bf16.mxu0 %v5829
  %5864 = vmatpush1.bf16.msra.mxu0 %v5828
  %5865 = vmatprep.subr.bf16.mxu0 %v5827
  %5866 = vmatpush1.bf16.msra.mxu0 %v5826
  %5867 = vmatprep.subr.bf16.mxu0 0
  %5868 = vmatpush2.bf16.msra.mxu0 0
  %5869 = vmatprep.subr.bf16.mxu0 0
  %5870 = vmatpush2.bf16.msra.mxu0 0
  %5871 = vmatprep.subr.bf16.mxu0 0
  %5872 = vmatpush2.bf16.msra.mxu0 0
  %5873 = vmatprep.subr.bf16.mxu0 0
  %5874 = vmatpush2.bf16.msra.mxu0 0
  %5875 = vmatprep.subr.bf16.mxu0 0
  %5876 = vmatpush2.bf16.msra.mxu0 0
  %5877 = vmatprep.subr.bf16.mxu0 0
  %5878 = vmatpush2.bf16.msra.mxu0 0
  %5879 = vmatprep.subr.bf16.mxu0 0
  %5880 = vmatpush2.bf16.msra.mxu0 0
  %5881 = vmatprep.subr.bf16.mxu0 0
  %5882 = vmatpush2.bf16.msra.mxu0 0
  %5883 = vmatprep.mubr.bf16.mxu0 0
  %5884 = vmatmul.mubr.bf16.gmra.mxu0 %v5833
  %v5885 = vpop.f32.mrf.mxu0
  %v5886 = vadd.f32 0.0, %v5885
  %v5887 = vpop.f32.mrf.mxu0
  %v5888 = vadd.f32 0.0, %v5887
  %v5889 = vpop.f32.mrf.mxu0
  %v5890 = vadd.f32 0.0, %v5889
  %v5891 = vpop.f32.mrf.mxu0
  %v5892 = vadd.f32 0.0, %v5891
  %5893 = vmatprep.mubr.bf16.mxu0 0
  %5894 = vmatmul.mubr.bf16.gmra.mxu0 %v5836
  %v5895 = vpop.f32.mrf.mxu0
  %v5896 = vadd.f32 0.0, %v5895
  %v5897 = vpop.f32.mrf.mxu0
  %v5898 = vadd.f32 0.0, %v5897
  %v5899 = vpop.f32.mrf.mxu0
  %v5900 = vadd.f32 0.0, %v5899
  %v5901 = vpop.f32.mrf.mxu0
  %v5902 = vadd.f32 0.0, %v5901
  %5903 = vmatprep.mubr.bf16.mxu0 0
  %5904 = vmatmul.mubr.bf16.gmra.mxu0 %v5839
  %v5905 = vpop.f32.mrf.mxu0
  %v5906 = vadd.f32 0.0, %v5905
  %v5907 = vpop.f32.mrf.mxu0
  %v5908 = vadd.f32 0.0, %v5907
  %v5909 = vpop.f32.mrf.mxu0
  %v5910 = vadd.f32 0.0, %v5909
  %v5911 = vpop.f32.mrf.mxu0
  %v5912 = vadd.f32 0.0, %v5911
  %5913 = vmatprep.mubr.bf16.mxu0 0
  %5914 = vmatmul.mubr.bf16.gmra.mxu0 %v5842
  %v5915 = vpop.f32.mrf.mxu0
  %v5916 = vadd.f32 0.0, %v5915
  %v5917 = vpop.f32.mrf.mxu0
  %v5918 = vadd.f32 0.0, %v5917
  %v5919 = vpop.f32.mrf.mxu0
  %v5920 = vadd.f32 0.0, %v5919
  %v5921 = vpop.f32.mrf.mxu0
  %v5922 = vadd.f32 0.0, %v5921
  %5923 = vdwg.mxu0
  %s5924 = scalar_lea.vmem %s18, 2
  %v5925 = vld [vmem:[%s5924] sm:$0x3]
  %v5926 = vlaneseq
  %v5927 = vshrl.u32 %v5926, 7
  %v5928 = vsub.s32 0, %v5927
  %v5929 = vrot.slane %v5925, %v5928
  %v5930 = vlaneseq
  %v5931 = vshrl.u32 %v5930, 7
  %v5932 = vsub.s32 1, %v5931
  %v5933 = vrot.slane %v5925, %v5932
  %vm5934 = vcmp.eq.s32.totalorder %v2040, %v5929
  %vm5935 = vcmp.eq.s32.totalorder %v2040, %v5933
  %vm5936 = vcmp.eq.s32.totalorder %v2041, %v5929
  %vm5937 = vcmp.eq.s32.totalorder %v2041, %v5933
  %vm5938 = vcmp.eq.s32.totalorder %v2042, %v5929
  %vm5939 = vcmp.eq.s32.totalorder %v2042, %v5933
  %vm5940 = vcmp.eq.s32.totalorder %v2043, %v5929
  %vm5941 = vcmp.eq.s32.totalorder %v2043, %v5933
  %vm5942 = vcmp.eq.s32.totalorder %v2044, %v5929
  %vm5943 = vcmp.eq.s32.totalorder %v2044, %v5933
  %v5944 = vsel %vm5934, 1.0, 0.0
  %v5945 = vsel %vm5935, 1.0, 0.0
  %v5946 = vsel %vm5936, 1.0, 0.0
  %v5947 = vsel %vm5937, 1.0, 0.0
  %v5948 = vsel %vm5938, 1.0, 0.0
  %v5949 = vsel %vm5939, 1.0, 0.0
  %v5950 = vsel %vm5940, 1.0, 0.0
  %v5951 = vsel %vm5941, 1.0, 0.0
  %v5952 = vsel %vm5942, 1.0, 0.0
  %v5953 = vsel %vm5943, 1.0, 0.0
  %v5954 = vpack.c.bf16 %v5946, %v5944
  %v5955 = vpack.c.bf16 %v5947, %v5945
  %v5956 = vpack.c.bf16 %v5950, %v5948
  %v5957 = vpack.c.bf16 %v5951, %v5949
  %v5958 = vpack.c.bf16 %v5952, %v5952
  %v5959 = vpack.c.bf16 %v5953, %v5953
  %v5961 = vsel %vm5844, %v5958, 0
  %v5964 = vsel %vm5844, %v5959, 0
  %5966 = vmatprep.subr.bf16.mxu0 0
  %5967 = vmatpush1.bf16.msra.mxu0 0
  %5968 = vmatprep.subr.bf16.mxu0 0
  %5969 = vmatpush1.bf16.msra.mxu0 0
  %5970 = vmatprep.subr.bf16.mxu0 0
  %5971 = vmatpush1.bf16.msra.mxu0 0
  %5972 = vmatprep.subr.bf16.mxu0 0
  %5973 = vmatpush1.bf16.msra.mxu0 0
  %5974 = vmatprep.subr.bf16.mxu0 0
  %5975 = vmatpush1.bf16.msra.mxu0 0
  %5976 = vmatprep.subr.bf16.mxu0 %v5964
  %5977 = vmatpush1.bf16.msra.mxu0 %v5961
  %5978 = vmatprep.subr.bf16.mxu0 %v5957
  %5979 = vmatpush1.bf16.msra.mxu0 %v5956
  %5980 = vmatprep.subr.bf16.mxu0 %v5955
  %5981 = vmatpush1.bf16.msra.mxu0 %v5954
  %5982 = vmatprep.subr.bf16.mxu0 0
  %5983 = vmatpush2.bf16.msra.mxu0 0
  %5984 = vmatprep.subr.bf16.mxu0 0
  %5985 = vmatpush2.bf16.msra.mxu0 0
  %5986 = vmatprep.subr.bf16.mxu0 0
  %5987 = vmatpush2.bf16.msra.mxu0 0
  %5988 = vmatprep.subr.bf16.mxu0 0
  %5989 = vmatpush2.bf16.msra.mxu0 0
  %5990 = vmatprep.subr.bf16.mxu0 0
  %5991 = vmatpush2.bf16.msra.mxu0 0
  %5992 = vmatprep.subr.bf16.mxu0 0
  %5993 = vmatpush2.bf16.msra.mxu0 0
  %5994 = vmatprep.subr.bf16.mxu0 0
  %5995 = vmatpush2.bf16.msra.mxu0 0
  %5996 = vmatprep.subr.bf16.mxu0 0
  %5997 = vmatpush2.bf16.msra.mxu0 0
  %5998 = vmatprep.mubr.bf16.mxu0 0
  %5999 = vmatmul.mubr.bf16.gmra.mxu0 %v5833
  %v6000 = vpop.f32.mrf.mxu0
  %v6001 = vadd.f32 0.0, %v6000
  %v6002 = vpop.f32.mrf.mxu0
  %v6003 = vadd.f32 0.0, %v6002
  %v6004 = vpop.f32.mrf.mxu0
  %v6005 = vadd.f32 0.0, %v6004
  %v6006 = vpop.f32.mrf.mxu0
  %v6007 = vadd.f32 0.0, %v6006
  %6008 = vmatprep.mubr.bf16.mxu0 0
  %6009 = vmatmul.mubr.bf16.gmra.mxu0 %v5836
  %v6010 = vpop.f32.mrf.mxu0
  %v6011 = vadd.f32 0.0, %v6010
  %v6012 = vpop.f32.mrf.mxu0
  %v6013 = vadd.f32 0.0, %v6012
  %v6014 = vpop.f32.mrf.mxu0
  %v6015 = vadd.f32 0.0, %v6014
  %v6016 = vpop.f32.mrf.mxu0
  %v6017 = vadd.f32 0.0, %v6016
  %6018 = vmatprep.mubr.bf16.mxu0 0
  %6019 = vmatmul.mubr.bf16.gmra.mxu0 %v5839
  %v6020 = vpop.f32.mrf.mxu0
  %v6021 = vadd.f32 0.0, %v6020
  %v6022 = vpop.f32.mrf.mxu0
  %v6023 = vadd.f32 0.0, %v6022
  %v6024 = vpop.f32.mrf.mxu0
  %v6025 = vadd.f32 0.0, %v6024
  %v6026 = vpop.f32.mrf.mxu0
  %v6027 = vadd.f32 0.0, %v6026
  %6028 = vmatprep.mubr.bf16.mxu0 0
  %6029 = vmatmul.mubr.bf16.gmra.mxu0 %v5842
  %v6030 = vpop.f32.mrf.mxu0
  %v6031 = vadd.f32 0.0, %v6030
  %v6032 = vpop.f32.mrf.mxu0
  %v6033 = vadd.f32 0.0, %v6032
  %v6034 = vpop.f32.mrf.mxu0
  %v6035 = vadd.f32 0.0, %v6034
  %v6036 = vpop.f32.mrf.mxu0
  %v6037 = vadd.f32 0.0, %v6036
  %6038 = vdwg.mxu0
  %s6039 = scalar_lea.vmem %s18, 4
  %v6040 = vld [vmem:[%s6039] sm:$0x3]
  %v6041 = vlaneseq
  %v6042 = vshrl.u32 %v6041, 7
  %v6043 = vsub.s32 0, %v6042
  %v6044 = vrot.slane %v6040, %v6043
  %v6045 = vlaneseq
  %v6046 = vshrl.u32 %v6045, 7
  %v6047 = vsub.s32 1, %v6046
  %v6048 = vrot.slane %v6040, %v6047
  %vm6049 = vcmp.eq.s32.totalorder %v2040, %v6044
  %vm6050 = vcmp.eq.s32.totalorder %v2040, %v6048
  %vm6051 = vcmp.eq.s32.totalorder %v2041, %v6044
  %vm6052 = vcmp.eq.s32.totalorder %v2041, %v6048
  %vm6053 = vcmp.eq.s32.totalorder %v2042, %v6044
  %vm6054 = vcmp.eq.s32.totalorder %v2042, %v6048
  %vm6055 = vcmp.eq.s32.totalorder %v2043, %v6044
  %vm6056 = vcmp.eq.s32.totalorder %v2043, %v6048
  %vm6057 = vcmp.eq.s32.totalorder %v2044, %v6044
  %vm6058 = vcmp.eq.s32.totalorder %v2044, %v6048
  %v6059 = vsel %vm6049, 1.0, 0.0
  %v6060 = vsel %vm6050, 1.0, 0.0
  %v6061 = vsel %vm6051, 1.0, 0.0
  %v6062 = vsel %vm6052, 1.0, 0.0
  %v6063 = vsel %vm6053, 1.0, 0.0
  %v6064 = vsel %vm6054, 1.0, 0.0
  %v6065 = vsel %vm6055, 1.0, 0.0
  %v6066 = vsel %vm6056, 1.0, 0.0
  %v6067 = vsel %vm6057, 1.0, 0.0
  %v6068 = vsel %vm6058, 1.0, 0.0
  %v6069 = vpack.c.bf16 %v6061, %v6059
  %v6070 = vpack.c.bf16 %v6062, %v6060
  %v6071 = vpack.c.bf16 %v6065, %v6063
  %v6072 = vpack.c.bf16 %v6066, %v6064
  %v6073 = vpack.c.bf16 %v6067, %v6067
  %v6074 = vpack.c.bf16 %v6068, %v6068
  %v6076 = vsel %vm5844, %v6073, 0
  %v6079 = vsel %vm5844, %v6074, 0
  %6081 = vmatprep.subr.bf16.mxu0 0
  %6082 = vmatpush1.bf16.msra.mxu0 0
  %6083 = vmatprep.subr.bf16.mxu0 0
  %6084 = vmatpush1.bf16.msra.mxu0 0
  %6085 = vmatprep.subr.bf16.mxu0 0
  %6086 = vmatpush1.bf16.msra.mxu0 0
  %6087 = vmatprep.subr.bf16.mxu0 0
  %6088 = vmatpush1.bf16.msra.mxu0 0
  %6089 = vmatprep.subr.bf16.mxu0 0
  %6090 = vmatpush1.bf16.msra.mxu0 0
  %6091 = vmatprep.subr.bf16.mxu0 %v6079
  %6092 = vmatpush1.bf16.msra.mxu0 %v6076
  %6093 = vmatprep.subr.bf16.mxu0 %v6072
  %6094 = vmatpush1.bf16.msra.mxu0 %v6071
  %6095 = vmatprep.subr.bf16.mxu0 %v6070
  %6096 = vmatpush1.bf16.msra.mxu0 %v6069
  %6097 = vmatprep.subr.bf16.mxu0 0
  %6098 = vmatpush2.bf16.msra.mxu0 0
  %6099 = vmatprep.subr.bf16.mxu0 0
  %6100 = vmatpush2.bf16.msra.mxu0 0
  %6101 = vmatprep.subr.bf16.mxu0 0
  %6102 = vmatpush2.bf16.msra.mxu0 0
  %6103 = vmatprep.subr.bf16.mxu0 0
  %6104 = vmatpush2.bf16.msra.mxu0 0
  %6105 = vmatprep.subr.bf16.mxu0 0
  %6106 = vmatpush2.bf16.msra.mxu0 0
  %6107 = vmatprep.subr.bf16.mxu0 0
  %6108 = vmatpush2.bf16.msra.mxu0 0
  %6109 = vmatprep.subr.bf16.mxu0 0
  %6110 = vmatpush2.bf16.msra.mxu0 0
  %6111 = vmatprep.subr.bf16.mxu0 0
  %6112 = vmatpush2.bf16.msra.mxu0 0
  %6113 = vmatprep.mubr.bf16.mxu0 0
  %6114 = vmatmul.mubr.bf16.gmra.mxu0 %v5833
  %v6115 = vpop.f32.mrf.mxu0
  %v6116 = vadd.f32 0.0, %v6115
  %v6117 = vpop.f32.mrf.mxu0
  %v6118 = vadd.f32 0.0, %v6117
  %v6119 = vpop.f32.mrf.mxu0
  %v6120 = vadd.f32 0.0, %v6119
  %v6121 = vpop.f32.mrf.mxu0
  %v6122 = vadd.f32 0.0, %v6121
  %6123 = vmatprep.mubr.bf16.mxu0 0
  %6124 = vmatmul.mubr.bf16.gmra.mxu0 %v5836
  %v6125 = vpop.f32.mrf.mxu0
  %v6126 = vadd.f32 0.0, %v6125
  %v6127 = vpop.f32.mrf.mxu0
  %v6128 = vadd.f32 0.0, %v6127
  %v6129 = vpop.f32.mrf.mxu0
  %v6130 = vadd.f32 0.0, %v6129
  %v6131 = vpop.f32.mrf.mxu0
  %v6132 = vadd.f32 0.0, %v6131
  %6133 = vmatprep.mubr.bf16.mxu0 0
  %6134 = vmatmul.mubr.bf16.gmra.mxu0 %v5839
  %v6135 = vpop.f32.mrf.mxu0
  %v6136 = vadd.f32 0.0, %v6135
  %v6137 = vpop.f32.mrf.mxu0
  %v6138 = vadd.f32 0.0, %v6137
  %v6139 = vpop.f32.mrf.mxu0
  %v6140 = vadd.f32 0.0, %v6139
  %v6141 = vpop.f32.mrf.mxu0
  %v6142 = vadd.f32 0.0, %v6141
  %6143 = vmatprep.mubr.bf16.mxu0 0
  %6144 = vmatmul.mubr.bf16.gmra.mxu0 %v5842
  %v6145 = vpop.f32.mrf.mxu0
  %v6146 = vadd.f32 0.0, %v6145
  %v6147 = vpop.f32.mrf.mxu0
  %v6148 = vadd.f32 0.0, %v6147
  %v6149 = vpop.f32.mrf.mxu0
  %v6150 = vadd.f32 0.0, %v6149
  %v6151 = vpop.f32.mrf.mxu0
  %v6152 = vadd.f32 0.0, %v6151
  %6153 = vdwg.mxu0
  %s6154 = scalar_lea.vmem %s18, 6
  %v6155 = vld [vmem:[%s6154] sm:$0x3]
  %v6156 = vlaneseq
  %v6157 = vshrl.u32 %v6156, 7
  %v6158 = vsub.s32 0, %v6157
  %v6159 = vrot.slane %v6155, %v6158
  %v6160 = vlaneseq
  %v6161 = vshrl.u32 %v6160, 7
  %v6162 = vsub.s32 1, %v6161
  %v6163 = vrot.slane %v6155, %v6162
  %vm6164 = vcmp.eq.s32.totalorder %v2040, %v6159
  %vm6165 = vcmp.eq.s32.totalorder %v2040, %v6163
  %vm6166 = vcmp.eq.s32.totalorder %v2041, %v6159
  %vm6167 = vcmp.eq.s32.totalorder %v2041, %v6163
  %vm6168 = vcmp.eq.s32.totalorder %v2042, %v6159
  %vm6169 = vcmp.eq.s32.totalorder %v2042, %v6163
  %vm6170 = vcmp.eq.s32.totalorder %v2043, %v6159
  %vm6171 = vcmp.eq.s32.totalorder %v2043, %v6163
  %vm6172 = vcmp.eq.s32.totalorder %v2044, %v6159
  %vm6173 = vcmp.eq.s32.totalorder %v2044, %v6163
  %v6174 = vsel %vm6164, 1.0, 0.0
  %v6175 = vsel %vm6165, 1.0, 0.0
  %v6176 = vsel %vm6166, 1.0, 0.0
  %v6177 = vsel %vm6167, 1.0, 0.0
  %v6178 = vsel %vm6168, 1.0, 0.0
  %v6179 = vsel %vm6169, 1.0, 0.0
  %v6180 = vsel %vm6170, 1.0, 0.0
  %v6181 = vsel %vm6171, 1.0, 0.0
  %v6182 = vsel %vm6172, 1.0, 0.0
  %v6183 = vsel %vm6173, 1.0, 0.0
  %v6184 = vpack.c.bf16 %v6176, %v6174
  %v6185 = vpack.c.bf16 %v6177, %v6175
  %v6186 = vpack.c.bf16 %v6180, %v6178
  %v6187 = vpack.c.bf16 %v6181, %v6179
  %v6188 = vpack.c.bf16 %v6182, %v6182
  %v6189 = vpack.c.bf16 %v6183, %v6183
  %v6191 = vsel %vm5844, %v6188, 0
  %v6194 = vsel %vm5844, %v6189, 0
  %6196 = vmatprep.subr.bf16.mxu0 0
  %6197 = vmatpush1.bf16.msra.mxu0 0
  %6198 = vmatprep.subr.bf16.mxu0 0
  %6199 = vmatpush1.bf16.msra.mxu0 0
  %6200 = vmatprep.subr.bf16.mxu0 0
  %6201 = vmatpush1.bf16.msra.mxu0 0
  %6202 = vmatprep.subr.bf16.mxu0 0
  %6203 = vmatpush1.bf16.msra.mxu0 0
  %6204 = vmatprep.subr.bf16.mxu0 0
  %6205 = vmatpush1.bf16.msra.mxu0 0
  %6206 = vmatprep.subr.bf16.mxu0 %v6194
  %6207 = vmatpush1.bf16.msra.mxu0 %v6191
  %6208 = vmatprep.subr.bf16.mxu0 %v6187
  %6209 = vmatpush1.bf16.msra.mxu0 %v6186
  %6210 = vmatprep.subr.bf16.mxu0 %v6185
  %6211 = vmatpush1.bf16.msra.mxu0 %v6184
  %6212 = vmatprep.subr.bf16.mxu0 0
  %6213 = vmatpush2.bf16.msra.mxu0 0
  %6214 = vmatprep.subr.bf16.mxu0 0
  %6215 = vmatpush2.bf16.msra.mxu0 0
  %6216 = vmatprep.subr.bf16.mxu0 0
  %6217 = vmatpush2.bf16.msra.mxu0 0
  %6218 = vmatprep.subr.bf16.mxu0 0
  %6219 = vmatpush2.bf16.msra.mxu0 0
  %6220 = vmatprep.subr.bf16.mxu0 0
  %6221 = vmatpush2.bf16.msra.mxu0 0
  %6222 = vmatprep.subr.bf16.mxu0 0
  %6223 = vmatpush2.bf16.msra.mxu0 0
  %6224 = vmatprep.subr.bf16.mxu0 0
  %6225 = vmatpush2.bf16.msra.mxu0 0
  %6226 = vmatprep.subr.bf16.mxu0 0
  %6227 = vmatpush2.bf16.msra.mxu0 0
  %6228 = vmatprep.mubr.bf16.mxu0 0
  %6229 = vmatmul.mubr.bf16.gmra.mxu0 %v5833
  %v6230 = vpop.f32.mrf.mxu0
  %v6231 = vadd.f32 0.0, %v6230
  %v6232 = vpop.f32.mrf.mxu0
  %v6233 = vadd.f32 0.0, %v6232
  %v6234 = vpop.f32.mrf.mxu0
  %v6235 = vadd.f32 0.0, %v6234
  %v6236 = vpop.f32.mrf.mxu0
  %v6237 = vadd.f32 0.0, %v6236
  %6238 = vmatprep.mubr.bf16.mxu0 0
  %6239 = vmatmul.mubr.bf16.gmra.mxu0 %v5836
  %v6240 = vpop.f32.mrf.mxu0
  %v6241 = vadd.f32 0.0, %v6240
  %v6242 = vpop.f32.mrf.mxu0
  %v6243 = vadd.f32 0.0, %v6242
  %v6244 = vpop.f32.mrf.mxu0
  %v6245 = vadd.f32 0.0, %v6244
  %v6246 = vpop.f32.mrf.mxu0
  %v6247 = vadd.f32 0.0, %v6246
  %6248 = vmatprep.mubr.bf16.mxu0 0
  %6249 = vmatmul.mubr.bf16.gmra.mxu0 %v5839
  %v6250 = vpop.f32.mrf.mxu0
  %v6251 = vadd.f32 0.0, %v6250
  %v6252 = vpop.f32.mrf.mxu0
  %v6253 = vadd.f32 0.0, %v6252
  %v6254 = vpop.f32.mrf.mxu0
  %v6255 = vadd.f32 0.0, %v6254
  %v6256 = vpop.f32.mrf.mxu0
  %v6257 = vadd.f32 0.0, %v6256
  %6258 = vmatprep.mubr.bf16.mxu0 0
  %6259 = vmatmul.mubr.bf16.gmra.mxu0 %v5842
  %v6260 = vpop.f32.mrf.mxu0
  %v6261 = vadd.f32 0.0, %v6260
  %v6262 = vpop.f32.mrf.mxu0
  %v6263 = vadd.f32 0.0, %v6262
  %v6264 = vpop.f32.mrf.mxu0
  %v6265 = vadd.f32 0.0, %v6264
  %v6266 = vpop.f32.mrf.mxu0
  %v6267 = vadd.f32 0.0, %v6266
  %6268 = vdwg.mxu0
  %v6269 = vpack.c.bf16 %v5890, %v5886
  %v6270 = vpack.c.bf16 %v5892, %v5888
  %v6271 = vpack.c.bf16 %v5900, %v5896
  %v6272 = vpack.c.bf16 %v5902, %v5898
  %v6273 = vpack.c.bf16 %v5910, %v5906
  %v6274 = vpack.c.bf16 %v5912, %v5908
  %v6275 = vpack.c.bf16 %v5920, %v5916
  %v6276 = vpack.c.bf16 %v5922, %v5918
  %v6277 = vpack.c.bf16 %v6005, %v6001
  %v6278 = vpack.c.bf16 %v6007, %v6003
  %v6279 = vpack.c.bf16 %v6015, %v6011
  %v6280 = vpack.c.bf16 %v6017, %v6013
  %v6281 = vpack.c.bf16 %v6025, %v6021
  %v6282 = vpack.c.bf16 %v6027, %v6023
  %v6283 = vpack.c.bf16 %v6035, %v6031
  %v6284 = vpack.c.bf16 %v6037, %v6033
  %v6285 = vpack.c.bf16 %v6120, %v6116
  %v6286 = vpack.c.bf16 %v6122, %v6118
  %v6287 = vpack.c.bf16 %v6130, %v6126
  %v6288 = vpack.c.bf16 %v6132, %v6128
  %v6289 = vpack.c.bf16 %v6140, %v6136
  %v6290 = vpack.c.bf16 %v6142, %v6138
  %v6291 = vpack.c.bf16 %v6150, %v6146
  %v6292 = vpack.c.bf16 %v6152, %v6148
  %v6293 = vpack.c.bf16 %v6235, %v6231
  %v6294 = vpack.c.bf16 %v6237, %v6233
  %v6295 = vpack.c.bf16 %v6245, %v6241
  %v6296 = vpack.c.bf16 %v6247, %v6243
  %v6297 = vpack.c.bf16 %v6255, %v6251
  %v6298 = vpack.c.bf16 %v6257, %v6253
  %v6299 = vpack.c.bf16 %v6265, %v6261
  %v6300 = vpack.c.bf16 %v6267, %v6263
  %v6301 = vld [vmem:[%s19] sm:$0xff]
  %s6302 = scalar_lea.vmem %s19, 8
  %v6303 = vld [vmem:[%s6302] sm:$0xff]
  %v6305 = vunpack.c.l.b16 %v6303
  %v6306 = vunpack.c.h.b16 %v6303
  %v6307 = vpack.c.b16 %v6305, %v6305
  %v6308 = vpack.c.b16 %v6306, %v6306
  %6343 = vrot.lane.b32.xlu0 %v6269, 126
  %v6344 = vpop.permute.xlu0 %6343
  %6345 = vrot.lane.b32.xlu0 %v6270, 126
  %v6346 = vpop.permute.xlu0 %6345
  %6347 = vrot.lane.b32.xlu0 %v6271, 126
  %v6348 = vpop.permute.xlu0 %6347
  %6349 = vrot.lane.b32.xlu0 %v6272, 126
  %v6350 = vpop.permute.xlu0 %6349
  %6351 = vrot.lane.b32.xlu0 %v6273, 126
  %v6352 = vpop.permute.xlu0 %6351
  %6353 = vrot.lane.b32.xlu0 %v6274, 126
  %v6354 = vpop.permute.xlu0 %6353
  %6355 = vrot.lane.b32.xlu0 %v6275, 126
  %v6356 = vpop.permute.xlu0 %6355
  %6357 = vrot.lane.b32.xlu0 %v6276, 126
  %v6358 = vpop.permute.xlu0 %6357
  %6359 = vrot.lane.b32.xlu0 %v6277, 126
  %v6360 = vpop.permute.xlu0 %6359
  %6361 = vrot.lane.b32.xlu0 %v6278, 126
  %v6362 = vpop.permute.xlu0 %6361
  %6363 = vrot.lane.b32.xlu0 %v6279, 126
  %v6364 = vpop.permute.xlu0 %6363
  %6365 = vrot.lane.b32.xlu0 %v6280, 126
  %v6366 = vpop.permute.xlu0 %6365
  %6367 = vrot.lane.b32.xlu0 %v6281, 126
  %v6368 = vpop.permute.xlu0 %6367
  %6369 = vrot.lane.b32.xlu0 %v6282, 126
  %v6370 = vpop.permute.xlu0 %6369
  %6371 = vrot.lane.b32.xlu0 %v6283, 126
  %v6372 = vpop.permute.xlu0 %6371
  %6373 = vrot.lane.b32.xlu0 %v6284, 126
  %v6374 = vpop.permute.xlu0 %6373
  %6375 = vrot.lane.b32.xlu0 %v6285, 126
  %v6376 = vpop.permute.xlu0 %6375
  %6377 = vrot.lane.b32.xlu0 %v6286, 126
  %v6378 = vpop.permute.xlu0 %6377
  %6379 = vrot.lane.b32.xlu0 %v6287, 126
  %v6380 = vpop.permute.xlu0 %6379
  %6381 = vrot.lane.b32.xlu0 %v6288, 126
  %v6382 = vpop.permute.xlu0 %6381
  %6383 = vrot.lane.b32.xlu0 %v6289, 126
  %v6384 = vpop.permute.xlu0 %6383
  %6385 = vrot.lane.b32.xlu0 %v6290, 126
  %v6386 = vpop.permute.xlu0 %6385
  %6387 = vrot.lane.b32.xlu0 %v6291, 126
  %v6388 = vpop.permute.xlu0 %6387
  %6389 = vrot.lane.b32.xlu0 %v6292, 126
  %v6390 = vpop.permute.xlu0 %6389
  %6391 = vrot.lane.b32.xlu0 %v6293, 126
  %v6392 = vpop.permute.xlu0 %6391
  %6393 = vrot.lane.b32.xlu0 %v6294, 126
  %v6394 = vpop.permute.xlu0 %6393
  %6395 = vrot.lane.b32.xlu0 %v6295, 126
  %v6396 = vpop.permute.xlu0 %6395
  %6397 = vrot.lane.b32.xlu0 %v6296, 126
  %v6398 = vpop.permute.xlu0 %6397
  %6399 = vrot.lane.b32.xlu0 %v6297, 126
  %v6400 = vpop.permute.xlu0 %6399
  %6401 = vrot.lane.b32.xlu0 %v6298, 126
  %v6402 = vpop.permute.xlu0 %6401
  %6403 = vrot.lane.b32.xlu0 %v6299, 126
  %v6404 = vpop.permute.xlu0 %6403
  %6405 = vrot.lane.b32.xlu0 %v6300, 126
  %v6406 = vpop.permute.xlu0 %6405
  %v6407 = vsel %vm1196, %v6344, %v6346
  %v6408 = vsel %vm1196, %v6348, %v6350
  %v6409 = vsel %vm1196, %v6352, %v6354
  %v6410 = vsel %vm1196, %v6356, %v6358
  %v6411 = vsel %vm1196, %v6360, %v6362
  %v6412 = vsel %vm1196, %v6364, %v6366
  %v6413 = vsel %vm1196, %v6368, %v6370
  %v6414 = vsel %vm1196, %v6372, %v6374
  %v6415 = vsel %vm1196, %v6376, %v6378
  %v6416 = vsel %vm1196, %v6380, %v6382
  %v6417 = vsel %vm1196, %v6384, %v6386
  %v6418 = vsel %vm1196, %v6388, %v6390
  %v6419 = vsel %vm1196, %v6392, %v6394
  %v6420 = vsel %vm1196, %v6396, %v6398
  %v6421 = vsel %vm1196, %v6400, %v6402
  %v6422 = vsel %vm1196, %v6404, %v6406
  %6439 = vmatprep.subr.bf16.mxu0 0
  %6440 = vmatpush1.bf16.msra.mxu0 %v6414
  %6441 = vmatprep.subr.bf16.mxu0 0
  %6442 = vmatpush1.bf16.msra.mxu0 %v6413
  %6443 = vmatprep.subr.bf16.mxu0 0
  %6444 = vmatpush1.bf16.msra.mxu0 %v6412
  %6445 = vmatprep.subr.bf16.mxu0 0
  %6446 = vmatpush1.bf16.msra.mxu0 %v6411
  %6447 = vmatprep.subr.bf16.mxu0 0
  %6448 = vmatpush1.bf16.msra.mxu0 %v6410
  %6449 = vmatprep.subr.bf16.mxu0 0
  %6450 = vmatpush1.bf16.msra.mxu0 %v6409
  %6451 = vmatprep.subr.bf16.mxu0 0
  %6452 = vmatpush1.bf16.msra.mxu0 %v6408
  %6453 = vmatprep.subr.bf16.mxu0 0
  %6454 = vmatpush1.bf16.msra.mxu0 %v6407
  %6455 = vmatprep.subr.bf16.mxu0 0
  %6456 = vmatpush2.bf16.msra.mxu0 %v6422
  %6457 = vmatprep.subr.bf16.mxu0 0
  %6458 = vmatpush2.bf16.msra.mxu0 %v6421
  %6459 = vmatprep.subr.bf16.mxu0 0
  %6460 = vmatpush2.bf16.msra.mxu0 %v6420
  %6461 = vmatprep.subr.bf16.mxu0 0
  %6462 = vmatpush2.bf16.msra.mxu0 %v6419
  %6463 = vmatprep.subr.bf16.mxu0 0
  %6464 = vmatpush2.bf16.msra.mxu0 %v6418
  %6465 = vmatprep.subr.bf16.mxu0 0
  %6466 = vmatpush2.bf16.msra.mxu0 %v6417
  %6467 = vmatprep.subr.bf16.mxu0 0
  %6468 = vmatpush2.bf16.msra.mxu0 %v6416
  %6469 = vmatprep.subr.bf16.mxu0 0
  %6470 = vmatpush2.bf16.msra.mxu0 %v6415
  %6471 = vmatprep.mubr.bf16.mxu0 %v6308
  %6472 = vmatmul.mubr.bf16.gmra.mxu0 %v6307
  %v6473 = vpop.f32.mrf.mxu0
  %v6474 = vadd.f32 0.0, %v6473
  %v6475 = vpop.f32.mrf.mxu0
  %v6476 = vpop.f32.mrf.mxu0
  %v6477 = vpop.f32.mrf.mxu0
  %6478 = vdwg.mxu0
  %v6480 = vunpack.c.l.b16 %v6301
  %v6481 = vunpack.c.h.b16 %v6301
  %v6482 = vpack.c.b16 %v6480, %v6480
  %v6483 = vpack.c.b16 %v6481, %v6481
  %6486 = vmatprep.subr.bf16.mxu0 0
  %6487 = vmatpush1.bf16.msra.mxu0 %v6283
  %6488 = vmatprep.subr.bf16.mxu0 0
  %6489 = vmatpush1.bf16.msra.mxu0 %v6281
  %6490 = vmatprep.subr.bf16.mxu0 0
  %6491 = vmatpush1.bf16.msra.mxu0 %v6279
  %6492 = vmatprep.subr.bf16.mxu0 0
  %6493 = vmatpush1.bf16.msra.mxu0 %v6277
  %6494 = vmatprep.subr.bf16.mxu0 0
  %6495 = vmatpush1.bf16.msra.mxu0 %v6275
  %6496 = vmatprep.subr.bf16.mxu0 0
  %6497 = vmatpush1.bf16.msra.mxu0 %v6273
  %6498 = vmatprep.subr.bf16.mxu0 0
  %6499 = vmatpush1.bf16.msra.mxu0 %v6271
  %6500 = vmatprep.subr.bf16.mxu0 0
  %6501 = vmatpush1.bf16.msra.mxu0 %v6269
  %6502 = vmatprep.subr.bf16.mxu0 0
  %6503 = vmatpush2.bf16.msra.mxu0 %v6299
  %6504 = vmatprep.subr.bf16.mxu0 0
  %6505 = vmatpush2.bf16.msra.mxu0 %v6297
  %6506 = vmatprep.subr.bf16.mxu0 0
  %6507 = vmatpush2.bf16.msra.mxu0 %v6295
  %6508 = vmatprep.subr.bf16.mxu0 0
  %6509 = vmatpush2.bf16.msra.mxu0 %v6293
  %6510 = vmatprep.subr.bf16.mxu0 0
  %6511 = vmatpush2.bf16.msra.mxu0 %v6291
  %6512 = vmatprep.subr.bf16.mxu0 0
  %6513 = vmatpush2.bf16.msra.mxu0 %v6289
  %6514 = vmatprep.subr.bf16.mxu0 0
  %6515 = vmatpush2.bf16.msra.mxu0 %v6287
  %6516 = vmatprep.subr.bf16.mxu0 0
  %6517 = vmatpush2.bf16.msra.mxu0 %v6285
  %6518 = vmatprep.mubr.bf16.mxu0 %v6483
  %6519 = vmatmul.mubr.bf16.gmra.mxu0 %v6482
  %v6520 = vpop.f32.mrf.mxu0
  %v6521 = vadd.f32 %v6474, %v6520
  %v6522 = vpop.f32.mrf.mxu0
  %v6523 = vpop.f32.mrf.mxu0
  %v6524 = vpop.f32.mrf.mxu0
  %6525 = vdwg.mxu0
  %s6526 = scalar_lea.vmem %s19, 16
  %v6527 = vld [vmem:[%s6526] sm:$0xff]
  %v6529 = vunpack.c.l.b16 %v6527
  %v6530 = vunpack.c.h.b16 %v6527
  %v6531 = vpack.c.b16 %v6529, %v6529
  %v6532 = vpack.c.b16 %v6530, %v6530
  %6535 = vrot.lane.b32.xlu0 %v6269, 124
  %v6536 = vpop.permute.xlu0 %6535
  %6537 = vrot.lane.b32.xlu0 %v6270, 124
  %v6538 = vpop.permute.xlu0 %6537
  %6539 = vrot.lane.b32.xlu0 %v6271, 124
  %v6540 = vpop.permute.xlu0 %6539
  %6541 = vrot.lane.b32.xlu0 %v6272, 124
  %v6542 = vpop.permute.xlu0 %6541
  %6543 = vrot.lane.b32.xlu0 %v6273, 124
  %v6544 = vpop.permute.xlu0 %6543
  %6545 = vrot.lane.b32.xlu0 %v6274, 124
  %v6546 = vpop.permute.xlu0 %6545
  %6547 = vrot.lane.b32.xlu0 %v6275, 124
  %v6548 = vpop.permute.xlu0 %6547
  %6549 = vrot.lane.b32.xlu0 %v6276, 124
  %v6550 = vpop.permute.xlu0 %6549
  %6551 = vrot.lane.b32.xlu0 %v6277, 124
  %v6552 = vpop.permute.xlu0 %6551
  %6553 = vrot.lane.b32.xlu0 %v6278, 124
  %v6554 = vpop.permute.xlu0 %6553
  %6555 = vrot.lane.b32.xlu0 %v6279, 124
  %v6556 = vpop.permute.xlu0 %6555
  %6557 = vrot.lane.b32.xlu0 %v6280, 124
  %v6558 = vpop.permute.xlu0 %6557
  %6559 = vrot.lane.b32.xlu0 %v6281, 124
  %v6560 = vpop.permute.xlu0 %6559
  %6561 = vrot.lane.b32.xlu0 %v6282, 124
  %v6562 = vpop.permute.xlu0 %6561
  %6563 = vrot.lane.b32.xlu0 %v6283, 124
  %v6564 = vpop.permute.xlu0 %6563
  %6565 = vrot.lane.b32.xlu0 %v6284, 124
  %v6566 = vpop.permute.xlu0 %6565
  %6567 = vrot.lane.b32.xlu0 %v6285, 124
  %v6568 = vpop.permute.xlu0 %6567
  %6569 = vrot.lane.b32.xlu0 %v6286, 124
  %v6570 = vpop.permute.xlu0 %6569
  %6571 = vrot.lane.b32.xlu0 %v6287, 124
  %v6572 = vpop.permute.xlu0 %6571
  %6573 = vrot.lane.b32.xlu0 %v6288, 124
  %v6574 = vpop.permute.xlu0 %6573
  %6575 = vrot.lane.b32.xlu0 %v6289, 124
  %v6576 = vpop.permute.xlu0 %6575
  %6577 = vrot.lane.b32.xlu0 %v6290, 124
  %v6578 = vpop.permute.xlu0 %6577
  %6579 = vrot.lane.b32.xlu0 %v6291, 124
  %v6580 = vpop.permute.xlu0 %6579
  %6581 = vrot.lane.b32.xlu0 %v6292, 124
  %v6582 = vpop.permute.xlu0 %6581
  %6583 = vrot.lane.b32.xlu0 %v6293, 124
  %v6584 = vpop.permute.xlu0 %6583
  %6585 = vrot.lane.b32.xlu0 %v6294, 124
  %v6586 = vpop.permute.xlu0 %6585
  %6587 = vrot.lane.b32.xlu0 %v6295, 124
  %v6588 = vpop.permute.xlu0 %6587
  %6589 = vrot.lane.b32.xlu0 %v6296, 124
  %v6590 = vpop.permute.xlu0 %6589
  %6591 = vrot.lane.b32.xlu0 %v6297, 124
  %v6592 = vpop.permute.xlu0 %6591
  %6593 = vrot.lane.b32.xlu0 %v6298, 124
  %v6594 = vpop.permute.xlu0 %6593
  %6595 = vrot.lane.b32.xlu0 %v6299, 124
  %v6596 = vpop.permute.xlu0 %6595
  %6597 = vrot.lane.b32.xlu0 %v6300, 124
  %v6598 = vpop.permute.xlu0 %6597
  %vm6599 = vcmask 1014784
  %v6600 = vsel %vm6599, %v6536, %v6538
  %v6601 = vsel %vm6599, %v6540, %v6542
  %v6602 = vsel %vm6599, %v6544, %v6546
  %v6603 = vsel %vm6599, %v6548, %v6550
  %v6604 = vsel %vm6599, %v6552, %v6554
  %v6605 = vsel %vm6599, %v6556, %v6558
  %v6606 = vsel %vm6599, %v6560, %v6562
  %v6607 = vsel %vm6599, %v6564, %v6566
  %v6608 = vsel %vm6599, %v6568, %v6570
  %v6609 = vsel %vm6599, %v6572, %v6574
  %v6610 = vsel %vm6599, %v6576, %v6578
  %v6611 = vsel %vm6599, %v6580, %v6582
  %v6612 = vsel %vm6599, %v6584, %v6586
  %v6613 = vsel %vm6599, %v6588, %v6590
  %v6614 = vsel %vm6599, %v6592, %v6594
  %v6615 = vsel %vm6599, %v6596, %v6598
  %6632 = vmatprep.subr.bf16.mxu0 0
  %6633 = vmatpush1.bf16.msra.mxu0 %v6607
  %6634 = vmatprep.subr.bf16.mxu0 0
  %6635 = vmatpush1.bf16.msra.mxu0 %v6606
  %6636 = vmatprep.subr.bf16.mxu0 0
  %6637 = vmatpush1.bf16.msra.mxu0 %v6605
  %6638 = vmatprep.subr.bf16.mxu0 0
  %6639 = vmatpush1.bf16.msra.mxu0 %v6604
  %6640 = vmatprep.subr.bf16.mxu0 0
  %6641 = vmatpush1.bf16.msra.mxu0 %v6603
  %6642 = vmatprep.subr.bf16.mxu0 0
  %6643 = vmatpush1.bf16.msra.mxu0 %v6602
  %6644 = vmatprep.subr.bf16.mxu0 0
  %6645 = vmatpush1.bf16.msra.mxu0 %v6601
  %6646 = vmatprep.subr.bf16.mxu0 0
  %6647 = vmatpush1.bf16.msra.mxu0 %v6600
  %6648 = vmatprep.subr.bf16.mxu0 0
  %6649 = vmatpush2.bf16.msra.mxu0 %v6615
  %6650 = vmatprep.subr.bf16.mxu0 0
  %6651 = vmatpush2.bf16.msra.mxu0 %v6614
  %6652 = vmatprep.subr.bf16.mxu0 0
  %6653 = vmatpush2.bf16.msra.mxu0 %v6613
  %6654 = vmatprep.subr.bf16.mxu0 0
  %6655 = vmatpush2.bf16.msra.mxu0 %v6612
  %6656 = vmatprep.subr.bf16.mxu0 0
  %6657 = vmatpush2.bf16.msra.mxu0 %v6611
  %6658 = vmatprep.subr.bf16.mxu0 0
  %6659 = vmatpush2.bf16.msra.mxu0 %v6610
  %6660 = vmatprep.subr.bf16.mxu0 0
  %6661 = vmatpush2.bf16.msra.mxu0 %v6609
  %6662 = vmatprep.subr.bf16.mxu0 0
  %6663 = vmatpush2.bf16.msra.mxu0 %v6608
  %6664 = vmatprep.mubr.bf16.mxu0 %v6532
  %6665 = vmatmul.mubr.bf16.gmra.mxu0 %v6531
  %v6666 = vpop.f32.mrf.mxu0
  %v6667 = vadd.f32 0.0, %v6666
  %v6668 = vpop.f32.mrf.mxu0
  %v6669 = vpop.f32.mrf.mxu0
  %v6670 = vpop.f32.mrf.mxu0
  %6671 = vdwg.mxu0
  %v6672 = vadd.f32 %v6521, %v6667
  %s6673 = scalar_lea.vmem %s19, 24
  %v6674 = vld [vmem:[%s6673] sm:$0xff]
  %v6676 = vunpack.c.l.b16 %v6674
  %v6677 = vunpack.c.h.b16 %v6674
  %v6678 = vpack.c.b16 %v6676, %v6676
  %v6679 = vpack.c.b16 %v6677, %v6677
  %6682 = vrot.lane.b32.xlu0 %v6269, 122
  %v6683 = vpop.permute.xlu0 %6682
  %6684 = vrot.lane.b32.xlu0 %v6270, 122
  %v6685 = vpop.permute.xlu0 %6684
  %6686 = vrot.lane.b32.xlu0 %v6271, 122
  %v6687 = vpop.permute.xlu0 %6686
  %6688 = vrot.lane.b32.xlu0 %v6272, 122
  %v6689 = vpop.permute.xlu0 %6688
  %6690 = vrot.lane.b32.xlu0 %v6273, 122
  %v6691 = vpop.permute.xlu0 %6690
  %6692 = vrot.lane.b32.xlu0 %v6274, 122
  %v6693 = vpop.permute.xlu0 %6692
  %6694 = vrot.lane.b32.xlu0 %v6275, 122
  %v6695 = vpop.permute.xlu0 %6694
  %6696 = vrot.lane.b32.xlu0 %v6276, 122
  %v6697 = vpop.permute.xlu0 %6696
  %6698 = vrot.lane.b32.xlu0 %v6277, 122
  %v6699 = vpop.permute.xlu0 %6698
  %6700 = vrot.lane.b32.xlu0 %v6278, 122
  %v6701 = vpop.permute.xlu0 %6700
  %6702 = vrot.lane.b32.xlu0 %v6279, 122
  %v6703 = vpop.permute.xlu0 %6702
  %6704 = vrot.lane.b32.xlu0 %v6280, 122
  %v6705 = vpop.permute.xlu0 %6704
  %6706 = vrot.lane.b32.xlu0 %v6281, 122
  %v6707 = vpop.permute.xlu0 %6706
  %6708 = vrot.lane.b32.xlu0 %v6282, 122
  %v6709 = vpop.permute.xlu0 %6708
  %6710 = vrot.lane.b32.xlu0 %v6283, 122
  %v6711 = vpop.permute.xlu0 %6710
  %6712 = vrot.lane.b32.xlu0 %v6284, 122
  %v6713 = vpop.permute.xlu0 %6712
  %6714 = vrot.lane.b32.xlu0 %v6285, 122
  %v6715 = vpop.permute.xlu0 %6714
  %6716 = vrot.lane.b32.xlu0 %v6286, 122
  %v6717 = vpop.permute.xlu0 %6716
  %6718 = vrot.lane.b32.xlu0 %v6287, 122
  %v6719 = vpop.permute.xlu0 %6718
  %6720 = vrot.lane.b32.xlu0 %v6288, 122
  %v6721 = vpop.permute.xlu0 %6720
  %6722 = vrot.lane.b32.xlu0 %v6289, 122
  %v6723 = vpop.permute.xlu0 %6722
  %6724 = vrot.lane.b32.xlu0 %v6290, 122
  %v6725 = vpop.permute.xlu0 %6724
  %6726 = vrot.lane.b32.xlu0 %v6291, 122
  %v6727 = vpop.permute.xlu0 %6726
  %6728 = vrot.lane.b32.xlu0 %v6292, 122
  %v6729 = vpop.permute.xlu0 %6728
  %6730 = vrot.lane.b32.xlu0 %v6293, 122
  %v6731 = vpop.permute.xlu0 %6730
  %6732 = vrot.lane.b32.xlu0 %v6294, 122
  %v6733 = vpop.permute.xlu0 %6732
  %6734 = vrot.lane.b32.xlu0 %v6295, 122
  %v6735 = vpop.permute.xlu0 %6734
  %6736 = vrot.lane.b32.xlu0 %v6296, 122
  %v6737 = vpop.permute.xlu0 %6736
  %6738 = vrot.lane.b32.xlu0 %v6297, 122
  %v6739 = vpop.permute.xlu0 %6738
  %6740 = vrot.lane.b32.xlu0 %v6298, 122
  %v6741 = vpop.permute.xlu0 %6740
  %6742 = vrot.lane.b32.xlu0 %v6299, 122
  %v6743 = vpop.permute.xlu0 %6742
  %6744 = vrot.lane.b32.xlu0 %v6300, 122
  %v6745 = vpop.permute.xlu0 %6744
  %vm6746 = vcmask 998400
  %v6747 = vsel %vm6746, %v6683, %v6685
  %v6748 = vsel %vm6746, %v6687, %v6689
  %v6749 = vsel %vm6746, %v6691, %v6693
  %v6750 = vsel %vm6746, %v6695, %v6697
  %v6751 = vsel %vm6746, %v6699, %v6701
  %v6752 = vsel %vm6746, %v6703, %v6705
  %v6753 = vsel %vm6746, %v6707, %v6709
  %v6754 = vsel %vm6746, %v6711, %v6713
  %v6755 = vsel %vm6746, %v6715, %v6717
  %v6756 = vsel %vm6746, %v6719, %v6721
  %v6757 = vsel %vm6746, %v6723, %v6725
  %v6758 = vsel %vm6746, %v6727, %v6729
  %v6759 = vsel %vm6746, %v6731, %v6733
  %v6760 = vsel %vm6746, %v6735, %v6737
  %v6761 = vsel %vm6746, %v6739, %v6741
  %v6762 = vsel %vm6746, %v6743, %v6745
  %6779 = vmatprep.subr.bf16.mxu0 0
  %6780 = vmatpush1.bf16.msra.mxu0 %v6754
  %6781 = vmatprep.subr.bf16.mxu0 0
  %6782 = vmatpush1.bf16.msra.mxu0 %v6753
  %6783 = vmatprep.subr.bf16.mxu0 0
  %6784 = vmatpush1.bf16.msra.mxu0 %v6752
  %6785 = vmatprep.subr.bf16.mxu0 0
  %6786 = vmatpush1.bf16.msra.mxu0 %v6751
  %6787 = vmatprep.subr.bf16.mxu0 0
  %6788 = vmatpush1.bf16.msra.mxu0 %v6750
  %6789 = vmatprep.subr.bf16.mxu0 0
  %6790 = vmatpush1.bf16.msra.mxu0 %v6749
  %6791 = vmatprep.subr.bf16.mxu0 0
  %6792 = vmatpush1.bf16.msra.mxu0 %v6748
  %6793 = vmatprep.subr.bf16.mxu0 0
  %6794 = vmatpush1.bf16.msra.mxu0 %v6747
  %6795 = vmatprep.subr.bf16.mxu0 0
  %6796 = vmatpush2.bf16.msra.mxu0 %v6762
  %6797 = vmatprep.subr.bf16.mxu0 0
  %6798 = vmatpush2.bf16.msra.mxu0 %v6761
  %6799 = vmatprep.subr.bf16.mxu0 0
  %6800 = vmatpush2.bf16.msra.mxu0 %v6760
  %6801 = vmatprep.subr.bf16.mxu0 0
  %6802 = vmatpush2.bf16.msra.mxu0 %v6759
  %6803 = vmatprep.subr.bf16.mxu0 0
  %6804 = vmatpush2.bf16.msra.mxu0 %v6758
  %6805 = vmatprep.subr.bf16.mxu0 0
  %6806 = vmatpush2.bf16.msra.mxu0 %v6757
  %6807 = vmatprep.subr.bf16.mxu0 0
  %6808 = vmatpush2.bf16.msra.mxu0 %v6756
  %6809 = vmatprep.subr.bf16.mxu0 0
  %6810 = vmatpush2.bf16.msra.mxu0 %v6755
  %6811 = vmatprep.mubr.bf16.mxu0 %v6679
  %6812 = vmatmul.mubr.bf16.gmra.mxu0 %v6678
  %v6813 = vpop.f32.mrf.mxu0
  %v6814 = vadd.f32 0.0, %v6813
  %v6815 = vpop.f32.mrf.mxu0
  %v6816 = vpop.f32.mrf.mxu0
  %v6817 = vpop.f32.mrf.mxu0
  %6818 = vdwg.mxu0
  %v6819 = vadd.f32 %v6672, %v6814
  %v6820 = vld [vmem:[%s20] sm:$0xff]
  %6822 = vset.pattern.permute.xlu0 0
  %6823 = vperm.xlu0 %6822, %v6820
  %v6824 = vpop.permute.xlu0 %6823
  %v6826 = vadd.f32 %v6819, %v6824
  %v6827 = vxor.u32 %v6826, 2147483648
  %v6828 = vmul.f32 %v6827, 1.442695
  %v6829 = vpow.pop %v6828
  %v6830 = vadd.f32 %v6829, 1.0
  %v6831 = vrcp.pop %v6830
  %v6832 = vmul.f32 1.0, %v6831
  %6833 = vst [vmem:[%s21] sm:$0xff] %v6832
  // Predicated region
  $region86: #{discriminator_forward.1} parent=0 // pred_check
    _
  $region87: #{discriminator_forward.1} parent=0 // pred_check_branch
    %6835 = sbr.rel (0) target = $region89
  $region88: #{discriminator_forward.1} parent=0 // pred_region
    _
  $region89: #{discriminator_forward.1} parent=0 // pred_fallthru
    _
  // Predicated region
  $region90: #{discriminator_forward.1} parent=0 // pred_check
    _
  $region91: #{discriminator_forward.1} parent=0 // pred_check_branch
    %6837 = sbr.rel (0) target = $region93
  $region92: #{discriminator_forward.1} parent=0 // pred_region
    _
  $region93: #{discriminator_forward.1} parent=0 // pred_fallthru
    _

</llo_original>
